<compile_context>
chip_gen: v7x
topology: tpu7x:2x2x1
jax: 0.10.0
libtpu: 0.0.40
codegen_flags: <defaults>
</compile_context>

<pallas_src>
import jax
import jax.numpy as jnp
from jax import lax
from jax.experimental import pallas as pl
from jax.experimental.pallas import tpu as pltpu

EMBED = 64
HIDDEN = 128
DEC_STEPS = 20
START_TOKEN = 3
NEG_INF = -1e30


def seq2seq_kernel(xw_ref,       # (T, Bp, 128)   projected encoder input (W_ih x + b), time-major
                   enc_whh_ref,  # (128, 128)     encoder W_hh (pre-transposed for h @ W)
                   m_ref,        # (Vp, 128)      dec_emb @ dec_W_ih + dec_b  (rows = tokens)
                   whh_fc_ref,   # (128, 128+Vp)  [dec_W_hh | fc_W]  (both pre-transposed)
                   fc_b_ref,     # (1, Vp)        fc bias, padded lanes carry -1e30
                   out_ref):     # (20, Bp, Vp)   logits per decode step (lane-dense)
    T, B, _ = xw_ref.shape
    Vp = fc_b_ref.shape[1]

    # ---------------- Encoder ----------------
    # Serial chain per step: one MXU matmul + add + tanh.  Weight read at its use site so it is
    # not pinned in vregs across the unrolled decoder body.
    def enc_step(t, h):
        return jnp.tanh(xw_ref[t] + jnp.dot(h, enc_whh_ref[...],
                                            preferred_element_type=jnp.float32))

    h_enc = lax.fori_loop(0, T, enc_step,
                          jnp.zeros((B, HIDDEN), jnp.float32), unroll=True)

    # ---------------- Greedy decoder, 20 steps ----------------
    # Hoisted (1 vreg each): bias broadcast and lane-id iota (JAX does not CSE broadcast_in_dim).
    fc_b = jnp.broadcast_to(fc_b_ref[...], (B, Vp))
    lane = lax.broadcasted_iota(jnp.int32, (B, Vp), 1)
    onehot0 = (lane == START_TOKEN).astype(jnp.float32)            # start token = 3

    # hW carry initialisation: h_enc @ dec_W_hh via a static slice of the fused RHS.
    hw0 = jnp.dot(h_enc, whh_fc_ref[:, :HIDDEN], preferred_element_type=jnp.float32)

    def dec_step(t, carry):
        hw, onehot = carry
        # h_{t+1} = tanh(onehot @ M + h_t @ W_hh)   (second matmul carried from previous step)
        h = jnp.tanh(jnp.dot(onehot, m_ref[...], preferred_element_type=jnp.float32) + hw)
        # One fused MXU matmul produces both the next-step recurrence term and the FC logits.
        fused = jnp.dot(h, whh_fc_ref[...], preferred_element_type=jnp.float32)  # (Bp, 128+Vp)
        logits = fused[:, HIDDEN:] + fc_b                                          # (Bp, Vp)
        out_ref[t] = logits                                  # full-lane, unmasked store
        # argmax(-1) as "first index achieving the row max"; padded lanes hold -1e30.
        mx = jnp.max(logits, axis=-1, keepdims=True)
        idx = jnp.min(jnp.where(logits == mx, lane, Vp), axis=-1, keepdims=True)
        onehot = (lane == idx).astype(jnp.float32)
        return (fused[:, :HIDDEN], onehot)

    lax.fori_loop(0, DEC_STEPS, dec_step, (hw0, onehot0), unroll=True)


def rnn_seq2seq_forward(tokens, params):
    """tokens: (B, T) int32.  Returns logits (B, 20, decoder_vocab)."""
    B, T = tokens.shape
    V = params["fc_w"].shape[1]
    Bp = ((B + 7) // 8) * 8          # f32 sublane granularity
    Vp = ((V + 127) // 128) * 128    # lane-dense output / onehot width

    # Batch padding (padded rows compute garbage, sliced out below; no cross-batch coupling).
    tok_p = jnp.zeros((Bp, T), jnp.int32).at[:B].set(tokens)
    x_emb = params["enc_emb"][tok_p].astype(jnp.float32)                       # (Bp, T, 64)

    # Off-the-serial-path precompute, done by XLA outside the kernel:
    #   encoder input projection (lane-dense 128-wide kernel input)
    xw = jnp.einsum("bte,eh->bth", x_emb, params["enc_wih"]) + params["enc_b"]  # (Bp, T, 128)
    xw_tm = jnp.transpose(xw, (1, 0, 2))                                        # (T, Bp, 128)

    #   fused decoder embedding + input projection (bias folded; padded rows never selected)
    dec_emb_p = jnp.zeros((Vp, EMBED), jnp.float32).at[:V].set(params["dec_emb"])
    m_mat = dec_emb_p @ params["dec_wih"] + params["dec_b"]                     # (Vp, 128)

    #   fused decoder recurrence + FC head RHS; padded fc bias = -1e30 so argmax skips padding.
    fc_w_p = jnp.zeros((HIDDEN, Vp), jnp.float32).at[:, :V].set(params["fc_w"])
    whh_fc = jnp.concatenate([params["dec_whh"], fc_w_p], axis=1)               # (128, 128+Vp)
    fc_b_p = jnp.full((1, Vp), NEG_INF, jnp.float32).at[:, :V].set(params["fc_b"])

    vmem = pl.BlockSpec(memory_space=pltpu.MemorySpace.VMEM)
    out = pl.pallas_call(
        seq2seq_kernel,
        out_shape=jax.ShapeDtypeStruct((DEC_STEPS, Bp, Vp), jnp.float32),
        in_specs=[vmem] * 5,
        out_specs=vmem,
    )(xw_tm, params["enc_whh"], m_mat, whh_fc, fc_b_p)
    return jnp.transpose(out, (1, 0, 2))[:B, :, :V]                             # (B, 20, V)


def reference_forward(tokens, params):
    """Pure-JAX f32 reference mirroring the PyTorch module."""
    x = params["enc_emb"][tokens]                        # (B, T, 64)
    B, T, _ = x.shape
    h = jnp.zeros((B, HIDDEN), jnp.float32)
    for t in range(T):
        h = jnp.tanh(x[:, t] @ params["enc_wih"] + h @ params["enc_whh"] + params["enc_b"])
    dec_in = jnp.full((B,), START_TOKEN, jnp.int32)
    outs = []
    for _ in range(DEC_STEPS):
        e = params["dec_emb"][dec_in]                    # (B, 64)
        h = jnp.tanh(e @ params["dec_wih"] + h @ params["dec_whh"] + params["dec_b"])
        logits = h @ params["fc_w"] + params["fc_b"]
        outs.append(logits)
        dec_in = jnp.argmax(logits, axis=-1)
    return jnp.stack(outs, 1)


def init_params(key, encoder_input_dim, decoder_input_dim):
    ks = jax.random.split(key, 12)
    s = 1.0 / jnp.sqrt(HIDDEN)
    u = lambda k, shape: jax.random.uniform(k, shape, jnp.float32, -s, s)
    return {
        # embeddings ~ N(0, 1) as in nn.Embedding
        "enc_emb": jax.random.normal(ks[0], (encoder_input_dim, EMBED), jnp.float32),
        "dec_emb": jax.random.normal(ks[1], (decoder_input_dim, EMBED), jnp.float32),
        # nn.RNN weights are (H, in); stored pre-transposed for h @ W
        "enc_wih": u(ks[2], (EMBED, HIDDEN)),
        "enc_whh": u(ks[3], (HIDDEN, HIDDEN)),
        "enc_b":   u(ks[4], (1, HIDDEN)) + u(ks[5], (1, HIDDEN)),   # b_ih + b_hh
        "dec_wih": u(ks[6], (EMBED, HIDDEN)),
        "dec_whh": u(ks[7], (HIDDEN, HIDDEN)),
        "dec_b":   u(ks[8], (1, HIDDEN)) + u(ks[9], (1, HIDDEN)),   # independent b_ih + b_hh
        # nn.Linear(128, V): weight (V, 128) -> stored transposed (128, V)
        "fc_w":    u(ks[10], (HIDDEN, decoder_input_dim)),
        "fc_b":    u(ks[11], (1, decoder_input_dim)),
    }


if __name__ == "__main__":
    encoder_input_dim = 50
    decoder_input_dim = 32
    B, T = 4, 8

    key = jax.random.PRNGKey(0)
    kp, kx = jax.random.split(key)
    params = init_params(kp, encoder_input_dim, decoder_input_dim)
    tokens = jax.random.randint(kx, (B, T), 0, encoder_input_dim, jnp.int32)

    out = jax.block_until_ready(rnn_seq2seq_forward(tokens, params))
    ref = jax.block_until_ready(reference_forward(tokens, params))

    assert out.shape == (B, DEC_STEPS, decoder_input_dim), out.shape
    assert jnp.allclose(out, ref, atol=1e-3, rtol=1e-3), float(jnp.max(jnp.abs(out - ref)))
    print("KERNEL_OK")
</pallas_src>

<mosaic_0001>
module attributes {stable_mosaic.version = 11 : i64} {
  func.func @seq2seq_kernel(%arg0: memref<8x8x128xf32, #tpu.memory_space<vmem>>, %arg1: memref<128x128xf32, #tpu.memory_space<vmem>>, %arg2: memref<128x128xf32, #tpu.memory_space<vmem>>, %arg3: memref<128x256xf32, #tpu.memory_space<vmem>>, %arg4: memref<1x128xf32, #tpu.memory_space<vmem>>, %arg5: memref<20x8x128xf32, #tpu.memory_space<vmem>>) attributes {dimension_semantics = [], scalar_prefetch = 0 : i64, scratch_operands = 0 : i64, tpu.core_type = #tpu.core_type<tc>} {
    %cst = arith.constant 0.000000e+00 : f32
    %0 = vector.broadcast %cst : f32 to vector<8x128xf32>
    %c0_i32 = arith.constant 0 : i32
    %1 = arith.index_cast %c0_i32 : i32 to index
    %c0 = arith.constant 0 : index
    %c0_0 = arith.constant 0 : index
    %2 = vector.load %arg0[%1, %c0, %c0_0] : memref<8x8x128xf32, #tpu.memory_space<vmem>>, vector<1x8x128xf32>
    %3 = vector.shape_cast %2 : vector<1x8x128xf32> to vector<8x128xf32>
    %c0_1 = arith.constant 0 : index
    %c0_2 = arith.constant 0 : index
    %4 = vector.load %arg1[%c0_1, %c0_2] : memref<128x128xf32, #tpu.memory_space<vmem>>, vector<128x128xf32>
    %cst_3 = arith.constant dense<0.000000e+00> : vector<8x128xf32>
    %5 = tpu.matmul %0, %4, %cst_3 {dimension_numbers = #tpu.dot_dimension_numbers<[1], [0], [0], [1], [0, 0, 1, 1], [], []>} : vector<8x128xf32>, vector<128x128xf32>, vector<8x128xf32> -> vector<8x128xf32>
    %6 = arith.addf %3, %5 : vector<8x128xf32>
    %7 = math.tanh %6 : vector<8x128xf32>
    %c1_i32 = arith.constant 1 : i32
    %8 = arith.index_cast %c1_i32 : i32 to index
    %c0_4 = arith.constant 0 : index
    %c0_5 = arith.constant 0 : index
    %9 = vector.load %arg0[%8, %c0_4, %c0_5] : memref<8x8x128xf32, #tpu.memory_space<vmem>>, vector<1x8x128xf32>
    %10 = vector.shape_cast %9 : vector<1x8x128xf32> to vector<8x128xf32>
    %c0_6 = arith.constant 0 : index
    %c0_7 = arith.constant 0 : index
    %11 = vector.load %arg1[%c0_6, %c0_7] : memref<128x128xf32, #tpu.memory_space<vmem>>, vector<128x128xf32>
    %cst_8 = arith.constant dense<0.000000e+00> : vector<8x128xf32>
    %12 = tpu.matmul %7, %11, %cst_8 {dimension_numbers = #tpu.dot_dimension_numbers<[1], [0], [0], [1], [0, 0, 1, 1], [], []>} : vector<8x128xf32>, vector<128x128xf32>, vector<8x128xf32> -> vector<8x128xf32>
    %13 = arith.addf %10, %12 : vector<8x128xf32>
    %14 = math.tanh %13 : vector<8x128xf32>
    %c2_i32 = arith.constant 2 : i32
    %15 = arith.index_cast %c2_i32 : i32 to index
    %c0_9 = arith.constant 0 : index
    %c0_10 = arith.constant 0 : index
    %16 = vector.load %arg0[%15, %c0_9, %c0_10] : memref<8x8x128xf32, #tpu.memory_space<vmem>>, vector<1x8x128xf32>
    %17 = vector.shape_cast %16 : vector<1x8x128xf32> to vector<8x128xf32>
    %c0_11 = arith.constant 0 : index
    %c0_12 = arith.constant 0 : index
    %18 = vector.load %arg1[%c0_11, %c0_12] : memref<128x128xf32, #tpu.memory_space<vmem>>, vector<128x128xf32>
    %cst_13 = arith.constant dense<0.000000e+00> : vector<8x128xf32>
    %19 = tpu.matmul %14, %18, %cst_13 {dimension_numbers = #tpu.dot_dimension_numbers<[1], [0], [0], [1], [0, 0, 1, 1], [], []>} : vector<8x128xf32>, vector<128x128xf32>, vector<8x128xf32> -> vector<8x128xf32>
    %20 = arith.addf %17, %19 : vector<8x128xf32>
    %21 = math.tanh %20 : vector<8x128xf32>
    %c3_i32 = arith.constant 3 : i32
    %22 = arith.index_cast %c3_i32 : i32 to index
    %c0_14 = arith.constant 0 : index
    %c0_15 = arith.constant 0 : index
    %23 = vector.load %arg0[%22, %c0_14, %c0_15] : memref<8x8x128xf32, #tpu.memory_space<vmem>>, vector<1x8x128xf32>
    %24 = vector.shape_cast %23 : vector<1x8x128xf32> to vector<8x128xf32>
    %c0_16 = arith.constant 0 : index
    %c0_17 = arith.constant 0 : index
    %25 = vector.load %arg1[%c0_16, %c0_17] : memref<128x128xf32, #tpu.memory_space<vmem>>, vector<128x128xf32>
    %cst_18 = arith.constant dense<0.000000e+00> : vector<8x128xf32>
    %26 = tpu.matmul %21, %25, %cst_18 {dimension_numbers = #tpu.dot_dimension_numbers<[1], [0], [0], [1], [0, 0, 1, 1], [], []>} : vector<8x128xf32>, vector<128x128xf32>, vector<8x128xf32> -> vector<8x128xf32>
    %27 = arith.addf %24, %26 : vector<8x128xf32>
    %28 = math.tanh %27 : vector<8x128xf32>
    %c4_i32 = arith.constant 4 : i32
    %29 = arith.index_cast %c4_i32 : i32 to index
    %c0_19 = arith.constant 0 : index
    %c0_20 = arith.constant 0 : index
    %30 = vector.load %arg0[%29, %c0_19, %c0_20] : memref<8x8x128xf32, #tpu.memory_space<vmem>>, vector<1x8x128xf32>
    %31 = vector.shape_cast %30 : vector<1x8x128xf32> to vector<8x128xf32>
    %c0_21 = arith.constant 0 : index
    %c0_22 = arith.constant 0 : index
    %32 = vector.load %arg1[%c0_21, %c0_22] : memref<128x128xf32, #tpu.memory_space<vmem>>, vector<128x128xf32>
    %cst_23 = arith.constant dense<0.000000e+00> : vector<8x128xf32>
    %33 = tpu.matmul %28, %32, %cst_23 {dimension_numbers = #tpu.dot_dimension_numbers<[1], [0], [0], [1], [0, 0, 1, 1], [], []>} : vector<8x128xf32>, vector<128x128xf32>, vector<8x128xf32> -> vector<8x128xf32>
    %34 = arith.addf %31, %33 : vector<8x128xf32>
    %35 = math.tanh %34 : vector<8x128xf32>
    %c5_i32 = arith.constant 5 : i32
    %36 = arith.index_cast %c5_i32 : i32 to index
    %c0_24 = arith.constant 0 : index
    %c0_25 = arith.constant 0 : index
    %37 = vector.load %arg0[%36, %c0_24, %c0_25] : memref<8x8x128xf32, #tpu.memory_space<vmem>>, vector<1x8x128xf32>
    %38 = vector.shape_cast %37 : vector<1x8x128xf32> to vector<8x128xf32>
    %c0_26 = arith.constant 0 : index
    %c0_27 = arith.constant 0 : index
    %39 = vector.load %arg1[%c0_26, %c0_27] : memref<128x128xf32, #tpu.memory_space<vmem>>, vector<128x128xf32>
    %cst_28 = arith.constant dense<0.000000e+00> : vector<8x128xf32>
    %40 = tpu.matmul %35, %39, %cst_28 {dimension_numbers = #tpu.dot_dimension_numbers<[1], [0], [0], [1], [0, 0, 1, 1], [], []>} : vector<8x128xf32>, vector<128x128xf32>, vector<8x128xf32> -> vector<8x128xf32>
    %41 = arith.addf %38, %40 : vector<8x128xf32>
    %42 = math.tanh %41 : vector<8x128xf32>
    %c6_i32 = arith.constant 6 : i32
    %43 = arith.index_cast %c6_i32 : i32 to index
    %c0_29 = arith.constant 0 : index
    %c0_30 = arith.constant 0 : index
    %44 = vector.load %arg0[%43, %c0_29, %c0_30] : memref<8x8x128xf32, #tpu.memory_space<vmem>>, vector<1x8x128xf32>
    %45 = vector.shape_cast %44 : vector<1x8x128xf32> to vector<8x128xf32>
    %c0_31 = arith.constant 0 : index
    %c0_32 = arith.constant 0 : index
    %46 = vector.load %arg1[%c0_31, %c0_32] : memref<128x128xf32, #tpu.memory_space<vmem>>, vector<128x128xf32>
    %cst_33 = arith.constant dense<0.000000e+00> : vector<8x128xf32>
    %47 = tpu.matmul %42, %46, %cst_33 {dimension_numbers = #tpu.dot_dimension_numbers<[1], [0], [0], [1], [0, 0, 1, 1], [], []>} : vector<8x128xf32>, vector<128x128xf32>, vector<8x128xf32> -> vector<8x128xf32>
    %48 = arith.addf %45, %47 : vector<8x128xf32>
    %49 = math.tanh %48 : vector<8x128xf32>
    %c7_i32 = arith.constant 7 : i32
    %50 = arith.index_cast %c7_i32 : i32 to index
    %c0_34 = arith.constant 0 : index
    %c0_35 = arith.constant 0 : index
    %51 = vector.load %arg0[%50, %c0_34, %c0_35] : memref<8x8x128xf32, #tpu.memory_space<vmem>>, vector<1x8x128xf32>
    %52 = vector.shape_cast %51 : vector<1x8x128xf32> to vector<8x128xf32>
    %c0_36 = arith.constant 0 : index
    %c0_37 = arith.constant 0 : index
    %53 = vector.load %arg1[%c0_36, %c0_37] : memref<128x128xf32, #tpu.memory_space<vmem>>, vector<128x128xf32>
    %cst_38 = arith.constant dense<0.000000e+00> : vector<8x128xf32>
    %54 = tpu.matmul %49, %53, %cst_38 {dimension_numbers = #tpu.dot_dimension_numbers<[1], [0], [0], [1], [0, 0, 1, 1], [], []>} : vector<8x128xf32>, vector<128x128xf32>, vector<8x128xf32> -> vector<8x128xf32>
    %55 = arith.addf %52, %54 : vector<8x128xf32>
    %56 = math.tanh %55 : vector<8x128xf32>
    %c8_i32 = arith.constant 8 : i32
    %c0_39 = arith.constant 0 : index
    %c0_40 = arith.constant 0 : index
    %57 = vector.load %arg4[%c0_39, %c0_40] : memref<1x128xf32, #tpu.memory_space<vmem>>, vector<1x128xf32>
    %58 = vector.shape_cast %57 : vector<1x128xf32> to vector<1x128xf32>
    %59 = vector.broadcast %58 : vector<1x128xf32> to vector<8x128xf32>
    %60 = tpu.iota {dimensions = array<i32: 1>} : vector<8x128xi32>
    %c3_i32_41 = arith.constant 3 : i32
    %61 = vector.broadcast %c3_i32_41 : i32 to vector<8x128xi32>
    %62 = arith.cmpi eq, %60, %61 : vector<8x128xi32>
    %63 = arith.extui %62 : vector<8x128xi1> to vector<8x128xi32>
    %64 = arith.sitofp %63 : vector<8x128xi32> to vector<8x128xf32>
    %c0_42 = arith.constant 0 : index
    %c0_43 = arith.constant 0 : index
    %65 = vector.load %arg3[%c0_42, %c0_43] : memref<128x256xf32, #tpu.memory_space<vmem>>, vector<128x128xf32>
    %cst_44 = arith.constant dense<0.000000e+00> : vector<8x128xf32>
    %66 = tpu.matmul %56, %65, %cst_44 {dimension_numbers = #tpu.dot_dimension_numbers<[1], [0], [0], [1], [0, 0, 1, 1], [], []>} : vector<8x128xf32>, vector<128x128xf32>, vector<8x128xf32> -> vector<8x128xf32>
    %c0_i32_45 = arith.constant 0 : i32
    %c0_46 = arith.constant 0 : index
    %c0_47 = arith.constant 0 : index
    %67 = vector.load %arg2[%c0_46, %c0_47] : memref<128x128xf32, #tpu.memory_space<vmem>>, vector<128x128xf32>
    %cst_48 = arith.constant dense<0.000000e+00> : vector<8x128xf32>
    %68 = tpu.matmul %64, %67, %cst_48 {dimension_numbers = #tpu.dot_dimension_numbers<[1], [0], [0], [1], [0, 0, 1, 1], [], []>} : vector<8x128xf32>, vector<128x128xf32>, vector<8x128xf32> -> vector<8x128xf32>
    %69 = arith.addf %68, %66 : vector<8x128xf32>
    %70 = math.tanh %69 : vector<8x128xf32>
    %c0_49 = arith.constant 0 : index
    %c0_50 = arith.constant 0 : index
    %71 = vector.load %arg3[%c0_49, %c0_50] : memref<128x256xf32, #tpu.memory_space<vmem>>, vector<128x256xf32>
    %cst_51 = arith.constant dense<0.000000e+00> : vector<8x256xf32>
    %72 = tpu.matmul %70, %71, %cst_51 {dimension_numbers = #tpu.dot_dimension_numbers<[1], [0], [0], [1], [0, 0, 1, 1], [], []>} : vector<8x128xf32>, vector<128x256xf32>, vector<8x256xf32> -> vector<8x256xf32>
    %73 = vector.extract_strided_slice %72 {offsets = [0, 128], sizes = [8, 128], strides = [1, 1]} : vector<8x256xf32> to vector<8x128xf32>
    %74 = arith.addf %73, %59 : vector<8x128xf32>
    %75 = arith.index_cast %c0_i32_45 : i32 to index
    %c0_52 = arith.constant 0 : index
    %c0_53 = arith.constant 0 : index
    %76 = vector.load %arg5[%75, %c0_52, %c0_53] : memref<20x8x128xf32, #tpu.memory_space<vmem>>, vector<1x8x128xf32>
    %77 = vector.shape_cast %76 : vector<1x8x128xf32> to vector<8x128xf32>
    %78 = vector.shape_cast %74 : vector<8x128xf32> to vector<1x8x128xf32>
    tpu.vector_store %arg5[%75, %c0_52, %c0_53], %78 {strides = array<i32>} : memref<20x8x128xf32, #tpu.memory_space<vmem>>, vector<1x8x128xf32>,
    %cst_54 = arith.constant dense<0xFF800000> : vector<8xf32>
    %79 = vector.multi_reduction <maximumf>, %74, %cst_54 [1] : vector<8x128xf32> to vector<8xf32>
    %80 = vector.shape_cast %79 : vector<8xf32> to vector<8x1xf32>
    %81 = vector.broadcast %80 : vector<8x1xf32> to vector<8x128xf32>
    %82 = arith.cmpf oeq, %74, %81 : vector<8x128xf32>
    %c128_i32 = arith.constant 128 : i32
    %83 = vector.broadcast %c128_i32 : i32 to vector<8x128xi32>
    %84 = arith.select %82, %60, %83 : vector<8x128xi1>, vector<8x128xi32>
    %cst_55 = arith.constant dense<2147483647> : vector<8xi32>
    %85 = vector.multi_reduction <minsi>, %84, %cst_55 [1] : vector<8x128xi32> to vector<8xi32>
    %86 = vector.shape_cast %85 : vector<8xi32> to vector<8x1xi32>
    %87 = vector.broadcast %86 : vector<8x1xi32> to vector<8x128xi32>
    %88 = arith.cmpi eq, %60, %87 : vector<8x128xi32>
    %89 = arith.extui %88 : vector<8x128xi1> to vector<8x128xi32>
    %90 = arith.sitofp %89 : vector<8x128xi32> to vector<8x128xf32>
    %91 = vector.extract_strided_slice %72 {offsets = [0, 0], sizes = [8, 128], strides = [1, 1]} : vector<8x256xf32> to vector<8x128xf32>
    %c1_i32_56 = arith.constant 1 : i32
    %c0_57 = arith.constant 0 : index
    %c0_58 = arith.constant 0 : index
    %92 = vector.load %arg2[%c0_57, %c0_58] : memref<128x128xf32, #tpu.memory_space<vmem>>, vector<128x128xf32>
    %cst_59 = arith.constant dense<0.000000e+00> : vector<8x128xf32>
    %93 = tpu.matmul %90, %92, %cst_59 {dimension_numbers = #tpu.dot_dimension_numbers<[1], [0], [0], [1], [0, 0, 1, 1], [], []>} : vector<8x128xf32>, vector<128x128xf32>, vector<8x128xf32> -> vector<8x128xf32>
    %94 = arith.addf %93, %91 : vector<8x128xf32>
    %95 = math.tanh %94 : vector<8x128xf32>
    %c0_60 = arith.constant 0 : index
    %c0_61 = arith.constant 0 : index
    %96 = vector.load %arg3[%c0_60, %c0_61] : memref<128x256xf32, #tpu.memory_space<vmem>>, vector<128x256xf32>
    %cst_62 = arith.constant dense<0.000000e+00> : vector<8x256xf32>
    %97 = tpu.matmul %95, %96, %cst_62 {dimension_numbers = #tpu.dot_dimension_numbers<[1], [0], [0], [1], [0, 0, 1, 1], [], []>} : vector<8x128xf32>, vector<128x256xf32>, vector<8x256xf32> -> vector<8x256xf32>
    %98 = vector.extract_strided_slice %97 {offsets = [0, 128], sizes = [8, 128], strides = [1, 1]} : vector<8x256xf32> to vector<8x128xf32>
    %99 = arith.addf %98, %59 : vector<8x128xf32>
    %100 = arith.index_cast %c1_i32_56 : i32 to index
    %c0_63 = arith.constant 0 : index
    %c0_64 = arith.constant 0 : index
    %101 = vector.load %arg5[%100, %c0_63, %c0_64] : memref<20x8x128xf32, #tpu.memory_space<vmem>>, vector<1x8x128xf32>
    %102 = vector.shape_cast %101 : vector<1x8x128xf32> to vector<8x128xf32>
    %103 = vector.shape_cast %99 : vector<8x128xf32> to vector<1x8x128xf32>
    tpu.vector_store %arg5[%100, %c0_63, %c0_64], %103 {strides = array<i32>} : memref<20x8x128xf32, #tpu.memory_space<vmem>>, vector<1x8x128xf32>,
    %cst_65 = arith.constant dense<0xFF800000> : vector<8xf32>
    %104 = vector.multi_reduction <maximumf>, %99, %cst_65 [1] : vector<8x128xf32> to vector<8xf32>
    %105 = vector.shape_cast %104 : vector<8xf32> to vector<8x1xf32>
    %106 = vector.broadcast %105 : vector<8x1xf32> to vector<8x128xf32>
    %107 = arith.cmpf oeq, %99, %106 : vector<8x128xf32>
    %c128_i32_66 = arith.constant 128 : i32
    %108 = vector.broadcast %c128_i32_66 : i32 to vector<8x128xi32>
    %109 = arith.select %107, %60, %108 : vector<8x128xi1>, vector<8x128xi32>
    %cst_67 = arith.constant dense<2147483647> : vector<8xi32>
    %110 = vector.multi_reduction <minsi>, %109, %cst_67 [1] : vector<8x128xi32> to vector<8xi32>
    %111 = vector.shape_cast %110 : vector<8xi32> to vector<8x1xi32>
    %112 = vector.broadcast %111 : vector<8x1xi32> to vector<8x128xi32>
    %113 = arith.cmpi eq, %60, %112 : vector<8x128xi32>
    %114 = arith.extui %113 : vector<8x128xi1> to vector<8x128xi32>
    %115 = arith.sitofp %114 : vector<8x128xi32> to vector<8x128xf32>
    %116 = vector.extract_strided_slice %97 {offsets = [0, 0], sizes = [8, 128], strides = [1, 1]} : vector<8x256xf32> to vector<8x128xf32>
    %c2_i32_68 = arith.constant 2 : i32
    %c0_69 = arith.constant 0 : index
    %c0_70 = arith.constant 0 : index
    %117 = vector.load %arg2[%c0_69, %c0_70] : memref<128x128xf32, #tpu.memory_space<vmem>>, vector<128x128xf32>
    %cst_71 = arith.constant dense<0.000000e+00> : vector<8x128xf32>
    %118 = tpu.matmul %115, %117, %cst_71 {dimension_numbers = #tpu.dot_dimension_numbers<[1], [0], [0], [1], [0, 0, 1, 1], [], []>} : vector<8x128xf32>, vector<128x128xf32>, vector<8x128xf32> -> vector<8x128xf32>
    %119 = arith.addf %118, %116 : vector<8x128xf32>
    %120 = math.tanh %119 : vector<8x128xf32>
    %c0_72 = arith.constant 0 : index
    %c0_73 = arith.constant 0 : index
    %121 = vector.load %arg3[%c0_72, %c0_73] : memref<128x256xf32, #tpu.memory_space<vmem>>, vector<128x256xf32>
    %cst_74 = arith.constant dense<0.000000e+00> : vector<8x256xf32>
    %122 = tpu.matmul %120, %121, %cst_74 {dimension_numbers = #tpu.dot_dimension_numbers<[1], [0], [0], [1], [0, 0, 1, 1], [], []>} : vector<8x128xf32>, vector<128x256xf32>, vector<8x256xf32> -> vector<8x256xf32>
    %123 = vector.extract_strided_slice %122 {offsets = [0, 128], sizes = [8, 128], strides = [1, 1]} : vector<8x256xf32> to vector<8x128xf32>
    %124 = arith.addf %123, %59 : vector<8x128xf32>
    %125 = arith.index_cast %c2_i32_68 : i32 to index
    %c0_75 = arith.constant 0 : index
    %c0_76 = arith.constant 0 : index
    %126 = vector.load %arg5[%125, %c0_75, %c0_76] : memref<20x8x128xf32, #tpu.memory_space<vmem>>, vector<1x8x128xf32>
    %127 = vector.shape_cast %126 : vector<1x8x128xf32> to vector<8x128xf32>
    %128 = vector.shape_cast %124 : vector<8x128xf32> to vector<1x8x128xf32>
    tpu.vector_store %arg5[%125, %c0_75, %c0_76], %128 {strides = array<i32>} : memref<20x8x128xf32, #tpu.memory_space<vmem>>, vector<1x8x128xf32>,
    %cst_77 = arith.constant dense<0xFF800000> : vector<8xf32>
    %129 = vector.multi_reduction <maximumf>, %124, %cst_77 [1] : vector<8x128xf32> to vector<8xf32>
    %130 = vector.shape_cast %129 : vector<8xf32> to vector<8x1xf32>
    %131 = vector.broadcast %130 : vector<8x1xf32> to vector<8x128xf32>
    %132 = arith.cmpf oeq, %124, %131 : vector<8x128xf32>
    %c128_i32_78 = arith.constant 128 : i32
    %133 = vector.broadcast %c128_i32_78 : i32 to vector<8x128xi32>
    %134 = arith.select %132, %60, %133 : vector<8x128xi1>, vector<8x128xi32>
    %cst_79 = arith.constant dense<2147483647> : vector<8xi32>
    %135 = vector.multi_reduction <minsi>, %134, %cst_79 [1] : vector<8x128xi32> to vector<8xi32>
    %136 = vector.shape_cast %135 : vector<8xi32> to vector<8x1xi32>
    %137 = vector.broadcast %136 : vector<8x1xi32> to vector<8x128xi32>
    %138 = arith.cmpi eq, %60, %137 : vector<8x128xi32>
    %139 = arith.extui %138 : vector<8x128xi1> to vector<8x128xi32>
    %140 = arith.sitofp %139 : vector<8x128xi32> to vector<8x128xf32>
    %141 = vector.extract_strided_slice %122 {offsets = [0, 0], sizes = [8, 128], strides = [1, 1]} : vector<8x256xf32> to vector<8x128xf32>
    %c3_i32_80 = arith.constant 3 : i32
    %c0_81 = arith.constant 0 : index
    %c0_82 = arith.constant 0 : index
    %142 = vector.load %arg2[%c0_81, %c0_82] : memref<128x128xf32, #tpu.memory_space<vmem>>, vector<128x128xf32>
    %cst_83 = arith.constant dense<0.000000e+00> : vector<8x128xf32>
    %143 = tpu.matmul %140, %142, %cst_83 {dimension_numbers = #tpu.dot_dimension_numbers<[1], [0], [0], [1], [0, 0, 1, 1], [], []>} : vector<8x128xf32>, vector<128x128xf32>, vector<8x128xf32> -> vector<8x128xf32>
    %144 = arith.addf %143, %141 : vector<8x128xf32>
    %145 = math.tanh %144 : vector<8x128xf32>
    %c0_84 = arith.constant 0 : index
    %c0_85 = arith.constant 0 : index
    %146 = vector.load %arg3[%c0_84, %c0_85] : memref<128x256xf32, #tpu.memory_space<vmem>>, vector<128x256xf32>
    %cst_86 = arith.constant dense<0.000000e+00> : vector<8x256xf32>
    %147 = tpu.matmul %145, %146, %cst_86 {dimension_numbers = #tpu.dot_dimension_numbers<[1], [0], [0], [1], [0, 0, 1, 1], [], []>} : vector<8x128xf32>, vector<128x256xf32>, vector<8x256xf32> -> vector<8x256xf32>
    %148 = vector.extract_strided_slice %147 {offsets = [0, 128], sizes = [8, 128], strides = [1, 1]} : vector<8x256xf32> to vector<8x128xf32>
    %149 = arith.addf %148, %59 : vector<8x128xf32>
    %150 = arith.index_cast %c3_i32_80 : i32 to index
    %c0_87 = arith.constant 0 : index
    %c0_88 = arith.constant 0 : index
    %151 = vector.load %arg5[%150, %c0_87, %c0_88] : memref<20x8x128xf32, #tpu.memory_space<vmem>>, vector<1x8x128xf32>
    %152 = vector.shape_cast %151 : vector<1x8x128xf32> to vector<8x128xf32>
    %153 = vector.shape_cast %149 : vector<8x128xf32> to vector<1x8x128xf32>
    tpu.vector_store %arg5[%150, %c0_87, %c0_88], %153 {strides = array<i32>} : memref<20x8x128xf32, #tpu.memory_space<vmem>>, vector<1x8x128xf32>,
    %cst_89 = arith.constant dense<0xFF800000> : vector<8xf32>
    %154 = vector.multi_reduction <maximumf>, %149, %cst_89 [1] : vector<8x128xf32> to vector<8xf32>
    %155 = vector.shape_cast %154 : vector<8xf32> to vector<8x1xf32>
    %156 = vector.broadcast %155 : vector<8x1xf32> to vector<8x128xf32>
    %157 = arith.cmpf oeq, %149, %156 : vector<8x128xf32>
    %c128_i32_90 = arith.constant 128 : i32
    %158 = vector.broadcast %c128_i32_90 : i32 to vector<8x128xi32>
    %159 = arith.select %157, %60, %158 : vector<8x128xi1>, vector<8x128xi32>
    %cst_91 = arith.constant dense<2147483647> : vector<8xi32>
    %160 = vector.multi_reduction <minsi>, %159, %cst_91 [1] : vector<8x128xi32> to vector<8xi32>
    %161 = vector.shape_cast %160 : vector<8xi32> to vector<8x1xi32>
    %162 = vector.broadcast %161 : vector<8x1xi32> to vector<8x128xi32>
    %163 = arith.cmpi eq, %60, %162 : vector<8x128xi32>
    %164 = arith.extui %163 : vector<8x128xi1> to vector<8x128xi32>
    %165 = arith.sitofp %164 : vector<8x128xi32> to vector<8x128xf32>
    %166 = vector.extract_strided_slice %147 {offsets = [0, 0], sizes = [8, 128], strides = [1, 1]} : vector<8x256xf32> to vector<8x128xf32>
    %c4_i32_92 = arith.constant 4 : i32
    %c0_93 = arith.constant 0 : index
    %c0_94 = arith.constant 0 : index
    %167 = vector.load %arg2[%c0_93, %c0_94] : memref<128x128xf32, #tpu.memory_space<vmem>>, vector<128x128xf32>
    %cst_95 = arith.constant dense<0.000000e+00> : vector<8x128xf32>
    %168 = tpu.matmul %165, %167, %cst_95 {dimension_numbers = #tpu.dot_dimension_numbers<[1], [0], [0], [1], [0, 0, 1, 1], [], []>} : vector<8x128xf32>, vector<128x128xf32>, vector<8x128xf32> -> vector<8x128xf32>
    %169 = arith.addf %168, %166 : vector<8x128xf32>
    %170 = math.tanh %169 : vector<8x128xf32>
    %c0_96 = arith.constant 0 : index
    %c0_97 = arith.constant 0 : index
    %171 = vector.load %arg3[%c0_96, %c0_97] : memref<128x256xf32, #tpu.memory_space<vmem>>, vector<128x256xf32>
    %cst_98 = arith.constant dense<0.000000e+00> : vector<8x256xf32>
    %172 = tpu.matmul %170, %171, %cst_98 {dimension_numbers = #tpu.dot_dimension_numbers<[1], [0], [0], [1], [0, 0, 1, 1], [], []>} : vector<8x128xf32>, vector<128x256xf32>, vector<8x256xf32> -> vector<8x256xf32>
    %173 = vector.extract_strided_slice %172 {offsets = [0, 128], sizes = [8, 128], strides = [1, 1]} : vector<8x256xf32> to vector<8x128xf32>
    %174 = arith.addf %173, %59 : vector<8x128xf32>
    %175 = arith.index_cast %c4_i32_92 : i32 to index
    %c0_99 = arith.constant 0 : index
    %c0_100 = arith.constant 0 : index
    %176 = vector.load %arg5[%175, %c0_99, %c0_100] : memref<20x8x128xf32, #tpu.memory_space<vmem>>, vector<1x8x128xf32>
    %177 = vector.shape_cast %176 : vector<1x8x128xf32> to vector<8x128xf32>
    %178 = vector.shape_cast %174 : vector<8x128xf32> to vector<1x8x128xf32>
    tpu.vector_store %arg5[%175, %c0_99, %c0_100], %178 {strides = array<i32>} : memref<20x8x128xf32, #tpu.memory_space<vmem>>, vector<1x8x128xf32>,
    %cst_101 = arith.constant dense<0xFF800000> : vector<8xf32>
    %179 = vector.multi_reduction <maximumf>, %174, %cst_101 [1] : vector<8x128xf32> to vector<8xf32>
    %180 = vector.shape_cast %179 : vector<8xf32> to vector<8x1xf32>
    %181 = vector.broadcast %180 : vector<8x1xf32> to vector<8x128xf32>
    %182 = arith.cmpf oeq, %174, %181 : vector<8x128xf32>
    %c128_i32_102 = arith.constant 128 : i32
    %183 = vector.broadcast %c128_i32_102 : i32 to vector<8x128xi32>
    %184 = arith.select %182, %60, %183 : vector<8x128xi1>, vector<8x128xi32>
    %cst_103 = arith.constant dense<2147483647> : vector<8xi32>
    %185 = vector.multi_reduction <minsi>, %184, %cst_103 [1] : vector<8x128xi32> to vector<8xi32>
    %186 = vector.shape_cast %185 : vector<8xi32> to vector<8x1xi32>
    %187 = vector.broadcast %186 : vector<8x1xi32> to vector<8x128xi32>
    %188 = arith.cmpi eq, %60, %187 : vector<8x128xi32>
    %189 = arith.extui %188 : vector<8x128xi1> to vector<8x128xi32>
    %190 = arith.sitofp %189 : vector<8x128xi32> to vector<8x128xf32>
    %191 = vector.extract_strided_slice %172 {offsets = [0, 0], sizes = [8, 128], strides = [1, 1]} : vector<8x256xf32> to vector<8x128xf32>
    %c5_i32_104 = arith.constant 5 : i32
    %c0_105 = arith.constant 0 : index
    %c0_106 = arith.constant 0 : index
    %192 = vector.load %arg2[%c0_105, %c0_106] : memref<128x128xf32, #tpu.memory_space<vmem>>, vector<128x128xf32>
    %cst_107 = arith.constant dense<0.000000e+00> : vector<8x128xf32>
    %193 = tpu.matmul %190, %192, %cst_107 {dimension_numbers = #tpu.dot_dimension_numbers<[1], [0], [0], [1], [0, 0, 1, 1], [], []>} : vector<8x128xf32>, vector<128x128xf32>, vector<8x128xf32> -> vector<8x128xf32>
    %194 = arith.addf %193, %191 : vector<8x128xf32>
    %195 = math.tanh %194 : vector<8x128xf32>
    %c0_108 = arith.constant 0 : index
    %c0_109 = arith.constant 0 : index
    %196 = vector.load %arg3[%c0_108, %c0_109] : memref<128x256xf32, #tpu.memory_space<vmem>>, vector<128x256xf32>
    %cst_110 = arith.constant dense<0.000000e+00> : vector<8x256xf32>
    %197 = tpu.matmul %195, %196, %cst_110 {dimension_numbers = #tpu.dot_dimension_numbers<[1], [0], [0], [1], [0, 0, 1, 1], [], []>} : vector<8x128xf32>, vector<128x256xf32>, vector<8x256xf32> -> vector<8x256xf32>
    %198 = vector.extract_strided_slice %197 {offsets = [0, 128], sizes = [8, 128], strides = [1, 1]} : vector<8x256xf32> to vector<8x128xf32>
    %199 = arith.addf %198, %59 : vector<8x128xf32>
    %200 = arith.index_cast %c5_i32_104 : i32 to index
    %c0_111 = arith.constant 0 : index
    %c0_112 = arith.constant 0 : index
    %201 = vector.load %arg5[%200, %c0_111, %c0_112] : memref<20x8x128xf32, #tpu.memory_space<vmem>>, vector<1x8x128xf32>
    %202 = vector.shape_cast %201 : vector<1x8x128xf32> to vector<8x128xf32>
    %203 = vector.shape_cast %199 : vector<8x128xf32> to vector<1x8x128xf32>
    tpu.vector_store %arg5[%200, %c0_111, %c0_112], %203 {strides = array<i32>} : memref<20x8x128xf32, #tpu.memory_space<vmem>>, vector<1x8x128xf32>,
    %cst_113 = arith.constant dense<0xFF800000> : vector<8xf32>
    %204 = vector.multi_reduction <maximumf>, %199, %cst_113 [1] : vector<8x128xf32> to vector<8xf32>
    %205 = vector.shape_cast %204 : vector<8xf32> to vector<8x1xf32>
    %206 = vector.broadcast %205 : vector<8x1xf32> to vector<8x128xf32>
    %207 = arith.cmpf oeq, %199, %206 : vector<8x128xf32>
    %c128_i32_114 = arith.constant 128 : i32
    %208 = vector.broadcast %c128_i32_114 : i32 to vector<8x128xi32>
    %209 = arith.select %207, %60, %208 : vector<8x128xi1>, vector<8x128xi32>
    %cst_115 = arith.constant dense<2147483647> : vector<8xi32>
    %210 = vector.multi_reduction <minsi>, %209, %cst_115 [1] : vector<8x128xi32> to vector<8xi32>
    %211 = vector.shape_cast %210 : vector<8xi32> to vector<8x1xi32>
    %212 = vector.broadcast %211 : vector<8x1xi32> to vector<8x128xi32>
    %213 = arith.cmpi eq, %60, %212 : vector<8x128xi32>
    %214 = arith.extui %213 : vector<8x128xi1> to vector<8x128xi32>
    %215 = arith.sitofp %214 : vector<8x128xi32> to vector<8x128xf32>
    %216 = vector.extract_strided_slice %197 {offsets = [0, 0], sizes = [8, 128], strides = [1, 1]} : vector<8x256xf32> to vector<8x128xf32>
    %c6_i32_116 = arith.constant 6 : i32
    %c0_117 = arith.constant 0 : index
    %c0_118 = arith.constant 0 : index
    %217 = vector.load %arg2[%c0_117, %c0_118] : memref<128x128xf32, #tpu.memory_space<vmem>>, vector<128x128xf32>
    %cst_119 = arith.constant dense<0.000000e+00> : vector<8x128xf32>
    %218 = tpu.matmul %215, %217, %cst_119 {dimension_numbers = #tpu.dot_dimension_numbers<[1], [0], [0], [1], [0, 0, 1, 1], [], []>} : vector<8x128xf32>, vector<128x128xf32>, vector<8x128xf32> -> vector<8x128xf32>
    %219 = arith.addf %218, %216 : vector<8x128xf32>
    %220 = math.tanh %219 : vector<8x128xf32>
    %c0_120 = arith.constant 0 : index
    %c0_121 = arith.constant 0 : index
    %221 = vector.load %arg3[%c0_120, %c0_121] : memref<128x256xf32, #tpu.memory_space<vmem>>, vector<128x256xf32>
    %cst_122 = arith.constant dense<0.000000e+00> : vector<8x256xf32>
    %222 = tpu.matmul %220, %221, %cst_122 {dimension_numbers = #tpu.dot_dimension_numbers<[1], [0], [0], [1], [0, 0, 1, 1], [], []>} : vector<8x128xf32>, vector<128x256xf32>, vector<8x256xf32> -> vector<8x256xf32>
    %223 = vector.extract_strided_slice %222 {offsets = [0, 128], sizes = [8, 128], strides = [1, 1]} : vector<8x256xf32> to vector<8x128xf32>
    %224 = arith.addf %223, %59 : vector<8x128xf32>
    %225 = arith.index_cast %c6_i32_116 : i32 to index
    %c0_123 = arith.constant 0 : index
    %c0_124 = arith.constant 0 : index
    %226 = vector.load %arg5[%225, %c0_123, %c0_124] : memref<20x8x128xf32, #tpu.memory_space<vmem>>, vector<1x8x128xf32>
    %227 = vector.shape_cast %226 : vector<1x8x128xf32> to vector<8x128xf32>
    %228 = vector.shape_cast %224 : vector<8x128xf32> to vector<1x8x128xf32>
    tpu.vector_store %arg5[%225, %c0_123, %c0_124], %228 {strides = array<i32>} : memref<20x8x128xf32, #tpu.memory_space<vmem>>, vector<1x8x128xf32>,
    %cst_125 = arith.constant dense<0xFF800000> : vector<8xf32>
    %229 = vector.multi_reduction <maximumf>, %224, %cst_125 [1] : vector<8x128xf32> to vector<8xf32>
    %230 = vector.shape_cast %229 : vector<8xf32> to vector<8x1xf32>
    %231 = vector.broadcast %230 : vector<8x1xf32> to vector<8x128xf32>
    %232 = arith.cmpf oeq, %224, %231 : vector<8x128xf32>
    %c128_i32_126 = arith.constant 128 : i32
    %233 = vector.broadcast %c128_i32_126 : i32 to vector<8x128xi32>
    %234 = arith.select %232, %60, %233 : vector<8x128xi1>, vector<8x128xi32>
    %cst_127 = arith.constant dense<2147483647> : vector<8xi32>
    %235 = vector.multi_reduction <minsi>, %234, %cst_127 [1] : vector<8x128xi32> to vector<8xi32>
    %236 = vector.shape_cast %235 : vector<8xi32> to vector<8x1xi32>
    %237 = vector.broadcast %236 : vector<8x1xi32> to vector<8x128xi32>
    %238 = arith.cmpi eq, %60, %237 : vector<8x128xi32>
    %239 = arith.extui %238 : vector<8x128xi1> to vector<8x128xi32>
    %240 = arith.sitofp %239 : vector<8x128xi32> to vector<8x128xf32>
    %241 = vector.extract_strided_slice %222 {offsets = [0, 0], sizes = [8, 128], strides = [1, 1]} : vector<8x256xf32> to vector<8x128xf32>
    %c7_i32_128 = arith.constant 7 : i32
    %c0_129 = arith.constant 0 : index
    %c0_130 = arith.constant 0 : index
    %242 = vector.load %arg2[%c0_129, %c0_130] : memref<128x128xf32, #tpu.memory_space<vmem>>, vector<128x128xf32>
    %cst_131 = arith.constant dense<0.000000e+00> : vector<8x128xf32>
    %243 = tpu.matmul %240, %242, %cst_131 {dimension_numbers = #tpu.dot_dimension_numbers<[1], [0], [0], [1], [0, 0, 1, 1], [], []>} : vector<8x128xf32>, vector<128x128xf32>, vector<8x128xf32> -> vector<8x128xf32>
    %244 = arith.addf %243, %241 : vector<8x128xf32>
    %245 = math.tanh %244 : vector<8x128xf32>
    %c0_132 = arith.constant 0 : index
    %c0_133 = arith.constant 0 : index
    %246 = vector.load %arg3[%c0_132, %c0_133] : memref<128x256xf32, #tpu.memory_space<vmem>>, vector<128x256xf32>
    %cst_134 = arith.constant dense<0.000000e+00> : vector<8x256xf32>
    %247 = tpu.matmul %245, %246, %cst_134 {dimension_numbers = #tpu.dot_dimension_numbers<[1], [0], [0], [1], [0, 0, 1, 1], [], []>} : vector<8x128xf32>, vector<128x256xf32>, vector<8x256xf32> -> vector<8x256xf32>
    %248 = vector.extract_strided_slice %247 {offsets = [0, 128], sizes = [8, 128], strides = [1, 1]} : vector<8x256xf32> to vector<8x128xf32>
    %249 = arith.addf %248, %59 : vector<8x128xf32>
    %250 = arith.index_cast %c7_i32_128 : i32 to index
    %c0_135 = arith.constant 0 : index
    %c0_136 = arith.constant 0 : index
    %251 = vector.load %arg5[%250, %c0_135, %c0_136] : memref<20x8x128xf32, #tpu.memory_space<vmem>>, vector<1x8x128xf32>
    %252 = vector.shape_cast %251 : vector<1x8x128xf32> to vector<8x128xf32>
    %253 = vector.shape_cast %249 : vector<8x128xf32> to vector<1x8x128xf32>
    tpu.vector_store %arg5[%250, %c0_135, %c0_136], %253 {strides = array<i32>} : memref<20x8x128xf32, #tpu.memory_space<vmem>>, vector<1x8x128xf32>,
    %cst_137 = arith.constant dense<0xFF800000> : vector<8xf32>
    %254 = vector.multi_reduction <maximumf>, %249, %cst_137 [1] : vector<8x128xf32> to vector<8xf32>
    %255 = vector.shape_cast %254 : vector<8xf32> to vector<8x1xf32>
    %256 = vector.broadcast %255 : vector<8x1xf32> to vector<8x128xf32>
    %257 = arith.cmpf oeq, %249, %256 : vector<8x128xf32>
    %c128_i32_138 = arith.constant 128 : i32
    %258 = vector.broadcast %c128_i32_138 : i32 to vector<8x128xi32>
    %259 = arith.select %257, %60, %258 : vector<8x128xi1>, vector<8x128xi32>
    %cst_139 = arith.constant dense<2147483647> : vector<8xi32>
    %260 = vector.multi_reduction <minsi>, %259, %cst_139 [1] : vector<8x128xi32> to vector<8xi32>
    %261 = vector.shape_cast %260 : vector<8xi32> to vector<8x1xi32>
    %262 = vector.broadcast %261 : vector<8x1xi32> to vector<8x128xi32>
    %263 = arith.cmpi eq, %60, %262 : vector<8x128xi32>
    %264 = arith.extui %263 : vector<8x128xi1> to vector<8x128xi32>
    %265 = arith.sitofp %264 : vector<8x128xi32> to vector<8x128xf32>
    %266 = vector.extract_strided_slice %247 {offsets = [0, 0], sizes = [8, 128], strides = [1, 1]} : vector<8x256xf32> to vector<8x128xf32>
    %c8_i32_140 = arith.constant 8 : i32
    %c0_141 = arith.constant 0 : index
    %c0_142 = arith.constant 0 : index
    %267 = vector.load %arg2[%c0_141, %c0_142] : memref<128x128xf32, #tpu.memory_space<vmem>>, vector<128x128xf32>
    %cst_143 = arith.constant dense<0.000000e+00> : vector<8x128xf32>
    %268 = tpu.matmul %265, %267, %cst_143 {dimension_numbers = #tpu.dot_dimension_numbers<[1], [0], [0], [1], [0, 0, 1, 1], [], []>} : vector<8x128xf32>, vector<128x128xf32>, vector<8x128xf32> -> vector<8x128xf32>
    %269 = arith.addf %268, %266 : vector<8x128xf32>
    %270 = math.tanh %269 : vector<8x128xf32>
    %c0_144 = arith.constant 0 : index
    %c0_145 = arith.constant 0 : index
    %271 = vector.load %arg3[%c0_144, %c0_145] : memref<128x256xf32, #tpu.memory_space<vmem>>, vector<128x256xf32>
    %cst_146 = arith.constant dense<0.000000e+00> : vector<8x256xf32>
    %272 = tpu.matmul %270, %271, %cst_146 {dimension_numbers = #tpu.dot_dimension_numbers<[1], [0], [0], [1], [0, 0, 1, 1], [], []>} : vector<8x128xf32>, vector<128x256xf32>, vector<8x256xf32> -> vector<8x256xf32>
    %273 = vector.extract_strided_slice %272 {offsets = [0, 128], sizes = [8, 128], strides = [1, 1]} : vector<8x256xf32> to vector<8x128xf32>
    %274 = arith.addf %273, %59 : vector<8x128xf32>
    %275 = arith.index_cast %c8_i32_140 : i32 to index
    %c0_147 = arith.constant 0 : index
    %c0_148 = arith.constant 0 : index
    %276 = vector.load %arg5[%275, %c0_147, %c0_148] : memref<20x8x128xf32, #tpu.memory_space<vmem>>, vector<1x8x128xf32>
    %277 = vector.shape_cast %276 : vector<1x8x128xf32> to vector<8x128xf32>
    %278 = vector.shape_cast %274 : vector<8x128xf32> to vector<1x8x128xf32>
    tpu.vector_store %arg5[%275, %c0_147, %c0_148], %278 {strides = array<i32>} : memref<20x8x128xf32, #tpu.memory_space<vmem>>, vector<1x8x128xf32>,
    %cst_149 = arith.constant dense<0xFF800000> : vector<8xf32>
    %279 = vector.multi_reduction <maximumf>, %274, %cst_149 [1] : vector<8x128xf32> to vector<8xf32>
    %280 = vector.shape_cast %279 : vector<8xf32> to vector<8x1xf32>
    %281 = vector.broadcast %280 : vector<8x1xf32> to vector<8x128xf32>
    %282 = arith.cmpf oeq, %274, %281 : vector<8x128xf32>
    %c128_i32_150 = arith.constant 128 : i32
    %283 = vector.broadcast %c128_i32_150 : i32 to vector<8x128xi32>
    %284 = arith.select %282, %60, %283 : vector<8x128xi1>, vector<8x128xi32>
    %cst_151 = arith.constant dense<2147483647> : vector<8xi32>
    %285 = vector.multi_reduction <minsi>, %284, %cst_151 [1] : vector<8x128xi32> to vector<8xi32>
    %286 = vector.shape_cast %285 : vector<8xi32> to vector<8x1xi32>
    %287 = vector.broadcast %286 : vector<8x1xi32> to vector<8x128xi32>
    %288 = arith.cmpi eq, %60, %287 : vector<8x128xi32>
    %289 = arith.extui %288 : vector<8x128xi1> to vector<8x128xi32>
    %290 = arith.sitofp %289 : vector<8x128xi32> to vector<8x128xf32>
    %291 = vector.extract_strided_slice %272 {offsets = [0, 0], sizes = [8, 128], strides = [1, 1]} : vector<8x256xf32> to vector<8x128xf32>
    %c9_i32 = arith.constant 9 : i32
    %c0_152 = arith.constant 0 : index
    %c0_153 = arith.constant 0 : index
    %292 = vector.load %arg2[%c0_152, %c0_153] : memref<128x128xf32, #tpu.memory_space<vmem>>, vector<128x128xf32>
    %cst_154 = arith.constant dense<0.000000e+00> : vector<8x128xf32>
    %293 = tpu.matmul %290, %292, %cst_154 {dimension_numbers = #tpu.dot_dimension_numbers<[1], [0], [0], [1], [0, 0, 1, 1], [], []>} : vector<8x128xf32>, vector<128x128xf32>, vector<8x128xf32> -> vector<8x128xf32>
    %294 = arith.addf %293, %291 : vector<8x128xf32>
    %295 = math.tanh %294 : vector<8x128xf32>
    %c0_155 = arith.constant 0 : index
    %c0_156 = arith.constant 0 : index
    %296 = vector.load %arg3[%c0_155, %c0_156] : memref<128x256xf32, #tpu.memory_space<vmem>>, vector<128x256xf32>
    %cst_157 = arith.constant dense<0.000000e+00> : vector<8x256xf32>
    %297 = tpu.matmul %295, %296, %cst_157 {dimension_numbers = #tpu.dot_dimension_numbers<[1], [0], [0], [1], [0, 0, 1, 1], [], []>} : vector<8x128xf32>, vector<128x256xf32>, vector<8x256xf32> -> vector<8x256xf32>
    %298 = vector.extract_strided_slice %297 {offsets = [0, 128], sizes = [8, 128], strides = [1, 1]} : vector<8x256xf32> to vector<8x128xf32>
    %299 = arith.addf %298, %59 : vector<8x128xf32>
    %300 = arith.index_cast %c9_i32 : i32 to index
    %c0_158 = arith.constant 0 : index
    %c0_159 = arith.constant 0 : index
    %301 = vector.load %arg5[%300, %c0_158, %c0_159] : memref<20x8x128xf32, #tpu.memory_space<vmem>>, vector<1x8x128xf32>
    %302 = vector.shape_cast %301 : vector<1x8x128xf32> to vector<8x128xf32>
    %303 = vector.shape_cast %299 : vector<8x128xf32> to vector<1x8x128xf32>
    tpu.vector_store %arg5[%300, %c0_158, %c0_159], %303 {strides = array<i32>} : memref<20x8x128xf32, #tpu.memory_space<vmem>>, vector<1x8x128xf32>,
    %cst_160 = arith.constant dense<0xFF800000> : vector<8xf32>
    %304 = vector.multi_reduction <maximumf>, %299, %cst_160 [1] : vector<8x128xf32> to vector<8xf32>
    %305 = vector.shape_cast %304 : vector<8xf32> to vector<8x1xf32>
    %306 = vector.broadcast %305 : vector<8x1xf32> to vector<8x128xf32>
    %307 = arith.cmpf oeq, %299, %306 : vector<8x128xf32>
    %c128_i32_161 = arith.constant 128 : i32
    %308 = vector.broadcast %c128_i32_161 : i32 to vector<8x128xi32>
    %309 = arith.select %307, %60, %308 : vector<8x128xi1>, vector<8x128xi32>
    %cst_162 = arith.constant dense<2147483647> : vector<8xi32>
    %310 = vector.multi_reduction <minsi>, %309, %cst_162 [1] : vector<8x128xi32> to vector<8xi32>
    %311 = vector.shape_cast %310 : vector<8xi32> to vector<8x1xi32>
    %312 = vector.broadcast %311 : vector<8x1xi32> to vector<8x128xi32>
    %313 = arith.cmpi eq, %60, %312 : vector<8x128xi32>
    %314 = arith.extui %313 : vector<8x128xi1> to vector<8x128xi32>
    %315 = arith.sitofp %314 : vector<8x128xi32> to vector<8x128xf32>
    %316 = vector.extract_strided_slice %297 {offsets = [0, 0], sizes = [8, 128], strides = [1, 1]} : vector<8x256xf32> to vector<8x128xf32>
    %c10_i32 = arith.constant 10 : i32
    %c0_163 = arith.constant 0 : index
    %c0_164 = arith.constant 0 : index
    %317 = vector.load %arg2[%c0_163, %c0_164] : memref<128x128xf32, #tpu.memory_space<vmem>>, vector<128x128xf32>
    %cst_165 = arith.constant dense<0.000000e+00> : vector<8x128xf32>
    %318 = tpu.matmul %315, %317, %cst_165 {dimension_numbers = #tpu.dot_dimension_numbers<[1], [0], [0], [1], [0, 0, 1, 1], [], []>} : vector<8x128xf32>, vector<128x128xf32>, vector<8x128xf32> -> vector<8x128xf32>
    %319 = arith.addf %318, %316 : vector<8x128xf32>
    %320 = math.tanh %319 : vector<8x128xf32>
    %c0_166 = arith.constant 0 : index
    %c0_167 = arith.constant 0 : index
    %321 = vector.load %arg3[%c0_166, %c0_167] : memref<128x256xf32, #tpu.memory_space<vmem>>, vector<128x256xf32>
    %cst_168 = arith.constant dense<0.000000e+00> : vector<8x256xf32>
    %322 = tpu.matmul %320, %321, %cst_168 {dimension_numbers = #tpu.dot_dimension_numbers<[1], [0], [0], [1], [0, 0, 1, 1], [], []>} : vector<8x128xf32>, vector<128x256xf32>, vector<8x256xf32> -> vector<8x256xf32>
    %323 = vector.extract_strided_slice %322 {offsets = [0, 128], sizes = [8, 128], strides = [1, 1]} : vector<8x256xf32> to vector<8x128xf32>
    %324 = arith.addf %323, %59 : vector<8x128xf32>
    %325 = arith.index_cast %c10_i32 : i32 to index
    %c0_169 = arith.constant 0 : index
    %c0_170 = arith.constant 0 : index
    %326 = vector.load %arg5[%325, %c0_169, %c0_170] : memref<20x8x128xf32, #tpu.memory_space<vmem>>, vector<1x8x128xf32>
    %327 = vector.shape_cast %326 : vector<1x8x128xf32> to vector<8x128xf32>
    %328 = vector.shape_cast %324 : vector<8x128xf32> to vector<1x8x128xf32>
    tpu.vector_store %arg5[%325, %c0_169, %c0_170], %328 {strides = array<i32>} : memref<20x8x128xf32, #tpu.memory_space<vmem>>, vector<1x8x128xf32>,
    %cst_171 = arith.constant dense<0xFF800000> : vector<8xf32>
    %329 = vector.multi_reduction <maximumf>, %324, %cst_171 [1] : vector<8x128xf32> to vector<8xf32>
    %330 = vector.shape_cast %329 : vector<8xf32> to vector<8x1xf32>
    %331 = vector.broadcast %330 : vector<8x1xf32> to vector<8x128xf32>
    %332 = arith.cmpf oeq, %324, %331 : vector<8x128xf32>
    %c128_i32_172 = arith.constant 128 : i32
    %333 = vector.broadcast %c128_i32_172 : i32 to vector<8x128xi32>
    %334 = arith.select %332, %60, %333 : vector<8x128xi1>, vector<8x128xi32>
    %cst_173 = arith.constant dense<2147483647> : vector<8xi32>
    %335 = vector.multi_reduction <minsi>, %334, %cst_173 [1] : vector<8x128xi32> to vector<8xi32>
    %336 = vector.shape_cast %335 : vector<8xi32> to vector<8x1xi32>
    %337 = vector.broadcast %336 : vector<8x1xi32> to vector<8x128xi32>
    %338 = arith.cmpi eq, %60, %337 : vector<8x128xi32>
    %339 = arith.extui %338 : vector<8x128xi1> to vector<8x128xi32>
    %340 = arith.sitofp %339 : vector<8x128xi32> to vector<8x128xf32>
    %341 = vector.extract_strided_slice %322 {offsets = [0, 0], sizes = [8, 128], strides = [1, 1]} : vector<8x256xf32> to vector<8x128xf32>
    %c11_i32 = arith.constant 11 : i32
    %c0_174 = arith.constant 0 : index
    %c0_175 = arith.constant 0 : index
    %342 = vector.load %arg2[%c0_174, %c0_175] : memref<128x128xf32, #tpu.memory_space<vmem>>, vector<128x128xf32>
    %cst_176 = arith.constant dense<0.000000e+00> : vector<8x128xf32>
    %343 = tpu.matmul %340, %342, %cst_176 {dimension_numbers = #tpu.dot_dimension_numbers<[1], [0], [0], [1], [0, 0, 1, 1], [], []>} : vector<8x128xf32>, vector<128x128xf32>, vector<8x128xf32> -> vector<8x128xf32>
    %344 = arith.addf %343, %341 : vector<8x128xf32>
    %345 = math.tanh %344 : vector<8x128xf32>
    %c0_177 = arith.constant 0 : index
    %c0_178 = arith.constant 0 : index
    %346 = vector.load %arg3[%c0_177, %c0_178] : memref<128x256xf32, #tpu.memory_space<vmem>>, vector<128x256xf32>
    %cst_179 = arith.constant dense<0.000000e+00> : vector<8x256xf32>
    %347 = tpu.matmul %345, %346, %cst_179 {dimension_numbers = #tpu.dot_dimension_numbers<[1], [0], [0], [1], [0, 0, 1, 1], [], []>} : vector<8x128xf32>, vector<128x256xf32>, vector<8x256xf32> -> vector<8x256xf32>
    %348 = vector.extract_strided_slice %347 {offsets = [0, 128], sizes = [8, 128], strides = [1, 1]} : vector<8x256xf32> to vector<8x128xf32>
    %349 = arith.addf %348, %59 : vector<8x128xf32>
    %350 = arith.index_cast %c11_i32 : i32 to index
    %c0_180 = arith.constant 0 : index
    %c0_181 = arith.constant 0 : index
    %351 = vector.load %arg5[%350, %c0_180, %c0_181] : memref<20x8x128xf32, #tpu.memory_space<vmem>>, vector<1x8x128xf32>
    %352 = vector.shape_cast %351 : vector<1x8x128xf32> to vector<8x128xf32>
    %353 = vector.shape_cast %349 : vector<8x128xf32> to vector<1x8x128xf32>
    tpu.vector_store %arg5[%350, %c0_180, %c0_181], %353 {strides = array<i32>} : memref<20x8x128xf32, #tpu.memory_space<vmem>>, vector<1x8x128xf32>,
    %cst_182 = arith.constant dense<0xFF800000> : vector<8xf32>
    %354 = vector.multi_reduction <maximumf>, %349, %cst_182 [1] : vector<8x128xf32> to vector<8xf32>
    %355 = vector.shape_cast %354 : vector<8xf32> to vector<8x1xf32>
    %356 = vector.broadcast %355 : vector<8x1xf32> to vector<8x128xf32>
    %357 = arith.cmpf oeq, %349, %356 : vector<8x128xf32>
    %c128_i32_183 = arith.constant 128 : i32
    %358 = vector.broadcast %c128_i32_183 : i32 to vector<8x128xi32>
    %359 = arith.select %357, %60, %358 : vector<8x128xi1>, vector<8x128xi32>
    %cst_184 = arith.constant dense<2147483647> : vector<8xi32>
    %360 = vector.multi_reduction <minsi>, %359, %cst_184 [1] : vector<8x128xi32> to vector<8xi32>
    %361 = vector.shape_cast %360 : vector<8xi32> to vector<8x1xi32>
    %362 = vector.broadcast %361 : vector<8x1xi32> to vector<8x128xi32>
    %363 = arith.cmpi eq, %60, %362 : vector<8x128xi32>
    %364 = arith.extui %363 : vector<8x128xi1> to vector<8x128xi32>
    %365 = arith.sitofp %364 : vector<8x128xi32> to vector<8x128xf32>
    %366 = vector.extract_strided_slice %347 {offsets = [0, 0], sizes = [8, 128], strides = [1, 1]} : vector<8x256xf32> to vector<8x128xf32>
    %c12_i32 = arith.constant 12 : i32
    %c0_185 = arith.constant 0 : index
    %c0_186 = arith.constant 0 : index
    %367 = vector.load %arg2[%c0_185, %c0_186] : memref<128x128xf32, #tpu.memory_space<vmem>>, vector<128x128xf32>
    %cst_187 = arith.constant dense<0.000000e+00> : vector<8x128xf32>
    %368 = tpu.matmul %365, %367, %cst_187 {dimension_numbers = #tpu.dot_dimension_numbers<[1], [0], [0], [1], [0, 0, 1, 1], [], []>} : vector<8x128xf32>, vector<128x128xf32>, vector<8x128xf32> -> vector<8x128xf32>
    %369 = arith.addf %368, %366 : vector<8x128xf32>
    %370 = math.tanh %369 : vector<8x128xf32>
    %c0_188 = arith.constant 0 : index
    %c0_189 = arith.constant 0 : index
    %371 = vector.load %arg3[%c0_188, %c0_189] : memref<128x256xf32, #tpu.memory_space<vmem>>, vector<128x256xf32>
    %cst_190 = arith.constant dense<0.000000e+00> : vector<8x256xf32>
    %372 = tpu.matmul %370, %371, %cst_190 {dimension_numbers = #tpu.dot_dimension_numbers<[1], [0], [0], [1], [0, 0, 1, 1], [], []>} : vector<8x128xf32>, vector<128x256xf32>, vector<8x256xf32> -> vector<8x256xf32>
    %373 = vector.extract_strided_slice %372 {offsets = [0, 128], sizes = [8, 128], strides = [1, 1]} : vector<8x256xf32> to vector<8x128xf32>
    %374 = arith.addf %373, %59 : vector<8x128xf32>
    %375 = arith.index_cast %c12_i32 : i32 to index
    %c0_191 = arith.constant 0 : index
    %c0_192 = arith.constant 0 : index
    %376 = vector.load %arg5[%375, %c0_191, %c0_192] : memref<20x8x128xf32, #tpu.memory_space<vmem>>, vector<1x8x128xf32>
    %377 = vector.shape_cast %376 : vector<1x8x128xf32> to vector<8x128xf32>
    %378 = vector.shape_cast %374 : vector<8x128xf32> to vector<1x8x128xf32>
    tpu.vector_store %arg5[%375, %c0_191, %c0_192], %378 {strides = array<i32>} : memref<20x8x128xf32, #tpu.memory_space<vmem>>, vector<1x8x128xf32>,
    %cst_193 = arith.constant dense<0xFF800000> : vector<8xf32>
    %379 = vector.multi_reduction <maximumf>, %374, %cst_193 [1] : vector<8x128xf32> to vector<8xf32>
    %380 = vector.shape_cast %379 : vector<8xf32> to vector<8x1xf32>
    %381 = vector.broadcast %380 : vector<8x1xf32> to vector<8x128xf32>
    %382 = arith.cmpf oeq, %374, %381 : vector<8x128xf32>
    %c128_i32_194 = arith.constant 128 : i32
    %383 = vector.broadcast %c128_i32_194 : i32 to vector<8x128xi32>
    %384 = arith.select %382, %60, %383 : vector<8x128xi1>, vector<8x128xi32>
    %cst_195 = arith.constant dense<2147483647> : vector<8xi32>
    %385 = vector.multi_reduction <minsi>, %384, %cst_195 [1] : vector<8x128xi32> to vector<8xi32>
    %386 = vector.shape_cast %385 : vector<8xi32> to vector<8x1xi32>
    %387 = vector.broadcast %386 : vector<8x1xi32> to vector<8x128xi32>
    %388 = arith.cmpi eq, %60, %387 : vector<8x128xi32>
    %389 = arith.extui %388 : vector<8x128xi1> to vector<8x128xi32>
    %390 = arith.sitofp %389 : vector<8x128xi32> to vector<8x128xf32>
    %391 = vector.extract_strided_slice %372 {offsets = [0, 0], sizes = [8, 128], strides = [1, 1]} : vector<8x256xf32> to vector<8x128xf32>
    %c13_i32 = arith.constant 13 : i32
    %c0_196 = arith.constant 0 : index
    %c0_197 = arith.constant 0 : index
    %392 = vector.load %arg2[%c0_196, %c0_197] : memref<128x128xf32, #tpu.memory_space<vmem>>, vector<128x128xf32>
    %cst_198 = arith.constant dense<0.000000e+00> : vector<8x128xf32>
    %393 = tpu.matmul %390, %392, %cst_198 {dimension_numbers = #tpu.dot_dimension_numbers<[1], [0], [0], [1], [0, 0, 1, 1], [], []>} : vector<8x128xf32>, vector<128x128xf32>, vector<8x128xf32> -> vector<8x128xf32>
    %394 = arith.addf %393, %391 : vector<8x128xf32>
    %395 = math.tanh %394 : vector<8x128xf32>
    %c0_199 = arith.constant 0 : index
    %c0_200 = arith.constant 0 : index
    %396 = vector.load %arg3[%c0_199, %c0_200] : memref<128x256xf32, #tpu.memory_space<vmem>>, vector<128x256xf32>
    %cst_201 = arith.constant dense<0.000000e+00> : vector<8x256xf32>
    %397 = tpu.matmul %395, %396, %cst_201 {dimension_numbers = #tpu.dot_dimension_numbers<[1], [0], [0], [1], [0, 0, 1, 1], [], []>} : vector<8x128xf32>, vector<128x256xf32>, vector<8x256xf32> -> vector<8x256xf32>
    %398 = vector.extract_strided_slice %397 {offsets = [0, 128], sizes = [8, 128], strides = [1, 1]} : vector<8x256xf32> to vector<8x128xf32>
    %399 = arith.addf %398, %59 : vector<8x128xf32>
    %400 = arith.index_cast %c13_i32 : i32 to index
    %c0_202 = arith.constant 0 : index
    %c0_203 = arith.constant 0 : index
    %401 = vector.load %arg5[%400, %c0_202, %c0_203] : memref<20x8x128xf32, #tpu.memory_space<vmem>>, vector<1x8x128xf32>
    %402 = vector.shape_cast %401 : vector<1x8x128xf32> to vector<8x128xf32>
    %403 = vector.shape_cast %399 : vector<8x128xf32> to vector<1x8x128xf32>
    tpu.vector_store %arg5[%400, %c0_202, %c0_203], %403 {strides = array<i32>} : memref<20x8x128xf32, #tpu.memory_space<vmem>>, vector<1x8x128xf32>,
    %cst_204 = arith.constant dense<0xFF800000> : vector<8xf32>
    %404 = vector.multi_reduction <maximumf>, %399, %cst_204 [1] : vector<8x128xf32> to vector<8xf32>
    %405 = vector.shape_cast %404 : vector<8xf32> to vector<8x1xf32>
    %406 = vector.broadcast %405 : vector<8x1xf32> to vector<8x128xf32>
    %407 = arith.cmpf oeq, %399, %406 : vector<8x128xf32>
    %c128_i32_205 = arith.constant 128 : i32
    %408 = vector.broadcast %c128_i32_205 : i32 to vector<8x128xi32>
    %409 = arith.select %407, %60, %408 : vector<8x128xi1>, vector<8x128xi32>
    %cst_206 = arith.constant dense<2147483647> : vector<8xi32>
    %410 = vector.multi_reduction <minsi>, %409, %cst_206 [1] : vector<8x128xi32> to vector<8xi32>
    %411 = vector.shape_cast %410 : vector<8xi32> to vector<8x1xi32>
    %412 = vector.broadcast %411 : vector<8x1xi32> to vector<8x128xi32>
    %413 = arith.cmpi eq, %60, %412 : vector<8x128xi32>
    %414 = arith.extui %413 : vector<8x128xi1> to vector<8x128xi32>
    %415 = arith.sitofp %414 : vector<8x128xi32> to vector<8x128xf32>
    %416 = vector.extract_strided_slice %397 {offsets = [0, 0], sizes = [8, 128], strides = [1, 1]} : vector<8x256xf32> to vector<8x128xf32>
    %c14_i32 = arith.constant 14 : i32
    %c0_207 = arith.constant 0 : index
    %c0_208 = arith.constant 0 : index
    %417 = vector.load %arg2[%c0_207, %c0_208] : memref<128x128xf32, #tpu.memory_space<vmem>>, vector<128x128xf32>
    %cst_209 = arith.constant dense<0.000000e+00> : vector<8x128xf32>
    %418 = tpu.matmul %415, %417, %cst_209 {dimension_numbers = #tpu.dot_dimension_numbers<[1], [0], [0], [1], [0, 0, 1, 1], [], []>} : vector<8x128xf32>, vector<128x128xf32>, vector<8x128xf32> -> vector<8x128xf32>
    %419 = arith.addf %418, %416 : vector<8x128xf32>
    %420 = math.tanh %419 : vector<8x128xf32>
    %c0_210 = arith.constant 0 : index
    %c0_211 = arith.constant 0 : index
    %421 = vector.load %arg3[%c0_210, %c0_211] : memref<128x256xf32, #tpu.memory_space<vmem>>, vector<128x256xf32>
    %cst_212 = arith.constant dense<0.000000e+00> : vector<8x256xf32>
    %422 = tpu.matmul %420, %421, %cst_212 {dimension_numbers = #tpu.dot_dimension_numbers<[1], [0], [0], [1], [0, 0, 1, 1], [], []>} : vector<8x128xf32>, vector<128x256xf32>, vector<8x256xf32> -> vector<8x256xf32>
    %423 = vector.extract_strided_slice %422 {offsets = [0, 128], sizes = [8, 128], strides = [1, 1]} : vector<8x256xf32> to vector<8x128xf32>
    %424 = arith.addf %423, %59 : vector<8x128xf32>
    %425 = arith.index_cast %c14_i32 : i32 to index
    %c0_213 = arith.constant 0 : index
    %c0_214 = arith.constant 0 : index
    %426 = vector.load %arg5[%425, %c0_213, %c0_214] : memref<20x8x128xf32, #tpu.memory_space<vmem>>, vector<1x8x128xf32>
    %427 = vector.shape_cast %426 : vector<1x8x128xf32> to vector<8x128xf32>
    %428 = vector.shape_cast %424 : vector<8x128xf32> to vector<1x8x128xf32>
    tpu.vector_store %arg5[%425, %c0_213, %c0_214], %428 {strides = array<i32>} : memref<20x8x128xf32, #tpu.memory_space<vmem>>, vector<1x8x128xf32>,
    %cst_215 = arith.constant dense<0xFF800000> : vector<8xf32>
    %429 = vector.multi_reduction <maximumf>, %424, %cst_215 [1] : vector<8x128xf32> to vector<8xf32>
    %430 = vector.shape_cast %429 : vector<8xf32> to vector<8x1xf32>
    %431 = vector.broadcast %430 : vector<8x1xf32> to vector<8x128xf32>
    %432 = arith.cmpf oeq, %424, %431 : vector<8x128xf32>
    %c128_i32_216 = arith.constant 128 : i32
    %433 = vector.broadcast %c128_i32_216 : i32 to vector<8x128xi32>
    %434 = arith.select %432, %60, %433 : vector<8x128xi1>, vector<8x128xi32>
    %cst_217 = arith.constant dense<2147483647> : vector<8xi32>
    %435 = vector.multi_reduction <minsi>, %434, %cst_217 [1] : vector<8x128xi32> to vector<8xi32>
    %436 = vector.shape_cast %435 : vector<8xi32> to vector<8x1xi32>
    %437 = vector.broadcast %436 : vector<8x1xi32> to vector<8x128xi32>
    %438 = arith.cmpi eq, %60, %437 : vector<8x128xi32>
    %439 = arith.extui %438 : vector<8x128xi1> to vector<8x128xi32>
    %440 = arith.sitofp %439 : vector<8x128xi32> to vector<8x128xf32>
    %441 = vector.extract_strided_slice %422 {offsets = [0, 0], sizes = [8, 128], strides = [1, 1]} : vector<8x256xf32> to vector<8x128xf32>
    %c15_i32 = arith.constant 15 : i32
    %c0_218 = arith.constant 0 : index
    %c0_219 = arith.constant 0 : index
    %442 = vector.load %arg2[%c0_218, %c0_219] : memref<128x128xf32, #tpu.memory_space<vmem>>, vector<128x128xf32>
    %cst_220 = arith.constant dense<0.000000e+00> : vector<8x128xf32>
    %443 = tpu.matmul %440, %442, %cst_220 {dimension_numbers = #tpu.dot_dimension_numbers<[1], [0], [0], [1], [0, 0, 1, 1], [], []>} : vector<8x128xf32>, vector<128x128xf32>, vector<8x128xf32> -> vector<8x128xf32>
    %444 = arith.addf %443, %441 : vector<8x128xf32>
    %445 = math.tanh %444 : vector<8x128xf32>
    %c0_221 = arith.constant 0 : index
    %c0_222 = arith.constant 0 : index
    %446 = vector.load %arg3[%c0_221, %c0_222] : memref<128x256xf32, #tpu.memory_space<vmem>>, vector<128x256xf32>
    %cst_223 = arith.constant dense<0.000000e+00> : vector<8x256xf32>
    %447 = tpu.matmul %445, %446, %cst_223 {dimension_numbers = #tpu.dot_dimension_numbers<[1], [0], [0], [1], [0, 0, 1, 1], [], []>} : vector<8x128xf32>, vector<128x256xf32>, vector<8x256xf32> -> vector<8x256xf32>
    %448 = vector.extract_strided_slice %447 {offsets = [0, 128], sizes = [8, 128], strides = [1, 1]} : vector<8x256xf32> to vector<8x128xf32>
    %449 = arith.addf %448, %59 : vector<8x128xf32>
    %450 = arith.index_cast %c15_i32 : i32 to index
    %c0_224 = arith.constant 0 : index
    %c0_225 = arith.constant 0 : index
    %451 = vector.load %arg5[%450, %c0_224, %c0_225] : memref<20x8x128xf32, #tpu.memory_space<vmem>>, vector<1x8x128xf32>
    %452 = vector.shape_cast %451 : vector<1x8x128xf32> to vector<8x128xf32>
    %453 = vector.shape_cast %449 : vector<8x128xf32> to vector<1x8x128xf32>
    tpu.vector_store %arg5[%450, %c0_224, %c0_225], %453 {strides = array<i32>} : memref<20x8x128xf32, #tpu.memory_space<vmem>>, vector<1x8x128xf32>,
    %cst_226 = arith.constant dense<0xFF800000> : vector<8xf32>
    %454 = vector.multi_reduction <maximumf>, %449, %cst_226 [1] : vector<8x128xf32> to vector<8xf32>
    %455 = vector.shape_cast %454 : vector<8xf32> to vector<8x1xf32>
    %456 = vector.broadcast %455 : vector<8x1xf32> to vector<8x128xf32>
    %457 = arith.cmpf oeq, %449, %456 : vector<8x128xf32>
    %c128_i32_227 = arith.constant 128 : i32
    %458 = vector.broadcast %c128_i32_227 : i32 to vector<8x128xi32>
    %459 = arith.select %457, %60, %458 : vector<8x128xi1>, vector<8x128xi32>
    %cst_228 = arith.constant dense<2147483647> : vector<8xi32>
    %460 = vector.multi_reduction <minsi>, %459, %cst_228 [1] : vector<8x128xi32> to vector<8xi32>
    %461 = vector.shape_cast %460 : vector<8xi32> to vector<8x1xi32>
    %462 = vector.broadcast %461 : vector<8x1xi32> to vector<8x128xi32>
    %463 = arith.cmpi eq, %60, %462 : vector<8x128xi32>
    %464 = arith.extui %463 : vector<8x128xi1> to vector<8x128xi32>
    %465 = arith.sitofp %464 : vector<8x128xi32> to vector<8x128xf32>
    %466 = vector.extract_strided_slice %447 {offsets = [0, 0], sizes = [8, 128], strides = [1, 1]} : vector<8x256xf32> to vector<8x128xf32>
    %c16_i32 = arith.constant 16 : i32
    %c0_229 = arith.constant 0 : index
    %c0_230 = arith.constant 0 : index
    %467 = vector.load %arg2[%c0_229, %c0_230] : memref<128x128xf32, #tpu.memory_space<vmem>>, vector<128x128xf32>
    %cst_231 = arith.constant dense<0.000000e+00> : vector<8x128xf32>
    %468 = tpu.matmul %465, %467, %cst_231 {dimension_numbers = #tpu.dot_dimension_numbers<[1], [0], [0], [1], [0, 0, 1, 1], [], []>} : vector<8x128xf32>, vector<128x128xf32>, vector<8x128xf32> -> vector<8x128xf32>
    %469 = arith.addf %468, %466 : vector<8x128xf32>
    %470 = math.tanh %469 : vector<8x128xf32>
    %c0_232 = arith.constant 0 : index
    %c0_233 = arith.constant 0 : index
    %471 = vector.load %arg3[%c0_232, %c0_233] : memref<128x256xf32, #tpu.memory_space<vmem>>, vector<128x256xf32>
    %cst_234 = arith.constant dense<0.000000e+00> : vector<8x256xf32>
    %472 = tpu.matmul %470, %471, %cst_234 {dimension_numbers = #tpu.dot_dimension_numbers<[1], [0], [0], [1], [0, 0, 1, 1], [], []>} : vector<8x128xf32>, vector<128x256xf32>, vector<8x256xf32> -> vector<8x256xf32>
    %473 = vector.extract_strided_slice %472 {offsets = [0, 128], sizes = [8, 128], strides = [1, 1]} : vector<8x256xf32> to vector<8x128xf32>
    %474 = arith.addf %473, %59 : vector<8x128xf32>
    %475 = arith.index_cast %c16_i32 : i32 to index
    %c0_235 = arith.constant 0 : index
    %c0_236 = arith.constant 0 : index
    %476 = vector.load %arg5[%475, %c0_235, %c0_236] : memref<20x8x128xf32, #tpu.memory_space<vmem>>, vector<1x8x128xf32>
    %477 = vector.shape_cast %476 : vector<1x8x128xf32> to vector<8x128xf32>
    %478 = vector.shape_cast %474 : vector<8x128xf32> to vector<1x8x128xf32>
    tpu.vector_store %arg5[%475, %c0_235, %c0_236], %478 {strides = array<i32>} : memref<20x8x128xf32, #tpu.memory_space<vmem>>, vector<1x8x128xf32>,
    %cst_237 = arith.constant dense<0xFF800000> : vector<8xf32>
    %479 = vector.multi_reduction <maximumf>, %474, %cst_237 [1] : vector<8x128xf32> to vector<8xf32>
    %480 = vector.shape_cast %479 : vector<8xf32> to vector<8x1xf32>
    %481 = vector.broadcast %480 : vector<8x1xf32> to vector<8x128xf32>
    %482 = arith.cmpf oeq, %474, %481 : vector<8x128xf32>
    %c128_i32_238 = arith.constant 128 : i32
    %483 = vector.broadcast %c128_i32_238 : i32 to vector<8x128xi32>
    %484 = arith.select %482, %60, %483 : vector<8x128xi1>, vector<8x128xi32>
    %cst_239 = arith.constant dense<2147483647> : vector<8xi32>
    %485 = vector.multi_reduction <minsi>, %484, %cst_239 [1] : vector<8x128xi32> to vector<8xi32>
    %486 = vector.shape_cast %485 : vector<8xi32> to vector<8x1xi32>
    %487 = vector.broadcast %486 : vector<8x1xi32> to vector<8x128xi32>
    %488 = arith.cmpi eq, %60, %487 : vector<8x128xi32>
    %489 = arith.extui %488 : vector<8x128xi1> to vector<8x128xi32>
    %490 = arith.sitofp %489 : vector<8x128xi32> to vector<8x128xf32>
    %491 = vector.extract_strided_slice %472 {offsets = [0, 0], sizes = [8, 128], strides = [1, 1]} : vector<8x256xf32> to vector<8x128xf32>
    %c17_i32 = arith.constant 17 : i32
    %c0_240 = arith.constant 0 : index
    %c0_241 = arith.constant 0 : index
    %492 = vector.load %arg2[%c0_240, %c0_241] : memref<128x128xf32, #tpu.memory_space<vmem>>, vector<128x128xf32>
    %cst_242 = arith.constant dense<0.000000e+00> : vector<8x128xf32>
    %493 = tpu.matmul %490, %492, %cst_242 {dimension_numbers = #tpu.dot_dimension_numbers<[1], [0], [0], [1], [0, 0, 1, 1], [], []>} : vector<8x128xf32>, vector<128x128xf32>, vector<8x128xf32> -> vector<8x128xf32>
    %494 = arith.addf %493, %491 : vector<8x128xf32>
    %495 = math.tanh %494 : vector<8x128xf32>
    %c0_243 = arith.constant 0 : index
    %c0_244 = arith.constant 0 : index
    %496 = vector.load %arg3[%c0_243, %c0_244] : memref<128x256xf32, #tpu.memory_space<vmem>>, vector<128x256xf32>
    %cst_245 = arith.constant dense<0.000000e+00> : vector<8x256xf32>
    %497 = tpu.matmul %495, %496, %cst_245 {dimension_numbers = #tpu.dot_dimension_numbers<[1], [0], [0], [1], [0, 0, 1, 1], [], []>} : vector<8x128xf32>, vector<128x256xf32>, vector<8x256xf32> -> vector<8x256xf32>
    %498 = vector.extract_strided_slice %497 {offsets = [0, 128], sizes = [8, 128], strides = [1, 1]} : vector<8x256xf32> to vector<8x128xf32>
    %499 = arith.addf %498, %59 : vector<8x128xf32>
    %500 = arith.index_cast %c17_i32 : i32 to index
    %c0_246 = arith.constant 0 : index
    %c0_247 = arith.constant 0 : index
    %501 = vector.load %arg5[%500, %c0_246, %c0_247] : memref<20x8x128xf32, #tpu.memory_space<vmem>>, vector<1x8x128xf32>
    %502 = vector.shape_cast %501 : vector<1x8x128xf32> to vector<8x128xf32>
    %503 = vector.shape_cast %499 : vector<8x128xf32> to vector<1x8x128xf32>
    tpu.vector_store %arg5[%500, %c0_246, %c0_247], %503 {strides = array<i32>} : memref<20x8x128xf32, #tpu.memory_space<vmem>>, vector<1x8x128xf32>,
    %cst_248 = arith.constant dense<0xFF800000> : vector<8xf32>
    %504 = vector.multi_reduction <maximumf>, %499, %cst_248 [1] : vector<8x128xf32> to vector<8xf32>
    %505 = vector.shape_cast %504 : vector<8xf32> to vector<8x1xf32>
    %506 = vector.broadcast %505 : vector<8x1xf32> to vector<8x128xf32>
    %507 = arith.cmpf oeq, %499, %506 : vector<8x128xf32>
    %c128_i32_249 = arith.constant 128 : i32
    %508 = vector.broadcast %c128_i32_249 : i32 to vector<8x128xi32>
    %509 = arith.select %507, %60, %508 : vector<8x128xi1>, vector<8x128xi32>
    %cst_250 = arith.constant dense<2147483647> : vector<8xi32>
    %510 = vector.multi_reduction <minsi>, %509, %cst_250 [1] : vector<8x128xi32> to vector<8xi32>
    %511 = vector.shape_cast %510 : vector<8xi32> to vector<8x1xi32>
    %512 = vector.broadcast %511 : vector<8x1xi32> to vector<8x128xi32>
    %513 = arith.cmpi eq, %60, %512 : vector<8x128xi32>
    %514 = arith.extui %513 : vector<8x128xi1> to vector<8x128xi32>
    %515 = arith.sitofp %514 : vector<8x128xi32> to vector<8x128xf32>
    %516 = vector.extract_strided_slice %497 {offsets = [0, 0], sizes = [8, 128], strides = [1, 1]} : vector<8x256xf32> to vector<8x128xf32>
    %c18_i32 = arith.constant 18 : i32
    %c0_251 = arith.constant 0 : index
    %c0_252 = arith.constant 0 : index
    %517 = vector.load %arg2[%c0_251, %c0_252] : memref<128x128xf32, #tpu.memory_space<vmem>>, vector<128x128xf32>
    %cst_253 = arith.constant dense<0.000000e+00> : vector<8x128xf32>
    %518 = tpu.matmul %515, %517, %cst_253 {dimension_numbers = #tpu.dot_dimension_numbers<[1], [0], [0], [1], [0, 0, 1, 1], [], []>} : vector<8x128xf32>, vector<128x128xf32>, vector<8x128xf32> -> vector<8x128xf32>
    %519 = arith.addf %518, %516 : vector<8x128xf32>
    %520 = math.tanh %519 : vector<8x128xf32>
    %c0_254 = arith.constant 0 : index
    %c0_255 = arith.constant 0 : index
    %521 = vector.load %arg3[%c0_254, %c0_255] : memref<128x256xf32, #tpu.memory_space<vmem>>, vector<128x256xf32>
    %cst_256 = arith.constant dense<0.000000e+00> : vector<8x256xf32>
    %522 = tpu.matmul %520, %521, %cst_256 {dimension_numbers = #tpu.dot_dimension_numbers<[1], [0], [0], [1], [0, 0, 1, 1], [], []>} : vector<8x128xf32>, vector<128x256xf32>, vector<8x256xf32> -> vector<8x256xf32>
    %523 = vector.extract_strided_slice %522 {offsets = [0, 128], sizes = [8, 128], strides = [1, 1]} : vector<8x256xf32> to vector<8x128xf32>
    %524 = arith.addf %523, %59 : vector<8x128xf32>
    %525 = arith.index_cast %c18_i32 : i32 to index
    %c0_257 = arith.constant 0 : index
    %c0_258 = arith.constant 0 : index
    %526 = vector.load %arg5[%525, %c0_257, %c0_258] : memref<20x8x128xf32, #tpu.memory_space<vmem>>, vector<1x8x128xf32>
    %527 = vector.shape_cast %526 : vector<1x8x128xf32> to vector<8x128xf32>
    %528 = vector.shape_cast %524 : vector<8x128xf32> to vector<1x8x128xf32>
    tpu.vector_store %arg5[%525, %c0_257, %c0_258], %528 {strides = array<i32>} : memref<20x8x128xf32, #tpu.memory_space<vmem>>, vector<1x8x128xf32>,
    %cst_259 = arith.constant dense<0xFF800000> : vector<8xf32>
    %529 = vector.multi_reduction <maximumf>, %524, %cst_259 [1] : vector<8x128xf32> to vector<8xf32>
    %530 = vector.shape_cast %529 : vector<8xf32> to vector<8x1xf32>
    %531 = vector.broadcast %530 : vector<8x1xf32> to vector<8x128xf32>
    %532 = arith.cmpf oeq, %524, %531 : vector<8x128xf32>
    %c128_i32_260 = arith.constant 128 : i32
    %533 = vector.broadcast %c128_i32_260 : i32 to vector<8x128xi32>
    %534 = arith.select %532, %60, %533 : vector<8x128xi1>, vector<8x128xi32>
    %cst_261 = arith.constant dense<2147483647> : vector<8xi32>
    %535 = vector.multi_reduction <minsi>, %534, %cst_261 [1] : vector<8x128xi32> to vector<8xi32>
    %536 = vector.shape_cast %535 : vector<8xi32> to vector<8x1xi32>
    %537 = vector.broadcast %536 : vector<8x1xi32> to vector<8x128xi32>
    %538 = arith.cmpi eq, %60, %537 : vector<8x128xi32>
    %539 = arith.extui %538 : vector<8x128xi1> to vector<8x128xi32>
    %540 = arith.sitofp %539 : vector<8x128xi32> to vector<8x128xf32>
    %541 = vector.extract_strided_slice %522 {offsets = [0, 0], sizes = [8, 128], strides = [1, 1]} : vector<8x256xf32> to vector<8x128xf32>
    %c19_i32 = arith.constant 19 : i32
    %c0_262 = arith.constant 0 : index
    %c0_263 = arith.constant 0 : index
    %542 = vector.load %arg2[%c0_262, %c0_263] : memref<128x128xf32, #tpu.memory_space<vmem>>, vector<128x128xf32>
    %cst_264 = arith.constant dense<0.000000e+00> : vector<8x128xf32>
    %543 = tpu.matmul %540, %542, %cst_264 {dimension_numbers = #tpu.dot_dimension_numbers<[1], [0], [0], [1], [0, 0, 1, 1], [], []>} : vector<8x128xf32>, vector<128x128xf32>, vector<8x128xf32> -> vector<8x128xf32>
    %544 = arith.addf %543, %541 : vector<8x128xf32>
    %545 = math.tanh %544 : vector<8x128xf32>
    %c0_265 = arith.constant 0 : index
    %c0_266 = arith.constant 0 : index
    %546 = vector.load %arg3[%c0_265, %c0_266] : memref<128x256xf32, #tpu.memory_space<vmem>>, vector<128x256xf32>
    %cst_267 = arith.constant dense<0.000000e+00> : vector<8x256xf32>
    %547 = tpu.matmul %545, %546, %cst_267 {dimension_numbers = #tpu.dot_dimension_numbers<[1], [0], [0], [1], [0, 0, 1, 1], [], []>} : vector<8x128xf32>, vector<128x256xf32>, vector<8x256xf32> -> vector<8x256xf32>
    %548 = vector.extract_strided_slice %547 {offsets = [0, 128], sizes = [8, 128], strides = [1, 1]} : vector<8x256xf32> to vector<8x128xf32>
    %549 = arith.addf %548, %59 : vector<8x128xf32>
    %550 = arith.index_cast %c19_i32 : i32 to index
    %c0_268 = arith.constant 0 : index
    %c0_269 = arith.constant 0 : index
    %551 = vector.load %arg5[%550, %c0_268, %c0_269] : memref<20x8x128xf32, #tpu.memory_space<vmem>>, vector<1x8x128xf32>
    %552 = vector.shape_cast %551 : vector<1x8x128xf32> to vector<8x128xf32>
    %553 = vector.shape_cast %549 : vector<8x128xf32> to vector<1x8x128xf32>
    tpu.vector_store %arg5[%550, %c0_268, %c0_269], %553 {strides = array<i32>} : memref<20x8x128xf32, #tpu.memory_space<vmem>>, vector<1x8x128xf32>,
    %cst_270 = arith.constant dense<0xFF800000> : vector<8xf32>
    %554 = vector.multi_reduction <maximumf>, %549, %cst_270 [1] : vector<8x128xf32> to vector<8xf32>
    %555 = vector.shape_cast %554 : vector<8xf32> to vector<8x1xf32>
    %556 = vector.broadcast %555 : vector<8x1xf32> to vector<8x128xf32>
    %557 = arith.cmpf oeq, %549, %556 : vector<8x128xf32>
    %c128_i32_271 = arith.constant 128 : i32
    %558 = vector.broadcast %c128_i32_271 : i32 to vector<8x128xi32>
    %559 = arith.select %557, %60, %558 : vector<8x128xi1>, vector<8x128xi32>
    %cst_272 = arith.constant dense<2147483647> : vector<8xi32>
    %560 = vector.multi_reduction <minsi>, %559, %cst_272 [1] : vector<8x128xi32> to vector<8xi32>
    %561 = vector.shape_cast %560 : vector<8xi32> to vector<8x1xi32>
    %562 = vector.broadcast %561 : vector<8x1xi32> to vector<8x128xi32>
    %563 = arith.cmpi eq, %60, %562 : vector<8x128xi32>
    %564 = arith.extui %563 : vector<8x128xi1> to vector<8x128xi32>
    %565 = arith.sitofp %564 : vector<8x128xi32> to vector<8x128xf32>
    %566 = vector.extract_strided_slice %547 {offsets = [0, 0], sizes = [8, 128], strides = [1, 1]} : vector<8x256xf32> to vector<8x128xf32>
    %c20_i32 = arith.constant 20 : i32
    return
  }
}

</mosaic_0001>

<llo_original>
// kernel: tpu_custom_call.1
$region0: #{tpu_custom_call.1}
  #allocation0 [shape = 'u32[]', space=smem, size = 0x4, offset = 0x4, fixed_abs, tag = 'smem constant byte address 0x4 - core index']
  #allocation1 [shape = 'u32[144,128]{1,0:T(1,128)}', space=vmem, size = 0x12000, scoped, tag = 'internal scratch']
  %s0 = inlined_call_operand.hbm [shape: f32[8,8,128], index: 0, kind: input, shape index: {}]
  %s1 = inlined_call_operand.hbm [shape: f32[128,128], index: 1, kind: input, shape index: {}]
  %s2 = inlined_call_operand.hbm [shape: f32[128,128], index: 2, kind: input, shape index: {}]
  %s3 = inlined_call_operand.hbm [shape: f32[128,256], index: 3, kind: input, shape index: {}]
  %s4 = inlined_call_operand.vmem [shape: f32[1,128], index: 4, kind: input, shape index: {}]
  %s5 = inlined_call_operand.hbm [shape: f32[20,8,128], index: 5, kind: output, shape index: {}]
  %s6 = sld [smem:[#allocation0]]
  $region46: #{tpu_custom_call.1} parent=0
    _
  %s8 = ssub.s32 1, %s6
  %s9 = scalar_select 0, %s8, %s6
  $region1: #{tpu_custom_call.1} parent=0
    #allocation2 [shape = 'u8[32768]{0}', space=vmem, size = 0x8000, scoped, tag = 'input window, operand 0, single buffered']
    #allocation3 [shape = 's32[1]{0}', space=sflag, size = 0x4, scoped, tag = 'scoped memory for tpu_custom_call.1']
    #allocation4 [shape = 's32[1]{0}', space=sflag, size = 0x4, scoped, tag = 'scoped memory for tpu_custom_call.1']
    #allocation5 [shape = 'u8[65536]{0}', space=vmem, size = 0x10000, scoped, tag = 'input window, operand 1, single buffered']
    #allocation6 [shape = 's32[1]{0}', space=sflag, size = 0x4, scoped, tag = 'scoped memory for tpu_custom_call.1']
    #allocation7 [shape = 'u8[65536]{0}', space=vmem, size = 0x10000, scoped, tag = 'input window, operand 2, single buffered']
    #allocation8 [shape = 'u8[131072]{0}', space=vmem, size = 0x20000, scoped, tag = 'input window, operand 3, single buffered']
    #allocation9 [shape = 's32[1]{0}', space=sflag, size = 0x4, scoped, tag = 'scoped memory for tpu_custom_call.1']
    #allocation10 [shape = 'u8[81920]{0}', space=vmem, size = 0x14000, scoped, tag = 'output window, operand 0, single buffered']
    %10 = vsyncpa [#allocation3], 0
    %11 = vsyncpa [#allocation6], 0
    %12 = vsyncpa [#allocation9], 0
    %13 = vsyncpa [#allocation4], 0
    // Predicated region
    $region2: #{tpu_custom_call.1} parent=1 // pred_check
      _
    $region3: #{tpu_custom_call.1} parent=1 // pred_check_branch
      %15 = sbr.rel (0) target = $region5
    $region4: #{tpu_custom_call.1} parent=1 // pred_region
      %s17 = ssub.s32 1024, 1024
      %18 = vsyncadd [#allocation3], %s17
      %s19 = sshll.u32 [#allocation2], 4
      %s20 = int_to_ptr.vmem [resolvable:$true] %s19
      %25 = dma.hbm_to_vmem [thread:$0]  %s0, 1024, %s20, [#allocation3], 128, 128, 8
    $region5: #{tpu_custom_call.1} parent=1 // pred_fallthru
      _
    // Predicated region
    $region6: #{tpu_custom_call.1} parent=1 // pred_check
      _
    $region7: #{tpu_custom_call.1} parent=1 // pred_check_branch
      %27 = sbr.rel (0) target = $region9
    $region8: #{tpu_custom_call.1} parent=1 // pred_region
      %s29 = ssub.s32 2048, 2048
      %30 = vsyncadd [#allocation6], %s29
      %s31 = sshll.u32 [#allocation5], 4
      %s32 = int_to_ptr.vmem [resolvable:$true] %s31
      %37 = dma.hbm_to_vmem [thread:$0]  %s1, 2048, %s32, [#allocation6], 128, 128, 8
    $region9: #{tpu_custom_call.1} parent=1 // pred_fallthru
      _
    // Predicated region
    $region10: #{tpu_custom_call.1} parent=1 // pred_check
      _
    $region11: #{tpu_custom_call.1} parent=1 // pred_check_branch
      %39 = sbr.rel (0) target = $region13
    $region12: #{tpu_custom_call.1} parent=1 // pred_region
      %s41 = ssub.s32 2048, 2048
      %42 = vsyncadd [#allocation6], %s41
      %s43 = sshll.u32 [#allocation7], 4
      %s44 = int_to_ptr.vmem [resolvable:$true] %s43
      %49 = dma.hbm_to_vmem [thread:$0]  %s2, 2048, %s44, [#allocation6], 128, 128, 8
    $region13: #{tpu_custom_call.1} parent=1 // pred_fallthru
      _
    // Predicated region
    $region14: #{tpu_custom_call.1} parent=1 // pred_check
      _
    $region15: #{tpu_custom_call.1} parent=1 // pred_check_branch
      %51 = sbr.rel (0) target = $region17
    $region16: #{tpu_custom_call.1} parent=1 // pred_region
      %s53 = ssub.s32 4096, 4096
      %54 = vsyncadd [#allocation9], %s53
      %s55 = sshll.u32 [#allocation8], 4
      %s56 = int_to_ptr.vmem [resolvable:$true] %s55
      %61 = dma.hbm_to_vmem [thread:$0]  %s3, 4096, %s56, [#allocation9], 256, 256, 16
    $region17: #{tpu_custom_call.1} parent=1 // pred_fallthru
      _
    // Predicated region
    $region18: #{tpu_custom_call.1} parent=1 // pred_check
      _
    $region19: #{tpu_custom_call.1} parent=1 // pred_check_branch
      %63 = sbr.rel (0) target = $region21
    $region20: #{tpu_custom_call.1} parent=1 // pred_region
      _
    $region21: #{tpu_custom_call.1} parent=1 // pred_fallthru
      _
    // Predicated region
    $region22: #{tpu_custom_call.1} parent=1 // pred_check
      _
    $region23: #{tpu_custom_call.1} parent=1 // pred_check_branch
      %65 = sbr.rel (0) target = $region25
    $region24: #{tpu_custom_call.1} parent=1 // pred_region
      %66 = dma.done [#allocation3], 1024
    $region25: #{tpu_custom_call.1} parent=1 // pred_fallthru
      _
    // Predicated region
    $region26: #{tpu_custom_call.1} parent=1 // pred_check
      _
    $region27: #{tpu_custom_call.1} parent=1 // pred_check_branch
      %68 = sbr.rel (0) target = $region29
    $region28: #{tpu_custom_call.1} parent=1 // pred_region
      %69 = dma.done [#allocation6], 2048
    $region29: #{tpu_custom_call.1} parent=1 // pred_fallthru
      _
    // Predicated region
    $region30: #{tpu_custom_call.1} parent=1 // pred_check
      _
    $region31: #{tpu_custom_call.1} parent=1 // pred_check_branch
      %71 = sbr.rel (0) target = $region33
    $region32: #{tpu_custom_call.1} parent=1 // pred_region
      %72 = dma.done [#allocation6], 2048
    $region33: #{tpu_custom_call.1} parent=1 // pred_fallthru
      _
    // Predicated region
    $region34: #{tpu_custom_call.1} parent=1 // pred_check
      _
    $region35: #{tpu_custom_call.1} parent=1 // pred_check_branch
      %74 = sbr.rel (0) target = $region37
    $region36: #{tpu_custom_call.1} parent=1 // pred_region
      %75 = dma.done [#allocation9], 4096
    $region37: #{tpu_custom_call.1} parent=1 // pred_fallthru
      _
    %v76 = vld [vmem:[#allocation2] sm:$0xff]
    %v77 = vld [vmem:[#allocation5] sm:$0xff]
    %v78 = vld [vmem:[#allocation5 + $0x8] sm:$0xff]
    %v79 = vld [vmem:[#allocation5 + $0x10] sm:$0xff]
    %v80 = vld [vmem:[#allocation5 + $0x18] sm:$0xff]
    %v81 = vld [vmem:[#allocation5 + $0x20] sm:$0xff]
    %v82 = vld [vmem:[#allocation5 + $0x28] sm:$0xff]
    %v83 = vld [vmem:[#allocation5 + $0x30] sm:$0xff]
    %v84 = vld [vmem:[#allocation5 + $0x38] sm:$0xff]
    %v85 = vld [vmem:[#allocation5 + $0x40] sm:$0xff]
    %v86 = vld [vmem:[#allocation5 + $0x48] sm:$0xff]
    %v87 = vld [vmem:[#allocation5 + $0x50] sm:$0xff]
    %v88 = vld [vmem:[#allocation5 + $0x58] sm:$0xff]
    %v89 = vld [vmem:[#allocation5 + $0x60] sm:$0xff]
    %v90 = vld [vmem:[#allocation5 + $0x68] sm:$0xff]
    %v91 = vld [vmem:[#allocation5 + $0x70] sm:$0xff]
    %v92 = vld [vmem:[#allocation5 + $0x78] sm:$0xff]
    %93 = vmatprep.subr.mxu0 0.0
    %94 = vmatpush1.msra.mxu0 %v77
    %95 = vmatprep.subr.mxu0 0.0
    %96 = vmatpush1.msra.mxu0 %v78
    %97 = vmatprep.subr.mxu0 0.0
    %98 = vmatpush1.msra.mxu0 %v79
    %99 = vmatprep.subr.mxu0 0.0
    %100 = vmatpush1.msra.mxu0 %v80
    %101 = vmatprep.subr.mxu0 0.0
    %102 = vmatpush1.msra.mxu0 %v81
    %103 = vmatprep.subr.mxu0 0.0
    %104 = vmatpush1.msra.mxu0 %v82
    %105 = vmatprep.subr.mxu0 0.0
    %106 = vmatpush1.msra.mxu0 %v83
    %107 = vmatprep.subr.mxu0 0.0
    %108 = vmatpush1.msra.mxu0 %v84
    %109 = vmatprep.subr.mxu0 0.0
    %110 = vmatpush1.msra.mxu0 %v85
    %111 = vmatprep.subr.mxu0 0.0
    %112 = vmatpush1.msra.mxu0 %v86
    %113 = vmatprep.subr.mxu0 0.0
    %114 = vmatpush1.msra.mxu0 %v87
    %115 = vmatprep.subr.mxu0 0.0
    %116 = vmatpush1.msra.mxu0 %v88
    %117 = vmatprep.subr.mxu0 0.0
    %118 = vmatpush1.msra.mxu0 %v89
    %119 = vmatprep.subr.mxu0 0.0
    %120 = vmatpush1.msra.mxu0 %v90
    %121 = vmatprep.subr.mxu0 0.0
    %122 = vmatpush1.msra.mxu0 %v91
    %123 = vmatprep.subr.mxu0 0.0
    %124 = vmatpush1.msra.mxu0 %v92
    %125 = vmatprep.subr.mxu0 0.0
    %126 = vmatpush1.msra.mxu0 0.0
    %127 = vmatprep.subr.mxu0 0.0
    %128 = vmatpush1.msra.mxu0 0.0
    %129 = vmatprep.subr.mxu0 0.0
    %130 = vmatpush1.msra.mxu0 0.0
    %131 = vmatprep.subr.mxu0 0.0
    %132 = vmatpush1.msra.mxu0 0.0
    %133 = vmatprep.subr.mxu0 0.0
    %134 = vmatpush1.msra.mxu0 0.0
    %135 = vmatprep.subr.mxu0 0.0
    %136 = vmatpush1.msra.mxu0 0.0
    %137 = vmatprep.subr.mxu0 0.0
    %138 = vmatpush1.msra.mxu0 0.0
    %139 = vmatprep.subr.mxu0 0.0
    %140 = vmatpush1.msra.mxu0 0.0
    %141 = vmatprep.subr.mxu0 0.0
    %142 = vmatpush1.msra.mxu0 0.0
    %143 = vmatprep.subr.mxu0 0.0
    %144 = vmatpush1.msra.mxu0 0.0
    %145 = vmatprep.subr.mxu0 0.0
    %146 = vmatpush1.msra.mxu0 0.0
    %147 = vmatprep.subr.mxu0 0.0
    %148 = vmatpush1.msra.mxu0 0.0
    %149 = vmatprep.subr.mxu0 0.0
    %150 = vmatpush1.msra.mxu0 0.0
    %151 = vmatprep.subr.mxu0 0.0
    %152 = vmatpush1.msra.mxu0 0.0
    %153 = vmatprep.subr.mxu0 0.0
    %154 = vmatpush1.msra.mxu0 0.0
    %155 = vmatprep.subr.mxu0 0.0
    %156 = vmatpush1.msra.mxu0 0.0
    %157 = vmatprep.mubr.f32.mxu0 0.0
    %158 = vmatmul.mubr.f32.gmra.mrb[0].mxu0 0.0
    %v159 = vpop.f32.mrb[0].mxu0
    %v160 = vadd.f32 0.0, %v159
    %v161 = vpop.f32.mrb[0].mxu0
    %162 = vdwg.mxu0
    %v163 = vadd.f32 %v76, %v160
    %v164 = vtanh.pop %v163
    %s165 = scalar_lea.vmem [#allocation2], 8
    %v166 = vld [vmem:[%s165] sm:$0xff]
    %167 = vmatprep.subr.mxu0 0.0
    %168 = vmatpush1.msra.mxu0 %v77
    %169 = vmatprep.subr.mxu0 0.0
    %170 = vmatpush1.msra.mxu0 %v78
    %171 = vmatprep.subr.mxu0 0.0
    %172 = vmatpush1.msra.mxu0 %v79
    %173 = vmatprep.subr.mxu0 0.0
    %174 = vmatpush1.msra.mxu0 %v80
    %175 = vmatprep.subr.mxu0 0.0
    %176 = vmatpush1.msra.mxu0 %v81
    %177 = vmatprep.subr.mxu0 0.0
    %178 = vmatpush1.msra.mxu0 %v82
    %179 = vmatprep.subr.mxu0 0.0
    %180 = vmatpush1.msra.mxu0 %v83
    %181 = vmatprep.subr.mxu0 0.0
    %182 = vmatpush1.msra.mxu0 %v84
    %183 = vmatprep.subr.mxu0 0.0
    %184 = vmatpush1.msra.mxu0 %v85
    %185 = vmatprep.subr.mxu0 0.0
    %186 = vmatpush1.msra.mxu0 %v86
    %187 = vmatprep.subr.mxu0 0.0
    %188 = vmatpush1.msra.mxu0 %v87
    %189 = vmatprep.subr.mxu0 0.0
    %190 = vmatpush1.msra.mxu0 %v88
    %191 = vmatprep.subr.mxu0 0.0
    %192 = vmatpush1.msra.mxu0 %v89
    %193 = vmatprep.subr.mxu0 0.0
    %194 = vmatpush1.msra.mxu0 %v90
    %195 = vmatprep.subr.mxu0 0.0
    %196 = vmatpush1.msra.mxu0 %v91
    %197 = vmatprep.subr.mxu0 0.0
    %198 = vmatpush1.msra.mxu0 %v92
    %199 = vmatprep.subr.mxu0 0.0
    %200 = vmatpush1.msra.mxu0 0.0
    %201 = vmatprep.subr.mxu0 0.0
    %202 = vmatpush1.msra.mxu0 0.0
    %203 = vmatprep.subr.mxu0 0.0
    %204 = vmatpush1.msra.mxu0 0.0
    %205 = vmatprep.subr.mxu0 0.0
    %206 = vmatpush1.msra.mxu0 0.0
    %207 = vmatprep.subr.mxu0 0.0
    %208 = vmatpush1.msra.mxu0 0.0
    %209 = vmatprep.subr.mxu0 0.0
    %210 = vmatpush1.msra.mxu0 0.0
    %211 = vmatprep.subr.mxu0 0.0
    %212 = vmatpush1.msra.mxu0 0.0
    %213 = vmatprep.subr.mxu0 0.0
    %214 = vmatpush1.msra.mxu0 0.0
    %215 = vmatprep.subr.mxu0 0.0
    %216 = vmatpush1.msra.mxu0 0.0
    %217 = vmatprep.subr.mxu0 0.0
    %218 = vmatpush1.msra.mxu0 0.0
    %219 = vmatprep.subr.mxu0 0.0
    %220 = vmatpush1.msra.mxu0 0.0
    %221 = vmatprep.subr.mxu0 0.0
    %222 = vmatpush1.msra.mxu0 0.0
    %223 = vmatprep.subr.mxu0 0.0
    %224 = vmatpush1.msra.mxu0 0.0
    %225 = vmatprep.subr.mxu0 0.0
    %226 = vmatpush1.msra.mxu0 0.0
    %227 = vmatprep.subr.mxu0 0.0
    %228 = vmatpush1.msra.mxu0 0.0
    %229 = vmatprep.subr.mxu0 0.0
    %230 = vmatpush1.msra.mxu0 0.0
    %231 = vmatprep.mubr.f32.mxu0 0.0
    %232 = vmatmul.mubr.f32.gmra.mrb[0].mxu0 %v164
    %v233 = vpop.f32.mrb[0].mxu0
    %v234 = vadd.f32 0.0, %v233
    %v235 = vpop.f32.mrb[0].mxu0
    %236 = vdwg.mxu0
    %v237 = vadd.f32 %v166, %v234
    %v238 = vtanh.pop %v237
    %s239 = scalar_lea.vmem [#allocation2], 16
    %v240 = vld [vmem:[%s239] sm:$0xff]
    %241 = vmatprep.subr.mxu0 0.0
    %242 = vmatpush1.msra.mxu0 %v77
    %243 = vmatprep.subr.mxu0 0.0
    %244 = vmatpush1.msra.mxu0 %v78
    %245 = vmatprep.subr.mxu0 0.0
    %246 = vmatpush1.msra.mxu0 %v79
    %247 = vmatprep.subr.mxu0 0.0
    %248 = vmatpush1.msra.mxu0 %v80
    %249 = vmatprep.subr.mxu0 0.0
    %250 = vmatpush1.msra.mxu0 %v81
    %251 = vmatprep.subr.mxu0 0.0
    %252 = vmatpush1.msra.mxu0 %v82
    %253 = vmatprep.subr.mxu0 0.0
    %254 = vmatpush1.msra.mxu0 %v83
    %255 = vmatprep.subr.mxu0 0.0
    %256 = vmatpush1.msra.mxu0 %v84
    %257 = vmatprep.subr.mxu0 0.0
    %258 = vmatpush1.msra.mxu0 %v85
    %259 = vmatprep.subr.mxu0 0.0
    %260 = vmatpush1.msra.mxu0 %v86
    %261 = vmatprep.subr.mxu0 0.0
    %262 = vmatpush1.msra.mxu0 %v87
    %263 = vmatprep.subr.mxu0 0.0
    %264 = vmatpush1.msra.mxu0 %v88
    %265 = vmatprep.subr.mxu0 0.0
    %266 = vmatpush1.msra.mxu0 %v89
    %267 = vmatprep.subr.mxu0 0.0
    %268 = vmatpush1.msra.mxu0 %v90
    %269 = vmatprep.subr.mxu0 0.0
    %270 = vmatpush1.msra.mxu0 %v91
    %271 = vmatprep.subr.mxu0 0.0
    %272 = vmatpush1.msra.mxu0 %v92
    %273 = vmatprep.subr.mxu0 0.0
    %274 = vmatpush1.msra.mxu0 0.0
    %275 = vmatprep.subr.mxu0 0.0
    %276 = vmatpush1.msra.mxu0 0.0
    %277 = vmatprep.subr.mxu0 0.0
    %278 = vmatpush1.msra.mxu0 0.0
    %279 = vmatprep.subr.mxu0 0.0
    %280 = vmatpush1.msra.mxu0 0.0
    %281 = vmatprep.subr.mxu0 0.0
    %282 = vmatpush1.msra.mxu0 0.0
    %283 = vmatprep.subr.mxu0 0.0
    %284 = vmatpush1.msra.mxu0 0.0
    %285 = vmatprep.subr.mxu0 0.0
    %286 = vmatpush1.msra.mxu0 0.0
    %287 = vmatprep.subr.mxu0 0.0
    %288 = vmatpush1.msra.mxu0 0.0
    %289 = vmatprep.subr.mxu0 0.0
    %290 = vmatpush1.msra.mxu0 0.0
    %291 = vmatprep.subr.mxu0 0.0
    %292 = vmatpush1.msra.mxu0 0.0
    %293 = vmatprep.subr.mxu0 0.0
    %294 = vmatpush1.msra.mxu0 0.0
    %295 = vmatprep.subr.mxu0 0.0
    %296 = vmatpush1.msra.mxu0 0.0
    %297 = vmatprep.subr.mxu0 0.0
    %298 = vmatpush1.msra.mxu0 0.0
    %299 = vmatprep.subr.mxu0 0.0
    %300 = vmatpush1.msra.mxu0 0.0
    %301 = vmatprep.subr.mxu0 0.0
    %302 = vmatpush1.msra.mxu0 0.0
    %303 = vmatprep.subr.mxu0 0.0
    %304 = vmatpush1.msra.mxu0 0.0
    %305 = vmatprep.mubr.f32.mxu0 0.0
    %306 = vmatmul.mubr.f32.gmra.mrb[0].mxu0 %v238
    %v307 = vpop.f32.mrb[0].mxu0
    %v308 = vadd.f32 0.0, %v307
    %v309 = vpop.f32.mrb[0].mxu0
    %310 = vdwg.mxu0
    %v311 = vadd.f32 %v240, %v308
    %v312 = vtanh.pop %v311
    %s313 = scalar_lea.vmem [#allocation2], 24
    %v314 = vld [vmem:[%s313] sm:$0xff]
    %315 = vmatprep.subr.mxu0 0.0
    %316 = vmatpush1.msra.mxu0 %v77
    %317 = vmatprep.subr.mxu0 0.0
    %318 = vmatpush1.msra.mxu0 %v78
    %319 = vmatprep.subr.mxu0 0.0
    %320 = vmatpush1.msra.mxu0 %v79
    %321 = vmatprep.subr.mxu0 0.0
    %322 = vmatpush1.msra.mxu0 %v80
    %323 = vmatprep.subr.mxu0 0.0
    %324 = vmatpush1.msra.mxu0 %v81
    %325 = vmatprep.subr.mxu0 0.0
    %326 = vmatpush1.msra.mxu0 %v82
    %327 = vmatprep.subr.mxu0 0.0
    %328 = vmatpush1.msra.mxu0 %v83
    %329 = vmatprep.subr.mxu0 0.0
    %330 = vmatpush1.msra.mxu0 %v84
    %331 = vmatprep.subr.mxu0 0.0
    %332 = vmatpush1.msra.mxu0 %v85
    %333 = vmatprep.subr.mxu0 0.0
    %334 = vmatpush1.msra.mxu0 %v86
    %335 = vmatprep.subr.mxu0 0.0
    %336 = vmatpush1.msra.mxu0 %v87
    %337 = vmatprep.subr.mxu0 0.0
    %338 = vmatpush1.msra.mxu0 %v88
    %339 = vmatprep.subr.mxu0 0.0
    %340 = vmatpush1.msra.mxu0 %v89
    %341 = vmatprep.subr.mxu0 0.0
    %342 = vmatpush1.msra.mxu0 %v90
    %343 = vmatprep.subr.mxu0 0.0
    %344 = vmatpush1.msra.mxu0 %v91
    %345 = vmatprep.subr.mxu0 0.0
    %346 = vmatpush1.msra.mxu0 %v92
    %347 = vmatprep.subr.mxu0 0.0
    %348 = vmatpush1.msra.mxu0 0.0
    %349 = vmatprep.subr.mxu0 0.0
    %350 = vmatpush1.msra.mxu0 0.0
    %351 = vmatprep.subr.mxu0 0.0
    %352 = vmatpush1.msra.mxu0 0.0
    %353 = vmatprep.subr.mxu0 0.0
    %354 = vmatpush1.msra.mxu0 0.0
    %355 = vmatprep.subr.mxu0 0.0
    %356 = vmatpush1.msra.mxu0 0.0
    %357 = vmatprep.subr.mxu0 0.0
    %358 = vmatpush1.msra.mxu0 0.0
    %359 = vmatprep.subr.mxu0 0.0
    %360 = vmatpush1.msra.mxu0 0.0
    %361 = vmatprep.subr.mxu0 0.0
    %362 = vmatpush1.msra.mxu0 0.0
    %363 = vmatprep.subr.mxu0 0.0
    %364 = vmatpush1.msra.mxu0 0.0
    %365 = vmatprep.subr.mxu0 0.0
    %366 = vmatpush1.msra.mxu0 0.0
    %367 = vmatprep.subr.mxu0 0.0
    %368 = vmatpush1.msra.mxu0 0.0
    %369 = vmatprep.subr.mxu0 0.0
    %370 = vmatpush1.msra.mxu0 0.0
    %371 = vmatprep.subr.mxu0 0.0
    %372 = vmatpush1.msra.mxu0 0.0
    %373 = vmatprep.subr.mxu0 0.0
    %374 = vmatpush1.msra.mxu0 0.0
    %375 = vmatprep.subr.mxu0 0.0
    %376 = vmatpush1.msra.mxu0 0.0
    %377 = vmatprep.subr.mxu0 0.0
    %378 = vmatpush1.msra.mxu0 0.0
    %379 = vmatprep.mubr.f32.mxu0 0.0
    %380 = vmatmul.mubr.f32.gmra.mrb[0].mxu0 %v312
    %v381 = vpop.f32.mrb[0].mxu0
    %v382 = vadd.f32 0.0, %v381
    %v383 = vpop.f32.mrb[0].mxu0
    %384 = vdwg.mxu0
    %v385 = vadd.f32 %v314, %v382
    %v386 = vtanh.pop %v385
    %s387 = scalar_lea.vmem [#allocation2], 32
    %v388 = vld [vmem:[%s387] sm:$0xff]
    %389 = vmatprep.subr.mxu0 0.0
    %390 = vmatpush1.msra.mxu0 %v77
    %391 = vmatprep.subr.mxu0 0.0
    %392 = vmatpush1.msra.mxu0 %v78
    %393 = vmatprep.subr.mxu0 0.0
    %394 = vmatpush1.msra.mxu0 %v79
    %395 = vmatprep.subr.mxu0 0.0
    %396 = vmatpush1.msra.mxu0 %v80
    %397 = vmatprep.subr.mxu0 0.0
    %398 = vmatpush1.msra.mxu0 %v81
    %399 = vmatprep.subr.mxu0 0.0
    %400 = vmatpush1.msra.mxu0 %v82
    %401 = vmatprep.subr.mxu0 0.0
    %402 = vmatpush1.msra.mxu0 %v83
    %403 = vmatprep.subr.mxu0 0.0
    %404 = vmatpush1.msra.mxu0 %v84
    %405 = vmatprep.subr.mxu0 0.0
    %406 = vmatpush1.msra.mxu0 %v85
    %407 = vmatprep.subr.mxu0 0.0
    %408 = vmatpush1.msra.mxu0 %v86
    %409 = vmatprep.subr.mxu0 0.0
    %410 = vmatpush1.msra.mxu0 %v87
    %411 = vmatprep.subr.mxu0 0.0
    %412 = vmatpush1.msra.mxu0 %v88
    %413 = vmatprep.subr.mxu0 0.0
    %414 = vmatpush1.msra.mxu0 %v89
    %415 = vmatprep.subr.mxu0 0.0
    %416 = vmatpush1.msra.mxu0 %v90
    %417 = vmatprep.subr.mxu0 0.0
    %418 = vmatpush1.msra.mxu0 %v91
    %419 = vmatprep.subr.mxu0 0.0
    %420 = vmatpush1.msra.mxu0 %v92
    %421 = vmatprep.subr.mxu0 0.0
    %422 = vmatpush1.msra.mxu0 0.0
    %423 = vmatprep.subr.mxu0 0.0
    %424 = vmatpush1.msra.mxu0 0.0
    %425 = vmatprep.subr.mxu0 0.0
    %426 = vmatpush1.msra.mxu0 0.0
    %427 = vmatprep.subr.mxu0 0.0
    %428 = vmatpush1.msra.mxu0 0.0
    %429 = vmatprep.subr.mxu0 0.0
    %430 = vmatpush1.msra.mxu0 0.0
    %431 = vmatprep.subr.mxu0 0.0
    %432 = vmatpush1.msra.mxu0 0.0
    %433 = vmatprep.subr.mxu0 0.0
    %434 = vmatpush1.msra.mxu0 0.0
    %435 = vmatprep.subr.mxu0 0.0
    %436 = vmatpush1.msra.mxu0 0.0
    %437 = vmatprep.subr.mxu0 0.0
    %438 = vmatpush1.msra.mxu0 0.0
    %439 = vmatprep.subr.mxu0 0.0
    %440 = vmatpush1.msra.mxu0 0.0
    %441 = vmatprep.subr.mxu0 0.0
    %442 = vmatpush1.msra.mxu0 0.0
    %443 = vmatprep.subr.mxu0 0.0
    %444 = vmatpush1.msra.mxu0 0.0
    %445 = vmatprep.subr.mxu0 0.0
    %446 = vmatpush1.msra.mxu0 0.0
    %447 = vmatprep.subr.mxu0 0.0
    %448 = vmatpush1.msra.mxu0 0.0
    %449 = vmatprep.subr.mxu0 0.0
    %450 = vmatpush1.msra.mxu0 0.0
    %451 = vmatprep.subr.mxu0 0.0
    %452 = vmatpush1.msra.mxu0 0.0
    %453 = vmatprep.mubr.f32.mxu0 0.0
    %454 = vmatmul.mubr.f32.gmra.mrb[0].mxu0 %v386
    %v455 = vpop.f32.mrb[0].mxu0
    %v456 = vadd.f32 0.0, %v455
    %v457 = vpop.f32.mrb[0].mxu0
    %458 = vdwg.mxu0
    %v459 = vadd.f32 %v388, %v456
    %v460 = vtanh.pop %v459
    %s461 = scalar_lea.vmem [#allocation2], 40
    %v462 = vld [vmem:[%s461] sm:$0xff]
    %463 = vmatprep.subr.mxu0 0.0
    %464 = vmatpush1.msra.mxu0 %v77
    %465 = vmatprep.subr.mxu0 0.0
    %466 = vmatpush1.msra.mxu0 %v78
    %467 = vmatprep.subr.mxu0 0.0
    %468 = vmatpush1.msra.mxu0 %v79
    %469 = vmatprep.subr.mxu0 0.0
    %470 = vmatpush1.msra.mxu0 %v80
    %471 = vmatprep.subr.mxu0 0.0
    %472 = vmatpush1.msra.mxu0 %v81
    %473 = vmatprep.subr.mxu0 0.0
    %474 = vmatpush1.msra.mxu0 %v82
    %475 = vmatprep.subr.mxu0 0.0
    %476 = vmatpush1.msra.mxu0 %v83
    %477 = vmatprep.subr.mxu0 0.0
    %478 = vmatpush1.msra.mxu0 %v84
    %479 = vmatprep.subr.mxu0 0.0
    %480 = vmatpush1.msra.mxu0 %v85
    %481 = vmatprep.subr.mxu0 0.0
    %482 = vmatpush1.msra.mxu0 %v86
    %483 = vmatprep.subr.mxu0 0.0
    %484 = vmatpush1.msra.mxu0 %v87
    %485 = vmatprep.subr.mxu0 0.0
    %486 = vmatpush1.msra.mxu0 %v88
    %487 = vmatprep.subr.mxu0 0.0
    %488 = vmatpush1.msra.mxu0 %v89
    %489 = vmatprep.subr.mxu0 0.0
    %490 = vmatpush1.msra.mxu0 %v90
    %491 = vmatprep.subr.mxu0 0.0
    %492 = vmatpush1.msra.mxu0 %v91
    %493 = vmatprep.subr.mxu0 0.0
    %494 = vmatpush1.msra.mxu0 %v92
    %495 = vmatprep.subr.mxu0 0.0
    %496 = vmatpush1.msra.mxu0 0.0
    %497 = vmatprep.subr.mxu0 0.0
    %498 = vmatpush1.msra.mxu0 0.0
    %499 = vmatprep.subr.mxu0 0.0
    %500 = vmatpush1.msra.mxu0 0.0
    %501 = vmatprep.subr.mxu0 0.0
    %502 = vmatpush1.msra.mxu0 0.0
    %503 = vmatprep.subr.mxu0 0.0
    %504 = vmatpush1.msra.mxu0 0.0
    %505 = vmatprep.subr.mxu0 0.0
    %506 = vmatpush1.msra.mxu0 0.0
    %507 = vmatprep.subr.mxu0 0.0
    %508 = vmatpush1.msra.mxu0 0.0
    %509 = vmatprep.subr.mxu0 0.0
    %510 = vmatpush1.msra.mxu0 0.0
    %511 = vmatprep.subr.mxu0 0.0
    %512 = vmatpush1.msra.mxu0 0.0
    %513 = vmatprep.subr.mxu0 0.0
    %514 = vmatpush1.msra.mxu0 0.0
    %515 = vmatprep.subr.mxu0 0.0
    %516 = vmatpush1.msra.mxu0 0.0
    %517 = vmatprep.subr.mxu0 0.0
    %518 = vmatpush1.msra.mxu0 0.0
    %519 = vmatprep.subr.mxu0 0.0
    %520 = vmatpush1.msra.mxu0 0.0
    %521 = vmatprep.subr.mxu0 0.0
    %522 = vmatpush1.msra.mxu0 0.0
    %523 = vmatprep.subr.mxu0 0.0
    %524 = vmatpush1.msra.mxu0 0.0
    %525 = vmatprep.subr.mxu0 0.0
    %526 = vmatpush1.msra.mxu0 0.0
    %527 = vmatprep.mubr.f32.mxu0 0.0
    %528 = vmatmul.mubr.f32.gmra.mrb[0].mxu0 %v460
    %v529 = vpop.f32.mrb[0].mxu0
    %v530 = vadd.f32 0.0, %v529
    %v531 = vpop.f32.mrb[0].mxu0
    %532 = vdwg.mxu0
    %v533 = vadd.f32 %v462, %v530
    %v534 = vtanh.pop %v533
    %s535 = scalar_lea.vmem [#allocation2], 48
    %v536 = vld [vmem:[%s535] sm:$0xff]
    %537 = vmatprep.subr.mxu0 0.0
    %538 = vmatpush1.msra.mxu0 %v77
    %539 = vmatprep.subr.mxu0 0.0
    %540 = vmatpush1.msra.mxu0 %v78
    %541 = vmatprep.subr.mxu0 0.0
    %542 = vmatpush1.msra.mxu0 %v79
    %543 = vmatprep.subr.mxu0 0.0
    %544 = vmatpush1.msra.mxu0 %v80
    %545 = vmatprep.subr.mxu0 0.0
    %546 = vmatpush1.msra.mxu0 %v81
    %547 = vmatprep.subr.mxu0 0.0
    %548 = vmatpush1.msra.mxu0 %v82
    %549 = vmatprep.subr.mxu0 0.0
    %550 = vmatpush1.msra.mxu0 %v83
    %551 = vmatprep.subr.mxu0 0.0
    %552 = vmatpush1.msra.mxu0 %v84
    %553 = vmatprep.subr.mxu0 0.0
    %554 = vmatpush1.msra.mxu0 %v85
    %555 = vmatprep.subr.mxu0 0.0
    %556 = vmatpush1.msra.mxu0 %v86
    %557 = vmatprep.subr.mxu0 0.0
    %558 = vmatpush1.msra.mxu0 %v87
    %559 = vmatprep.subr.mxu0 0.0
    %560 = vmatpush1.msra.mxu0 %v88
    %561 = vmatprep.subr.mxu0 0.0
    %562 = vmatpush1.msra.mxu0 %v89
    %563 = vmatprep.subr.mxu0 0.0
    %564 = vmatpush1.msra.mxu0 %v90
    %565 = vmatprep.subr.mxu0 0.0
    %566 = vmatpush1.msra.mxu0 %v91
    %567 = vmatprep.subr.mxu0 0.0
    %568 = vmatpush1.msra.mxu0 %v92
    %569 = vmatprep.subr.mxu0 0.0
    %570 = vmatpush1.msra.mxu0 0.0
    %571 = vmatprep.subr.mxu0 0.0
    %572 = vmatpush1.msra.mxu0 0.0
    %573 = vmatprep.subr.mxu0 0.0
    %574 = vmatpush1.msra.mxu0 0.0
    %575 = vmatprep.subr.mxu0 0.0
    %576 = vmatpush1.msra.mxu0 0.0
    %577 = vmatprep.subr.mxu0 0.0
    %578 = vmatpush1.msra.mxu0 0.0
    %579 = vmatprep.subr.mxu0 0.0
    %580 = vmatpush1.msra.mxu0 0.0
    %581 = vmatprep.subr.mxu0 0.0
    %582 = vmatpush1.msra.mxu0 0.0
    %583 = vmatprep.subr.mxu0 0.0
    %584 = vmatpush1.msra.mxu0 0.0
    %585 = vmatprep.subr.mxu0 0.0
    %586 = vmatpush1.msra.mxu0 0.0
    %587 = vmatprep.subr.mxu0 0.0
    %588 = vmatpush1.msra.mxu0 0.0
    %589 = vmatprep.subr.mxu0 0.0
    %590 = vmatpush1.msra.mxu0 0.0
    %591 = vmatprep.subr.mxu0 0.0
    %592 = vmatpush1.msra.mxu0 0.0
    %593 = vmatprep.subr.mxu0 0.0
    %594 = vmatpush1.msra.mxu0 0.0
    %595 = vmatprep.subr.mxu0 0.0
    %596 = vmatpush1.msra.mxu0 0.0
    %597 = vmatprep.subr.mxu0 0.0
    %598 = vmatpush1.msra.mxu0 0.0
    %599 = vmatprep.subr.mxu0 0.0
    %600 = vmatpush1.msra.mxu0 0.0
    %601 = vmatprep.mubr.f32.mxu0 0.0
    %602 = vmatmul.mubr.f32.gmra.mrb[0].mxu0 %v534
    %v603 = vpop.f32.mrb[0].mxu0
    %v604 = vadd.f32 0.0, %v603
    %v605 = vpop.f32.mrb[0].mxu0
    %606 = vdwg.mxu0
    %v607 = vadd.f32 %v536, %v604
    %v608 = vtanh.pop %v607
    %s609 = scalar_lea.vmem [#allocation2], 56
    %v610 = vld [vmem:[%s609] sm:$0xff]
    %611 = vmatprep.subr.mxu0 0.0
    %612 = vmatpush1.msra.mxu0 %v77
    %613 = vmatprep.subr.mxu0 0.0
    %614 = vmatpush1.msra.mxu0 %v78
    %615 = vmatprep.subr.mxu0 0.0
    %616 = vmatpush1.msra.mxu0 %v79
    %617 = vmatprep.subr.mxu0 0.0
    %618 = vmatpush1.msra.mxu0 %v80
    %619 = vmatprep.subr.mxu0 0.0
    %620 = vmatpush1.msra.mxu0 %v81
    %621 = vmatprep.subr.mxu0 0.0
    %622 = vmatpush1.msra.mxu0 %v82
    %623 = vmatprep.subr.mxu0 0.0
    %624 = vmatpush1.msra.mxu0 %v83
    %625 = vmatprep.subr.mxu0 0.0
    %626 = vmatpush1.msra.mxu0 %v84
    %627 = vmatprep.subr.mxu0 0.0
    %628 = vmatpush1.msra.mxu0 %v85
    %629 = vmatprep.subr.mxu0 0.0
    %630 = vmatpush1.msra.mxu0 %v86
    %631 = vmatprep.subr.mxu0 0.0
    %632 = vmatpush1.msra.mxu0 %v87
    %633 = vmatprep.subr.mxu0 0.0
    %634 = vmatpush1.msra.mxu0 %v88
    %635 = vmatprep.subr.mxu0 0.0
    %636 = vmatpush1.msra.mxu0 %v89
    %637 = vmatprep.subr.mxu0 0.0
    %638 = vmatpush1.msra.mxu0 %v90
    %639 = vmatprep.subr.mxu0 0.0
    %640 = vmatpush1.msra.mxu0 %v91
    %641 = vmatprep.subr.mxu0 0.0
    %642 = vmatpush1.msra.mxu0 %v92
    %643 = vmatprep.subr.mxu0 0.0
    %644 = vmatpush1.msra.mxu0 0.0
    %645 = vmatprep.subr.mxu0 0.0
    %646 = vmatpush1.msra.mxu0 0.0
    %647 = vmatprep.subr.mxu0 0.0
    %648 = vmatpush1.msra.mxu0 0.0
    %649 = vmatprep.subr.mxu0 0.0
    %650 = vmatpush1.msra.mxu0 0.0
    %651 = vmatprep.subr.mxu0 0.0
    %652 = vmatpush1.msra.mxu0 0.0
    %653 = vmatprep.subr.mxu0 0.0
    %654 = vmatpush1.msra.mxu0 0.0
    %655 = vmatprep.subr.mxu0 0.0
    %656 = vmatpush1.msra.mxu0 0.0
    %657 = vmatprep.subr.mxu0 0.0
    %658 = vmatpush1.msra.mxu0 0.0
    %659 = vmatprep.subr.mxu0 0.0
    %660 = vmatpush1.msra.mxu0 0.0
    %661 = vmatprep.subr.mxu0 0.0
    %662 = vmatpush1.msra.mxu0 0.0
    %663 = vmatprep.subr.mxu0 0.0
    %664 = vmatpush1.msra.mxu0 0.0
    %665 = vmatprep.subr.mxu0 0.0
    %666 = vmatpush1.msra.mxu0 0.0
    %667 = vmatprep.subr.mxu0 0.0
    %668 = vmatpush1.msra.mxu0 0.0
    %669 = vmatprep.subr.mxu0 0.0
    %670 = vmatpush1.msra.mxu0 0.0
    %671 = vmatprep.subr.mxu0 0.0
    %672 = vmatpush1.msra.mxu0 0.0
    %673 = vmatprep.subr.mxu0 0.0
    %674 = vmatpush1.msra.mxu0 0.0
    %675 = vmatprep.mubr.f32.mxu0 0.0
    %676 = vmatmul.mubr.f32.gmra.mrb[0].mxu0 %v608
    %v677 = vpop.f32.mrb[0].mxu0
    %v678 = vadd.f32 0.0, %v677
    %v679 = vpop.f32.mrb[0].mxu0
    %680 = vdwg.mxu0
    %v681 = vadd.f32 %v610, %v678
    %v682 = vtanh.pop %v681
    %v683 = vld [vmem:[%s4] sm:$0x1]
    %v685 = vlaneseq
    %v686 = vshrl.u32 %v685, 7
    %v687 = vsub.s32 0, %v686
    %v688 = vrot.slane %v683, %v687
    %v690 = vlaneseq
    %v691 = vand.u32 %v690, 127
    %vm692 = vcmp.eq.s32.totalorder %v691, 3
    %v693 = vsel %vm692, 1, 0
    %v694 = vcvt.s32.f32 %v693
    %v695 = vld [vmem:[#allocation8] sm:$0xff]
    %v696 = vld [vmem:[#allocation8 + $0x10] sm:$0xff]
    %v697 = vld [vmem:[#allocation8 + $0x20] sm:$0xff]
    %v698 = vld [vmem:[#allocation8 + $0x30] sm:$0xff]
    %v699 = vld [vmem:[#allocation8 + $0x40] sm:$0xff]
    %v700 = vld [vmem:[#allocation8 + $0x50] sm:$0xff]
    %v701 = vld [vmem:[#allocation8 + $0x60] sm:$0xff]
    %v702 = vld [vmem:[#allocation8 + $0x70] sm:$0xff]
    %v703 = vld [vmem:[#allocation8 + $0x80] sm:$0xff]
    %v704 = vld [vmem:[#allocation8 + $0x90] sm:$0xff]
    %v705 = vld [vmem:[#allocation8 + $0xa0] sm:$0xff]
    %v706 = vld [vmem:[#allocation8 + $0xb0] sm:$0xff]
    %v707 = vld [vmem:[#allocation8 + $0xc0] sm:$0xff]
    %v708 = vld [vmem:[#allocation8 + $0xd0] sm:$0xff]
    %v709 = vld [vmem:[#allocation8 + $0xe0] sm:$0xff]
    %v710 = vld [vmem:[#allocation8 + $0xf0] sm:$0xff]
    %711 = vmatprep.subr.mxu0 0.0
    %712 = vmatpush1.msra.mxu0 %v695
    %713 = vmatprep.subr.mxu0 0.0
    %714 = vmatpush1.msra.mxu0 %v696
    %715 = vmatprep.subr.mxu0 0.0
    %716 = vmatpush1.msra.mxu0 %v697
    %717 = vmatprep.subr.mxu0 0.0
    %718 = vmatpush1.msra.mxu0 %v698
    %719 = vmatprep.subr.mxu0 0.0
    %720 = vmatpush1.msra.mxu0 %v699
    %721 = vmatprep.subr.mxu0 0.0
    %722 = vmatpush1.msra.mxu0 %v700
    %723 = vmatprep.subr.mxu0 0.0
    %724 = vmatpush1.msra.mxu0 %v701
    %725 = vmatprep.subr.mxu0 0.0
    %726 = vmatpush1.msra.mxu0 %v702
    %727 = vmatprep.subr.mxu0 0.0
    %728 = vmatpush1.msra.mxu0 %v703
    %729 = vmatprep.subr.mxu0 0.0
    %730 = vmatpush1.msra.mxu0 %v704
    %731 = vmatprep.subr.mxu0 0.0
    %732 = vmatpush1.msra.mxu0 %v705
    %733 = vmatprep.subr.mxu0 0.0
    %734 = vmatpush1.msra.mxu0 %v706
    %735 = vmatprep.subr.mxu0 0.0
    %736 = vmatpush1.msra.mxu0 %v707
    %737 = vmatprep.subr.mxu0 0.0
    %738 = vmatpush1.msra.mxu0 %v708
    %739 = vmatprep.subr.mxu0 0.0
    %740 = vmatpush1.msra.mxu0 %v709
    %741 = vmatprep.subr.mxu0 0.0
    %742 = vmatpush1.msra.mxu0 %v710
    %743 = vmatprep.subr.mxu0 0.0
    %744 = vmatpush1.msra.mxu0 0.0
    %745 = vmatprep.subr.mxu0 0.0
    %746 = vmatpush1.msra.mxu0 0.0
    %747 = vmatprep.subr.mxu0 0.0
    %748 = vmatpush1.msra.mxu0 0.0
    %749 = vmatprep.subr.mxu0 0.0
    %750 = vmatpush1.msra.mxu0 0.0
    %751 = vmatprep.subr.mxu0 0.0
    %752 = vmatpush1.msra.mxu0 0.0
    %753 = vmatprep.subr.mxu0 0.0
    %754 = vmatpush1.msra.mxu0 0.0
    %755 = vmatprep.subr.mxu0 0.0
    %756 = vmatpush1.msra.mxu0 0.0
    %757 = vmatprep.subr.mxu0 0.0
    %758 = vmatpush1.msra.mxu0 0.0
    %759 = vmatprep.subr.mxu0 0.0
    %760 = vmatpush1.msra.mxu0 0.0
    %761 = vmatprep.subr.mxu0 0.0
    %762 = vmatpush1.msra.mxu0 0.0
    %763 = vmatprep.subr.mxu0 0.0
    %764 = vmatpush1.msra.mxu0 0.0
    %765 = vmatprep.subr.mxu0 0.0
    %766 = vmatpush1.msra.mxu0 0.0
    %767 = vmatprep.subr.mxu0 0.0
    %768 = vmatpush1.msra.mxu0 0.0
    %769 = vmatprep.subr.mxu0 0.0
    %770 = vmatpush1.msra.mxu0 0.0
    %771 = vmatprep.subr.mxu0 0.0
    %772 = vmatpush1.msra.mxu0 0.0
    %773 = vmatprep.subr.mxu0 0.0
    %774 = vmatpush1.msra.mxu0 0.0
    %775 = vmatprep.mubr.f32.mxu0 0.0
    %776 = vmatmul.mubr.f32.gmra.mrb[0].mxu0 %v682
    %v777 = vpop.f32.mrb[0].mxu0
    %v778 = vadd.f32 0.0, %v777
    %v779 = vpop.f32.mrb[0].mxu0
    %780 = vdwg.mxu0
    %v781 = vld [vmem:[#allocation7] sm:$0xff]
    %v782 = vld [vmem:[#allocation7 + $0x8] sm:$0xff]
    %v783 = vld [vmem:[#allocation7 + $0x10] sm:$0xff]
    %v784 = vld [vmem:[#allocation7 + $0x18] sm:$0xff]
    %v785 = vld [vmem:[#allocation7 + $0x20] sm:$0xff]
    %v786 = vld [vmem:[#allocation7 + $0x28] sm:$0xff]
    %v787 = vld [vmem:[#allocation7 + $0x30] sm:$0xff]
    %v788 = vld [vmem:[#allocation7 + $0x38] sm:$0xff]
    %v789 = vld [vmem:[#allocation7 + $0x40] sm:$0xff]
    %v790 = vld [vmem:[#allocation7 + $0x48] sm:$0xff]
    %v791 = vld [vmem:[#allocation7 + $0x50] sm:$0xff]
    %v792 = vld [vmem:[#allocation7 + $0x58] sm:$0xff]
    %v793 = vld [vmem:[#allocation7 + $0x60] sm:$0xff]
    %v794 = vld [vmem:[#allocation7 + $0x68] sm:$0xff]
    %v795 = vld [vmem:[#allocation7 + $0x70] sm:$0xff]
    %v796 = vld [vmem:[#allocation7 + $0x78] sm:$0xff]
    %797 = vmatprep.subr.mxu0 0.0
    %798 = vmatpush1.msra.mxu0 %v781
    %799 = vmatprep.subr.mxu0 0.0
    %800 = vmatpush1.msra.mxu0 %v782
    %801 = vmatprep.subr.mxu0 0.0
    %802 = vmatpush1.msra.mxu0 %v783
    %803 = vmatprep.subr.mxu0 0.0
    %804 = vmatpush1.msra.mxu0 %v784
    %805 = vmatprep.subr.mxu0 0.0
    %806 = vmatpush1.msra.mxu0 %v785
    %807 = vmatprep.subr.mxu0 0.0
    %808 = vmatpush1.msra.mxu0 %v786
    %809 = vmatprep.subr.mxu0 0.0
    %810 = vmatpush1.msra.mxu0 %v787
    %811 = vmatprep.subr.mxu0 0.0
    %812 = vmatpush1.msra.mxu0 %v788
    %813 = vmatprep.subr.mxu0 0.0
    %814 = vmatpush1.msra.mxu0 %v789
    %815 = vmatprep.subr.mxu0 0.0
    %816 = vmatpush1.msra.mxu0 %v790
    %817 = vmatprep.subr.mxu0 0.0
    %818 = vmatpush1.msra.mxu0 %v791
    %819 = vmatprep.subr.mxu0 0.0
    %820 = vmatpush1.msra.mxu0 %v792
    %821 = vmatprep.subr.mxu0 0.0
    %822 = vmatpush1.msra.mxu0 %v793
    %823 = vmatprep.subr.mxu0 0.0
    %824 = vmatpush1.msra.mxu0 %v794
    %825 = vmatprep.subr.mxu0 0.0
    %826 = vmatpush1.msra.mxu0 %v795
    %827 = vmatprep.subr.mxu0 0.0
    %828 = vmatpush1.msra.mxu0 %v796
    %829 = vmatprep.subr.mxu0 0.0
    %830 = vmatpush1.msra.mxu0 0.0
    %831 = vmatprep.subr.mxu0 0.0
    %832 = vmatpush1.msra.mxu0 0.0
    %833 = vmatprep.subr.mxu0 0.0
    %834 = vmatpush1.msra.mxu0 0.0
    %835 = vmatprep.subr.mxu0 0.0
    %836 = vmatpush1.msra.mxu0 0.0
    %837 = vmatprep.subr.mxu0 0.0
    %838 = vmatpush1.msra.mxu0 0.0
    %839 = vmatprep.subr.mxu0 0.0
    %840 = vmatpush1.msra.mxu0 0.0
    %841 = vmatprep.subr.mxu0 0.0
    %842 = vmatpush1.msra.mxu0 0.0
    %843 = vmatprep.subr.mxu0 0.0
    %844 = vmatpush1.msra.mxu0 0.0
    %845 = vmatprep.subr.mxu0 0.0
    %846 = vmatpush1.msra.mxu0 0.0
    %847 = vmatprep.subr.mxu0 0.0
    %848 = vmatpush1.msra.mxu0 0.0
    %849 = vmatprep.subr.mxu0 0.0
    %850 = vmatpush1.msra.mxu0 0.0
    %851 = vmatprep.subr.mxu0 0.0
    %852 = vmatpush1.msra.mxu0 0.0
    %853 = vmatprep.subr.mxu0 0.0
    %854 = vmatpush1.msra.mxu0 0.0
    %855 = vmatprep.subr.mxu0 0.0
    %856 = vmatpush1.msra.mxu0 0.0
    %857 = vmatprep.subr.mxu0 0.0
    %858 = vmatpush1.msra.mxu0 0.0
    %859 = vmatprep.subr.mxu0 0.0
    %860 = vmatpush1.msra.mxu0 0.0
    %861 = vmatprep.mubr.f32.mxu0 0.0
    %862 = vmatmul.mubr.f32.gmra.mrb[0].mxu0 %v694
    %v863 = vpop.f32.mrb[0].mxu0
    %v864 = vadd.f32 %v778, %v863
    %v865 = vpop.f32.mrb[0].mxu0
    %866 = vdwg.mxu0
    %v867 = vtanh.pop %v864
    %v868 = vld [vmem:[#allocation8] sm:$0xff]
    %v869 = vld [vmem:[#allocation8 + $0x8] sm:$0xff]
    %v870 = vld [vmem:[#allocation8 + $0x10] sm:$0xff]
    %v871 = vld [vmem:[#allocation8 + $0x18] sm:$0xff]
    %v872 = vld [vmem:[#allocation8 + $0x20] sm:$0xff]
    %v873 = vld [vmem:[#allocation8 + $0x28] sm:$0xff]
    %v874 = vld [vmem:[#allocation8 + $0x30] sm:$0xff]
    %v875 = vld [vmem:[#allocation8 + $0x38] sm:$0xff]
    %v876 = vld [vmem:[#allocation8 + $0x40] sm:$0xff]
    %v877 = vld [vmem:[#allocation8 + $0x48] sm:$0xff]
    %v878 = vld [vmem:[#allocation8 + $0x50] sm:$0xff]
    %v879 = vld [vmem:[#allocation8 + $0x58] sm:$0xff]
    %v880 = vld [vmem:[#allocation8 + $0x60] sm:$0xff]
    %v881 = vld [vmem:[#allocation8 + $0x68] sm:$0xff]
    %v882 = vld [vmem:[#allocation8 + $0x70] sm:$0xff]
    %v883 = vld [vmem:[#allocation8 + $0x78] sm:$0xff]
    %v884 = vld [vmem:[#allocation8 + $0x80] sm:$0xff]
    %v885 = vld [vmem:[#allocation8 + $0x88] sm:$0xff]
    %v886 = vld [vmem:[#allocation8 + $0x90] sm:$0xff]
    %v887 = vld [vmem:[#allocation8 + $0x98] sm:$0xff]
    %v888 = vld [vmem:[#allocation8 + $0xa0] sm:$0xff]
    %v889 = vld [vmem:[#allocation8 + $0xa8] sm:$0xff]
    %v890 = vld [vmem:[#allocation8 + $0xb0] sm:$0xff]
    %v891 = vld [vmem:[#allocation8 + $0xb8] sm:$0xff]
    %v892 = vld [vmem:[#allocation8 + $0xc0] sm:$0xff]
    %v893 = vld [vmem:[#allocation8 + $0xc8] sm:$0xff]
    %v894 = vld [vmem:[#allocation8 + $0xd0] sm:$0xff]
    %v895 = vld [vmem:[#allocation8 + $0xd8] sm:$0xff]
    %v896 = vld [vmem:[#allocation8 + $0xe0] sm:$0xff]
    %v897 = vld [vmem:[#allocation8 + $0xe8] sm:$0xff]
    %v898 = vld [vmem:[#allocation8 + $0xf0] sm:$0xff]
    %v899 = vld [vmem:[#allocation8 + $0xf8] sm:$0xff]
    %900 = vmatprep.subr.mxu0 %v869
    %901 = vmatpush1.msra.mxu0 %v868
    %902 = vmatprep.subr.mxu0 %v871
    %903 = vmatpush1.msra.mxu0 %v870
    %904 = vmatprep.subr.mxu0 %v873
    %905 = vmatpush1.msra.mxu0 %v872
    %906 = vmatprep.subr.mxu0 %v875
    %907 = vmatpush1.msra.mxu0 %v874
    %908 = vmatprep.subr.mxu0 %v877
    %909 = vmatpush1.msra.mxu0 %v876
    %910 = vmatprep.subr.mxu0 %v879
    %911 = vmatpush1.msra.mxu0 %v878
    %912 = vmatprep.subr.mxu0 %v881
    %913 = vmatpush1.msra.mxu0 %v880
    %914 = vmatprep.subr.mxu0 %v883
    %915 = vmatpush1.msra.mxu0 %v882
    %916 = vmatprep.subr.mxu0 %v885
    %917 = vmatpush1.msra.mxu0 %v884
    %918 = vmatprep.subr.mxu0 %v887
    %919 = vmatpush1.msra.mxu0 %v886
    %920 = vmatprep.subr.mxu0 %v889
    %921 = vmatpush1.msra.mxu0 %v888
    %922 = vmatprep.subr.mxu0 %v891
    %923 = vmatpush1.msra.mxu0 %v890
    %924 = vmatprep.subr.mxu0 %v893
    %925 = vmatpush1.msra.mxu0 %v892
    %926 = vmatprep.subr.mxu0 %v895
    %927 = vmatpush1.msra.mxu0 %v894
    %928 = vmatprep.subr.mxu0 %v897
    %929 = vmatpush1.msra.mxu0 %v896
    %930 = vmatprep.subr.mxu0 %v899
    %931 = vmatpush1.msra.mxu0 %v898
    %932 = vmatprep.subr.mxu0 0.0
    %933 = vmatpush1.msra.mxu0 0.0
    %934 = vmatprep.subr.mxu0 0.0
    %935 = vmatpush1.msra.mxu0 0.0
    %936 = vmatprep.subr.mxu0 0.0
    %937 = vmatpush1.msra.mxu0 0.0
    %938 = vmatprep.subr.mxu0 0.0
    %939 = vmatpush1.msra.mxu0 0.0
    %940 = vmatprep.subr.mxu0 0.0
    %941 = vmatpush1.msra.mxu0 0.0
    %942 = vmatprep.subr.mxu0 0.0
    %943 = vmatpush1.msra.mxu0 0.0
    %944 = vmatprep.subr.mxu0 0.0
    %945 = vmatpush1.msra.mxu0 0.0
    %946 = vmatprep.subr.mxu0 0.0
    %947 = vmatpush1.msra.mxu0 0.0
    %948 = vmatprep.subr.mxu0 0.0
    %949 = vmatpush1.msra.mxu0 0.0
    %950 = vmatprep.subr.mxu0 0.0
    %951 = vmatpush1.msra.mxu0 0.0
    %952 = vmatprep.subr.mxu0 0.0
    %953 = vmatpush1.msra.mxu0 0.0
    %954 = vmatprep.subr.mxu0 0.0
    %955 = vmatpush1.msra.mxu0 0.0
    %956 = vmatprep.subr.mxu0 0.0
    %957 = vmatpush1.msra.mxu0 0.0
    %958 = vmatprep.subr.mxu0 0.0
    %959 = vmatpush1.msra.mxu0 0.0
    %960 = vmatprep.subr.mxu0 0.0
    %961 = vmatpush1.msra.mxu0 0.0
    %962 = vmatprep.subr.mxu0 0.0
    %963 = vmatpush1.msra.mxu0 0.0
    %964 = vmatprep.mubr.f32.mxu0 0.0
    %965 = vmatmul.mubr.f32.gmra.mrb[0].mxu0 %v867
    %v966 = vpop.f32.mrb[0].mxu0
    %v967 = vadd.f32 0.0, %v966
    %v968 = vpop.f32.mrb[0].mxu0
    %v969 = vadd.f32 0.0, %v968
    %970 = vdwg.mxu0
    %v971 = vadd.f32 %v969, %v688
    %972 = vst [vmem:[#allocation10] sm:$0xff] %v971
    %973 = vmax.xlane.f32.xlu0 %v971
    %v974 = vpop.xlane.xlu0 %973
    %vm975 = vcmp.eq.f32.partialorder %v971, %v974
    %v976 = vsel %vm975, %v691, 128
    %v977 = vand.u32 %v976, 65535
    %v978 = vshra.s32 %v976, 16
    %v979 = vcvt.s32.f32 %v977
    %v980 = vcvt.s32.f32 %v978
    %981 = vmin.xlane.f32.xlu0 %v980
    %v982 = vpop.xlane.xlu0 %981
    %vm983 = vcmp.eq.f32.partialorder %v980, %v982
    %v984 = vsel %vm983, %v979, inf
    %985 = vmin.xlane.f32.xlu0 %v984
    %v986 = vpop.xlane.xlu0 %985
    %v987 = vcvt.f32.s32 %v986
    %v988 = vcvt.f32.s32 %v982
    %v989 = vshll.u32 %v988, 16
    %v990 = vadd.s32 %v989, %v987
    %vm991 = vcmp.eq.s32.totalorder %v691, %v990
    %v992 = vsel %vm991, 1, 0
    %v993 = vcvt.s32.f32 %v992
    %v994 = vld [vmem:[#allocation7] sm:$0xff]
    %v995 = vld [vmem:[#allocation7 + $0x8] sm:$0xff]
    %v996 = vld [vmem:[#allocation7 + $0x10] sm:$0xff]
    %v997 = vld [vmem:[#allocation7 + $0x18] sm:$0xff]
    %v998 = vld [vmem:[#allocation7 + $0x20] sm:$0xff]
    %v999 = vld [vmem:[#allocation7 + $0x28] sm:$0xff]
    %v1000 = vld [vmem:[#allocation7 + $0x30] sm:$0xff]
    %v1001 = vld [vmem:[#allocation7 + $0x38] sm:$0xff]
    %v1002 = vld [vmem:[#allocation7 + $0x40] sm:$0xff]
    %v1003 = vld [vmem:[#allocation7 + $0x48] sm:$0xff]
    %v1004 = vld [vmem:[#allocation7 + $0x50] sm:$0xff]
    %v1005 = vld [vmem:[#allocation7 + $0x58] sm:$0xff]
    %v1006 = vld [vmem:[#allocation7 + $0x60] sm:$0xff]
    %v1007 = vld [vmem:[#allocation7 + $0x68] sm:$0xff]
    %v1008 = vld [vmem:[#allocation7 + $0x70] sm:$0xff]
    %v1009 = vld [vmem:[#allocation7 + $0x78] sm:$0xff]
    %1010 = vmatprep.subr.mxu0 0.0
    %1011 = vmatpush1.msra.mxu0 %v994
    %1012 = vmatprep.subr.mxu0 0.0
    %1013 = vmatpush1.msra.mxu0 %v995
    %1014 = vmatprep.subr.mxu0 0.0
    %1015 = vmatpush1.msra.mxu0 %v996
    %1016 = vmatprep.subr.mxu0 0.0
    %1017 = vmatpush1.msra.mxu0 %v997
    %1018 = vmatprep.subr.mxu0 0.0
    %1019 = vmatpush1.msra.mxu0 %v998
    %1020 = vmatprep.subr.mxu0 0.0
    %1021 = vmatpush1.msra.mxu0 %v999
    %1022 = vmatprep.subr.mxu0 0.0
    %1023 = vmatpush1.msra.mxu0 %v1000
    %1024 = vmatprep.subr.mxu0 0.0
    %1025 = vmatpush1.msra.mxu0 %v1001
    %1026 = vmatprep.subr.mxu0 0.0
    %1027 = vmatpush1.msra.mxu0 %v1002
    %1028 = vmatprep.subr.mxu0 0.0
    %1029 = vmatpush1.msra.mxu0 %v1003
    %1030 = vmatprep.subr.mxu0 0.0
    %1031 = vmatpush1.msra.mxu0 %v1004
    %1032 = vmatprep.subr.mxu0 0.0
    %1033 = vmatpush1.msra.mxu0 %v1005
    %1034 = vmatprep.subr.mxu0 0.0
    %1035 = vmatpush1.msra.mxu0 %v1006
    %1036 = vmatprep.subr.mxu0 0.0
    %1037 = vmatpush1.msra.mxu0 %v1007
    %1038 = vmatprep.subr.mxu0 0.0
    %1039 = vmatpush1.msra.mxu0 %v1008
    %1040 = vmatprep.subr.mxu0 0.0
    %1041 = vmatpush1.msra.mxu0 %v1009
    %1042 = vmatprep.subr.mxu0 0.0
    %1043 = vmatpush1.msra.mxu0 0.0
    %1044 = vmatprep.subr.mxu0 0.0
    %1045 = vmatpush1.msra.mxu0 0.0
    %1046 = vmatprep.subr.mxu0 0.0
    %1047 = vmatpush1.msra.mxu0 0.0
    %1048 = vmatprep.subr.mxu0 0.0
    %1049 = vmatpush1.msra.mxu0 0.0
    %1050 = vmatprep.subr.mxu0 0.0
    %1051 = vmatpush1.msra.mxu0 0.0
    %1052 = vmatprep.subr.mxu0 0.0
    %1053 = vmatpush1.msra.mxu0 0.0
    %1054 = vmatprep.subr.mxu0 0.0
    %1055 = vmatpush1.msra.mxu0 0.0
    %1056 = vmatprep.subr.mxu0 0.0
    %1057 = vmatpush1.msra.mxu0 0.0
    %1058 = vmatprep.subr.mxu0 0.0
    %1059 = vmatpush1.msra.mxu0 0.0
    %1060 = vmatprep.subr.mxu0 0.0
    %1061 = vmatpush1.msra.mxu0 0.0
    %1062 = vmatprep.subr.mxu0 0.0
    %1063 = vmatpush1.msra.mxu0 0.0
    %1064 = vmatprep.subr.mxu0 0.0
    %1065 = vmatpush1.msra.mxu0 0.0
    %1066 = vmatprep.subr.mxu0 0.0
    %1067 = vmatpush1.msra.mxu0 0.0
    %1068 = vmatprep.subr.mxu0 0.0
    %1069 = vmatpush1.msra.mxu0 0.0
    %1070 = vmatprep.subr.mxu0 0.0
    %1071 = vmatpush1.msra.mxu0 0.0
    %1072 = vmatprep.subr.mxu0 0.0
    %1073 = vmatpush1.msra.mxu0 0.0
    %1074 = vmatprep.mubr.f32.mxu0 0.0
    %1075 = vmatmul.mubr.f32.gmra.mrb[0].mxu0 %v993
    %v1076 = vpop.f32.mrb[0].mxu0
    %v1077 = vadd.f32 %v967, %v1076
    %v1078 = vpop.f32.mrb[0].mxu0
    %1079 = vdwg.mxu0
    %v1080 = vtanh.pop %v1077
    %v1081 = vld [vmem:[#allocation8] sm:$0xff]
    %v1082 = vld [vmem:[#allocation8 + $0x8] sm:$0xff]
    %v1083 = vld [vmem:[#allocation8 + $0x10] sm:$0xff]
    %v1084 = vld [vmem:[#allocation8 + $0x18] sm:$0xff]
    %v1085 = vld [vmem:[#allocation8 + $0x20] sm:$0xff]
    %v1086 = vld [vmem:[#allocation8 + $0x28] sm:$0xff]
    %v1087 = vld [vmem:[#allocation8 + $0x30] sm:$0xff]
    %v1088 = vld [vmem:[#allocation8 + $0x38] sm:$0xff]
    %v1089 = vld [vmem:[#allocation8 + $0x40] sm:$0xff]
    %v1090 = vld [vmem:[#allocation8 + $0x48] sm:$0xff]
    %v1091 = vld [vmem:[#allocation8 + $0x50] sm:$0xff]
    %v1092 = vld [vmem:[#allocation8 + $0x58] sm:$0xff]
    %v1093 = vld [vmem:[#allocation8 + $0x60] sm:$0xff]
    %v1094 = vld [vmem:[#allocation8 + $0x68] sm:$0xff]
    %v1095 = vld [vmem:[#allocation8 + $0x70] sm:$0xff]
    %v1096 = vld [vmem:[#allocation8 + $0x78] sm:$0xff]
    %v1097 = vld [vmem:[#allocation8 + $0x80] sm:$0xff]
    %v1098 = vld [vmem:[#allocation8 + $0x88] sm:$0xff]
    %v1099 = vld [vmem:[#allocation8 + $0x90] sm:$0xff]
    %v1100 = vld [vmem:[#allocation8 + $0x98] sm:$0xff]
    %v1101 = vld [vmem:[#allocation8 + $0xa0] sm:$0xff]
    %v1102 = vld [vmem:[#allocation8 + $0xa8] sm:$0xff]
    %v1103 = vld [vmem:[#allocation8 + $0xb0] sm:$0xff]
    %v1104 = vld [vmem:[#allocation8 + $0xb8] sm:$0xff]
    %v1105 = vld [vmem:[#allocation8 + $0xc0] sm:$0xff]
    %v1106 = vld [vmem:[#allocation8 + $0xc8] sm:$0xff]
    %v1107 = vld [vmem:[#allocation8 + $0xd0] sm:$0xff]
    %v1108 = vld [vmem:[#allocation8 + $0xd8] sm:$0xff]
    %v1109 = vld [vmem:[#allocation8 + $0xe0] sm:$0xff]
    %v1110 = vld [vmem:[#allocation8 + $0xe8] sm:$0xff]
    %v1111 = vld [vmem:[#allocation8 + $0xf0] sm:$0xff]
    %v1112 = vld [vmem:[#allocation8 + $0xf8] sm:$0xff]
    %1113 = vmatprep.subr.mxu0 %v1082
    %1114 = vmatpush1.msra.mxu0 %v1081
    %1115 = vmatprep.subr.mxu0 %v1084
    %1116 = vmatpush1.msra.mxu0 %v1083
    %1117 = vmatprep.subr.mxu0 %v1086
    %1118 = vmatpush1.msra.mxu0 %v1085
    %1119 = vmatprep.subr.mxu0 %v1088
    %1120 = vmatpush1.msra.mxu0 %v1087
    %1121 = vmatprep.subr.mxu0 %v1090
    %1122 = vmatpush1.msra.mxu0 %v1089
    %1123 = vmatprep.subr.mxu0 %v1092
    %1124 = vmatpush1.msra.mxu0 %v1091
    %1125 = vmatprep.subr.mxu0 %v1094
    %1126 = vmatpush1.msra.mxu0 %v1093
    %1127 = vmatprep.subr.mxu0 %v1096
    %1128 = vmatpush1.msra.mxu0 %v1095
    %1129 = vmatprep.subr.mxu0 %v1098
    %1130 = vmatpush1.msra.mxu0 %v1097
    %1131 = vmatprep.subr.mxu0 %v1100
    %1132 = vmatpush1.msra.mxu0 %v1099
    %1133 = vmatprep.subr.mxu0 %v1102
    %1134 = vmatpush1.msra.mxu0 %v1101
    %1135 = vmatprep.subr.mxu0 %v1104
    %1136 = vmatpush1.msra.mxu0 %v1103
    %1137 = vmatprep.subr.mxu0 %v1106
    %1138 = vmatpush1.msra.mxu0 %v1105
    %1139 = vmatprep.subr.mxu0 %v1108
    %1140 = vmatpush1.msra.mxu0 %v1107
    %1141 = vmatprep.subr.mxu0 %v1110
    %1142 = vmatpush1.msra.mxu0 %v1109
    %1143 = vmatprep.subr.mxu0 %v1112
    %1144 = vmatpush1.msra.mxu0 %v1111
    %1145 = vmatprep.subr.mxu0 0.0
    %1146 = vmatpush1.msra.mxu0 0.0
    %1147 = vmatprep.subr.mxu0 0.0
    %1148 = vmatpush1.msra.mxu0 0.0
    %1149 = vmatprep.subr.mxu0 0.0
    %1150 = vmatpush1.msra.mxu0 0.0
    %1151 = vmatprep.subr.mxu0 0.0
    %1152 = vmatpush1.msra.mxu0 0.0
    %1153 = vmatprep.subr.mxu0 0.0
    %1154 = vmatpush1.msra.mxu0 0.0
    %1155 = vmatprep.subr.mxu0 0.0
    %1156 = vmatpush1.msra.mxu0 0.0
    %1157 = vmatprep.subr.mxu0 0.0
    %1158 = vmatpush1.msra.mxu0 0.0
    %1159 = vmatprep.subr.mxu0 0.0
    %1160 = vmatpush1.msra.mxu0 0.0
    %1161 = vmatprep.subr.mxu0 0.0
    %1162 = vmatpush1.msra.mxu0 0.0
    %1163 = vmatprep.subr.mxu0 0.0
    %1164 = vmatpush1.msra.mxu0 0.0
    %1165 = vmatprep.subr.mxu0 0.0
    %1166 = vmatpush1.msra.mxu0 0.0
    %1167 = vmatprep.subr.mxu0 0.0
    %1168 = vmatpush1.msra.mxu0 0.0
    %1169 = vmatprep.subr.mxu0 0.0
    %1170 = vmatpush1.msra.mxu0 0.0
    %1171 = vmatprep.subr.mxu0 0.0
    %1172 = vmatpush1.msra.mxu0 0.0
    %1173 = vmatprep.subr.mxu0 0.0
    %1174 = vmatpush1.msra.mxu0 0.0
    %1175 = vmatprep.subr.mxu0 0.0
    %1176 = vmatpush1.msra.mxu0 0.0
    %1177 = vmatprep.mubr.f32.mxu0 0.0
    %1178 = vmatmul.mubr.f32.gmra.mrb[0].mxu0 %v1080
    %v1179 = vpop.f32.mrb[0].mxu0
    %v1180 = vadd.f32 0.0, %v1179
    %v1181 = vpop.f32.mrb[0].mxu0
    %v1182 = vadd.f32 0.0, %v1181
    %1183 = vdwg.mxu0
    %v1184 = vadd.f32 %v1182, %v688
    %s1185 = scalar_lea.vmem [#allocation10], 8
    %1186 = vst [vmem:[%s1185] sm:$0xff] %v1184
    %1187 = vmax.xlane.f32.xlu0 %v1184
    %v1188 = vpop.xlane.xlu0 %1187
    %vm1189 = vcmp.eq.f32.partialorder %v1184, %v1188
    %v1190 = vsel %vm1189, %v691, 128
    %v1191 = vand.u32 %v1190, 65535
    %v1192 = vshra.s32 %v1190, 16
    %v1193 = vcvt.s32.f32 %v1191
    %v1194 = vcvt.s32.f32 %v1192
    %1195 = vmin.xlane.f32.xlu0 %v1194
    %v1196 = vpop.xlane.xlu0 %1195
    %vm1197 = vcmp.eq.f32.partialorder %v1194, %v1196
    %v1198 = vsel %vm1197, %v1193, inf
    %1199 = vmin.xlane.f32.xlu0 %v1198
    %v1200 = vpop.xlane.xlu0 %1199
    %v1201 = vcvt.f32.s32 %v1200
    %v1202 = vcvt.f32.s32 %v1196
    %v1203 = vshll.u32 %v1202, 16
    %v1204 = vadd.s32 %v1203, %v1201
    %vm1205 = vcmp.eq.s32.totalorder %v691, %v1204
    %v1206 = vsel %vm1205, 1, 0
    %v1207 = vcvt.s32.f32 %v1206
    %v1208 = vld [vmem:[#allocation7] sm:$0xff]
    %v1209 = vld [vmem:[#allocation7 + $0x8] sm:$0xff]
    %v1210 = vld [vmem:[#allocation7 + $0x10] sm:$0xff]
    %v1211 = vld [vmem:[#allocation7 + $0x18] sm:$0xff]
    %v1212 = vld [vmem:[#allocation7 + $0x20] sm:$0xff]
    %v1213 = vld [vmem:[#allocation7 + $0x28] sm:$0xff]
    %v1214 = vld [vmem:[#allocation7 + $0x30] sm:$0xff]
    %v1215 = vld [vmem:[#allocation7 + $0x38] sm:$0xff]
    %v1216 = vld [vmem:[#allocation7 + $0x40] sm:$0xff]
    %v1217 = vld [vmem:[#allocation7 + $0x48] sm:$0xff]
    %v1218 = vld [vmem:[#allocation7 + $0x50] sm:$0xff]
    %v1219 = vld [vmem:[#allocation7 + $0x58] sm:$0xff]
    %v1220 = vld [vmem:[#allocation7 + $0x60] sm:$0xff]
    %v1221 = vld [vmem:[#allocation7 + $0x68] sm:$0xff]
    %v1222 = vld [vmem:[#allocation7 + $0x70] sm:$0xff]
    %v1223 = vld [vmem:[#allocation7 + $0x78] sm:$0xff]
    %1224 = vmatprep.subr.mxu0 0.0
    %1225 = vmatpush1.msra.mxu0 %v1208
    %1226 = vmatprep.subr.mxu0 0.0
    %1227 = vmatpush1.msra.mxu0 %v1209
    %1228 = vmatprep.subr.mxu0 0.0
    %1229 = vmatpush1.msra.mxu0 %v1210
    %1230 = vmatprep.subr.mxu0 0.0
    %1231 = vmatpush1.msra.mxu0 %v1211
    %1232 = vmatprep.subr.mxu0 0.0
    %1233 = vmatpush1.msra.mxu0 %v1212
    %1234 = vmatprep.subr.mxu0 0.0
    %1235 = vmatpush1.msra.mxu0 %v1213
    %1236 = vmatprep.subr.mxu0 0.0
    %1237 = vmatpush1.msra.mxu0 %v1214
    %1238 = vmatprep.subr.mxu0 0.0
    %1239 = vmatpush1.msra.mxu0 %v1215
    %1240 = vmatprep.subr.mxu0 0.0
    %1241 = vmatpush1.msra.mxu0 %v1216
    %1242 = vmatprep.subr.mxu0 0.0
    %1243 = vmatpush1.msra.mxu0 %v1217
    %1244 = vmatprep.subr.mxu0 0.0
    %1245 = vmatpush1.msra.mxu0 %v1218
    %1246 = vmatprep.subr.mxu0 0.0
    %1247 = vmatpush1.msra.mxu0 %v1219
    %1248 = vmatprep.subr.mxu0 0.0
    %1249 = vmatpush1.msra.mxu0 %v1220
    %1250 = vmatprep.subr.mxu0 0.0
    %1251 = vmatpush1.msra.mxu0 %v1221
    %1252 = vmatprep.subr.mxu0 0.0
    %1253 = vmatpush1.msra.mxu0 %v1222
    %1254 = vmatprep.subr.mxu0 0.0
    %1255 = vmatpush1.msra.mxu0 %v1223
    %1256 = vmatprep.subr.mxu0 0.0
    %1257 = vmatpush1.msra.mxu0 0.0
    %1258 = vmatprep.subr.mxu0 0.0
    %1259 = vmatpush1.msra.mxu0 0.0
    %1260 = vmatprep.subr.mxu0 0.0
    %1261 = vmatpush1.msra.mxu0 0.0
    %1262 = vmatprep.subr.mxu0 0.0
    %1263 = vmatpush1.msra.mxu0 0.0
    %1264 = vmatprep.subr.mxu0 0.0
    %1265 = vmatpush1.msra.mxu0 0.0
    %1266 = vmatprep.subr.mxu0 0.0
    %1267 = vmatpush1.msra.mxu0 0.0
    %1268 = vmatprep.subr.mxu0 0.0
    %1269 = vmatpush1.msra.mxu0 0.0
    %1270 = vmatprep.subr.mxu0 0.0
    %1271 = vmatpush1.msra.mxu0 0.0
    %1272 = vmatprep.subr.mxu0 0.0
    %1273 = vmatpush1.msra.mxu0 0.0
    %1274 = vmatprep.subr.mxu0 0.0
    %1275 = vmatpush1.msra.mxu0 0.0
    %1276 = vmatprep.subr.mxu0 0.0
    %1277 = vmatpush1.msra.mxu0 0.0
    %1278 = vmatprep.subr.mxu0 0.0
    %1279 = vmatpush1.msra.mxu0 0.0
    %1280 = vmatprep.subr.mxu0 0.0
    %1281 = vmatpush1.msra.mxu0 0.0
    %1282 = vmatprep.subr.mxu0 0.0
    %1283 = vmatpush1.msra.mxu0 0.0
    %1284 = vmatprep.subr.mxu0 0.0
    %1285 = vmatpush1.msra.mxu0 0.0
    %1286 = vmatprep.subr.mxu0 0.0
    %1287 = vmatpush1.msra.mxu0 0.0
    %1288 = vmatprep.mubr.f32.mxu0 0.0
    %1289 = vmatmul.mubr.f32.gmra.mrb[0].mxu0 %v1207
    %v1290 = vpop.f32.mrb[0].mxu0
    %v1291 = vadd.f32 %v1180, %v1290
    %v1292 = vpop.f32.mrb[0].mxu0
    %1293 = vdwg.mxu0
    %v1294 = vtanh.pop %v1291
    %v1295 = vld [vmem:[#allocation8] sm:$0xff]
    %v1296 = vld [vmem:[#allocation8 + $0x8] sm:$0xff]
    %v1297 = vld [vmem:[#allocation8 + $0x10] sm:$0xff]
    %v1298 = vld [vmem:[#allocation8 + $0x18] sm:$0xff]
    %v1299 = vld [vmem:[#allocation8 + $0x20] sm:$0xff]
    %v1300 = vld [vmem:[#allocation8 + $0x28] sm:$0xff]
    %v1301 = vld [vmem:[#allocation8 + $0x30] sm:$0xff]
    %v1302 = vld [vmem:[#allocation8 + $0x38] sm:$0xff]
    %v1303 = vld [vmem:[#allocation8 + $0x40] sm:$0xff]
    %v1304 = vld [vmem:[#allocation8 + $0x48] sm:$0xff]
    %v1305 = vld [vmem:[#allocation8 + $0x50] sm:$0xff]
    %v1306 = vld [vmem:[#allocation8 + $0x58] sm:$0xff]
    %v1307 = vld [vmem:[#allocation8 + $0x60] sm:$0xff]
    %v1308 = vld [vmem:[#allocation8 + $0x68] sm:$0xff]
    %v1309 = vld [vmem:[#allocation8 + $0x70] sm:$0xff]
    %v1310 = vld [vmem:[#allocation8 + $0x78] sm:$0xff]
    %v1311 = vld [vmem:[#allocation8 + $0x80] sm:$0xff]
    %v1312 = vld [vmem:[#allocation8 + $0x88] sm:$0xff]
    %v1313 = vld [vmem:[#allocation8 + $0x90] sm:$0xff]
    %v1314 = vld [vmem:[#allocation8 + $0x98] sm:$0xff]
    %v1315 = vld [vmem:[#allocation8 + $0xa0] sm:$0xff]
    %v1316 = vld [vmem:[#allocation8 + $0xa8] sm:$0xff]
    %v1317 = vld [vmem:[#allocation8 + $0xb0] sm:$0xff]
    %v1318 = vld [vmem:[#allocation8 + $0xb8] sm:$0xff]
    %v1319 = vld [vmem:[#allocation8 + $0xc0] sm:$0xff]
    %v1320 = vld [vmem:[#allocation8 + $0xc8] sm:$0xff]
    %v1321 = vld [vmem:[#allocation8 + $0xd0] sm:$0xff]
    %v1322 = vld [vmem:[#allocation8 + $0xd8] sm:$0xff]
    %v1323 = vld [vmem:[#allocation8 + $0xe0] sm:$0xff]
    %v1324 = vld [vmem:[#allocation8 + $0xe8] sm:$0xff]
    %v1325 = vld [vmem:[#allocation8 + $0xf0] sm:$0xff]
    %v1326 = vld [vmem:[#allocation8 + $0xf8] sm:$0xff]
    %1327 = vmatprep.subr.mxu0 %v1296
    %1328 = vmatpush1.msra.mxu0 %v1295
    %1329 = vmatprep.subr.mxu0 %v1298
    %1330 = vmatpush1.msra.mxu0 %v1297
    %1331 = vmatprep.subr.mxu0 %v1300
    %1332 = vmatpush1.msra.mxu0 %v1299
    %1333 = vmatprep.subr.mxu0 %v1302
    %1334 = vmatpush1.msra.mxu0 %v1301
    %1335 = vmatprep.subr.mxu0 %v1304
    %1336 = vmatpush1.msra.mxu0 %v1303
    %1337 = vmatprep.subr.mxu0 %v1306
    %1338 = vmatpush1.msra.mxu0 %v1305
    %1339 = vmatprep.subr.mxu0 %v1308
    %1340 = vmatpush1.msra.mxu0 %v1307
    %1341 = vmatprep.subr.mxu0 %v1310
    %1342 = vmatpush1.msra.mxu0 %v1309
    %1343 = vmatprep.subr.mxu0 %v1312
    %1344 = vmatpush1.msra.mxu0 %v1311
    %1345 = vmatprep.subr.mxu0 %v1314
    %1346 = vmatpush1.msra.mxu0 %v1313
    %1347 = vmatprep.subr.mxu0 %v1316
    %1348 = vmatpush1.msra.mxu0 %v1315
    %1349 = vmatprep.subr.mxu0 %v1318
    %1350 = vmatpush1.msra.mxu0 %v1317
    %1351 = vmatprep.subr.mxu0 %v1320
    %1352 = vmatpush1.msra.mxu0 %v1319
    %1353 = vmatprep.subr.mxu0 %v1322
    %1354 = vmatpush1.msra.mxu0 %v1321
    %1355 = vmatprep.subr.mxu0 %v1324
    %1356 = vmatpush1.msra.mxu0 %v1323
    %1357 = vmatprep.subr.mxu0 %v1326
    %1358 = vmatpush1.msra.mxu0 %v1325
    %1359 = vmatprep.subr.mxu0 0.0
    %1360 = vmatpush1.msra.mxu0 0.0
    %1361 = vmatprep.subr.mxu0 0.0
    %1362 = vmatpush1.msra.mxu0 0.0
    %1363 = vmatprep.subr.mxu0 0.0
    %1364 = vmatpush1.msra.mxu0 0.0
    %1365 = vmatprep.subr.mxu0 0.0
    %1366 = vmatpush1.msra.mxu0 0.0
    %1367 = vmatprep.subr.mxu0 0.0
    %1368 = vmatpush1.msra.mxu0 0.0
    %1369 = vmatprep.subr.mxu0 0.0
    %1370 = vmatpush1.msra.mxu0 0.0
    %1371 = vmatprep.subr.mxu0 0.0
    %1372 = vmatpush1.msra.mxu0 0.0
    %1373 = vmatprep.subr.mxu0 0.0
    %1374 = vmatpush1.msra.mxu0 0.0
    %1375 = vmatprep.subr.mxu0 0.0
    %1376 = vmatpush1.msra.mxu0 0.0
    %1377 = vmatprep.subr.mxu0 0.0
    %1378 = vmatpush1.msra.mxu0 0.0
    %1379 = vmatprep.subr.mxu0 0.0
    %1380 = vmatpush1.msra.mxu0 0.0
    %1381 = vmatprep.subr.mxu0 0.0
    %1382 = vmatpush1.msra.mxu0 0.0
    %1383 = vmatprep.subr.mxu0 0.0
    %1384 = vmatpush1.msra.mxu0 0.0
    %1385 = vmatprep.subr.mxu0 0.0
    %1386 = vmatpush1.msra.mxu0 0.0
    %1387 = vmatprep.subr.mxu0 0.0
    %1388 = vmatpush1.msra.mxu0 0.0
    %1389 = vmatprep.subr.mxu0 0.0
    %1390 = vmatpush1.msra.mxu0 0.0
    %1391 = vmatprep.mubr.f32.mxu0 0.0
    %1392 = vmatmul.mubr.f32.gmra.mrb[0].mxu0 %v1294
    %v1393 = vpop.f32.mrb[0].mxu0
    %v1394 = vadd.f32 0.0, %v1393
    %v1395 = vpop.f32.mrb[0].mxu0
    %v1396 = vadd.f32 0.0, %v1395
    %1397 = vdwg.mxu0
    %v1398 = vadd.f32 %v1396, %v688
    %s1399 = scalar_lea.vmem [#allocation10], 16
    %1400 = vst [vmem:[%s1399] sm:$0xff] %v1398
    %1401 = vmax.xlane.f32.xlu0 %v1398
    %v1402 = vpop.xlane.xlu0 %1401
    %vm1403 = vcmp.eq.f32.partialorder %v1398, %v1402
    %v1404 = vsel %vm1403, %v691, 128
    %v1405 = vand.u32 %v1404, 65535
    %v1406 = vshra.s32 %v1404, 16
    %v1407 = vcvt.s32.f32 %v1405
    %v1408 = vcvt.s32.f32 %v1406
    %1409 = vmin.xlane.f32.xlu0 %v1408
    %v1410 = vpop.xlane.xlu0 %1409
    %vm1411 = vcmp.eq.f32.partialorder %v1408, %v1410
    %v1412 = vsel %vm1411, %v1407, inf
    %1413 = vmin.xlane.f32.xlu0 %v1412
    %v1414 = vpop.xlane.xlu0 %1413
    %v1415 = vcvt.f32.s32 %v1414
    %v1416 = vcvt.f32.s32 %v1410
    %v1417 = vshll.u32 %v1416, 16
    %v1418 = vadd.s32 %v1417, %v1415
    %vm1419 = vcmp.eq.s32.totalorder %v691, %v1418
    %v1420 = vsel %vm1419, 1, 0
    %v1421 = vcvt.s32.f32 %v1420
    %v1422 = vld [vmem:[#allocation7] sm:$0xff]
    %v1423 = vld [vmem:[#allocation7 + $0x8] sm:$0xff]
    %v1424 = vld [vmem:[#allocation7 + $0x10] sm:$0xff]
    %v1425 = vld [vmem:[#allocation7 + $0x18] sm:$0xff]
    %v1426 = vld [vmem:[#allocation7 + $0x20] sm:$0xff]
    %v1427 = vld [vmem:[#allocation7 + $0x28] sm:$0xff]
    %v1428 = vld [vmem:[#allocation7 + $0x30] sm:$0xff]
    %v1429 = vld [vmem:[#allocation7 + $0x38] sm:$0xff]
    %v1430 = vld [vmem:[#allocation7 + $0x40] sm:$0xff]
    %v1431 = vld [vmem:[#allocation7 + $0x48] sm:$0xff]
    %v1432 = vld [vmem:[#allocation7 + $0x50] sm:$0xff]
    %v1433 = vld [vmem:[#allocation7 + $0x58] sm:$0xff]
    %v1434 = vld [vmem:[#allocation7 + $0x60] sm:$0xff]
    %v1435 = vld [vmem:[#allocation7 + $0x68] sm:$0xff]
    %v1436 = vld [vmem:[#allocation7 + $0x70] sm:$0xff]
    %v1437 = vld [vmem:[#allocation7 + $0x78] sm:$0xff]
    %1438 = vmatprep.subr.mxu0 0.0
    %1439 = vmatpush1.msra.mxu0 %v1422
    %1440 = vmatprep.subr.mxu0 0.0
    %1441 = vmatpush1.msra.mxu0 %v1423
    %1442 = vmatprep.subr.mxu0 0.0
    %1443 = vmatpush1.msra.mxu0 %v1424
    %1444 = vmatprep.subr.mxu0 0.0
    %1445 = vmatpush1.msra.mxu0 %v1425
    %1446 = vmatprep.subr.mxu0 0.0
    %1447 = vmatpush1.msra.mxu0 %v1426
    %1448 = vmatprep.subr.mxu0 0.0
    %1449 = vmatpush1.msra.mxu0 %v1427
    %1450 = vmatprep.subr.mxu0 0.0
    %1451 = vmatpush1.msra.mxu0 %v1428
    %1452 = vmatprep.subr.mxu0 0.0
    %1453 = vmatpush1.msra.mxu0 %v1429
    %1454 = vmatprep.subr.mxu0 0.0
    %1455 = vmatpush1.msra.mxu0 %v1430
    %1456 = vmatprep.subr.mxu0 0.0
    %1457 = vmatpush1.msra.mxu0 %v1431
    %1458 = vmatprep.subr.mxu0 0.0
    %1459 = vmatpush1.msra.mxu0 %v1432
    %1460 = vmatprep.subr.mxu0 0.0
    %1461 = vmatpush1.msra.mxu0 %v1433
    %1462 = vmatprep.subr.mxu0 0.0
    %1463 = vmatpush1.msra.mxu0 %v1434
    %1464 = vmatprep.subr.mxu0 0.0
    %1465 = vmatpush1.msra.mxu0 %v1435
    %1466 = vmatprep.subr.mxu0 0.0
    %1467 = vmatpush1.msra.mxu0 %v1436
    %1468 = vmatprep.subr.mxu0 0.0
    %1469 = vmatpush1.msra.mxu0 %v1437
    %1470 = vmatprep.subr.mxu0 0.0
    %1471 = vmatpush1.msra.mxu0 0.0
    %1472 = vmatprep.subr.mxu0 0.0
    %1473 = vmatpush1.msra.mxu0 0.0
    %1474 = vmatprep.subr.mxu0 0.0
    %1475 = vmatpush1.msra.mxu0 0.0
    %1476 = vmatprep.subr.mxu0 0.0
    %1477 = vmatpush1.msra.mxu0 0.0
    %1478 = vmatprep.subr.mxu0 0.0
    %1479 = vmatpush1.msra.mxu0 0.0
    %1480 = vmatprep.subr.mxu0 0.0
    %1481 = vmatpush1.msra.mxu0 0.0
    %1482 = vmatprep.subr.mxu0 0.0
    %1483 = vmatpush1.msra.mxu0 0.0
    %1484 = vmatprep.subr.mxu0 0.0
    %1485 = vmatpush1.msra.mxu0 0.0
    %1486 = vmatprep.subr.mxu0 0.0
    %1487 = vmatpush1.msra.mxu0 0.0
    %1488 = vmatprep.subr.mxu0 0.0
    %1489 = vmatpush1.msra.mxu0 0.0
    %1490 = vmatprep.subr.mxu0 0.0
    %1491 = vmatpush1.msra.mxu0 0.0
    %1492 = vmatprep.subr.mxu0 0.0
    %1493 = vmatpush1.msra.mxu0 0.0
    %1494 = vmatprep.subr.mxu0 0.0
    %1495 = vmatpush1.msra.mxu0 0.0
    %1496 = vmatprep.subr.mxu0 0.0
    %1497 = vmatpush1.msra.mxu0 0.0
    %1498 = vmatprep.subr.mxu0 0.0
    %1499 = vmatpush1.msra.mxu0 0.0
    %1500 = vmatprep.subr.mxu0 0.0
    %1501 = vmatpush1.msra.mxu0 0.0
    %1502 = vmatprep.mubr.f32.mxu0 0.0
    %1503 = vmatmul.mubr.f32.gmra.mrb[0].mxu0 %v1421
    %v1504 = vpop.f32.mrb[0].mxu0
    %v1505 = vadd.f32 %v1394, %v1504
    %v1506 = vpop.f32.mrb[0].mxu0
    %1507 = vdwg.mxu0
    %v1508 = vtanh.pop %v1505
    %v1509 = vld [vmem:[#allocation8] sm:$0xff]
    %v1510 = vld [vmem:[#allocation8 + $0x8] sm:$0xff]
    %v1511 = vld [vmem:[#allocation8 + $0x10] sm:$0xff]
    %v1512 = vld [vmem:[#allocation8 + $0x18] sm:$0xff]
    %v1513 = vld [vmem:[#allocation8 + $0x20] sm:$0xff]
    %v1514 = vld [vmem:[#allocation8 + $0x28] sm:$0xff]
    %v1515 = vld [vmem:[#allocation8 + $0x30] sm:$0xff]
    %v1516 = vld [vmem:[#allocation8 + $0x38] sm:$0xff]
    %v1517 = vld [vmem:[#allocation8 + $0x40] sm:$0xff]
    %v1518 = vld [vmem:[#allocation8 + $0x48] sm:$0xff]
    %v1519 = vld [vmem:[#allocation8 + $0x50] sm:$0xff]
    %v1520 = vld [vmem:[#allocation8 + $0x58] sm:$0xff]
    %v1521 = vld [vmem:[#allocation8 + $0x60] sm:$0xff]
    %v1522 = vld [vmem:[#allocation8 + $0x68] sm:$0xff]
    %v1523 = vld [vmem:[#allocation8 + $0x70] sm:$0xff]
    %v1524 = vld [vmem:[#allocation8 + $0x78] sm:$0xff]
    %v1525 = vld [vmem:[#allocation8 + $0x80] sm:$0xff]
    %v1526 = vld [vmem:[#allocation8 + $0x88] sm:$0xff]
    %v1527 = vld [vmem:[#allocation8 + $0x90] sm:$0xff]
    %v1528 = vld [vmem:[#allocation8 + $0x98] sm:$0xff]
    %v1529 = vld [vmem:[#allocation8 + $0xa0] sm:$0xff]
    %v1530 = vld [vmem:[#allocation8 + $0xa8] sm:$0xff]
    %v1531 = vld [vmem:[#allocation8 + $0xb0] sm:$0xff]
    %v1532 = vld [vmem:[#allocation8 + $0xb8] sm:$0xff]
    %v1533 = vld [vmem:[#allocation8 + $0xc0] sm:$0xff]
    %v1534 = vld [vmem:[#allocation8 + $0xc8] sm:$0xff]
    %v1535 = vld [vmem:[#allocation8 + $0xd0] sm:$0xff]
    %v1536 = vld [vmem:[#allocation8 + $0xd8] sm:$0xff]
    %v1537 = vld [vmem:[#allocation8 + $0xe0] sm:$0xff]
    %v1538 = vld [vmem:[#allocation8 + $0xe8] sm:$0xff]
    %v1539 = vld [vmem:[#allocation8 + $0xf0] sm:$0xff]
    %v1540 = vld [vmem:[#allocation8 + $0xf8] sm:$0xff]
    %1541 = vmatprep.subr.mxu0 %v1510
    %1542 = vmatpush1.msra.mxu0 %v1509
    %1543 = vmatprep.subr.mxu0 %v1512
    %1544 = vmatpush1.msra.mxu0 %v1511
    %1545 = vmatprep.subr.mxu0 %v1514
    %1546 = vmatpush1.msra.mxu0 %v1513
    %1547 = vmatprep.subr.mxu0 %v1516
    %1548 = vmatpush1.msra.mxu0 %v1515
    %1549 = vmatprep.subr.mxu0 %v1518
    %1550 = vmatpush1.msra.mxu0 %v1517
    %1551 = vmatprep.subr.mxu0 %v1520
    %1552 = vmatpush1.msra.mxu0 %v1519
    %1553 = vmatprep.subr.mxu0 %v1522
    %1554 = vmatpush1.msra.mxu0 %v1521
    %1555 = vmatprep.subr.mxu0 %v1524
    %1556 = vmatpush1.msra.mxu0 %v1523
    %1557 = vmatprep.subr.mxu0 %v1526
    %1558 = vmatpush1.msra.mxu0 %v1525
    %1559 = vmatprep.subr.mxu0 %v1528
    %1560 = vmatpush1.msra.mxu0 %v1527
    %1561 = vmatprep.subr.mxu0 %v1530
    %1562 = vmatpush1.msra.mxu0 %v1529
    %1563 = vmatprep.subr.mxu0 %v1532
    %1564 = vmatpush1.msra.mxu0 %v1531
    %1565 = vmatprep.subr.mxu0 %v1534
    %1566 = vmatpush1.msra.mxu0 %v1533
    %1567 = vmatprep.subr.mxu0 %v1536
    %1568 = vmatpush1.msra.mxu0 %v1535
    %1569 = vmatprep.subr.mxu0 %v1538
    %1570 = vmatpush1.msra.mxu0 %v1537
    %1571 = vmatprep.subr.mxu0 %v1540
    %1572 = vmatpush1.msra.mxu0 %v1539
    %1573 = vmatprep.subr.mxu0 0.0
    %1574 = vmatpush1.msra.mxu0 0.0
    %1575 = vmatprep.subr.mxu0 0.0
    %1576 = vmatpush1.msra.mxu0 0.0
    %1577 = vmatprep.subr.mxu0 0.0
    %1578 = vmatpush1.msra.mxu0 0.0
    %1579 = vmatprep.subr.mxu0 0.0
    %1580 = vmatpush1.msra.mxu0 0.0
    %1581 = vmatprep.subr.mxu0 0.0
    %1582 = vmatpush1.msra.mxu0 0.0
    %1583 = vmatprep.subr.mxu0 0.0
    %1584 = vmatpush1.msra.mxu0 0.0
    %1585 = vmatprep.subr.mxu0 0.0
    %1586 = vmatpush1.msra.mxu0 0.0
    %1587 = vmatprep.subr.mxu0 0.0
    %1588 = vmatpush1.msra.mxu0 0.0
    %1589 = vmatprep.subr.mxu0 0.0
    %1590 = vmatpush1.msra.mxu0 0.0
    %1591 = vmatprep.subr.mxu0 0.0
    %1592 = vmatpush1.msra.mxu0 0.0
    %1593 = vmatprep.subr.mxu0 0.0
    %1594 = vmatpush1.msra.mxu0 0.0
    %1595 = vmatprep.subr.mxu0 0.0
    %1596 = vmatpush1.msra.mxu0 0.0
    %1597 = vmatprep.subr.mxu0 0.0
    %1598 = vmatpush1.msra.mxu0 0.0
    %1599 = vmatprep.subr.mxu0 0.0
    %1600 = vmatpush1.msra.mxu0 0.0
    %1601 = vmatprep.subr.mxu0 0.0
    %1602 = vmatpush1.msra.mxu0 0.0
    %1603 = vmatprep.subr.mxu0 0.0
    %1604 = vmatpush1.msra.mxu0 0.0
    %1605 = vmatprep.mubr.f32.mxu0 0.0
    %1606 = vmatmul.mubr.f32.gmra.mrb[0].mxu0 %v1508
    %v1607 = vpop.f32.mrb[0].mxu0
    %v1608 = vadd.f32 0.0, %v1607
    %v1609 = vpop.f32.mrb[0].mxu0
    %v1610 = vadd.f32 0.0, %v1609
    %1611 = vdwg.mxu0
    %v1612 = vadd.f32 %v1610, %v688
    %s1613 = scalar_lea.vmem [#allocation10], 24
    %1614 = vst [vmem:[%s1613] sm:$0xff] %v1612
    %1615 = vmax.xlane.f32.xlu0 %v1612
    %v1616 = vpop.xlane.xlu0 %1615
    %vm1617 = vcmp.eq.f32.partialorder %v1612, %v1616
    %v1618 = vsel %vm1617, %v691, 128
    %v1619 = vand.u32 %v1618, 65535
    %v1620 = vshra.s32 %v1618, 16
    %v1621 = vcvt.s32.f32 %v1619
    %v1622 = vcvt.s32.f32 %v1620
    %1623 = vmin.xlane.f32.xlu0 %v1622
    %v1624 = vpop.xlane.xlu0 %1623
    %vm1625 = vcmp.eq.f32.partialorder %v1622, %v1624
    %v1626 = vsel %vm1625, %v1621, inf
    %1627 = vmin.xlane.f32.xlu0 %v1626
    %v1628 = vpop.xlane.xlu0 %1627
    %v1629 = vcvt.f32.s32 %v1628
    %v1630 = vcvt.f32.s32 %v1624
    %v1631 = vshll.u32 %v1630, 16
    %v1632 = vadd.s32 %v1631, %v1629
    %vm1633 = vcmp.eq.s32.totalorder %v691, %v1632
    %v1634 = vsel %vm1633, 1, 0
    %v1635 = vcvt.s32.f32 %v1634
    %v1636 = vld [vmem:[#allocation7] sm:$0xff]
    %v1637 = vld [vmem:[#allocation7 + $0x8] sm:$0xff]
    %v1638 = vld [vmem:[#allocation7 + $0x10] sm:$0xff]
    %v1639 = vld [vmem:[#allocation7 + $0x18] sm:$0xff]
    %v1640 = vld [vmem:[#allocation7 + $0x20] sm:$0xff]
    %v1641 = vld [vmem:[#allocation7 + $0x28] sm:$0xff]
    %v1642 = vld [vmem:[#allocation7 + $0x30] sm:$0xff]
    %v1643 = vld [vmem:[#allocation7 + $0x38] sm:$0xff]
    %v1644 = vld [vmem:[#allocation7 + $0x40] sm:$0xff]
    %v1645 = vld [vmem:[#allocation7 + $0x48] sm:$0xff]
    %v1646 = vld [vmem:[#allocation7 + $0x50] sm:$0xff]
    %v1647 = vld [vmem:[#allocation7 + $0x58] sm:$0xff]
    %v1648 = vld [vmem:[#allocation7 + $0x60] sm:$0xff]
    %v1649 = vld [vmem:[#allocation7 + $0x68] sm:$0xff]
    %v1650 = vld [vmem:[#allocation7 + $0x70] sm:$0xff]
    %v1651 = vld [vmem:[#allocation7 + $0x78] sm:$0xff]
    %1652 = vmatprep.subr.mxu0 0.0
    %1653 = vmatpush1.msra.mxu0 %v1636
    %1654 = vmatprep.subr.mxu0 0.0
    %1655 = vmatpush1.msra.mxu0 %v1637
    %1656 = vmatprep.subr.mxu0 0.0
    %1657 = vmatpush1.msra.mxu0 %v1638
    %1658 = vmatprep.subr.mxu0 0.0
    %1659 = vmatpush1.msra.mxu0 %v1639
    %1660 = vmatprep.subr.mxu0 0.0
    %1661 = vmatpush1.msra.mxu0 %v1640
    %1662 = vmatprep.subr.mxu0 0.0
    %1663 = vmatpush1.msra.mxu0 %v1641
    %1664 = vmatprep.subr.mxu0 0.0
    %1665 = vmatpush1.msra.mxu0 %v1642
    %1666 = vmatprep.subr.mxu0 0.0
    %1667 = vmatpush1.msra.mxu0 %v1643
    %1668 = vmatprep.subr.mxu0 0.0
    %1669 = vmatpush1.msra.mxu0 %v1644
    %1670 = vmatprep.subr.mxu0 0.0
    %1671 = vmatpush1.msra.mxu0 %v1645
    %1672 = vmatprep.subr.mxu0 0.0
    %1673 = vmatpush1.msra.mxu0 %v1646
    %1674 = vmatprep.subr.mxu0 0.0
    %1675 = vmatpush1.msra.mxu0 %v1647
    %1676 = vmatprep.subr.mxu0 0.0
    %1677 = vmatpush1.msra.mxu0 %v1648
    %1678 = vmatprep.subr.mxu0 0.0
    %1679 = vmatpush1.msra.mxu0 %v1649
    %1680 = vmatprep.subr.mxu0 0.0
    %1681 = vmatpush1.msra.mxu0 %v1650
    %1682 = vmatprep.subr.mxu0 0.0
    %1683 = vmatpush1.msra.mxu0 %v1651
    %1684 = vmatprep.subr.mxu0 0.0
    %1685 = vmatpush1.msra.mxu0 0.0
    %1686 = vmatprep.subr.mxu0 0.0
    %1687 = vmatpush1.msra.mxu0 0.0
    %1688 = vmatprep.subr.mxu0 0.0
    %1689 = vmatpush1.msra.mxu0 0.0
    %1690 = vmatprep.subr.mxu0 0.0
    %1691 = vmatpush1.msra.mxu0 0.0
    %1692 = vmatprep.subr.mxu0 0.0
    %1693 = vmatpush1.msra.mxu0 0.0
    %1694 = vmatprep.subr.mxu0 0.0
    %1695 = vmatpush1.msra.mxu0 0.0
    %1696 = vmatprep.subr.mxu0 0.0
    %1697 = vmatpush1.msra.mxu0 0.0
    %1698 = vmatprep.subr.mxu0 0.0
    %1699 = vmatpush1.msra.mxu0 0.0
    %1700 = vmatprep.subr.mxu0 0.0
    %1701 = vmatpush1.msra.mxu0 0.0
    %1702 = vmatprep.subr.mxu0 0.0
    %1703 = vmatpush1.msra.mxu0 0.0
    %1704 = vmatprep.subr.mxu0 0.0
    %1705 = vmatpush1.msra.mxu0 0.0
    %1706 = vmatprep.subr.mxu0 0.0
    %1707 = vmatpush1.msra.mxu0 0.0
    %1708 = vmatprep.subr.mxu0 0.0
    %1709 = vmatpush1.msra.mxu0 0.0
    %1710 = vmatprep.subr.mxu0 0.0
    %1711 = vmatpush1.msra.mxu0 0.0
    %1712 = vmatprep.subr.mxu0 0.0
    %1713 = vmatpush1.msra.mxu0 0.0
    %1714 = vmatprep.subr.mxu0 0.0
    %1715 = vmatpush1.msra.mxu0 0.0
    %1716 = vmatprep.mubr.f32.mxu0 0.0
    %1717 = vmatmul.mubr.f32.gmra.mrb[0].mxu0 %v1635
    %v1718 = vpop.f32.mrb[0].mxu0
    %v1719 = vadd.f32 %v1608, %v1718
    %v1720 = vpop.f32.mrb[0].mxu0
    %1721 = vdwg.mxu0
    %v1722 = vtanh.pop %v1719
    %v1723 = vld [vmem:[#allocation8] sm:$0xff]
    %v1724 = vld [vmem:[#allocation8 + $0x8] sm:$0xff]
    %v1725 = vld [vmem:[#allocation8 + $0x10] sm:$0xff]
    %v1726 = vld [vmem:[#allocation8 + $0x18] sm:$0xff]
    %v1727 = vld [vmem:[#allocation8 + $0x20] sm:$0xff]
    %v1728 = vld [vmem:[#allocation8 + $0x28] sm:$0xff]
    %v1729 = vld [vmem:[#allocation8 + $0x30] sm:$0xff]
    %v1730 = vld [vmem:[#allocation8 + $0x38] sm:$0xff]
    %v1731 = vld [vmem:[#allocation8 + $0x40] sm:$0xff]
    %v1732 = vld [vmem:[#allocation8 + $0x48] sm:$0xff]
    %v1733 = vld [vmem:[#allocation8 + $0x50] sm:$0xff]
    %v1734 = vld [vmem:[#allocation8 + $0x58] sm:$0xff]
    %v1735 = vld [vmem:[#allocation8 + $0x60] sm:$0xff]
    %v1736 = vld [vmem:[#allocation8 + $0x68] sm:$0xff]
    %v1737 = vld [vmem:[#allocation8 + $0x70] sm:$0xff]
    %v1738 = vld [vmem:[#allocation8 + $0x78] sm:$0xff]
    %v1739 = vld [vmem:[#allocation8 + $0x80] sm:$0xff]
    %v1740 = vld [vmem:[#allocation8 + $0x88] sm:$0xff]
    %v1741 = vld [vmem:[#allocation8 + $0x90] sm:$0xff]
    %v1742 = vld [vmem:[#allocation8 + $0x98] sm:$0xff]
    %v1743 = vld [vmem:[#allocation8 + $0xa0] sm:$0xff]
    %v1744 = vld [vmem:[#allocation8 + $0xa8] sm:$0xff]
    %v1745 = vld [vmem:[#allocation8 + $0xb0] sm:$0xff]
    %v1746 = vld [vmem:[#allocation8 + $0xb8] sm:$0xff]
    %v1747 = vld [vmem:[#allocation8 + $0xc0] sm:$0xff]
    %v1748 = vld [vmem:[#allocation8 + $0xc8] sm:$0xff]
    %v1749 = vld [vmem:[#allocation8 + $0xd0] sm:$0xff]
    %v1750 = vld [vmem:[#allocation8 + $0xd8] sm:$0xff]
    %v1751 = vld [vmem:[#allocation8 + $0xe0] sm:$0xff]
    %v1752 = vld [vmem:[#allocation8 + $0xe8] sm:$0xff]
    %v1753 = vld [vmem:[#allocation8 + $0xf0] sm:$0xff]
    %v1754 = vld [vmem:[#allocation8 + $0xf8] sm:$0xff]
    %1755 = vmatprep.subr.mxu0 %v1724
    %1756 = vmatpush1.msra.mxu0 %v1723
    %1757 = vmatprep.subr.mxu0 %v1726
    %1758 = vmatpush1.msra.mxu0 %v1725
    %1759 = vmatprep.subr.mxu0 %v1728
    %1760 = vmatpush1.msra.mxu0 %v1727
    %1761 = vmatprep.subr.mxu0 %v1730
    %1762 = vmatpush1.msra.mxu0 %v1729
    %1763 = vmatprep.subr.mxu0 %v1732
    %1764 = vmatpush1.msra.mxu0 %v1731
    %1765 = vmatprep.subr.mxu0 %v1734
    %1766 = vmatpush1.msra.mxu0 %v1733
    %1767 = vmatprep.subr.mxu0 %v1736
    %1768 = vmatpush1.msra.mxu0 %v1735
    %1769 = vmatprep.subr.mxu0 %v1738
    %1770 = vmatpush1.msra.mxu0 %v1737
    %1771 = vmatprep.subr.mxu0 %v1740
    %1772 = vmatpush1.msra.mxu0 %v1739
    %1773 = vmatprep.subr.mxu0 %v1742
    %1774 = vmatpush1.msra.mxu0 %v1741
    %1775 = vmatprep.subr.mxu0 %v1744
    %1776 = vmatpush1.msra.mxu0 %v1743
    %1777 = vmatprep.subr.mxu0 %v1746
    %1778 = vmatpush1.msra.mxu0 %v1745
    %1779 = vmatprep.subr.mxu0 %v1748
    %1780 = vmatpush1.msra.mxu0 %v1747
    %1781 = vmatprep.subr.mxu0 %v1750
    %1782 = vmatpush1.msra.mxu0 %v1749
    %1783 = vmatprep.subr.mxu0 %v1752
    %1784 = vmatpush1.msra.mxu0 %v1751
    %1785 = vmatprep.subr.mxu0 %v1754
    %1786 = vmatpush1.msra.mxu0 %v1753
    %1787 = vmatprep.subr.mxu0 0.0
    %1788 = vmatpush1.msra.mxu0 0.0
    %1789 = vmatprep.subr.mxu0 0.0
    %1790 = vmatpush1.msra.mxu0 0.0
    %1791 = vmatprep.subr.mxu0 0.0
    %1792 = vmatpush1.msra.mxu0 0.0
    %1793 = vmatprep.subr.mxu0 0.0
    %1794 = vmatpush1.msra.mxu0 0.0
    %1795 = vmatprep.subr.mxu0 0.0
    %1796 = vmatpush1.msra.mxu0 0.0
    %1797 = vmatprep.subr.mxu0 0.0
    %1798 = vmatpush1.msra.mxu0 0.0
    %1799 = vmatprep.subr.mxu0 0.0
    %1800 = vmatpush1.msra.mxu0 0.0
    %1801 = vmatprep.subr.mxu0 0.0
    %1802 = vmatpush1.msra.mxu0 0.0
    %1803 = vmatprep.subr.mxu0 0.0
    %1804 = vmatpush1.msra.mxu0 0.0
    %1805 = vmatprep.subr.mxu0 0.0
    %1806 = vmatpush1.msra.mxu0 0.0
    %1807 = vmatprep.subr.mxu0 0.0
    %1808 = vmatpush1.msra.mxu0 0.0
    %1809 = vmatprep.subr.mxu0 0.0
    %1810 = vmatpush1.msra.mxu0 0.0
    %1811 = vmatprep.subr.mxu0 0.0
    %1812 = vmatpush1.msra.mxu0 0.0
    %1813 = vmatprep.subr.mxu0 0.0
    %1814 = vmatpush1.msra.mxu0 0.0
    %1815 = vmatprep.subr.mxu0 0.0
    %1816 = vmatpush1.msra.mxu0 0.0
    %1817 = vmatprep.subr.mxu0 0.0
    %1818 = vmatpush1.msra.mxu0 0.0
    %1819 = vmatprep.mubr.f32.mxu0 0.0
    %1820 = vmatmul.mubr.f32.gmra.mrb[0].mxu0 %v1722
    %v1821 = vpop.f32.mrb[0].mxu0
    %v1822 = vadd.f32 0.0, %v1821
    %v1823 = vpop.f32.mrb[0].mxu0
    %v1824 = vadd.f32 0.0, %v1823
    %1825 = vdwg.mxu0
    %v1826 = vadd.f32 %v1824, %v688
    %s1827 = scalar_lea.vmem [#allocation10], 32
    %1828 = vst [vmem:[%s1827] sm:$0xff] %v1826
    %1829 = vmax.xlane.f32.xlu0 %v1826
    %v1830 = vpop.xlane.xlu0 %1829
    %vm1831 = vcmp.eq.f32.partialorder %v1826, %v1830
    %v1832 = vsel %vm1831, %v691, 128
    %v1833 = vand.u32 %v1832, 65535
    %v1834 = vshra.s32 %v1832, 16
    %v1835 = vcvt.s32.f32 %v1833
    %v1836 = vcvt.s32.f32 %v1834
    %1837 = vmin.xlane.f32.xlu0 %v1836
    %v1838 = vpop.xlane.xlu0 %1837
    %vm1839 = vcmp.eq.f32.partialorder %v1836, %v1838
    %v1840 = vsel %vm1839, %v1835, inf
    %1841 = vmin.xlane.f32.xlu0 %v1840
    %v1842 = vpop.xlane.xlu0 %1841
    %v1843 = vcvt.f32.s32 %v1842
    %v1844 = vcvt.f32.s32 %v1838
    %v1845 = vshll.u32 %v1844, 16
    %v1846 = vadd.s32 %v1845, %v1843
    %vm1847 = vcmp.eq.s32.totalorder %v691, %v1846
    %v1848 = vsel %vm1847, 1, 0
    %v1849 = vcvt.s32.f32 %v1848
    %v1850 = vld [vmem:[#allocation7] sm:$0xff]
    %v1851 = vld [vmem:[#allocation7 + $0x8] sm:$0xff]
    %v1852 = vld [vmem:[#allocation7 + $0x10] sm:$0xff]
    %v1853 = vld [vmem:[#allocation7 + $0x18] sm:$0xff]
    %v1854 = vld [vmem:[#allocation7 + $0x20] sm:$0xff]
    %v1855 = vld [vmem:[#allocation7 + $0x28] sm:$0xff]
    %v1856 = vld [vmem:[#allocation7 + $0x30] sm:$0xff]
    %v1857 = vld [vmem:[#allocation7 + $0x38] sm:$0xff]
    %v1858 = vld [vmem:[#allocation7 + $0x40] sm:$0xff]
    %v1859 = vld [vmem:[#allocation7 + $0x48] sm:$0xff]
    %v1860 = vld [vmem:[#allocation7 + $0x50] sm:$0xff]
    %v1861 = vld [vmem:[#allocation7 + $0x58] sm:$0xff]
    %v1862 = vld [vmem:[#allocation7 + $0x60] sm:$0xff]
    %v1863 = vld [vmem:[#allocation7 + $0x68] sm:$0xff]
    %v1864 = vld [vmem:[#allocation7 + $0x70] sm:$0xff]
    %v1865 = vld [vmem:[#allocation7 + $0x78] sm:$0xff]
    %1866 = vmatprep.subr.mxu0 0.0
    %1867 = vmatpush1.msra.mxu0 %v1850
    %1868 = vmatprep.subr.mxu0 0.0
    %1869 = vmatpush1.msra.mxu0 %v1851
    %1870 = vmatprep.subr.mxu0 0.0
    %1871 = vmatpush1.msra.mxu0 %v1852
    %1872 = vmatprep.subr.mxu0 0.0
    %1873 = vmatpush1.msra.mxu0 %v1853
    %1874 = vmatprep.subr.mxu0 0.0
    %1875 = vmatpush1.msra.mxu0 %v1854
    %1876 = vmatprep.subr.mxu0 0.0
    %1877 = vmatpush1.msra.mxu0 %v1855
    %1878 = vmatprep.subr.mxu0 0.0
    %1879 = vmatpush1.msra.mxu0 %v1856
    %1880 = vmatprep.subr.mxu0 0.0
    %1881 = vmatpush1.msra.mxu0 %v1857
    %1882 = vmatprep.subr.mxu0 0.0
    %1883 = vmatpush1.msra.mxu0 %v1858
    %1884 = vmatprep.subr.mxu0 0.0
    %1885 = vmatpush1.msra.mxu0 %v1859
    %1886 = vmatprep.subr.mxu0 0.0
    %1887 = vmatpush1.msra.mxu0 %v1860
    %1888 = vmatprep.subr.mxu0 0.0
    %1889 = vmatpush1.msra.mxu0 %v1861
    %1890 = vmatprep.subr.mxu0 0.0
    %1891 = vmatpush1.msra.mxu0 %v1862
    %1892 = vmatprep.subr.mxu0 0.0
    %1893 = vmatpush1.msra.mxu0 %v1863
    %1894 = vmatprep.subr.mxu0 0.0
    %1895 = vmatpush1.msra.mxu0 %v1864
    %1896 = vmatprep.subr.mxu0 0.0
    %1897 = vmatpush1.msra.mxu0 %v1865
    %1898 = vmatprep.subr.mxu0 0.0
    %1899 = vmatpush1.msra.mxu0 0.0
    %1900 = vmatprep.subr.mxu0 0.0
    %1901 = vmatpush1.msra.mxu0 0.0
    %1902 = vmatprep.subr.mxu0 0.0
    %1903 = vmatpush1.msra.mxu0 0.0
    %1904 = vmatprep.subr.mxu0 0.0
    %1905 = vmatpush1.msra.mxu0 0.0
    %1906 = vmatprep.subr.mxu0 0.0
    %1907 = vmatpush1.msra.mxu0 0.0
    %1908 = vmatprep.subr.mxu0 0.0
    %1909 = vmatpush1.msra.mxu0 0.0
    %1910 = vmatprep.subr.mxu0 0.0
    %1911 = vmatpush1.msra.mxu0 0.0
    %1912 = vmatprep.subr.mxu0 0.0
    %1913 = vmatpush1.msra.mxu0 0.0
    %1914 = vmatprep.subr.mxu0 0.0
    %1915 = vmatpush1.msra.mxu0 0.0
    %1916 = vmatprep.subr.mxu0 0.0
    %1917 = vmatpush1.msra.mxu0 0.0
    %1918 = vmatprep.subr.mxu0 0.0
    %1919 = vmatpush1.msra.mxu0 0.0
    %1920 = vmatprep.subr.mxu0 0.0
    %1921 = vmatpush1.msra.mxu0 0.0
    %1922 = vmatprep.subr.mxu0 0.0
    %1923 = vmatpush1.msra.mxu0 0.0
    %1924 = vmatprep.subr.mxu0 0.0
    %1925 = vmatpush1.msra.mxu0 0.0
    %1926 = vmatprep.subr.mxu0 0.0
    %1927 = vmatpush1.msra.mxu0 0.0
    %1928 = vmatprep.subr.mxu0 0.0
    %1929 = vmatpush1.msra.mxu0 0.0
    %1930 = vmatprep.mubr.f32.mxu0 0.0
    %1931 = vmatmul.mubr.f32.gmra.mrb[0].mxu0 %v1849
    %v1932 = vpop.f32.mrb[0].mxu0
    %v1933 = vadd.f32 %v1822, %v1932
    %v1934 = vpop.f32.mrb[0].mxu0
    %1935 = vdwg.mxu0
    %v1936 = vtanh.pop %v1933
    %v1937 = vld [vmem:[#allocation8] sm:$0xff]
    %v1938 = vld [vmem:[#allocation8 + $0x8] sm:$0xff]
    %v1939 = vld [vmem:[#allocation8 + $0x10] sm:$0xff]
    %v1940 = vld [vmem:[#allocation8 + $0x18] sm:$0xff]
    %v1941 = vld [vmem:[#allocation8 + $0x20] sm:$0xff]
    %v1942 = vld [vmem:[#allocation8 + $0x28] sm:$0xff]
    %v1943 = vld [vmem:[#allocation8 + $0x30] sm:$0xff]
    %v1944 = vld [vmem:[#allocation8 + $0x38] sm:$0xff]
    %v1945 = vld [vmem:[#allocation8 + $0x40] sm:$0xff]
    %v1946 = vld [vmem:[#allocation8 + $0x48] sm:$0xff]
    %v1947 = vld [vmem:[#allocation8 + $0x50] sm:$0xff]
    %v1948 = vld [vmem:[#allocation8 + $0x58] sm:$0xff]
    %v1949 = vld [vmem:[#allocation8 + $0x60] sm:$0xff]
    %v1950 = vld [vmem:[#allocation8 + $0x68] sm:$0xff]
    %v1951 = vld [vmem:[#allocation8 + $0x70] sm:$0xff]
    %v1952 = vld [vmem:[#allocation8 + $0x78] sm:$0xff]
    %v1953 = vld [vmem:[#allocation8 + $0x80] sm:$0xff]
    %v1954 = vld [vmem:[#allocation8 + $0x88] sm:$0xff]
    %v1955 = vld [vmem:[#allocation8 + $0x90] sm:$0xff]
    %v1956 = vld [vmem:[#allocation8 + $0x98] sm:$0xff]
    %v1957 = vld [vmem:[#allocation8 + $0xa0] sm:$0xff]
    %v1958 = vld [vmem:[#allocation8 + $0xa8] sm:$0xff]
    %v1959 = vld [vmem:[#allocation8 + $0xb0] sm:$0xff]
    %v1960 = vld [vmem:[#allocation8 + $0xb8] sm:$0xff]
    %v1961 = vld [vmem:[#allocation8 + $0xc0] sm:$0xff]
    %v1962 = vld [vmem:[#allocation8 + $0xc8] sm:$0xff]
    %v1963 = vld [vmem:[#allocation8 + $0xd0] sm:$0xff]
    %v1964 = vld [vmem:[#allocation8 + $0xd8] sm:$0xff]
    %v1965 = vld [vmem:[#allocation8 + $0xe0] sm:$0xff]
    %v1966 = vld [vmem:[#allocation8 + $0xe8] sm:$0xff]
    %v1967 = vld [vmem:[#allocation8 + $0xf0] sm:$0xff]
    %v1968 = vld [vmem:[#allocation8 + $0xf8] sm:$0xff]
    %1969 = vmatprep.subr.mxu0 %v1938
    %1970 = vmatpush1.msra.mxu0 %v1937
    %1971 = vmatprep.subr.mxu0 %v1940
    %1972 = vmatpush1.msra.mxu0 %v1939
    %1973 = vmatprep.subr.mxu0 %v1942
    %1974 = vmatpush1.msra.mxu0 %v1941
    %1975 = vmatprep.subr.mxu0 %v1944
    %1976 = vmatpush1.msra.mxu0 %v1943
    %1977 = vmatprep.subr.mxu0 %v1946
    %1978 = vmatpush1.msra.mxu0 %v1945
    %1979 = vmatprep.subr.mxu0 %v1948
    %1980 = vmatpush1.msra.mxu0 %v1947
    %1981 = vmatprep.subr.mxu0 %v1950
    %1982 = vmatpush1.msra.mxu0 %v1949
    %1983 = vmatprep.subr.mxu0 %v1952
    %1984 = vmatpush1.msra.mxu0 %v1951
    %1985 = vmatprep.subr.mxu0 %v1954
    %1986 = vmatpush1.msra.mxu0 %v1953
    %1987 = vmatprep.subr.mxu0 %v1956
    %1988 = vmatpush1.msra.mxu0 %v1955
    %1989 = vmatprep.subr.mxu0 %v1958
    %1990 = vmatpush1.msra.mxu0 %v1957
    %1991 = vmatprep.subr.mxu0 %v1960
    %1992 = vmatpush1.msra.mxu0 %v1959
    %1993 = vmatprep.subr.mxu0 %v1962
    %1994 = vmatpush1.msra.mxu0 %v1961
    %1995 = vmatprep.subr.mxu0 %v1964
    %1996 = vmatpush1.msra.mxu0 %v1963
    %1997 = vmatprep.subr.mxu0 %v1966
    %1998 = vmatpush1.msra.mxu0 %v1965
    %1999 = vmatprep.subr.mxu0 %v1968
    %2000 = vmatpush1.msra.mxu0 %v1967
    %2001 = vmatprep.subr.mxu0 0.0
    %2002 = vmatpush1.msra.mxu0 0.0
    %2003 = vmatprep.subr.mxu0 0.0
    %2004 = vmatpush1.msra.mxu0 0.0
    %2005 = vmatprep.subr.mxu0 0.0
    %2006 = vmatpush1.msra.mxu0 0.0
    %2007 = vmatprep.subr.mxu0 0.0
    %2008 = vmatpush1.msra.mxu0 0.0
    %2009 = vmatprep.subr.mxu0 0.0
    %2010 = vmatpush1.msra.mxu0 0.0
    %2011 = vmatprep.subr.mxu0 0.0
    %2012 = vmatpush1.msra.mxu0 0.0
    %2013 = vmatprep.subr.mxu0 0.0
    %2014 = vmatpush1.msra.mxu0 0.0
    %2015 = vmatprep.subr.mxu0 0.0
    %2016 = vmatpush1.msra.mxu0 0.0
    %2017 = vmatprep.subr.mxu0 0.0
    %2018 = vmatpush1.msra.mxu0 0.0
    %2019 = vmatprep.subr.mxu0 0.0
    %2020 = vmatpush1.msra.mxu0 0.0
    %2021 = vmatprep.subr.mxu0 0.0
    %2022 = vmatpush1.msra.mxu0 0.0
    %2023 = vmatprep.subr.mxu0 0.0
    %2024 = vmatpush1.msra.mxu0 0.0
    %2025 = vmatprep.subr.mxu0 0.0
    %2026 = vmatpush1.msra.mxu0 0.0
    %2027 = vmatprep.subr.mxu0 0.0
    %2028 = vmatpush1.msra.mxu0 0.0
    %2029 = vmatprep.subr.mxu0 0.0
    %2030 = vmatpush1.msra.mxu0 0.0
    %2031 = vmatprep.subr.mxu0 0.0
    %2032 = vmatpush1.msra.mxu0 0.0
    %2033 = vmatprep.mubr.f32.mxu0 0.0
    %2034 = vmatmul.mubr.f32.gmra.mrb[0].mxu0 %v1936
    %v2035 = vpop.f32.mrb[0].mxu0
    %v2036 = vadd.f32 0.0, %v2035
    %v2037 = vpop.f32.mrb[0].mxu0
    %v2038 = vadd.f32 0.0, %v2037
    %2039 = vdwg.mxu0
    %v2040 = vadd.f32 %v2038, %v688
    %s2041 = scalar_lea.vmem [#allocation10], 40
    %2042 = vst [vmem:[%s2041] sm:$0xff] %v2040
    %2043 = vmax.xlane.f32.xlu0 %v2040
    %v2044 = vpop.xlane.xlu0 %2043
    %vm2045 = vcmp.eq.f32.partialorder %v2040, %v2044
    %v2046 = vsel %vm2045, %v691, 128
    %v2047 = vand.u32 %v2046, 65535
    %v2048 = vshra.s32 %v2046, 16
    %v2049 = vcvt.s32.f32 %v2047
    %v2050 = vcvt.s32.f32 %v2048
    %2051 = vmin.xlane.f32.xlu0 %v2050
    %v2052 = vpop.xlane.xlu0 %2051
    %vm2053 = vcmp.eq.f32.partialorder %v2050, %v2052
    %v2054 = vsel %vm2053, %v2049, inf
    %2055 = vmin.xlane.f32.xlu0 %v2054
    %v2056 = vpop.xlane.xlu0 %2055
    %v2057 = vcvt.f32.s32 %v2056
    %v2058 = vcvt.f32.s32 %v2052
    %v2059 = vshll.u32 %v2058, 16
    %v2060 = vadd.s32 %v2059, %v2057
    %vm2061 = vcmp.eq.s32.totalorder %v691, %v2060
    %v2062 = vsel %vm2061, 1, 0
    %v2063 = vcvt.s32.f32 %v2062
    %v2064 = vld [vmem:[#allocation7] sm:$0xff]
    %v2065 = vld [vmem:[#allocation7 + $0x8] sm:$0xff]
    %v2066 = vld [vmem:[#allocation7 + $0x10] sm:$0xff]
    %v2067 = vld [vmem:[#allocation7 + $0x18] sm:$0xff]
    %v2068 = vld [vmem:[#allocation7 + $0x20] sm:$0xff]
    %v2069 = vld [vmem:[#allocation7 + $0x28] sm:$0xff]
    %v2070 = vld [vmem:[#allocation7 + $0x30] sm:$0xff]
    %v2071 = vld [vmem:[#allocation7 + $0x38] sm:$0xff]
    %v2072 = vld [vmem:[#allocation7 + $0x40] sm:$0xff]
    %v2073 = vld [vmem:[#allocation7 + $0x48] sm:$0xff]
    %v2074 = vld [vmem:[#allocation7 + $0x50] sm:$0xff]
    %v2075 = vld [vmem:[#allocation7 + $0x58] sm:$0xff]
    %v2076 = vld [vmem:[#allocation7 + $0x60] sm:$0xff]
    %v2077 = vld [vmem:[#allocation7 + $0x68] sm:$0xff]
    %v2078 = vld [vmem:[#allocation7 + $0x70] sm:$0xff]
    %v2079 = vld [vmem:[#allocation7 + $0x78] sm:$0xff]
    %2080 = vmatprep.subr.mxu0 0.0
    %2081 = vmatpush1.msra.mxu0 %v2064
    %2082 = vmatprep.subr.mxu0 0.0
    %2083 = vmatpush1.msra.mxu0 %v2065
    %2084 = vmatprep.subr.mxu0 0.0
    %2085 = vmatpush1.msra.mxu0 %v2066
    %2086 = vmatprep.subr.mxu0 0.0
    %2087 = vmatpush1.msra.mxu0 %v2067
    %2088 = vmatprep.subr.mxu0 0.0
    %2089 = vmatpush1.msra.mxu0 %v2068
    %2090 = vmatprep.subr.mxu0 0.0
    %2091 = vmatpush1.msra.mxu0 %v2069
    %2092 = vmatprep.subr.mxu0 0.0
    %2093 = vmatpush1.msra.mxu0 %v2070
    %2094 = vmatprep.subr.mxu0 0.0
    %2095 = vmatpush1.msra.mxu0 %v2071
    %2096 = vmatprep.subr.mxu0 0.0
    %2097 = vmatpush1.msra.mxu0 %v2072
    %2098 = vmatprep.subr.mxu0 0.0
    %2099 = vmatpush1.msra.mxu0 %v2073
    %2100 = vmatprep.subr.mxu0 0.0
    %2101 = vmatpush1.msra.mxu0 %v2074
    %2102 = vmatprep.subr.mxu0 0.0
    %2103 = vmatpush1.msra.mxu0 %v2075
    %2104 = vmatprep.subr.mxu0 0.0
    %2105 = vmatpush1.msra.mxu0 %v2076
    %2106 = vmatprep.subr.mxu0 0.0
    %2107 = vmatpush1.msra.mxu0 %v2077
    %2108 = vmatprep.subr.mxu0 0.0
    %2109 = vmatpush1.msra.mxu0 %v2078
    %2110 = vmatprep.subr.mxu0 0.0
    %2111 = vmatpush1.msra.mxu0 %v2079
    %2112 = vmatprep.subr.mxu0 0.0
    %2113 = vmatpush1.msra.mxu0 0.0
    %2114 = vmatprep.subr.mxu0 0.0
    %2115 = vmatpush1.msra.mxu0 0.0
    %2116 = vmatprep.subr.mxu0 0.0
    %2117 = vmatpush1.msra.mxu0 0.0
    %2118 = vmatprep.subr.mxu0 0.0
    %2119 = vmatpush1.msra.mxu0 0.0
    %2120 = vmatprep.subr.mxu0 0.0
    %2121 = vmatpush1.msra.mxu0 0.0
    %2122 = vmatprep.subr.mxu0 0.0
    %2123 = vmatpush1.msra.mxu0 0.0
    %2124 = vmatprep.subr.mxu0 0.0
    %2125 = vmatpush1.msra.mxu0 0.0
    %2126 = vmatprep.subr.mxu0 0.0
    %2127 = vmatpush1.msra.mxu0 0.0
    %2128 = vmatprep.subr.mxu0 0.0
    %2129 = vmatpush1.msra.mxu0 0.0
    %2130 = vmatprep.subr.mxu0 0.0
    %2131 = vmatpush1.msra.mxu0 0.0
    %2132 = vmatprep.subr.mxu0 0.0
    %2133 = vmatpush1.msra.mxu0 0.0
    %2134 = vmatprep.subr.mxu0 0.0
    %2135 = vmatpush1.msra.mxu0 0.0
    %2136 = vmatprep.subr.mxu0 0.0
    %2137 = vmatpush1.msra.mxu0 0.0
    %2138 = vmatprep.subr.mxu0 0.0
    %2139 = vmatpush1.msra.mxu0 0.0
    %2140 = vmatprep.subr.mxu0 0.0
    %2141 = vmatpush1.msra.mxu0 0.0
    %2142 = vmatprep.subr.mxu0 0.0
    %2143 = vmatpush1.msra.mxu0 0.0
    %2144 = vmatprep.mubr.f32.mxu0 0.0
    %2145 = vmatmul.mubr.f32.gmra.mrb[0].mxu0 %v2063
    %v2146 = vpop.f32.mrb[0].mxu0
    %v2147 = vadd.f32 %v2036, %v2146
    %v2148 = vpop.f32.mrb[0].mxu0
    %2149 = vdwg.mxu0
    %v2150 = vtanh.pop %v2147
    %v2151 = vld [vmem:[#allocation8] sm:$0xff]
    %v2152 = vld [vmem:[#allocation8 + $0x8] sm:$0xff]
    %v2153 = vld [vmem:[#allocation8 + $0x10] sm:$0xff]
    %v2154 = vld [vmem:[#allocation8 + $0x18] sm:$0xff]
    %v2155 = vld [vmem:[#allocation8 + $0x20] sm:$0xff]
    %v2156 = vld [vmem:[#allocation8 + $0x28] sm:$0xff]
    %v2157 = vld [vmem:[#allocation8 + $0x30] sm:$0xff]
    %v2158 = vld [vmem:[#allocation8 + $0x38] sm:$0xff]
    %v2159 = vld [vmem:[#allocation8 + $0x40] sm:$0xff]
    %v2160 = vld [vmem:[#allocation8 + $0x48] sm:$0xff]
    %v2161 = vld [vmem:[#allocation8 + $0x50] sm:$0xff]
    %v2162 = vld [vmem:[#allocation8 + $0x58] sm:$0xff]
    %v2163 = vld [vmem:[#allocation8 + $0x60] sm:$0xff]
    %v2164 = vld [vmem:[#allocation8 + $0x68] sm:$0xff]
    %v2165 = vld [vmem:[#allocation8 + $0x70] sm:$0xff]
    %v2166 = vld [vmem:[#allocation8 + $0x78] sm:$0xff]
    %v2167 = vld [vmem:[#allocation8 + $0x80] sm:$0xff]
    %v2168 = vld [vmem:[#allocation8 + $0x88] sm:$0xff]
    %v2169 = vld [vmem:[#allocation8 + $0x90] sm:$0xff]
    %v2170 = vld [vmem:[#allocation8 + $0x98] sm:$0xff]
    %v2171 = vld [vmem:[#allocation8 + $0xa0] sm:$0xff]
    %v2172 = vld [vmem:[#allocation8 + $0xa8] sm:$0xff]
    %v2173 = vld [vmem:[#allocation8 + $0xb0] sm:$0xff]
    %v2174 = vld [vmem:[#allocation8 + $0xb8] sm:$0xff]
    %v2175 = vld [vmem:[#allocation8 + $0xc0] sm:$0xff]
    %v2176 = vld [vmem:[#allocation8 + $0xc8] sm:$0xff]
    %v2177 = vld [vmem:[#allocation8 + $0xd0] sm:$0xff]
    %v2178 = vld [vmem:[#allocation8 + $0xd8] sm:$0xff]
    %v2179 = vld [vmem:[#allocation8 + $0xe0] sm:$0xff]
    %v2180 = vld [vmem:[#allocation8 + $0xe8] sm:$0xff]
    %v2181 = vld [vmem:[#allocation8 + $0xf0] sm:$0xff]
    %v2182 = vld [vmem:[#allocation8 + $0xf8] sm:$0xff]
    %2183 = vmatprep.subr.mxu0 %v2152
    %2184 = vmatpush1.msra.mxu0 %v2151
    %2185 = vmatprep.subr.mxu0 %v2154
    %2186 = vmatpush1.msra.mxu0 %v2153
    %2187 = vmatprep.subr.mxu0 %v2156
    %2188 = vmatpush1.msra.mxu0 %v2155
    %2189 = vmatprep.subr.mxu0 %v2158
    %2190 = vmatpush1.msra.mxu0 %v2157
    %2191 = vmatprep.subr.mxu0 %v2160
    %2192 = vmatpush1.msra.mxu0 %v2159
    %2193 = vmatprep.subr.mxu0 %v2162
    %2194 = vmatpush1.msra.mxu0 %v2161
    %2195 = vmatprep.subr.mxu0 %v2164
    %2196 = vmatpush1.msra.mxu0 %v2163
    %2197 = vmatprep.subr.mxu0 %v2166
    %2198 = vmatpush1.msra.mxu0 %v2165
    %2199 = vmatprep.subr.mxu0 %v2168
    %2200 = vmatpush1.msra.mxu0 %v2167
    %2201 = vmatprep.subr.mxu0 %v2170
    %2202 = vmatpush1.msra.mxu0 %v2169
    %2203 = vmatprep.subr.mxu0 %v2172
    %2204 = vmatpush1.msra.mxu0 %v2171
    %2205 = vmatprep.subr.mxu0 %v2174
    %2206 = vmatpush1.msra.mxu0 %v2173
    %2207 = vmatprep.subr.mxu0 %v2176
    %2208 = vmatpush1.msra.mxu0 %v2175
    %2209 = vmatprep.subr.mxu0 %v2178
    %2210 = vmatpush1.msra.mxu0 %v2177
    %2211 = vmatprep.subr.mxu0 %v2180
    %2212 = vmatpush1.msra.mxu0 %v2179
    %2213 = vmatprep.subr.mxu0 %v2182
    %2214 = vmatpush1.msra.mxu0 %v2181
    %2215 = vmatprep.subr.mxu0 0.0
    %2216 = vmatpush1.msra.mxu0 0.0
    %2217 = vmatprep.subr.mxu0 0.0
    %2218 = vmatpush1.msra.mxu0 0.0
    %2219 = vmatprep.subr.mxu0 0.0
    %2220 = vmatpush1.msra.mxu0 0.0
    %2221 = vmatprep.subr.mxu0 0.0
    %2222 = vmatpush1.msra.mxu0 0.0
    %2223 = vmatprep.subr.mxu0 0.0
    %2224 = vmatpush1.msra.mxu0 0.0
    %2225 = vmatprep.subr.mxu0 0.0
    %2226 = vmatpush1.msra.mxu0 0.0
    %2227 = vmatprep.subr.mxu0 0.0
    %2228 = vmatpush1.msra.mxu0 0.0
    %2229 = vmatprep.subr.mxu0 0.0
    %2230 = vmatpush1.msra.mxu0 0.0
    %2231 = vmatprep.subr.mxu0 0.0
    %2232 = vmatpush1.msra.mxu0 0.0
    %2233 = vmatprep.subr.mxu0 0.0
    %2234 = vmatpush1.msra.mxu0 0.0
    %2235 = vmatprep.subr.mxu0 0.0
    %2236 = vmatpush1.msra.mxu0 0.0
    %2237 = vmatprep.subr.mxu0 0.0
    %2238 = vmatpush1.msra.mxu0 0.0
    %2239 = vmatprep.subr.mxu0 0.0
    %2240 = vmatpush1.msra.mxu0 0.0
    %2241 = vmatprep.subr.mxu0 0.0
    %2242 = vmatpush1.msra.mxu0 0.0
    %2243 = vmatprep.subr.mxu0 0.0
    %2244 = vmatpush1.msra.mxu0 0.0
    %2245 = vmatprep.subr.mxu0 0.0
    %2246 = vmatpush1.msra.mxu0 0.0
    %2247 = vmatprep.mubr.f32.mxu0 0.0
    %2248 = vmatmul.mubr.f32.gmra.mrb[0].mxu0 %v2150
    %v2249 = vpop.f32.mrb[0].mxu0
    %v2250 = vadd.f32 0.0, %v2249
    %v2251 = vpop.f32.mrb[0].mxu0
    %v2252 = vadd.f32 0.0, %v2251
    %2253 = vdwg.mxu0
    %v2254 = vadd.f32 %v2252, %v688
    %s2255 = scalar_lea.vmem [#allocation10], 48
    %2256 = vst [vmem:[%s2255] sm:$0xff] %v2254
    %2257 = vmax.xlane.f32.xlu0 %v2254
    %v2258 = vpop.xlane.xlu0 %2257
    %vm2259 = vcmp.eq.f32.partialorder %v2254, %v2258
    %v2260 = vsel %vm2259, %v691, 128
    %v2261 = vand.u32 %v2260, 65535
    %v2262 = vshra.s32 %v2260, 16
    %v2263 = vcvt.s32.f32 %v2261
    %v2264 = vcvt.s32.f32 %v2262
    %2265 = vmin.xlane.f32.xlu0 %v2264
    %v2266 = vpop.xlane.xlu0 %2265
    %vm2267 = vcmp.eq.f32.partialorder %v2264, %v2266
    %v2268 = vsel %vm2267, %v2263, inf
    %2269 = vmin.xlane.f32.xlu0 %v2268
    %v2270 = vpop.xlane.xlu0 %2269
    %v2271 = vcvt.f32.s32 %v2270
    %v2272 = vcvt.f32.s32 %v2266
    %v2273 = vshll.u32 %v2272, 16
    %v2274 = vadd.s32 %v2273, %v2271
    %vm2275 = vcmp.eq.s32.totalorder %v691, %v2274
    %v2276 = vsel %vm2275, 1, 0
    %v2277 = vcvt.s32.f32 %v2276
    %v2278 = vld [vmem:[#allocation7] sm:$0xff]
    %v2279 = vld [vmem:[#allocation7 + $0x8] sm:$0xff]
    %v2280 = vld [vmem:[#allocation7 + $0x10] sm:$0xff]
    %v2281 = vld [vmem:[#allocation7 + $0x18] sm:$0xff]
    %v2282 = vld [vmem:[#allocation7 + $0x20] sm:$0xff]
    %v2283 = vld [vmem:[#allocation7 + $0x28] sm:$0xff]
    %v2284 = vld [vmem:[#allocation7 + $0x30] sm:$0xff]
    %v2285 = vld [vmem:[#allocation7 + $0x38] sm:$0xff]
    %v2286 = vld [vmem:[#allocation7 + $0x40] sm:$0xff]
    %v2287 = vld [vmem:[#allocation7 + $0x48] sm:$0xff]
    %v2288 = vld [vmem:[#allocation7 + $0x50] sm:$0xff]
    %v2289 = vld [vmem:[#allocation7 + $0x58] sm:$0xff]
    %v2290 = vld [vmem:[#allocation7 + $0x60] sm:$0xff]
    %v2291 = vld [vmem:[#allocation7 + $0x68] sm:$0xff]
    %v2292 = vld [vmem:[#allocation7 + $0x70] sm:$0xff]
    %v2293 = vld [vmem:[#allocation7 + $0x78] sm:$0xff]
    %2294 = vmatprep.subr.mxu0 0.0
    %2295 = vmatpush1.msra.mxu0 %v2278
    %2296 = vmatprep.subr.mxu0 0.0
    %2297 = vmatpush1.msra.mxu0 %v2279
    %2298 = vmatprep.subr.mxu0 0.0
    %2299 = vmatpush1.msra.mxu0 %v2280
    %2300 = vmatprep.subr.mxu0 0.0
    %2301 = vmatpush1.msra.mxu0 %v2281
    %2302 = vmatprep.subr.mxu0 0.0
    %2303 = vmatpush1.msra.mxu0 %v2282
    %2304 = vmatprep.subr.mxu0 0.0
    %2305 = vmatpush1.msra.mxu0 %v2283
    %2306 = vmatprep.subr.mxu0 0.0
    %2307 = vmatpush1.msra.mxu0 %v2284
    %2308 = vmatprep.subr.mxu0 0.0
    %2309 = vmatpush1.msra.mxu0 %v2285
    %2310 = vmatprep.subr.mxu0 0.0
    %2311 = vmatpush1.msra.mxu0 %v2286
    %2312 = vmatprep.subr.mxu0 0.0
    %2313 = vmatpush1.msra.mxu0 %v2287
    %2314 = vmatprep.subr.mxu0 0.0
    %2315 = vmatpush1.msra.mxu0 %v2288
    %2316 = vmatprep.subr.mxu0 0.0
    %2317 = vmatpush1.msra.mxu0 %v2289
    %2318 = vmatprep.subr.mxu0 0.0
    %2319 = vmatpush1.msra.mxu0 %v2290
    %2320 = vmatprep.subr.mxu0 0.0
    %2321 = vmatpush1.msra.mxu0 %v2291
    %2322 = vmatprep.subr.mxu0 0.0
    %2323 = vmatpush1.msra.mxu0 %v2292
    %2324 = vmatprep.subr.mxu0 0.0
    %2325 = vmatpush1.msra.mxu0 %v2293
    %2326 = vmatprep.subr.mxu0 0.0
    %2327 = vmatpush1.msra.mxu0 0.0
    %2328 = vmatprep.subr.mxu0 0.0
    %2329 = vmatpush1.msra.mxu0 0.0
    %2330 = vmatprep.subr.mxu0 0.0
    %2331 = vmatpush1.msra.mxu0 0.0
    %2332 = vmatprep.subr.mxu0 0.0
    %2333 = vmatpush1.msra.mxu0 0.0
    %2334 = vmatprep.subr.mxu0 0.0
    %2335 = vmatpush1.msra.mxu0 0.0
    %2336 = vmatprep.subr.mxu0 0.0
    %2337 = vmatpush1.msra.mxu0 0.0
    %2338 = vmatprep.subr.mxu0 0.0
    %2339 = vmatpush1.msra.mxu0 0.0
    %2340 = vmatprep.subr.mxu0 0.0
    %2341 = vmatpush1.msra.mxu0 0.0
    %2342 = vmatprep.subr.mxu0 0.0
    %2343 = vmatpush1.msra.mxu0 0.0
    %2344 = vmatprep.subr.mxu0 0.0
    %2345 = vmatpush1.msra.mxu0 0.0
    %2346 = vmatprep.subr.mxu0 0.0
    %2347 = vmatpush1.msra.mxu0 0.0
    %2348 = vmatprep.subr.mxu0 0.0
    %2349 = vmatpush1.msra.mxu0 0.0
    %2350 = vmatprep.subr.mxu0 0.0
    %2351 = vmatpush1.msra.mxu0 0.0
    %2352 = vmatprep.subr.mxu0 0.0
    %2353 = vmatpush1.msra.mxu0 0.0
    %2354 = vmatprep.subr.mxu0 0.0
    %2355 = vmatpush1.msra.mxu0 0.0
    %2356 = vmatprep.subr.mxu0 0.0
    %2357 = vmatpush1.msra.mxu0 0.0
    %2358 = vmatprep.mubr.f32.mxu0 0.0
    %2359 = vmatmul.mubr.f32.gmra.mrb[0].mxu0 %v2277
    %v2360 = vpop.f32.mrb[0].mxu0
    %v2361 = vadd.f32 %v2250, %v2360
    %v2362 = vpop.f32.mrb[0].mxu0
    %2363 = vdwg.mxu0
    %v2364 = vtanh.pop %v2361
    %v2365 = vld [vmem:[#allocation8] sm:$0xff]
    %v2366 = vld [vmem:[#allocation8 + $0x8] sm:$0xff]
    %v2367 = vld [vmem:[#allocation8 + $0x10] sm:$0xff]
    %v2368 = vld [vmem:[#allocation8 + $0x18] sm:$0xff]
    %v2369 = vld [vmem:[#allocation8 + $0x20] sm:$0xff]
    %v2370 = vld [vmem:[#allocation8 + $0x28] sm:$0xff]
    %v2371 = vld [vmem:[#allocation8 + $0x30] sm:$0xff]
    %v2372 = vld [vmem:[#allocation8 + $0x38] sm:$0xff]
    %v2373 = vld [vmem:[#allocation8 + $0x40] sm:$0xff]
    %v2374 = vld [vmem:[#allocation8 + $0x48] sm:$0xff]
    %v2375 = vld [vmem:[#allocation8 + $0x50] sm:$0xff]
    %v2376 = vld [vmem:[#allocation8 + $0x58] sm:$0xff]
    %v2377 = vld [vmem:[#allocation8 + $0x60] sm:$0xff]
    %v2378 = vld [vmem:[#allocation8 + $0x68] sm:$0xff]
    %v2379 = vld [vmem:[#allocation8 + $0x70] sm:$0xff]
    %v2380 = vld [vmem:[#allocation8 + $0x78] sm:$0xff]
    %v2381 = vld [vmem:[#allocation8 + $0x80] sm:$0xff]
    %v2382 = vld [vmem:[#allocation8 + $0x88] sm:$0xff]
    %v2383 = vld [vmem:[#allocation8 + $0x90] sm:$0xff]
    %v2384 = vld [vmem:[#allocation8 + $0x98] sm:$0xff]
    %v2385 = vld [vmem:[#allocation8 + $0xa0] sm:$0xff]
    %v2386 = vld [vmem:[#allocation8 + $0xa8] sm:$0xff]
    %v2387 = vld [vmem:[#allocation8 + $0xb0] sm:$0xff]
    %v2388 = vld [vmem:[#allocation8 + $0xb8] sm:$0xff]
    %v2389 = vld [vmem:[#allocation8 + $0xc0] sm:$0xff]
    %v2390 = vld [vmem:[#allocation8 + $0xc8] sm:$0xff]
    %v2391 = vld [vmem:[#allocation8 + $0xd0] sm:$0xff]
    %v2392 = vld [vmem:[#allocation8 + $0xd8] sm:$0xff]
    %v2393 = vld [vmem:[#allocation8 + $0xe0] sm:$0xff]
    %v2394 = vld [vmem:[#allocation8 + $0xe8] sm:$0xff]
    %v2395 = vld [vmem:[#allocation8 + $0xf0] sm:$0xff]
    %v2396 = vld [vmem:[#allocation8 + $0xf8] sm:$0xff]
    %2397 = vmatprep.subr.mxu0 %v2366
    %2398 = vmatpush1.msra.mxu0 %v2365
    %2399 = vmatprep.subr.mxu0 %v2368
    %2400 = vmatpush1.msra.mxu0 %v2367
    %2401 = vmatprep.subr.mxu0 %v2370
    %2402 = vmatpush1.msra.mxu0 %v2369
    %2403 = vmatprep.subr.mxu0 %v2372
    %2404 = vmatpush1.msra.mxu0 %v2371
    %2405 = vmatprep.subr.mxu0 %v2374
    %2406 = vmatpush1.msra.mxu0 %v2373
    %2407 = vmatprep.subr.mxu0 %v2376
    %2408 = vmatpush1.msra.mxu0 %v2375
    %2409 = vmatprep.subr.mxu0 %v2378
    %2410 = vmatpush1.msra.mxu0 %v2377
    %2411 = vmatprep.subr.mxu0 %v2380
    %2412 = vmatpush1.msra.mxu0 %v2379
    %2413 = vmatprep.subr.mxu0 %v2382
    %2414 = vmatpush1.msra.mxu0 %v2381
    %2415 = vmatprep.subr.mxu0 %v2384
    %2416 = vmatpush1.msra.mxu0 %v2383
    %2417 = vmatprep.subr.mxu0 %v2386
    %2418 = vmatpush1.msra.mxu0 %v2385
    %2419 = vmatprep.subr.mxu0 %v2388
    %2420 = vmatpush1.msra.mxu0 %v2387
    %2421 = vmatprep.subr.mxu0 %v2390
    %2422 = vmatpush1.msra.mxu0 %v2389
    %2423 = vmatprep.subr.mxu0 %v2392
    %2424 = vmatpush1.msra.mxu0 %v2391
    %2425 = vmatprep.subr.mxu0 %v2394
    %2426 = vmatpush1.msra.mxu0 %v2393
    %2427 = vmatprep.subr.mxu0 %v2396
    %2428 = vmatpush1.msra.mxu0 %v2395
    %2429 = vmatprep.subr.mxu0 0.0
    %2430 = vmatpush1.msra.mxu0 0.0
    %2431 = vmatprep.subr.mxu0 0.0
    %2432 = vmatpush1.msra.mxu0 0.0
    %2433 = vmatprep.subr.mxu0 0.0
    %2434 = vmatpush1.msra.mxu0 0.0
    %2435 = vmatprep.subr.mxu0 0.0
    %2436 = vmatpush1.msra.mxu0 0.0
    %2437 = vmatprep.subr.mxu0 0.0
    %2438 = vmatpush1.msra.mxu0 0.0
    %2439 = vmatprep.subr.mxu0 0.0
    %2440 = vmatpush1.msra.mxu0 0.0
    %2441 = vmatprep.subr.mxu0 0.0
    %2442 = vmatpush1.msra.mxu0 0.0
    %2443 = vmatprep.subr.mxu0 0.0
    %2444 = vmatpush1.msra.mxu0 0.0
    %2445 = vmatprep.subr.mxu0 0.0
    %2446 = vmatpush1.msra.mxu0 0.0
    %2447 = vmatprep.subr.mxu0 0.0
    %2448 = vmatpush1.msra.mxu0 0.0
    %2449 = vmatprep.subr.mxu0 0.0
    %2450 = vmatpush1.msra.mxu0 0.0
    %2451 = vmatprep.subr.mxu0 0.0
    %2452 = vmatpush1.msra.mxu0 0.0
    %2453 = vmatprep.subr.mxu0 0.0
    %2454 = vmatpush1.msra.mxu0 0.0
    %2455 = vmatprep.subr.mxu0 0.0
    %2456 = vmatpush1.msra.mxu0 0.0
    %2457 = vmatprep.subr.mxu0 0.0
    %2458 = vmatpush1.msra.mxu0 0.0
    %2459 = vmatprep.subr.mxu0 0.0
    %2460 = vmatpush1.msra.mxu0 0.0
    %2461 = vmatprep.mubr.f32.mxu0 0.0
    %2462 = vmatmul.mubr.f32.gmra.mrb[0].mxu0 %v2364
    %v2463 = vpop.f32.mrb[0].mxu0
    %v2464 = vadd.f32 0.0, %v2463
    %v2465 = vpop.f32.mrb[0].mxu0
    %v2466 = vadd.f32 0.0, %v2465
    %2467 = vdwg.mxu0
    %v2468 = vadd.f32 %v2466, %v688
    %s2469 = scalar_lea.vmem [#allocation10], 56
    %2470 = vst [vmem:[%s2469] sm:$0xff] %v2468
    %2471 = vmax.xlane.f32.xlu0 %v2468
    %v2472 = vpop.xlane.xlu0 %2471
    %vm2473 = vcmp.eq.f32.partialorder %v2468, %v2472
    %v2474 = vsel %vm2473, %v691, 128
    %v2475 = vand.u32 %v2474, 65535
    %v2476 = vshra.s32 %v2474, 16
    %v2477 = vcvt.s32.f32 %v2475
    %v2478 = vcvt.s32.f32 %v2476
    %2479 = vmin.xlane.f32.xlu0 %v2478
    %v2480 = vpop.xlane.xlu0 %2479
    %vm2481 = vcmp.eq.f32.partialorder %v2478, %v2480
    %v2482 = vsel %vm2481, %v2477, inf
    %2483 = vmin.xlane.f32.xlu0 %v2482
    %v2484 = vpop.xlane.xlu0 %2483
    %v2485 = vcvt.f32.s32 %v2484
    %v2486 = vcvt.f32.s32 %v2480
    %v2487 = vshll.u32 %v2486, 16
    %v2488 = vadd.s32 %v2487, %v2485
    %vm2489 = vcmp.eq.s32.totalorder %v691, %v2488
    %v2490 = vsel %vm2489, 1, 0
    %v2491 = vcvt.s32.f32 %v2490
    %v2492 = vld [vmem:[#allocation7] sm:$0xff]
    %v2493 = vld [vmem:[#allocation7 + $0x8] sm:$0xff]
    %v2494 = vld [vmem:[#allocation7 + $0x10] sm:$0xff]
    %v2495 = vld [vmem:[#allocation7 + $0x18] sm:$0xff]
    %v2496 = vld [vmem:[#allocation7 + $0x20] sm:$0xff]
    %v2497 = vld [vmem:[#allocation7 + $0x28] sm:$0xff]
    %v2498 = vld [vmem:[#allocation7 + $0x30] sm:$0xff]
    %v2499 = vld [vmem:[#allocation7 + $0x38] sm:$0xff]
    %v2500 = vld [vmem:[#allocation7 + $0x40] sm:$0xff]
    %v2501 = vld [vmem:[#allocation7 + $0x48] sm:$0xff]
    %v2502 = vld [vmem:[#allocation7 + $0x50] sm:$0xff]
    %v2503 = vld [vmem:[#allocation7 + $0x58] sm:$0xff]
    %v2504 = vld [vmem:[#allocation7 + $0x60] sm:$0xff]
    %v2505 = vld [vmem:[#allocation7 + $0x68] sm:$0xff]
    %v2506 = vld [vmem:[#allocation7 + $0x70] sm:$0xff]
    %v2507 = vld [vmem:[#allocation7 + $0x78] sm:$0xff]
    %2508 = vmatprep.subr.mxu0 0.0
    %2509 = vmatpush1.msra.mxu0 %v2492
    %2510 = vmatprep.subr.mxu0 0.0
    %2511 = vmatpush1.msra.mxu0 %v2493
    %2512 = vmatprep.subr.mxu0 0.0
    %2513 = vmatpush1.msra.mxu0 %v2494
    %2514 = vmatprep.subr.mxu0 0.0
    %2515 = vmatpush1.msra.mxu0 %v2495
    %2516 = vmatprep.subr.mxu0 0.0
    %2517 = vmatpush1.msra.mxu0 %v2496
    %2518 = vmatprep.subr.mxu0 0.0
    %2519 = vmatpush1.msra.mxu0 %v2497
    %2520 = vmatprep.subr.mxu0 0.0
    %2521 = vmatpush1.msra.mxu0 %v2498
    %2522 = vmatprep.subr.mxu0 0.0
    %2523 = vmatpush1.msra.mxu0 %v2499
    %2524 = vmatprep.subr.mxu0 0.0
    %2525 = vmatpush1.msra.mxu0 %v2500
    %2526 = vmatprep.subr.mxu0 0.0
    %2527 = vmatpush1.msra.mxu0 %v2501
    %2528 = vmatprep.subr.mxu0 0.0
    %2529 = vmatpush1.msra.mxu0 %v2502
    %2530 = vmatprep.subr.mxu0 0.0
    %2531 = vmatpush1.msra.mxu0 %v2503
    %2532 = vmatprep.subr.mxu0 0.0
    %2533 = vmatpush1.msra.mxu0 %v2504
    %2534 = vmatprep.subr.mxu0 0.0
    %2535 = vmatpush1.msra.mxu0 %v2505
    %2536 = vmatprep.subr.mxu0 0.0
    %2537 = vmatpush1.msra.mxu0 %v2506
    %2538 = vmatprep.subr.mxu0 0.0
    %2539 = vmatpush1.msra.mxu0 %v2507
    %2540 = vmatprep.subr.mxu0 0.0
    %2541 = vmatpush1.msra.mxu0 0.0
    %2542 = vmatprep.subr.mxu0 0.0
    %2543 = vmatpush1.msra.mxu0 0.0
    %2544 = vmatprep.subr.mxu0 0.0
    %2545 = vmatpush1.msra.mxu0 0.0
    %2546 = vmatprep.subr.mxu0 0.0
    %2547 = vmatpush1.msra.mxu0 0.0
    %2548 = vmatprep.subr.mxu0 0.0
    %2549 = vmatpush1.msra.mxu0 0.0
    %2550 = vmatprep.subr.mxu0 0.0
    %2551 = vmatpush1.msra.mxu0 0.0
    %2552 = vmatprep.subr.mxu0 0.0
    %2553 = vmatpush1.msra.mxu0 0.0
    %2554 = vmatprep.subr.mxu0 0.0
    %2555 = vmatpush1.msra.mxu0 0.0
    %2556 = vmatprep.subr.mxu0 0.0
    %2557 = vmatpush1.msra.mxu0 0.0
    %2558 = vmatprep.subr.mxu0 0.0
    %2559 = vmatpush1.msra.mxu0 0.0
    %2560 = vmatprep.subr.mxu0 0.0
    %2561 = vmatpush1.msra.mxu0 0.0
    %2562 = vmatprep.subr.mxu0 0.0
    %2563 = vmatpush1.msra.mxu0 0.0
    %2564 = vmatprep.subr.mxu0 0.0
    %2565 = vmatpush1.msra.mxu0 0.0
    %2566 = vmatprep.subr.mxu0 0.0
    %2567 = vmatpush1.msra.mxu0 0.0
    %2568 = vmatprep.subr.mxu0 0.0
    %2569 = vmatpush1.msra.mxu0 0.0
    %2570 = vmatprep.subr.mxu0 0.0
    %2571 = vmatpush1.msra.mxu0 0.0
    %2572 = vmatprep.mubr.f32.mxu0 0.0
    %2573 = vmatmul.mubr.f32.gmra.mrb[0].mxu0 %v2491
    %v2574 = vpop.f32.mrb[0].mxu0
    %v2575 = vadd.f32 %v2464, %v2574
    %v2576 = vpop.f32.mrb[0].mxu0
    %2577 = vdwg.mxu0
    %v2578 = vtanh.pop %v2575
    %v2579 = vld [vmem:[#allocation8] sm:$0xff]
    %v2580 = vld [vmem:[#allocation8 + $0x8] sm:$0xff]
    %v2581 = vld [vmem:[#allocation8 + $0x10] sm:$0xff]
    %v2582 = vld [vmem:[#allocation8 + $0x18] sm:$0xff]
    %v2583 = vld [vmem:[#allocation8 + $0x20] sm:$0xff]
    %v2584 = vld [vmem:[#allocation8 + $0x28] sm:$0xff]
    %v2585 = vld [vmem:[#allocation8 + $0x30] sm:$0xff]
    %v2586 = vld [vmem:[#allocation8 + $0x38] sm:$0xff]
    %v2587 = vld [vmem:[#allocation8 + $0x40] sm:$0xff]
    %v2588 = vld [vmem:[#allocation8 + $0x48] sm:$0xff]
    %v2589 = vld [vmem:[#allocation8 + $0x50] sm:$0xff]
    %v2590 = vld [vmem:[#allocation8 + $0x58] sm:$0xff]
    %v2591 = vld [vmem:[#allocation8 + $0x60] sm:$0xff]
    %v2592 = vld [vmem:[#allocation8 + $0x68] sm:$0xff]
    %v2593 = vld [vmem:[#allocation8 + $0x70] sm:$0xff]
    %v2594 = vld [vmem:[#allocation8 + $0x78] sm:$0xff]
    %v2595 = vld [vmem:[#allocation8 + $0x80] sm:$0xff]
    %v2596 = vld [vmem:[#allocation8 + $0x88] sm:$0xff]
    %v2597 = vld [vmem:[#allocation8 + $0x90] sm:$0xff]
    %v2598 = vld [vmem:[#allocation8 + $0x98] sm:$0xff]
    %v2599 = vld [vmem:[#allocation8 + $0xa0] sm:$0xff]
    %v2600 = vld [vmem:[#allocation8 + $0xa8] sm:$0xff]
    %v2601 = vld [vmem:[#allocation8 + $0xb0] sm:$0xff]
    %v2602 = vld [vmem:[#allocation8 + $0xb8] sm:$0xff]
    %v2603 = vld [vmem:[#allocation8 + $0xc0] sm:$0xff]
    %v2604 = vld [vmem:[#allocation8 + $0xc8] sm:$0xff]
    %v2605 = vld [vmem:[#allocation8 + $0xd0] sm:$0xff]
    %v2606 = vld [vmem:[#allocation8 + $0xd8] sm:$0xff]
    %v2607 = vld [vmem:[#allocation8 + $0xe0] sm:$0xff]
    %v2608 = vld [vmem:[#allocation8 + $0xe8] sm:$0xff]
    %v2609 = vld [vmem:[#allocation8 + $0xf0] sm:$0xff]
    %v2610 = vld [vmem:[#allocation8 + $0xf8] sm:$0xff]
    %2611 = vmatprep.subr.mxu0 %v2580
    %2612 = vmatpush1.msra.mxu0 %v2579
    %2613 = vmatprep.subr.mxu0 %v2582
    %2614 = vmatpush1.msra.mxu0 %v2581
    %2615 = vmatprep.subr.mxu0 %v2584
    %2616 = vmatpush1.msra.mxu0 %v2583
    %2617 = vmatprep.subr.mxu0 %v2586
    %2618 = vmatpush1.msra.mxu0 %v2585
    %2619 = vmatprep.subr.mxu0 %v2588
    %2620 = vmatpush1.msra.mxu0 %v2587
    %2621 = vmatprep.subr.mxu0 %v2590
    %2622 = vmatpush1.msra.mxu0 %v2589
    %2623 = vmatprep.subr.mxu0 %v2592
    %2624 = vmatpush1.msra.mxu0 %v2591
    %2625 = vmatprep.subr.mxu0 %v2594
    %2626 = vmatpush1.msra.mxu0 %v2593
    %2627 = vmatprep.subr.mxu0 %v2596
    %2628 = vmatpush1.msra.mxu0 %v2595
    %2629 = vmatprep.subr.mxu0 %v2598
    %2630 = vmatpush1.msra.mxu0 %v2597
    %2631 = vmatprep.subr.mxu0 %v2600
    %2632 = vmatpush1.msra.mxu0 %v2599
    %2633 = vmatprep.subr.mxu0 %v2602
    %2634 = vmatpush1.msra.mxu0 %v2601
    %2635 = vmatprep.subr.mxu0 %v2604
    %2636 = vmatpush1.msra.mxu0 %v2603
    %2637 = vmatprep.subr.mxu0 %v2606
    %2638 = vmatpush1.msra.mxu0 %v2605
    %2639 = vmatprep.subr.mxu0 %v2608
    %2640 = vmatpush1.msra.mxu0 %v2607
    %2641 = vmatprep.subr.mxu0 %v2610
    %2642 = vmatpush1.msra.mxu0 %v2609
    %2643 = vmatprep.subr.mxu0 0.0
    %2644 = vmatpush1.msra.mxu0 0.0
    %2645 = vmatprep.subr.mxu0 0.0
    %2646 = vmatpush1.msra.mxu0 0.0
    %2647 = vmatprep.subr.mxu0 0.0
    %2648 = vmatpush1.msra.mxu0 0.0
    %2649 = vmatprep.subr.mxu0 0.0
    %2650 = vmatpush1.msra.mxu0 0.0
    %2651 = vmatprep.subr.mxu0 0.0
    %2652 = vmatpush1.msra.mxu0 0.0
    %2653 = vmatprep.subr.mxu0 0.0
    %2654 = vmatpush1.msra.mxu0 0.0
    %2655 = vmatprep.subr.mxu0 0.0
    %2656 = vmatpush1.msra.mxu0 0.0
    %2657 = vmatprep.subr.mxu0 0.0
    %2658 = vmatpush1.msra.mxu0 0.0
    %2659 = vmatprep.subr.mxu0 0.0
    %2660 = vmatpush1.msra.mxu0 0.0
    %2661 = vmatprep.subr.mxu0 0.0
    %2662 = vmatpush1.msra.mxu0 0.0
    %2663 = vmatprep.subr.mxu0 0.0
    %2664 = vmatpush1.msra.mxu0 0.0
    %2665 = vmatprep.subr.mxu0 0.0
    %2666 = vmatpush1.msra.mxu0 0.0
    %2667 = vmatprep.subr.mxu0 0.0
    %2668 = vmatpush1.msra.mxu0 0.0
    %2669 = vmatprep.subr.mxu0 0.0
    %2670 = vmatpush1.msra.mxu0 0.0
    %2671 = vmatprep.subr.mxu0 0.0
    %2672 = vmatpush1.msra.mxu0 0.0
    %2673 = vmatprep.subr.mxu0 0.0
    %2674 = vmatpush1.msra.mxu0 0.0
    %2675 = vmatprep.mubr.f32.mxu0 0.0
    %2676 = vmatmul.mubr.f32.gmra.mrb[0].mxu0 %v2578
    %v2677 = vpop.f32.mrb[0].mxu0
    %v2678 = vadd.f32 0.0, %v2677
    %v2679 = vpop.f32.mrb[0].mxu0
    %v2680 = vadd.f32 0.0, %v2679
    %2681 = vdwg.mxu0
    %v2682 = vadd.f32 %v2680, %v688
    %s2683 = scalar_lea.vmem [#allocation10], 64
    %2684 = vst [vmem:[%s2683] sm:$0xff] %v2682
    %2685 = vmax.xlane.f32.xlu0 %v2682
    %v2686 = vpop.xlane.xlu0 %2685
    %vm2687 = vcmp.eq.f32.partialorder %v2682, %v2686
    %v2688 = vsel %vm2687, %v691, 128
    %v2689 = vand.u32 %v2688, 65535
    %v2690 = vshra.s32 %v2688, 16
    %v2691 = vcvt.s32.f32 %v2689
    %v2692 = vcvt.s32.f32 %v2690
    %2693 = vmin.xlane.f32.xlu0 %v2692
    %v2694 = vpop.xlane.xlu0 %2693
    %vm2695 = vcmp.eq.f32.partialorder %v2692, %v2694
    %v2696 = vsel %vm2695, %v2691, inf
    %2697 = vmin.xlane.f32.xlu0 %v2696
    %v2698 = vpop.xlane.xlu0 %2697
    %v2699 = vcvt.f32.s32 %v2698
    %v2700 = vcvt.f32.s32 %v2694
    %v2701 = vshll.u32 %v2700, 16
    %v2702 = vadd.s32 %v2701, %v2699
    %vm2703 = vcmp.eq.s32.totalorder %v691, %v2702
    %v2704 = vsel %vm2703, 1, 0
    %v2705 = vcvt.s32.f32 %v2704
    %v2706 = vld [vmem:[#allocation7] sm:$0xff]
    %v2707 = vld [vmem:[#allocation7 + $0x8] sm:$0xff]
    %v2708 = vld [vmem:[#allocation7 + $0x10] sm:$0xff]
    %v2709 = vld [vmem:[#allocation7 + $0x18] sm:$0xff]
    %v2710 = vld [vmem:[#allocation7 + $0x20] sm:$0xff]
    %v2711 = vld [vmem:[#allocation7 + $0x28] sm:$0xff]
    %v2712 = vld [vmem:[#allocation7 + $0x30] sm:$0xff]
    %v2713 = vld [vmem:[#allocation7 + $0x38] sm:$0xff]
    %v2714 = vld [vmem:[#allocation7 + $0x40] sm:$0xff]
    %v2715 = vld [vmem:[#allocation7 + $0x48] sm:$0xff]
    %v2716 = vld [vmem:[#allocation7 + $0x50] sm:$0xff]
    %v2717 = vld [vmem:[#allocation7 + $0x58] sm:$0xff]
    %v2718 = vld [vmem:[#allocation7 + $0x60] sm:$0xff]
    %v2719 = vld [vmem:[#allocation7 + $0x68] sm:$0xff]
    %v2720 = vld [vmem:[#allocation7 + $0x70] sm:$0xff]
    %v2721 = vld [vmem:[#allocation7 + $0x78] sm:$0xff]
    %2722 = vmatprep.subr.mxu0 0.0
    %2723 = vmatpush1.msra.mxu0 %v2706
    %2724 = vmatprep.subr.mxu0 0.0
    %2725 = vmatpush1.msra.mxu0 %v2707
    %2726 = vmatprep.subr.mxu0 0.0
    %2727 = vmatpush1.msra.mxu0 %v2708
    %2728 = vmatprep.subr.mxu0 0.0
    %2729 = vmatpush1.msra.mxu0 %v2709
    %2730 = vmatprep.subr.mxu0 0.0
    %2731 = vmatpush1.msra.mxu0 %v2710
    %2732 = vmatprep.subr.mxu0 0.0
    %2733 = vmatpush1.msra.mxu0 %v2711
    %2734 = vmatprep.subr.mxu0 0.0
    %2735 = vmatpush1.msra.mxu0 %v2712
    %2736 = vmatprep.subr.mxu0 0.0
    %2737 = vmatpush1.msra.mxu0 %v2713
    %2738 = vmatprep.subr.mxu0 0.0
    %2739 = vmatpush1.msra.mxu0 %v2714
    %2740 = vmatprep.subr.mxu0 0.0
    %2741 = vmatpush1.msra.mxu0 %v2715
    %2742 = vmatprep.subr.mxu0 0.0
    %2743 = vmatpush1.msra.mxu0 %v2716
    %2744 = vmatprep.subr.mxu0 0.0
    %2745 = vmatpush1.msra.mxu0 %v2717
    %2746 = vmatprep.subr.mxu0 0.0
    %2747 = vmatpush1.msra.mxu0 %v2718
    %2748 = vmatprep.subr.mxu0 0.0
    %2749 = vmatpush1.msra.mxu0 %v2719
    %2750 = vmatprep.subr.mxu0 0.0
    %2751 = vmatpush1.msra.mxu0 %v2720
    %2752 = vmatprep.subr.mxu0 0.0
    %2753 = vmatpush1.msra.mxu0 %v2721
    %2754 = vmatprep.subr.mxu0 0.0
    %2755 = vmatpush1.msra.mxu0 0.0
    %2756 = vmatprep.subr.mxu0 0.0
    %2757 = vmatpush1.msra.mxu0 0.0
    %2758 = vmatprep.subr.mxu0 0.0
    %2759 = vmatpush1.msra.mxu0 0.0
    %2760 = vmatprep.subr.mxu0 0.0
    %2761 = vmatpush1.msra.mxu0 0.0
    %2762 = vmatprep.subr.mxu0 0.0
    %2763 = vmatpush1.msra.mxu0 0.0
    %2764 = vmatprep.subr.mxu0 0.0
    %2765 = vmatpush1.msra.mxu0 0.0
    %2766 = vmatprep.subr.mxu0 0.0
    %2767 = vmatpush1.msra.mxu0 0.0
    %2768 = vmatprep.subr.mxu0 0.0
    %2769 = vmatpush1.msra.mxu0 0.0
    %2770 = vmatprep.subr.mxu0 0.0
    %2771 = vmatpush1.msra.mxu0 0.0
    %2772 = vmatprep.subr.mxu0 0.0
    %2773 = vmatpush1.msra.mxu0 0.0
    %2774 = vmatprep.subr.mxu0 0.0
    %2775 = vmatpush1.msra.mxu0 0.0
    %2776 = vmatprep.subr.mxu0 0.0
    %2777 = vmatpush1.msra.mxu0 0.0
    %2778 = vmatprep.subr.mxu0 0.0
    %2779 = vmatpush1.msra.mxu0 0.0
    %2780 = vmatprep.subr.mxu0 0.0
    %2781 = vmatpush1.msra.mxu0 0.0
    %2782 = vmatprep.subr.mxu0 0.0
    %2783 = vmatpush1.msra.mxu0 0.0
    %2784 = vmatprep.subr.mxu0 0.0
    %2785 = vmatpush1.msra.mxu0 0.0
    %2786 = vmatprep.mubr.f32.mxu0 0.0
    %2787 = vmatmul.mubr.f32.gmra.mrb[0].mxu0 %v2705
    %v2788 = vpop.f32.mrb[0].mxu0
    %v2789 = vadd.f32 %v2678, %v2788
    %v2790 = vpop.f32.mrb[0].mxu0
    %2791 = vdwg.mxu0
    %v2792 = vtanh.pop %v2789
    %v2793 = vld [vmem:[#allocation8] sm:$0xff]
    %v2794 = vld [vmem:[#allocation8 + $0x8] sm:$0xff]
    %v2795 = vld [vmem:[#allocation8 + $0x10] sm:$0xff]
    %v2796 = vld [vmem:[#allocation8 + $0x18] sm:$0xff]
    %v2797 = vld [vmem:[#allocation8 + $0x20] sm:$0xff]
    %v2798 = vld [vmem:[#allocation8 + $0x28] sm:$0xff]
    %v2799 = vld [vmem:[#allocation8 + $0x30] sm:$0xff]
    %v2800 = vld [vmem:[#allocation8 + $0x38] sm:$0xff]
    %v2801 = vld [vmem:[#allocation8 + $0x40] sm:$0xff]
    %v2802 = vld [vmem:[#allocation8 + $0x48] sm:$0xff]
    %v2803 = vld [vmem:[#allocation8 + $0x50] sm:$0xff]
    %v2804 = vld [vmem:[#allocation8 + $0x58] sm:$0xff]
    %v2805 = vld [vmem:[#allocation8 + $0x60] sm:$0xff]
    %v2806 = vld [vmem:[#allocation8 + $0x68] sm:$0xff]
    %v2807 = vld [vmem:[#allocation8 + $0x70] sm:$0xff]
    %v2808 = vld [vmem:[#allocation8 + $0x78] sm:$0xff]
    %v2809 = vld [vmem:[#allocation8 + $0x80] sm:$0xff]
    %v2810 = vld [vmem:[#allocation8 + $0x88] sm:$0xff]
    %v2811 = vld [vmem:[#allocation8 + $0x90] sm:$0xff]
    %v2812 = vld [vmem:[#allocation8 + $0x98] sm:$0xff]
    %v2813 = vld [vmem:[#allocation8 + $0xa0] sm:$0xff]
    %v2814 = vld [vmem:[#allocation8 + $0xa8] sm:$0xff]
    %v2815 = vld [vmem:[#allocation8 + $0xb0] sm:$0xff]
    %v2816 = vld [vmem:[#allocation8 + $0xb8] sm:$0xff]
    %v2817 = vld [vmem:[#allocation8 + $0xc0] sm:$0xff]
    %v2818 = vld [vmem:[#allocation8 + $0xc8] sm:$0xff]
    %v2819 = vld [vmem:[#allocation8 + $0xd0] sm:$0xff]
    %v2820 = vld [vmem:[#allocation8 + $0xd8] sm:$0xff]
    %v2821 = vld [vmem:[#allocation8 + $0xe0] sm:$0xff]
    %v2822 = vld [vmem:[#allocation8 + $0xe8] sm:$0xff]
    %v2823 = vld [vmem:[#allocation8 + $0xf0] sm:$0xff]
    %v2824 = vld [vmem:[#allocation8 + $0xf8] sm:$0xff]
    %2825 = vmatprep.subr.mxu0 %v2794
    %2826 = vmatpush1.msra.mxu0 %v2793
    %2827 = vmatprep.subr.mxu0 %v2796
    %2828 = vmatpush1.msra.mxu0 %v2795
    %2829 = vmatprep.subr.mxu0 %v2798
    %2830 = vmatpush1.msra.mxu0 %v2797
    %2831 = vmatprep.subr.mxu0 %v2800
    %2832 = vmatpush1.msra.mxu0 %v2799
    %2833 = vmatprep.subr.mxu0 %v2802
    %2834 = vmatpush1.msra.mxu0 %v2801
    %2835 = vmatprep.subr.mxu0 %v2804
    %2836 = vmatpush1.msra.mxu0 %v2803
    %2837 = vmatprep.subr.mxu0 %v2806
    %2838 = vmatpush1.msra.mxu0 %v2805
    %2839 = vmatprep.subr.mxu0 %v2808
    %2840 = vmatpush1.msra.mxu0 %v2807
    %2841 = vmatprep.subr.mxu0 %v2810
    %2842 = vmatpush1.msra.mxu0 %v2809
    %2843 = vmatprep.subr.mxu0 %v2812
    %2844 = vmatpush1.msra.mxu0 %v2811
    %2845 = vmatprep.subr.mxu0 %v2814
    %2846 = vmatpush1.msra.mxu0 %v2813
    %2847 = vmatprep.subr.mxu0 %v2816
    %2848 = vmatpush1.msra.mxu0 %v2815
    %2849 = vmatprep.subr.mxu0 %v2818
    %2850 = vmatpush1.msra.mxu0 %v2817
    %2851 = vmatprep.subr.mxu0 %v2820
    %2852 = vmatpush1.msra.mxu0 %v2819
    %2853 = vmatprep.subr.mxu0 %v2822
    %2854 = vmatpush1.msra.mxu0 %v2821
    %2855 = vmatprep.subr.mxu0 %v2824
    %2856 = vmatpush1.msra.mxu0 %v2823
    %2857 = vmatprep.subr.mxu0 0.0
    %2858 = vmatpush1.msra.mxu0 0.0
    %2859 = vmatprep.subr.mxu0 0.0
    %2860 = vmatpush1.msra.mxu0 0.0
    %2861 = vmatprep.subr.mxu0 0.0
    %2862 = vmatpush1.msra.mxu0 0.0
    %2863 = vmatprep.subr.mxu0 0.0
    %2864 = vmatpush1.msra.mxu0 0.0
    %2865 = vmatprep.subr.mxu0 0.0
    %2866 = vmatpush1.msra.mxu0 0.0
    %2867 = vmatprep.subr.mxu0 0.0
    %2868 = vmatpush1.msra.mxu0 0.0
    %2869 = vmatprep.subr.mxu0 0.0
    %2870 = vmatpush1.msra.mxu0 0.0
    %2871 = vmatprep.subr.mxu0 0.0
    %2872 = vmatpush1.msra.mxu0 0.0
    %2873 = vmatprep.subr.mxu0 0.0
    %2874 = vmatpush1.msra.mxu0 0.0
    %2875 = vmatprep.subr.mxu0 0.0
    %2876 = vmatpush1.msra.mxu0 0.0
    %2877 = vmatprep.subr.mxu0 0.0
    %2878 = vmatpush1.msra.mxu0 0.0
    %2879 = vmatprep.subr.mxu0 0.0
    %2880 = vmatpush1.msra.mxu0 0.0
    %2881 = vmatprep.subr.mxu0 0.0
    %2882 = vmatpush1.msra.mxu0 0.0
    %2883 = vmatprep.subr.mxu0 0.0
    %2884 = vmatpush1.msra.mxu0 0.0
    %2885 = vmatprep.subr.mxu0 0.0
    %2886 = vmatpush1.msra.mxu0 0.0
    %2887 = vmatprep.subr.mxu0 0.0
    %2888 = vmatpush1.msra.mxu0 0.0
    %2889 = vmatprep.mubr.f32.mxu0 0.0
    %2890 = vmatmul.mubr.f32.gmra.mrb[0].mxu0 %v2792
    %v2891 = vpop.f32.mrb[0].mxu0
    %v2892 = vadd.f32 0.0, %v2891
    %v2893 = vpop.f32.mrb[0].mxu0
    %v2894 = vadd.f32 0.0, %v2893
    %2895 = vdwg.mxu0
    %v2896 = vadd.f32 %v2894, %v688
    %s2897 = scalar_lea.vmem [#allocation10], 72
    %2898 = vst [vmem:[%s2897] sm:$0xff] %v2896
    %2899 = vmax.xlane.f32.xlu0 %v2896
    %v2900 = vpop.xlane.xlu0 %2899
    %vm2901 = vcmp.eq.f32.partialorder %v2896, %v2900
    %v2902 = vsel %vm2901, %v691, 128
    %v2903 = vand.u32 %v2902, 65535
    %v2904 = vshra.s32 %v2902, 16
    %v2905 = vcvt.s32.f32 %v2903
    %v2906 = vcvt.s32.f32 %v2904
    %2907 = vmin.xlane.f32.xlu0 %v2906
    %v2908 = vpop.xlane.xlu0 %2907
    %vm2909 = vcmp.eq.f32.partialorder %v2906, %v2908
    %v2910 = vsel %vm2909, %v2905, inf
    %2911 = vmin.xlane.f32.xlu0 %v2910
    %v2912 = vpop.xlane.xlu0 %2911
    %v2913 = vcvt.f32.s32 %v2912
    %v2914 = vcvt.f32.s32 %v2908
    %v2915 = vshll.u32 %v2914, 16
    %v2916 = vadd.s32 %v2915, %v2913
    %vm2917 = vcmp.eq.s32.totalorder %v691, %v2916
    %v2918 = vsel %vm2917, 1, 0
    %v2919 = vcvt.s32.f32 %v2918
    %v2920 = vld [vmem:[#allocation7] sm:$0xff]
    %v2921 = vld [vmem:[#allocation7 + $0x8] sm:$0xff]
    %v2922 = vld [vmem:[#allocation7 + $0x10] sm:$0xff]
    %v2923 = vld [vmem:[#allocation7 + $0x18] sm:$0xff]
    %v2924 = vld [vmem:[#allocation7 + $0x20] sm:$0xff]
    %v2925 = vld [vmem:[#allocation7 + $0x28] sm:$0xff]
    %v2926 = vld [vmem:[#allocation7 + $0x30] sm:$0xff]
    %v2927 = vld [vmem:[#allocation7 + $0x38] sm:$0xff]
    %v2928 = vld [vmem:[#allocation7 + $0x40] sm:$0xff]
    %v2929 = vld [vmem:[#allocation7 + $0x48] sm:$0xff]
    %v2930 = vld [vmem:[#allocation7 + $0x50] sm:$0xff]
    %v2931 = vld [vmem:[#allocation7 + $0x58] sm:$0xff]
    %v2932 = vld [vmem:[#allocation7 + $0x60] sm:$0xff]
    %v2933 = vld [vmem:[#allocation7 + $0x68] sm:$0xff]
    %v2934 = vld [vmem:[#allocation7 + $0x70] sm:$0xff]
    %v2935 = vld [vmem:[#allocation7 + $0x78] sm:$0xff]
    %2936 = vmatprep.subr.mxu0 0.0
    %2937 = vmatpush1.msra.mxu0 %v2920
    %2938 = vmatprep.subr.mxu0 0.0
    %2939 = vmatpush1.msra.mxu0 %v2921
    %2940 = vmatprep.subr.mxu0 0.0
    %2941 = vmatpush1.msra.mxu0 %v2922
    %2942 = vmatprep.subr.mxu0 0.0
    %2943 = vmatpush1.msra.mxu0 %v2923
    %2944 = vmatprep.subr.mxu0 0.0
    %2945 = vmatpush1.msra.mxu0 %v2924
    %2946 = vmatprep.subr.mxu0 0.0
    %2947 = vmatpush1.msra.mxu0 %v2925
    %2948 = vmatprep.subr.mxu0 0.0
    %2949 = vmatpush1.msra.mxu0 %v2926
    %2950 = vmatprep.subr.mxu0 0.0
    %2951 = vmatpush1.msra.mxu0 %v2927
    %2952 = vmatprep.subr.mxu0 0.0
    %2953 = vmatpush1.msra.mxu0 %v2928
    %2954 = vmatprep.subr.mxu0 0.0
    %2955 = vmatpush1.msra.mxu0 %v2929
    %2956 = vmatprep.subr.mxu0 0.0
    %2957 = vmatpush1.msra.mxu0 %v2930
    %2958 = vmatprep.subr.mxu0 0.0
    %2959 = vmatpush1.msra.mxu0 %v2931
    %2960 = vmatprep.subr.mxu0 0.0
    %2961 = vmatpush1.msra.mxu0 %v2932
    %2962 = vmatprep.subr.mxu0 0.0
    %2963 = vmatpush1.msra.mxu0 %v2933
    %2964 = vmatprep.subr.mxu0 0.0
    %2965 = vmatpush1.msra.mxu0 %v2934
    %2966 = vmatprep.subr.mxu0 0.0
    %2967 = vmatpush1.msra.mxu0 %v2935
    %2968 = vmatprep.subr.mxu0 0.0
    %2969 = vmatpush1.msra.mxu0 0.0
    %2970 = vmatprep.subr.mxu0 0.0
    %2971 = vmatpush1.msra.mxu0 0.0
    %2972 = vmatprep.subr.mxu0 0.0
    %2973 = vmatpush1.msra.mxu0 0.0
    %2974 = vmatprep.subr.mxu0 0.0
    %2975 = vmatpush1.msra.mxu0 0.0
    %2976 = vmatprep.subr.mxu0 0.0
    %2977 = vmatpush1.msra.mxu0 0.0
    %2978 = vmatprep.subr.mxu0 0.0
    %2979 = vmatpush1.msra.mxu0 0.0
    %2980 = vmatprep.subr.mxu0 0.0
    %2981 = vmatpush1.msra.mxu0 0.0
    %2982 = vmatprep.subr.mxu0 0.0
    %2983 = vmatpush1.msra.mxu0 0.0
    %2984 = vmatprep.subr.mxu0 0.0
    %2985 = vmatpush1.msra.mxu0 0.0
    %2986 = vmatprep.subr.mxu0 0.0
    %2987 = vmatpush1.msra.mxu0 0.0
    %2988 = vmatprep.subr.mxu0 0.0
    %2989 = vmatpush1.msra.mxu0 0.0
    %2990 = vmatprep.subr.mxu0 0.0
    %2991 = vmatpush1.msra.mxu0 0.0
    %2992 = vmatprep.subr.mxu0 0.0
    %2993 = vmatpush1.msra.mxu0 0.0
    %2994 = vmatprep.subr.mxu0 0.0
    %2995 = vmatpush1.msra.mxu0 0.0
    %2996 = vmatprep.subr.mxu0 0.0
    %2997 = vmatpush1.msra.mxu0 0.0
    %2998 = vmatprep.subr.mxu0 0.0
    %2999 = vmatpush1.msra.mxu0 0.0
    %3000 = vmatprep.mubr.f32.mxu0 0.0
    %3001 = vmatmul.mubr.f32.gmra.mrb[0].mxu0 %v2919
    %v3002 = vpop.f32.mrb[0].mxu0
    %v3003 = vadd.f32 %v2892, %v3002
    %v3004 = vpop.f32.mrb[0].mxu0
    %3005 = vdwg.mxu0
    %v3006 = vtanh.pop %v3003
    %v3007 = vld [vmem:[#allocation8] sm:$0xff]
    %v3008 = vld [vmem:[#allocation8 + $0x8] sm:$0xff]
    %v3009 = vld [vmem:[#allocation8 + $0x10] sm:$0xff]
    %v3010 = vld [vmem:[#allocation8 + $0x18] sm:$0xff]
    %v3011 = vld [vmem:[#allocation8 + $0x20] sm:$0xff]
    %v3012 = vld [vmem:[#allocation8 + $0x28] sm:$0xff]
    %v3013 = vld [vmem:[#allocation8 + $0x30] sm:$0xff]
    %v3014 = vld [vmem:[#allocation8 + $0x38] sm:$0xff]
    %v3015 = vld [vmem:[#allocation8 + $0x40] sm:$0xff]
    %v3016 = vld [vmem:[#allocation8 + $0x48] sm:$0xff]
    %v3017 = vld [vmem:[#allocation8 + $0x50] sm:$0xff]
    %v3018 = vld [vmem:[#allocation8 + $0x58] sm:$0xff]
    %v3019 = vld [vmem:[#allocation8 + $0x60] sm:$0xff]
    %v3020 = vld [vmem:[#allocation8 + $0x68] sm:$0xff]
    %v3021 = vld [vmem:[#allocation8 + $0x70] sm:$0xff]
    %v3022 = vld [vmem:[#allocation8 + $0x78] sm:$0xff]
    %v3023 = vld [vmem:[#allocation8 + $0x80] sm:$0xff]
    %v3024 = vld [vmem:[#allocation8 + $0x88] sm:$0xff]
    %v3025 = vld [vmem:[#allocation8 + $0x90] sm:$0xff]
    %v3026 = vld [vmem:[#allocation8 + $0x98] sm:$0xff]
    %v3027 = vld [vmem:[#allocation8 + $0xa0] sm:$0xff]
    %v3028 = vld [vmem:[#allocation8 + $0xa8] sm:$0xff]
    %v3029 = vld [vmem:[#allocation8 + $0xb0] sm:$0xff]
    %v3030 = vld [vmem:[#allocation8 + $0xb8] sm:$0xff]
    %v3031 = vld [vmem:[#allocation8 + $0xc0] sm:$0xff]
    %v3032 = vld [vmem:[#allocation8 + $0xc8] sm:$0xff]
    %v3033 = vld [vmem:[#allocation8 + $0xd0] sm:$0xff]
    %v3034 = vld [vmem:[#allocation8 + $0xd8] sm:$0xff]
    %v3035 = vld [vmem:[#allocation8 + $0xe0] sm:$0xff]
    %v3036 = vld [vmem:[#allocation8 + $0xe8] sm:$0xff]
    %v3037 = vld [vmem:[#allocation8 + $0xf0] sm:$0xff]
    %v3038 = vld [vmem:[#allocation8 + $0xf8] sm:$0xff]
    %3039 = vmatprep.subr.mxu0 %v3008
    %3040 = vmatpush1.msra.mxu0 %v3007
    %3041 = vmatprep.subr.mxu0 %v3010
    %3042 = vmatpush1.msra.mxu0 %v3009
    %3043 = vmatprep.subr.mxu0 %v3012
    %3044 = vmatpush1.msra.mxu0 %v3011
    %3045 = vmatprep.subr.mxu0 %v3014
    %3046 = vmatpush1.msra.mxu0 %v3013
    %3047 = vmatprep.subr.mxu0 %v3016
    %3048 = vmatpush1.msra.mxu0 %v3015
    %3049 = vmatprep.subr.mxu0 %v3018
    %3050 = vmatpush1.msra.mxu0 %v3017
    %3051 = vmatprep.subr.mxu0 %v3020
    %3052 = vmatpush1.msra.mxu0 %v3019
    %3053 = vmatprep.subr.mxu0 %v3022
    %3054 = vmatpush1.msra.mxu0 %v3021
    %3055 = vmatprep.subr.mxu0 %v3024
    %3056 = vmatpush1.msra.mxu0 %v3023
    %3057 = vmatprep.subr.mxu0 %v3026
    %3058 = vmatpush1.msra.mxu0 %v3025
    %3059 = vmatprep.subr.mxu0 %v3028
    %3060 = vmatpush1.msra.mxu0 %v3027
    %3061 = vmatprep.subr.mxu0 %v3030
    %3062 = vmatpush1.msra.mxu0 %v3029
    %3063 = vmatprep.subr.mxu0 %v3032
    %3064 = vmatpush1.msra.mxu0 %v3031
    %3065 = vmatprep.subr.mxu0 %v3034
    %3066 = vmatpush1.msra.mxu0 %v3033
    %3067 = vmatprep.subr.mxu0 %v3036
    %3068 = vmatpush1.msra.mxu0 %v3035
    %3069 = vmatprep.subr.mxu0 %v3038
    %3070 = vmatpush1.msra.mxu0 %v3037
    %3071 = vmatprep.subr.mxu0 0.0
    %3072 = vmatpush1.msra.mxu0 0.0
    %3073 = vmatprep.subr.mxu0 0.0
    %3074 = vmatpush1.msra.mxu0 0.0
    %3075 = vmatprep.subr.mxu0 0.0
    %3076 = vmatpush1.msra.mxu0 0.0
    %3077 = vmatprep.subr.mxu0 0.0
    %3078 = vmatpush1.msra.mxu0 0.0
    %3079 = vmatprep.subr.mxu0 0.0
    %3080 = vmatpush1.msra.mxu0 0.0
    %3081 = vmatprep.subr.mxu0 0.0
    %3082 = vmatpush1.msra.mxu0 0.0
    %3083 = vmatprep.subr.mxu0 0.0
    %3084 = vmatpush1.msra.mxu0 0.0
    %3085 = vmatprep.subr.mxu0 0.0
    %3086 = vmatpush1.msra.mxu0 0.0
    %3087 = vmatprep.subr.mxu0 0.0
    %3088 = vmatpush1.msra.mxu0 0.0
    %3089 = vmatprep.subr.mxu0 0.0
    %3090 = vmatpush1.msra.mxu0 0.0
    %3091 = vmatprep.subr.mxu0 0.0
    %3092 = vmatpush1.msra.mxu0 0.0
    %3093 = vmatprep.subr.mxu0 0.0
    %3094 = vmatpush1.msra.mxu0 0.0
    %3095 = vmatprep.subr.mxu0 0.0
    %3096 = vmatpush1.msra.mxu0 0.0
    %3097 = vmatprep.subr.mxu0 0.0
    %3098 = vmatpush1.msra.mxu0 0.0
    %3099 = vmatprep.subr.mxu0 0.0
    %3100 = vmatpush1.msra.mxu0 0.0
    %3101 = vmatprep.subr.mxu0 0.0
    %3102 = vmatpush1.msra.mxu0 0.0
    %3103 = vmatprep.mubr.f32.mxu0 0.0
    %3104 = vmatmul.mubr.f32.gmra.mrb[0].mxu0 %v3006
    %v3105 = vpop.f32.mrb[0].mxu0
    %v3106 = vadd.f32 0.0, %v3105
    %v3107 = vpop.f32.mrb[0].mxu0
    %v3108 = vadd.f32 0.0, %v3107
    %3109 = vdwg.mxu0
    %v3110 = vadd.f32 %v3108, %v688
    %s3111 = scalar_lea.vmem [#allocation10], 80
    %3112 = vst [vmem:[%s3111] sm:$0xff] %v3110
    %3113 = vmax.xlane.f32.xlu0 %v3110
    %v3114 = vpop.xlane.xlu0 %3113
    %vm3115 = vcmp.eq.f32.partialorder %v3110, %v3114
    %v3116 = vsel %vm3115, %v691, 128
    %v3117 = vand.u32 %v3116, 65535
    %v3118 = vshra.s32 %v3116, 16
    %v3119 = vcvt.s32.f32 %v3117
    %v3120 = vcvt.s32.f32 %v3118
    %3121 = vmin.xlane.f32.xlu0 %v3120
    %v3122 = vpop.xlane.xlu0 %3121
    %vm3123 = vcmp.eq.f32.partialorder %v3120, %v3122
    %v3124 = vsel %vm3123, %v3119, inf
    %3125 = vmin.xlane.f32.xlu0 %v3124
    %v3126 = vpop.xlane.xlu0 %3125
    %v3127 = vcvt.f32.s32 %v3126
    %v3128 = vcvt.f32.s32 %v3122
    %v3129 = vshll.u32 %v3128, 16
    %v3130 = vadd.s32 %v3129, %v3127
    %vm3131 = vcmp.eq.s32.totalorder %v691, %v3130
    %v3132 = vsel %vm3131, 1, 0
    %v3133 = vcvt.s32.f32 %v3132
    %v3134 = vld [vmem:[#allocation7] sm:$0xff]
    %v3135 = vld [vmem:[#allocation7 + $0x8] sm:$0xff]
    %v3136 = vld [vmem:[#allocation7 + $0x10] sm:$0xff]
    %v3137 = vld [vmem:[#allocation7 + $0x18] sm:$0xff]
    %v3138 = vld [vmem:[#allocation7 + $0x20] sm:$0xff]
    %v3139 = vld [vmem:[#allocation7 + $0x28] sm:$0xff]
    %v3140 = vld [vmem:[#allocation7 + $0x30] sm:$0xff]
    %v3141 = vld [vmem:[#allocation7 + $0x38] sm:$0xff]
    %v3142 = vld [vmem:[#allocation7 + $0x40] sm:$0xff]
    %v3143 = vld [vmem:[#allocation7 + $0x48] sm:$0xff]
    %v3144 = vld [vmem:[#allocation7 + $0x50] sm:$0xff]
    %v3145 = vld [vmem:[#allocation7 + $0x58] sm:$0xff]
    %v3146 = vld [vmem:[#allocation7 + $0x60] sm:$0xff]
    %v3147 = vld [vmem:[#allocation7 + $0x68] sm:$0xff]
    %v3148 = vld [vmem:[#allocation7 + $0x70] sm:$0xff]
    %v3149 = vld [vmem:[#allocation7 + $0x78] sm:$0xff]
    %3150 = vmatprep.subr.mxu0 0.0
    %3151 = vmatpush1.msra.mxu0 %v3134
    %3152 = vmatprep.subr.mxu0 0.0
    %3153 = vmatpush1.msra.mxu0 %v3135
    %3154 = vmatprep.subr.mxu0 0.0
    %3155 = vmatpush1.msra.mxu0 %v3136
    %3156 = vmatprep.subr.mxu0 0.0
    %3157 = vmatpush1.msra.mxu0 %v3137
    %3158 = vmatprep.subr.mxu0 0.0
    %3159 = vmatpush1.msra.mxu0 %v3138
    %3160 = vmatprep.subr.mxu0 0.0
    %3161 = vmatpush1.msra.mxu0 %v3139
    %3162 = vmatprep.subr.mxu0 0.0
    %3163 = vmatpush1.msra.mxu0 %v3140
    %3164 = vmatprep.subr.mxu0 0.0
    %3165 = vmatpush1.msra.mxu0 %v3141
    %3166 = vmatprep.subr.mxu0 0.0
    %3167 = vmatpush1.msra.mxu0 %v3142
    %3168 = vmatprep.subr.mxu0 0.0
    %3169 = vmatpush1.msra.mxu0 %v3143
    %3170 = vmatprep.subr.mxu0 0.0
    %3171 = vmatpush1.msra.mxu0 %v3144
    %3172 = vmatprep.subr.mxu0 0.0
    %3173 = vmatpush1.msra.mxu0 %v3145
    %3174 = vmatprep.subr.mxu0 0.0
    %3175 = vmatpush1.msra.mxu0 %v3146
    %3176 = vmatprep.subr.mxu0 0.0
    %3177 = vmatpush1.msra.mxu0 %v3147
    %3178 = vmatprep.subr.mxu0 0.0
    %3179 = vmatpush1.msra.mxu0 %v3148
    %3180 = vmatprep.subr.mxu0 0.0
    %3181 = vmatpush1.msra.mxu0 %v3149
    %3182 = vmatprep.subr.mxu0 0.0
    %3183 = vmatpush1.msra.mxu0 0.0
    %3184 = vmatprep.subr.mxu0 0.0
    %3185 = vmatpush1.msra.mxu0 0.0
    %3186 = vmatprep.subr.mxu0 0.0
    %3187 = vmatpush1.msra.mxu0 0.0
    %3188 = vmatprep.subr.mxu0 0.0
    %3189 = vmatpush1.msra.mxu0 0.0
    %3190 = vmatprep.subr.mxu0 0.0
    %3191 = vmatpush1.msra.mxu0 0.0
    %3192 = vmatprep.subr.mxu0 0.0
    %3193 = vmatpush1.msra.mxu0 0.0
    %3194 = vmatprep.subr.mxu0 0.0
    %3195 = vmatpush1.msra.mxu0 0.0
    %3196 = vmatprep.subr.mxu0 0.0
    %3197 = vmatpush1.msra.mxu0 0.0
    %3198 = vmatprep.subr.mxu0 0.0
    %3199 = vmatpush1.msra.mxu0 0.0
    %3200 = vmatprep.subr.mxu0 0.0
    %3201 = vmatpush1.msra.mxu0 0.0
    %3202 = vmatprep.subr.mxu0 0.0
    %3203 = vmatpush1.msra.mxu0 0.0
    %3204 = vmatprep.subr.mxu0 0.0
    %3205 = vmatpush1.msra.mxu0 0.0
    %3206 = vmatprep.subr.mxu0 0.0
    %3207 = vmatpush1.msra.mxu0 0.0
    %3208 = vmatprep.subr.mxu0 0.0
    %3209 = vmatpush1.msra.mxu0 0.0
    %3210 = vmatprep.subr.mxu0 0.0
    %3211 = vmatpush1.msra.mxu0 0.0
    %3212 = vmatprep.subr.mxu0 0.0
    %3213 = vmatpush1.msra.mxu0 0.0
    %3214 = vmatprep.mubr.f32.mxu0 0.0
    %3215 = vmatmul.mubr.f32.gmra.mrb[0].mxu0 %v3133
    %v3216 = vpop.f32.mrb[0].mxu0
    %v3217 = vadd.f32 %v3106, %v3216
    %v3218 = vpop.f32.mrb[0].mxu0
    %3219 = vdwg.mxu0
    %v3220 = vtanh.pop %v3217
    %v3221 = vld [vmem:[#allocation8] sm:$0xff]
    %v3222 = vld [vmem:[#allocation8 + $0x8] sm:$0xff]
    %v3223 = vld [vmem:[#allocation8 + $0x10] sm:$0xff]
    %v3224 = vld [vmem:[#allocation8 + $0x18] sm:$0xff]
    %v3225 = vld [vmem:[#allocation8 + $0x20] sm:$0xff]
    %v3226 = vld [vmem:[#allocation8 + $0x28] sm:$0xff]
    %v3227 = vld [vmem:[#allocation8 + $0x30] sm:$0xff]
    %v3228 = vld [vmem:[#allocation8 + $0x38] sm:$0xff]
    %v3229 = vld [vmem:[#allocation8 + $0x40] sm:$0xff]
    %v3230 = vld [vmem:[#allocation8 + $0x48] sm:$0xff]
    %v3231 = vld [vmem:[#allocation8 + $0x50] sm:$0xff]
    %v3232 = vld [vmem:[#allocation8 + $0x58] sm:$0xff]
    %v3233 = vld [vmem:[#allocation8 + $0x60] sm:$0xff]
    %v3234 = vld [vmem:[#allocation8 + $0x68] sm:$0xff]
    %v3235 = vld [vmem:[#allocation8 + $0x70] sm:$0xff]
    %v3236 = vld [vmem:[#allocation8 + $0x78] sm:$0xff]
    %v3237 = vld [vmem:[#allocation8 + $0x80] sm:$0xff]
    %v3238 = vld [vmem:[#allocation8 + $0x88] sm:$0xff]
    %v3239 = vld [vmem:[#allocation8 + $0x90] sm:$0xff]
    %v3240 = vld [vmem:[#allocation8 + $0x98] sm:$0xff]
    %v3241 = vld [vmem:[#allocation8 + $0xa0] sm:$0xff]
    %v3242 = vld [vmem:[#allocation8 + $0xa8] sm:$0xff]
    %v3243 = vld [vmem:[#allocation8 + $0xb0] sm:$0xff]
    %v3244 = vld [vmem:[#allocation8 + $0xb8] sm:$0xff]
    %v3245 = vld [vmem:[#allocation8 + $0xc0] sm:$0xff]
    %v3246 = vld [vmem:[#allocation8 + $0xc8] sm:$0xff]
    %v3247 = vld [vmem:[#allocation8 + $0xd0] sm:$0xff]
    %v3248 = vld [vmem:[#allocation8 + $0xd8] sm:$0xff]
    %v3249 = vld [vmem:[#allocation8 + $0xe0] sm:$0xff]
    %v3250 = vld [vmem:[#allocation8 + $0xe8] sm:$0xff]
    %v3251 = vld [vmem:[#allocation8 + $0xf0] sm:$0xff]
    %v3252 = vld [vmem:[#allocation8 + $0xf8] sm:$0xff]
    %3253 = vmatprep.subr.mxu0 %v3222
    %3254 = vmatpush1.msra.mxu0 %v3221
    %3255 = vmatprep.subr.mxu0 %v3224
    %3256 = vmatpush1.msra.mxu0 %v3223
    %3257 = vmatprep.subr.mxu0 %v3226
    %3258 = vmatpush1.msra.mxu0 %v3225
    %3259 = vmatprep.subr.mxu0 %v3228
    %3260 = vmatpush1.msra.mxu0 %v3227
    %3261 = vmatprep.subr.mxu0 %v3230
    %3262 = vmatpush1.msra.mxu0 %v3229
    %3263 = vmatprep.subr.mxu0 %v3232
    %3264 = vmatpush1.msra.mxu0 %v3231
    %3265 = vmatprep.subr.mxu0 %v3234
    %3266 = vmatpush1.msra.mxu0 %v3233
    %3267 = vmatprep.subr.mxu0 %v3236
    %3268 = vmatpush1.msra.mxu0 %v3235
    %3269 = vmatprep.subr.mxu0 %v3238
    %3270 = vmatpush1.msra.mxu0 %v3237
    %3271 = vmatprep.subr.mxu0 %v3240
    %3272 = vmatpush1.msra.mxu0 %v3239
    %3273 = vmatprep.subr.mxu0 %v3242
    %3274 = vmatpush1.msra.mxu0 %v3241
    %3275 = vmatprep.subr.mxu0 %v3244
    %3276 = vmatpush1.msra.mxu0 %v3243
    %3277 = vmatprep.subr.mxu0 %v3246
    %3278 = vmatpush1.msra.mxu0 %v3245
    %3279 = vmatprep.subr.mxu0 %v3248
    %3280 = vmatpush1.msra.mxu0 %v3247
    %3281 = vmatprep.subr.mxu0 %v3250
    %3282 = vmatpush1.msra.mxu0 %v3249
    %3283 = vmatprep.subr.mxu0 %v3252
    %3284 = vmatpush1.msra.mxu0 %v3251
    %3285 = vmatprep.subr.mxu0 0.0
    %3286 = vmatpush1.msra.mxu0 0.0
    %3287 = vmatprep.subr.mxu0 0.0
    %3288 = vmatpush1.msra.mxu0 0.0
    %3289 = vmatprep.subr.mxu0 0.0
    %3290 = vmatpush1.msra.mxu0 0.0
    %3291 = vmatprep.subr.mxu0 0.0
    %3292 = vmatpush1.msra.mxu0 0.0
    %3293 = vmatprep.subr.mxu0 0.0
    %3294 = vmatpush1.msra.mxu0 0.0
    %3295 = vmatprep.subr.mxu0 0.0
    %3296 = vmatpush1.msra.mxu0 0.0
    %3297 = vmatprep.subr.mxu0 0.0
    %3298 = vmatpush1.msra.mxu0 0.0
    %3299 = vmatprep.subr.mxu0 0.0
    %3300 = vmatpush1.msra.mxu0 0.0
    %3301 = vmatprep.subr.mxu0 0.0
    %3302 = vmatpush1.msra.mxu0 0.0
    %3303 = vmatprep.subr.mxu0 0.0
    %3304 = vmatpush1.msra.mxu0 0.0
    %3305 = vmatprep.subr.mxu0 0.0
    %3306 = vmatpush1.msra.mxu0 0.0
    %3307 = vmatprep.subr.mxu0 0.0
    %3308 = vmatpush1.msra.mxu0 0.0
    %3309 = vmatprep.subr.mxu0 0.0
    %3310 = vmatpush1.msra.mxu0 0.0
    %3311 = vmatprep.subr.mxu0 0.0
    %3312 = vmatpush1.msra.mxu0 0.0
    %3313 = vmatprep.subr.mxu0 0.0
    %3314 = vmatpush1.msra.mxu0 0.0
    %3315 = vmatprep.subr.mxu0 0.0
    %3316 = vmatpush1.msra.mxu0 0.0
    %3317 = vmatprep.mubr.f32.mxu0 0.0
    %3318 = vmatmul.mubr.f32.gmra.mrb[0].mxu0 %v3220
    %v3319 = vpop.f32.mrb[0].mxu0
    %v3320 = vadd.f32 0.0, %v3319
    %v3321 = vpop.f32.mrb[0].mxu0
    %v3322 = vadd.f32 0.0, %v3321
    %3323 = vdwg.mxu0
    %v3324 = vadd.f32 %v3322, %v688
    %s3325 = scalar_lea.vmem [#allocation10], 88
    %3326 = vst [vmem:[%s3325] sm:$0xff] %v3324
    %3327 = vmax.xlane.f32.xlu0 %v3324
    %v3328 = vpop.xlane.xlu0 %3327
    %vm3329 = vcmp.eq.f32.partialorder %v3324, %v3328
    %v3330 = vsel %vm3329, %v691, 128
    %v3331 = vand.u32 %v3330, 65535
    %v3332 = vshra.s32 %v3330, 16
    %v3333 = vcvt.s32.f32 %v3331
    %v3334 = vcvt.s32.f32 %v3332
    %3335 = vmin.xlane.f32.xlu0 %v3334
    %v3336 = vpop.xlane.xlu0 %3335
    %vm3337 = vcmp.eq.f32.partialorder %v3334, %v3336
    %v3338 = vsel %vm3337, %v3333, inf
    %3339 = vmin.xlane.f32.xlu0 %v3338
    %v3340 = vpop.xlane.xlu0 %3339
    %v3341 = vcvt.f32.s32 %v3340
    %v3342 = vcvt.f32.s32 %v3336
    %v3343 = vshll.u32 %v3342, 16
    %v3344 = vadd.s32 %v3343, %v3341
    %vm3345 = vcmp.eq.s32.totalorder %v691, %v3344
    %v3346 = vsel %vm3345, 1, 0
    %v3347 = vcvt.s32.f32 %v3346
    %v3348 = vld [vmem:[#allocation7] sm:$0xff]
    %v3349 = vld [vmem:[#allocation7 + $0x8] sm:$0xff]
    %v3350 = vld [vmem:[#allocation7 + $0x10] sm:$0xff]
    %v3351 = vld [vmem:[#allocation7 + $0x18] sm:$0xff]
    %v3352 = vld [vmem:[#allocation7 + $0x20] sm:$0xff]
    %v3353 = vld [vmem:[#allocation7 + $0x28] sm:$0xff]
    %v3354 = vld [vmem:[#allocation7 + $0x30] sm:$0xff]
    %v3355 = vld [vmem:[#allocation7 + $0x38] sm:$0xff]
    %v3356 = vld [vmem:[#allocation7 + $0x40] sm:$0xff]
    %v3357 = vld [vmem:[#allocation7 + $0x48] sm:$0xff]
    %v3358 = vld [vmem:[#allocation7 + $0x50] sm:$0xff]
    %v3359 = vld [vmem:[#allocation7 + $0x58] sm:$0xff]
    %v3360 = vld [vmem:[#allocation7 + $0x60] sm:$0xff]
    %v3361 = vld [vmem:[#allocation7 + $0x68] sm:$0xff]
    %v3362 = vld [vmem:[#allocation7 + $0x70] sm:$0xff]
    %v3363 = vld [vmem:[#allocation7 + $0x78] sm:$0xff]
    %3364 = vmatprep.subr.mxu0 0.0
    %3365 = vmatpush1.msra.mxu0 %v3348
    %3366 = vmatprep.subr.mxu0 0.0
    %3367 = vmatpush1.msra.mxu0 %v3349
    %3368 = vmatprep.subr.mxu0 0.0
    %3369 = vmatpush1.msra.mxu0 %v3350
    %3370 = vmatprep.subr.mxu0 0.0
    %3371 = vmatpush1.msra.mxu0 %v3351
    %3372 = vmatprep.subr.mxu0 0.0
    %3373 = vmatpush1.msra.mxu0 %v3352
    %3374 = vmatprep.subr.mxu0 0.0
    %3375 = vmatpush1.msra.mxu0 %v3353
    %3376 = vmatprep.subr.mxu0 0.0
    %3377 = vmatpush1.msra.mxu0 %v3354
    %3378 = vmatprep.subr.mxu0 0.0
    %3379 = vmatpush1.msra.mxu0 %v3355
    %3380 = vmatprep.subr.mxu0 0.0
    %3381 = vmatpush1.msra.mxu0 %v3356
    %3382 = vmatprep.subr.mxu0 0.0
    %3383 = vmatpush1.msra.mxu0 %v3357
    %3384 = vmatprep.subr.mxu0 0.0
    %3385 = vmatpush1.msra.mxu0 %v3358
    %3386 = vmatprep.subr.mxu0 0.0
    %3387 = vmatpush1.msra.mxu0 %v3359
    %3388 = vmatprep.subr.mxu0 0.0
    %3389 = vmatpush1.msra.mxu0 %v3360
    %3390 = vmatprep.subr.mxu0 0.0
    %3391 = vmatpush1.msra.mxu0 %v3361
    %3392 = vmatprep.subr.mxu0 0.0
    %3393 = vmatpush1.msra.mxu0 %v3362
    %3394 = vmatprep.subr.mxu0 0.0
    %3395 = vmatpush1.msra.mxu0 %v3363
    %3396 = vmatprep.subr.mxu0 0.0
    %3397 = vmatpush1.msra.mxu0 0.0
    %3398 = vmatprep.subr.mxu0 0.0
    %3399 = vmatpush1.msra.mxu0 0.0
    %3400 = vmatprep.subr.mxu0 0.0
    %3401 = vmatpush1.msra.mxu0 0.0
    %3402 = vmatprep.subr.mxu0 0.0
    %3403 = vmatpush1.msra.mxu0 0.0
    %3404 = vmatprep.subr.mxu0 0.0
    %3405 = vmatpush1.msra.mxu0 0.0
    %3406 = vmatprep.subr.mxu0 0.0
    %3407 = vmatpush1.msra.mxu0 0.0
    %3408 = vmatprep.subr.mxu0 0.0
    %3409 = vmatpush1.msra.mxu0 0.0
    %3410 = vmatprep.subr.mxu0 0.0
    %3411 = vmatpush1.msra.mxu0 0.0
    %3412 = vmatprep.subr.mxu0 0.0
    %3413 = vmatpush1.msra.mxu0 0.0
    %3414 = vmatprep.subr.mxu0 0.0
    %3415 = vmatpush1.msra.mxu0 0.0
    %3416 = vmatprep.subr.mxu0 0.0
    %3417 = vmatpush1.msra.mxu0 0.0
    %3418 = vmatprep.subr.mxu0 0.0
    %3419 = vmatpush1.msra.mxu0 0.0
    %3420 = vmatprep.subr.mxu0 0.0
    %3421 = vmatpush1.msra.mxu0 0.0
    %3422 = vmatprep.subr.mxu0 0.0
    %3423 = vmatpush1.msra.mxu0 0.0
    %3424 = vmatprep.subr.mxu0 0.0
    %3425 = vmatpush1.msra.mxu0 0.0
    %3426 = vmatprep.subr.mxu0 0.0
    %3427 = vmatpush1.msra.mxu0 0.0
    %3428 = vmatprep.mubr.f32.mxu0 0.0
    %3429 = vmatmul.mubr.f32.gmra.mrb[0].mxu0 %v3347
    %v3430 = vpop.f32.mrb[0].mxu0
    %v3431 = vadd.f32 %v3320, %v3430
    %v3432 = vpop.f32.mrb[0].mxu0
    %3433 = vdwg.mxu0
    %v3434 = vtanh.pop %v3431
    %v3435 = vld [vmem:[#allocation8] sm:$0xff]
    %v3436 = vld [vmem:[#allocation8 + $0x8] sm:$0xff]
    %v3437 = vld [vmem:[#allocation8 + $0x10] sm:$0xff]
    %v3438 = vld [vmem:[#allocation8 + $0x18] sm:$0xff]
    %v3439 = vld [vmem:[#allocation8 + $0x20] sm:$0xff]
    %v3440 = vld [vmem:[#allocation8 + $0x28] sm:$0xff]
    %v3441 = vld [vmem:[#allocation8 + $0x30] sm:$0xff]
    %v3442 = vld [vmem:[#allocation8 + $0x38] sm:$0xff]
    %v3443 = vld [vmem:[#allocation8 + $0x40] sm:$0xff]
    %v3444 = vld [vmem:[#allocation8 + $0x48] sm:$0xff]
    %v3445 = vld [vmem:[#allocation8 + $0x50] sm:$0xff]
    %v3446 = vld [vmem:[#allocation8 + $0x58] sm:$0xff]
    %v3447 = vld [vmem:[#allocation8 + $0x60] sm:$0xff]
    %v3448 = vld [vmem:[#allocation8 + $0x68] sm:$0xff]
    %v3449 = vld [vmem:[#allocation8 + $0x70] sm:$0xff]
    %v3450 = vld [vmem:[#allocation8 + $0x78] sm:$0xff]
    %v3451 = vld [vmem:[#allocation8 + $0x80] sm:$0xff]
    %v3452 = vld [vmem:[#allocation8 + $0x88] sm:$0xff]
    %v3453 = vld [vmem:[#allocation8 + $0x90] sm:$0xff]
    %v3454 = vld [vmem:[#allocation8 + $0x98] sm:$0xff]
    %v3455 = vld [vmem:[#allocation8 + $0xa0] sm:$0xff]
    %v3456 = vld [vmem:[#allocation8 + $0xa8] sm:$0xff]
    %v3457 = vld [vmem:[#allocation8 + $0xb0] sm:$0xff]
    %v3458 = vld [vmem:[#allocation8 + $0xb8] sm:$0xff]
    %v3459 = vld [vmem:[#allocation8 + $0xc0] sm:$0xff]
    %v3460 = vld [vmem:[#allocation8 + $0xc8] sm:$0xff]
    %v3461 = vld [vmem:[#allocation8 + $0xd0] sm:$0xff]
    %v3462 = vld [vmem:[#allocation8 + $0xd8] sm:$0xff]
    %v3463 = vld [vmem:[#allocation8 + $0xe0] sm:$0xff]
    %v3464 = vld [vmem:[#allocation8 + $0xe8] sm:$0xff]
    %v3465 = vld [vmem:[#allocation8 + $0xf0] sm:$0xff]
    %v3466 = vld [vmem:[#allocation8 + $0xf8] sm:$0xff]
    %3467 = vmatprep.subr.mxu0 %v3436
    %3468 = vmatpush1.msra.mxu0 %v3435
    %3469 = vmatprep.subr.mxu0 %v3438
    %3470 = vmatpush1.msra.mxu0 %v3437
    %3471 = vmatprep.subr.mxu0 %v3440
    %3472 = vmatpush1.msra.mxu0 %v3439
    %3473 = vmatprep.subr.mxu0 %v3442
    %3474 = vmatpush1.msra.mxu0 %v3441
    %3475 = vmatprep.subr.mxu0 %v3444
    %3476 = vmatpush1.msra.mxu0 %v3443
    %3477 = vmatprep.subr.mxu0 %v3446
    %3478 = vmatpush1.msra.mxu0 %v3445
    %3479 = vmatprep.subr.mxu0 %v3448
    %3480 = vmatpush1.msra.mxu0 %v3447
    %3481 = vmatprep.subr.mxu0 %v3450
    %3482 = vmatpush1.msra.mxu0 %v3449
    %3483 = vmatprep.subr.mxu0 %v3452
    %3484 = vmatpush1.msra.mxu0 %v3451
    %3485 = vmatprep.subr.mxu0 %v3454
    %3486 = vmatpush1.msra.mxu0 %v3453
    %3487 = vmatprep.subr.mxu0 %v3456
    %3488 = vmatpush1.msra.mxu0 %v3455
    %3489 = vmatprep.subr.mxu0 %v3458
    %3490 = vmatpush1.msra.mxu0 %v3457
    %3491 = vmatprep.subr.mxu0 %v3460
    %3492 = vmatpush1.msra.mxu0 %v3459
    %3493 = vmatprep.subr.mxu0 %v3462
    %3494 = vmatpush1.msra.mxu0 %v3461
    %3495 = vmatprep.subr.mxu0 %v3464
    %3496 = vmatpush1.msra.mxu0 %v3463
    %3497 = vmatprep.subr.mxu0 %v3466
    %3498 = vmatpush1.msra.mxu0 %v3465
    %3499 = vmatprep.subr.mxu0 0.0
    %3500 = vmatpush1.msra.mxu0 0.0
    %3501 = vmatprep.subr.mxu0 0.0
    %3502 = vmatpush1.msra.mxu0 0.0
    %3503 = vmatprep.subr.mxu0 0.0
    %3504 = vmatpush1.msra.mxu0 0.0
    %3505 = vmatprep.subr.mxu0 0.0
    %3506 = vmatpush1.msra.mxu0 0.0
    %3507 = vmatprep.subr.mxu0 0.0
    %3508 = vmatpush1.msra.mxu0 0.0
    %3509 = vmatprep.subr.mxu0 0.0
    %3510 = vmatpush1.msra.mxu0 0.0
    %3511 = vmatprep.subr.mxu0 0.0
    %3512 = vmatpush1.msra.mxu0 0.0
    %3513 = vmatprep.subr.mxu0 0.0
    %3514 = vmatpush1.msra.mxu0 0.0
    %3515 = vmatprep.subr.mxu0 0.0
    %3516 = vmatpush1.msra.mxu0 0.0
    %3517 = vmatprep.subr.mxu0 0.0
    %3518 = vmatpush1.msra.mxu0 0.0
    %3519 = vmatprep.subr.mxu0 0.0
    %3520 = vmatpush1.msra.mxu0 0.0
    %3521 = vmatprep.subr.mxu0 0.0
    %3522 = vmatpush1.msra.mxu0 0.0
    %3523 = vmatprep.subr.mxu0 0.0
    %3524 = vmatpush1.msra.mxu0 0.0
    %3525 = vmatprep.subr.mxu0 0.0
    %3526 = vmatpush1.msra.mxu0 0.0
    %3527 = vmatprep.subr.mxu0 0.0
    %3528 = vmatpush1.msra.mxu0 0.0
    %3529 = vmatprep.subr.mxu0 0.0
    %3530 = vmatpush1.msra.mxu0 0.0
    %3531 = vmatprep.mubr.f32.mxu0 0.0
    %3532 = vmatmul.mubr.f32.gmra.mrb[0].mxu0 %v3434
    %v3533 = vpop.f32.mrb[0].mxu0
    %v3534 = vadd.f32 0.0, %v3533
    %v3535 = vpop.f32.mrb[0].mxu0
    %v3536 = vadd.f32 0.0, %v3535
    %3537 = vdwg.mxu0
    %v3538 = vadd.f32 %v3536, %v688
    %s3539 = scalar_lea.vmem [#allocation10], 96
    %3540 = vst [vmem:[%s3539] sm:$0xff] %v3538
    %3541 = vmax.xlane.f32.xlu0 %v3538
    %v3542 = vpop.xlane.xlu0 %3541
    %vm3543 = vcmp.eq.f32.partialorder %v3538, %v3542
    %v3544 = vsel %vm3543, %v691, 128
    %v3545 = vand.u32 %v3544, 65535
    %v3546 = vshra.s32 %v3544, 16
    %v3547 = vcvt.s32.f32 %v3545
    %v3548 = vcvt.s32.f32 %v3546
    %3549 = vmin.xlane.f32.xlu0 %v3548
    %v3550 = vpop.xlane.xlu0 %3549
    %vm3551 = vcmp.eq.f32.partialorder %v3548, %v3550
    %v3552 = vsel %vm3551, %v3547, inf
    %3553 = vmin.xlane.f32.xlu0 %v3552
    %v3554 = vpop.xlane.xlu0 %3553
    %v3555 = vcvt.f32.s32 %v3554
    %v3556 = vcvt.f32.s32 %v3550
    %v3557 = vshll.u32 %v3556, 16
    %v3558 = vadd.s32 %v3557, %v3555
    %vm3559 = vcmp.eq.s32.totalorder %v691, %v3558
    %v3560 = vsel %vm3559, 1, 0
    %v3561 = vcvt.s32.f32 %v3560
    %v3562 = vld [vmem:[#allocation7] sm:$0xff]
    %v3563 = vld [vmem:[#allocation7 + $0x8] sm:$0xff]
    %v3564 = vld [vmem:[#allocation7 + $0x10] sm:$0xff]
    %v3565 = vld [vmem:[#allocation7 + $0x18] sm:$0xff]
    %v3566 = vld [vmem:[#allocation7 + $0x20] sm:$0xff]
    %v3567 = vld [vmem:[#allocation7 + $0x28] sm:$0xff]
    %v3568 = vld [vmem:[#allocation7 + $0x30] sm:$0xff]
    %v3569 = vld [vmem:[#allocation7 + $0x38] sm:$0xff]
    %v3570 = vld [vmem:[#allocation7 + $0x40] sm:$0xff]
    %v3571 = vld [vmem:[#allocation7 + $0x48] sm:$0xff]
    %v3572 = vld [vmem:[#allocation7 + $0x50] sm:$0xff]
    %v3573 = vld [vmem:[#allocation7 + $0x58] sm:$0xff]
    %v3574 = vld [vmem:[#allocation7 + $0x60] sm:$0xff]
    %v3575 = vld [vmem:[#allocation7 + $0x68] sm:$0xff]
    %v3576 = vld [vmem:[#allocation7 + $0x70] sm:$0xff]
    %v3577 = vld [vmem:[#allocation7 + $0x78] sm:$0xff]
    %3578 = vmatprep.subr.mxu0 0.0
    %3579 = vmatpush1.msra.mxu0 %v3562
    %3580 = vmatprep.subr.mxu0 0.0
    %3581 = vmatpush1.msra.mxu0 %v3563
    %3582 = vmatprep.subr.mxu0 0.0
    %3583 = vmatpush1.msra.mxu0 %v3564
    %3584 = vmatprep.subr.mxu0 0.0
    %3585 = vmatpush1.msra.mxu0 %v3565
    %3586 = vmatprep.subr.mxu0 0.0
    %3587 = vmatpush1.msra.mxu0 %v3566
    %3588 = vmatprep.subr.mxu0 0.0
    %3589 = vmatpush1.msra.mxu0 %v3567
    %3590 = vmatprep.subr.mxu0 0.0
    %3591 = vmatpush1.msra.mxu0 %v3568
    %3592 = vmatprep.subr.mxu0 0.0
    %3593 = vmatpush1.msra.mxu0 %v3569
    %3594 = vmatprep.subr.mxu0 0.0
    %3595 = vmatpush1.msra.mxu0 %v3570
    %3596 = vmatprep.subr.mxu0 0.0
    %3597 = vmatpush1.msra.mxu0 %v3571
    %3598 = vmatprep.subr.mxu0 0.0
    %3599 = vmatpush1.msra.mxu0 %v3572
    %3600 = vmatprep.subr.mxu0 0.0
    %3601 = vmatpush1.msra.mxu0 %v3573
    %3602 = vmatprep.subr.mxu0 0.0
    %3603 = vmatpush1.msra.mxu0 %v3574
    %3604 = vmatprep.subr.mxu0 0.0
    %3605 = vmatpush1.msra.mxu0 %v3575
    %3606 = vmatprep.subr.mxu0 0.0
    %3607 = vmatpush1.msra.mxu0 %v3576
    %3608 = vmatprep.subr.mxu0 0.0
    %3609 = vmatpush1.msra.mxu0 %v3577
    %3610 = vmatprep.subr.mxu0 0.0
    %3611 = vmatpush1.msra.mxu0 0.0
    %3612 = vmatprep.subr.mxu0 0.0
    %3613 = vmatpush1.msra.mxu0 0.0
    %3614 = vmatprep.subr.mxu0 0.0
    %3615 = vmatpush1.msra.mxu0 0.0
    %3616 = vmatprep.subr.mxu0 0.0
    %3617 = vmatpush1.msra.mxu0 0.0
    %3618 = vmatprep.subr.mxu0 0.0
    %3619 = vmatpush1.msra.mxu0 0.0
    %3620 = vmatprep.subr.mxu0 0.0
    %3621 = vmatpush1.msra.mxu0 0.0
    %3622 = vmatprep.subr.mxu0 0.0
    %3623 = vmatpush1.msra.mxu0 0.0
    %3624 = vmatprep.subr.mxu0 0.0
    %3625 = vmatpush1.msra.mxu0 0.0
    %3626 = vmatprep.subr.mxu0 0.0
    %3627 = vmatpush1.msra.mxu0 0.0
    %3628 = vmatprep.subr.mxu0 0.0
    %3629 = vmatpush1.msra.mxu0 0.0
    %3630 = vmatprep.subr.mxu0 0.0
    %3631 = vmatpush1.msra.mxu0 0.0
    %3632 = vmatprep.subr.mxu0 0.0
    %3633 = vmatpush1.msra.mxu0 0.0
    %3634 = vmatprep.subr.mxu0 0.0
    %3635 = vmatpush1.msra.mxu0 0.0
    %3636 = vmatprep.subr.mxu0 0.0
    %3637 = vmatpush1.msra.mxu0 0.0
    %3638 = vmatprep.subr.mxu0 0.0
    %3639 = vmatpush1.msra.mxu0 0.0
    %3640 = vmatprep.subr.mxu0 0.0
    %3641 = vmatpush1.msra.mxu0 0.0
    %3642 = vmatprep.mubr.f32.mxu0 0.0
    %3643 = vmatmul.mubr.f32.gmra.mrb[0].mxu0 %v3561
    %v3644 = vpop.f32.mrb[0].mxu0
    %v3645 = vadd.f32 %v3534, %v3644
    %v3646 = vpop.f32.mrb[0].mxu0
    %3647 = vdwg.mxu0
    %v3648 = vtanh.pop %v3645
    %v3649 = vld [vmem:[#allocation8] sm:$0xff]
    %v3650 = vld [vmem:[#allocation8 + $0x8] sm:$0xff]
    %v3651 = vld [vmem:[#allocation8 + $0x10] sm:$0xff]
    %v3652 = vld [vmem:[#allocation8 + $0x18] sm:$0xff]
    %v3653 = vld [vmem:[#allocation8 + $0x20] sm:$0xff]
    %v3654 = vld [vmem:[#allocation8 + $0x28] sm:$0xff]
    %v3655 = vld [vmem:[#allocation8 + $0x30] sm:$0xff]
    %v3656 = vld [vmem:[#allocation8 + $0x38] sm:$0xff]
    %v3657 = vld [vmem:[#allocation8 + $0x40] sm:$0xff]
    %v3658 = vld [vmem:[#allocation8 + $0x48] sm:$0xff]
    %v3659 = vld [vmem:[#allocation8 + $0x50] sm:$0xff]
    %v3660 = vld [vmem:[#allocation8 + $0x58] sm:$0xff]
    %v3661 = vld [vmem:[#allocation8 + $0x60] sm:$0xff]
    %v3662 = vld [vmem:[#allocation8 + $0x68] sm:$0xff]
    %v3663 = vld [vmem:[#allocation8 + $0x70] sm:$0xff]
    %v3664 = vld [vmem:[#allocation8 + $0x78] sm:$0xff]
    %v3665 = vld [vmem:[#allocation8 + $0x80] sm:$0xff]
    %v3666 = vld [vmem:[#allocation8 + $0x88] sm:$0xff]
    %v3667 = vld [vmem:[#allocation8 + $0x90] sm:$0xff]
    %v3668 = vld [vmem:[#allocation8 + $0x98] sm:$0xff]
    %v3669 = vld [vmem:[#allocation8 + $0xa0] sm:$0xff]
    %v3670 = vld [vmem:[#allocation8 + $0xa8] sm:$0xff]
    %v3671 = vld [vmem:[#allocation8 + $0xb0] sm:$0xff]
    %v3672 = vld [vmem:[#allocation8 + $0xb8] sm:$0xff]
    %v3673 = vld [vmem:[#allocation8 + $0xc0] sm:$0xff]
    %v3674 = vld [vmem:[#allocation8 + $0xc8] sm:$0xff]
    %v3675 = vld [vmem:[#allocation8 + $0xd0] sm:$0xff]
    %v3676 = vld [vmem:[#allocation8 + $0xd8] sm:$0xff]
    %v3677 = vld [vmem:[#allocation8 + $0xe0] sm:$0xff]
    %v3678 = vld [vmem:[#allocation8 + $0xe8] sm:$0xff]
    %v3679 = vld [vmem:[#allocation8 + $0xf0] sm:$0xff]
    %v3680 = vld [vmem:[#allocation8 + $0xf8] sm:$0xff]
    %3681 = vmatprep.subr.mxu0 %v3650
    %3682 = vmatpush1.msra.mxu0 %v3649
    %3683 = vmatprep.subr.mxu0 %v3652
    %3684 = vmatpush1.msra.mxu0 %v3651
    %3685 = vmatprep.subr.mxu0 %v3654
    %3686 = vmatpush1.msra.mxu0 %v3653
    %3687 = vmatprep.subr.mxu0 %v3656
    %3688 = vmatpush1.msra.mxu0 %v3655
    %3689 = vmatprep.subr.mxu0 %v3658
    %3690 = vmatpush1.msra.mxu0 %v3657
    %3691 = vmatprep.subr.mxu0 %v3660
    %3692 = vmatpush1.msra.mxu0 %v3659
    %3693 = vmatprep.subr.mxu0 %v3662
    %3694 = vmatpush1.msra.mxu0 %v3661
    %3695 = vmatprep.subr.mxu0 %v3664
    %3696 = vmatpush1.msra.mxu0 %v3663
    %3697 = vmatprep.subr.mxu0 %v3666
    %3698 = vmatpush1.msra.mxu0 %v3665
    %3699 = vmatprep.subr.mxu0 %v3668
    %3700 = vmatpush1.msra.mxu0 %v3667
    %3701 = vmatprep.subr.mxu0 %v3670
    %3702 = vmatpush1.msra.mxu0 %v3669
    %3703 = vmatprep.subr.mxu0 %v3672
    %3704 = vmatpush1.msra.mxu0 %v3671
    %3705 = vmatprep.subr.mxu0 %v3674
    %3706 = vmatpush1.msra.mxu0 %v3673
    %3707 = vmatprep.subr.mxu0 %v3676
    %3708 = vmatpush1.msra.mxu0 %v3675
    %3709 = vmatprep.subr.mxu0 %v3678
    %3710 = vmatpush1.msra.mxu0 %v3677
    %3711 = vmatprep.subr.mxu0 %v3680
    %3712 = vmatpush1.msra.mxu0 %v3679
    %3713 = vmatprep.subr.mxu0 0.0
    %3714 = vmatpush1.msra.mxu0 0.0
    %3715 = vmatprep.subr.mxu0 0.0
    %3716 = vmatpush1.msra.mxu0 0.0
    %3717 = vmatprep.subr.mxu0 0.0
    %3718 = vmatpush1.msra.mxu0 0.0
    %3719 = vmatprep.subr.mxu0 0.0
    %3720 = vmatpush1.msra.mxu0 0.0
    %3721 = vmatprep.subr.mxu0 0.0
    %3722 = vmatpush1.msra.mxu0 0.0
    %3723 = vmatprep.subr.mxu0 0.0
    %3724 = vmatpush1.msra.mxu0 0.0
    %3725 = vmatprep.subr.mxu0 0.0
    %3726 = vmatpush1.msra.mxu0 0.0
    %3727 = vmatprep.subr.mxu0 0.0
    %3728 = vmatpush1.msra.mxu0 0.0
    %3729 = vmatprep.subr.mxu0 0.0
    %3730 = vmatpush1.msra.mxu0 0.0
    %3731 = vmatprep.subr.mxu0 0.0
    %3732 = vmatpush1.msra.mxu0 0.0
    %3733 = vmatprep.subr.mxu0 0.0
    %3734 = vmatpush1.msra.mxu0 0.0
    %3735 = vmatprep.subr.mxu0 0.0
    %3736 = vmatpush1.msra.mxu0 0.0
    %3737 = vmatprep.subr.mxu0 0.0
    %3738 = vmatpush1.msra.mxu0 0.0
    %3739 = vmatprep.subr.mxu0 0.0
    %3740 = vmatpush1.msra.mxu0 0.0
    %3741 = vmatprep.subr.mxu0 0.0
    %3742 = vmatpush1.msra.mxu0 0.0
    %3743 = vmatprep.subr.mxu0 0.0
    %3744 = vmatpush1.msra.mxu0 0.0
    %3745 = vmatprep.mubr.f32.mxu0 0.0
    %3746 = vmatmul.mubr.f32.gmra.mrb[0].mxu0 %v3648
    %v3747 = vpop.f32.mrb[0].mxu0
    %v3748 = vadd.f32 0.0, %v3747
    %v3749 = vpop.f32.mrb[0].mxu0
    %v3750 = vadd.f32 0.0, %v3749
    %3751 = vdwg.mxu0
    %v3752 = vadd.f32 %v3750, %v688
    %s3753 = scalar_lea.vmem [#allocation10], 104
    %3754 = vst [vmem:[%s3753] sm:$0xff] %v3752
    %3755 = vmax.xlane.f32.xlu0 %v3752
    %v3756 = vpop.xlane.xlu0 %3755
    %vm3757 = vcmp.eq.f32.partialorder %v3752, %v3756
    %v3758 = vsel %vm3757, %v691, 128
    %v3759 = vand.u32 %v3758, 65535
    %v3760 = vshra.s32 %v3758, 16
    %v3761 = vcvt.s32.f32 %v3759
    %v3762 = vcvt.s32.f32 %v3760
    %3763 = vmin.xlane.f32.xlu0 %v3762
    %v3764 = vpop.xlane.xlu0 %3763
    %vm3765 = vcmp.eq.f32.partialorder %v3762, %v3764
    %v3766 = vsel %vm3765, %v3761, inf
    %3767 = vmin.xlane.f32.xlu0 %v3766
    %v3768 = vpop.xlane.xlu0 %3767
    %v3769 = vcvt.f32.s32 %v3768
    %v3770 = vcvt.f32.s32 %v3764
    %v3771 = vshll.u32 %v3770, 16
    %v3772 = vadd.s32 %v3771, %v3769
    %vm3773 = vcmp.eq.s32.totalorder %v691, %v3772
    %v3774 = vsel %vm3773, 1, 0
    %v3775 = vcvt.s32.f32 %v3774
    %v3776 = vld [vmem:[#allocation7] sm:$0xff]
    %v3777 = vld [vmem:[#allocation7 + $0x8] sm:$0xff]
    %v3778 = vld [vmem:[#allocation7 + $0x10] sm:$0xff]
    %v3779 = vld [vmem:[#allocation7 + $0x18] sm:$0xff]
    %v3780 = vld [vmem:[#allocation7 + $0x20] sm:$0xff]
    %v3781 = vld [vmem:[#allocation7 + $0x28] sm:$0xff]
    %v3782 = vld [vmem:[#allocation7 + $0x30] sm:$0xff]
    %v3783 = vld [vmem:[#allocation7 + $0x38] sm:$0xff]
    %v3784 = vld [vmem:[#allocation7 + $0x40] sm:$0xff]
    %v3785 = vld [vmem:[#allocation7 + $0x48] sm:$0xff]
    %v3786 = vld [vmem:[#allocation7 + $0x50] sm:$0xff]
    %v3787 = vld [vmem:[#allocation7 + $0x58] sm:$0xff]
    %v3788 = vld [vmem:[#allocation7 + $0x60] sm:$0xff]
    %v3789 = vld [vmem:[#allocation7 + $0x68] sm:$0xff]
    %v3790 = vld [vmem:[#allocation7 + $0x70] sm:$0xff]
    %v3791 = vld [vmem:[#allocation7 + $0x78] sm:$0xff]
    %3792 = vmatprep.subr.mxu0 0.0
    %3793 = vmatpush1.msra.mxu0 %v3776
    %3794 = vmatprep.subr.mxu0 0.0
    %3795 = vmatpush1.msra.mxu0 %v3777
    %3796 = vmatprep.subr.mxu0 0.0
    %3797 = vmatpush1.msra.mxu0 %v3778
    %3798 = vmatprep.subr.mxu0 0.0
    %3799 = vmatpush1.msra.mxu0 %v3779
    %3800 = vmatprep.subr.mxu0 0.0
    %3801 = vmatpush1.msra.mxu0 %v3780
    %3802 = vmatprep.subr.mxu0 0.0
    %3803 = vmatpush1.msra.mxu0 %v3781
    %3804 = vmatprep.subr.mxu0 0.0
    %3805 = vmatpush1.msra.mxu0 %v3782
    %3806 = vmatprep.subr.mxu0 0.0
    %3807 = vmatpush1.msra.mxu0 %v3783
    %3808 = vmatprep.subr.mxu0 0.0
    %3809 = vmatpush1.msra.mxu0 %v3784
    %3810 = vmatprep.subr.mxu0 0.0
    %3811 = vmatpush1.msra.mxu0 %v3785
    %3812 = vmatprep.subr.mxu0 0.0
    %3813 = vmatpush1.msra.mxu0 %v3786
    %3814 = vmatprep.subr.mxu0 0.0
    %3815 = vmatpush1.msra.mxu0 %v3787
    %3816 = vmatprep.subr.mxu0 0.0
    %3817 = vmatpush1.msra.mxu0 %v3788
    %3818 = vmatprep.subr.mxu0 0.0
    %3819 = vmatpush1.msra.mxu0 %v3789
    %3820 = vmatprep.subr.mxu0 0.0
    %3821 = vmatpush1.msra.mxu0 %v3790
    %3822 = vmatprep.subr.mxu0 0.0
    %3823 = vmatpush1.msra.mxu0 %v3791
    %3824 = vmatprep.subr.mxu0 0.0
    %3825 = vmatpush1.msra.mxu0 0.0
    %3826 = vmatprep.subr.mxu0 0.0
    %3827 = vmatpush1.msra.mxu0 0.0
    %3828 = vmatprep.subr.mxu0 0.0
    %3829 = vmatpush1.msra.mxu0 0.0
    %3830 = vmatprep.subr.mxu0 0.0
    %3831 = vmatpush1.msra.mxu0 0.0
    %3832 = vmatprep.subr.mxu0 0.0
    %3833 = vmatpush1.msra.mxu0 0.0
    %3834 = vmatprep.subr.mxu0 0.0
    %3835 = vmatpush1.msra.mxu0 0.0
    %3836 = vmatprep.subr.mxu0 0.0
    %3837 = vmatpush1.msra.mxu0 0.0
    %3838 = vmatprep.subr.mxu0 0.0
    %3839 = vmatpush1.msra.mxu0 0.0
    %3840 = vmatprep.subr.mxu0 0.0
    %3841 = vmatpush1.msra.mxu0 0.0
    %3842 = vmatprep.subr.mxu0 0.0
    %3843 = vmatpush1.msra.mxu0 0.0
    %3844 = vmatprep.subr.mxu0 0.0
    %3845 = vmatpush1.msra.mxu0 0.0
    %3846 = vmatprep.subr.mxu0 0.0
    %3847 = vmatpush1.msra.mxu0 0.0
    %3848 = vmatprep.subr.mxu0 0.0
    %3849 = vmatpush1.msra.mxu0 0.0
    %3850 = vmatprep.subr.mxu0 0.0
    %3851 = vmatpush1.msra.mxu0 0.0
    %3852 = vmatprep.subr.mxu0 0.0
    %3853 = vmatpush1.msra.mxu0 0.0
    %3854 = vmatprep.subr.mxu0 0.0
    %3855 = vmatpush1.msra.mxu0 0.0
    %3856 = vmatprep.mubr.f32.mxu0 0.0
    %3857 = vmatmul.mubr.f32.gmra.mrb[0].mxu0 %v3775
    %v3858 = vpop.f32.mrb[0].mxu0
    %v3859 = vadd.f32 %v3748, %v3858
    %v3860 = vpop.f32.mrb[0].mxu0
    %3861 = vdwg.mxu0
    %v3862 = vtanh.pop %v3859
    %v3863 = vld [vmem:[#allocation8] sm:$0xff]
    %v3864 = vld [vmem:[#allocation8 + $0x8] sm:$0xff]
    %v3865 = vld [vmem:[#allocation8 + $0x10] sm:$0xff]
    %v3866 = vld [vmem:[#allocation8 + $0x18] sm:$0xff]
    %v3867 = vld [vmem:[#allocation8 + $0x20] sm:$0xff]
    %v3868 = vld [vmem:[#allocation8 + $0x28] sm:$0xff]
    %v3869 = vld [vmem:[#allocation8 + $0x30] sm:$0xff]
    %v3870 = vld [vmem:[#allocation8 + $0x38] sm:$0xff]
    %v3871 = vld [vmem:[#allocation8 + $0x40] sm:$0xff]
    %v3872 = vld [vmem:[#allocation8 + $0x48] sm:$0xff]
    %v3873 = vld [vmem:[#allocation8 + $0x50] sm:$0xff]
    %v3874 = vld [vmem:[#allocation8 + $0x58] sm:$0xff]
    %v3875 = vld [vmem:[#allocation8 + $0x60] sm:$0xff]
    %v3876 = vld [vmem:[#allocation8 + $0x68] sm:$0xff]
    %v3877 = vld [vmem:[#allocation8 + $0x70] sm:$0xff]
    %v3878 = vld [vmem:[#allocation8 + $0x78] sm:$0xff]
    %v3879 = vld [vmem:[#allocation8 + $0x80] sm:$0xff]
    %v3880 = vld [vmem:[#allocation8 + $0x88] sm:$0xff]
    %v3881 = vld [vmem:[#allocation8 + $0x90] sm:$0xff]
    %v3882 = vld [vmem:[#allocation8 + $0x98] sm:$0xff]
    %v3883 = vld [vmem:[#allocation8 + $0xa0] sm:$0xff]
    %v3884 = vld [vmem:[#allocation8 + $0xa8] sm:$0xff]
    %v3885 = vld [vmem:[#allocation8 + $0xb0] sm:$0xff]
    %v3886 = vld [vmem:[#allocation8 + $0xb8] sm:$0xff]
    %v3887 = vld [vmem:[#allocation8 + $0xc0] sm:$0xff]
    %v3888 = vld [vmem:[#allocation8 + $0xc8] sm:$0xff]
    %v3889 = vld [vmem:[#allocation8 + $0xd0] sm:$0xff]
    %v3890 = vld [vmem:[#allocation8 + $0xd8] sm:$0xff]
    %v3891 = vld [vmem:[#allocation8 + $0xe0] sm:$0xff]
    %v3892 = vld [vmem:[#allocation8 + $0xe8] sm:$0xff]
    %v3893 = vld [vmem:[#allocation8 + $0xf0] sm:$0xff]
    %v3894 = vld [vmem:[#allocation8 + $0xf8] sm:$0xff]
    %3895 = vmatprep.subr.mxu0 %v3864
    %3896 = vmatpush1.msra.mxu0 %v3863
    %3897 = vmatprep.subr.mxu0 %v3866
    %3898 = vmatpush1.msra.mxu0 %v3865
    %3899 = vmatprep.subr.mxu0 %v3868
    %3900 = vmatpush1.msra.mxu0 %v3867
    %3901 = vmatprep.subr.mxu0 %v3870
    %3902 = vmatpush1.msra.mxu0 %v3869
    %3903 = vmatprep.subr.mxu0 %v3872
    %3904 = vmatpush1.msra.mxu0 %v3871
    %3905 = vmatprep.subr.mxu0 %v3874
    %3906 = vmatpush1.msra.mxu0 %v3873
    %3907 = vmatprep.subr.mxu0 %v3876
    %3908 = vmatpush1.msra.mxu0 %v3875
    %3909 = vmatprep.subr.mxu0 %v3878
    %3910 = vmatpush1.msra.mxu0 %v3877
    %3911 = vmatprep.subr.mxu0 %v3880
    %3912 = vmatpush1.msra.mxu0 %v3879
    %3913 = vmatprep.subr.mxu0 %v3882
    %3914 = vmatpush1.msra.mxu0 %v3881
    %3915 = vmatprep.subr.mxu0 %v3884
    %3916 = vmatpush1.msra.mxu0 %v3883
    %3917 = vmatprep.subr.mxu0 %v3886
    %3918 = vmatpush1.msra.mxu0 %v3885
    %3919 = vmatprep.subr.mxu0 %v3888
    %3920 = vmatpush1.msra.mxu0 %v3887
    %3921 = vmatprep.subr.mxu0 %v3890
    %3922 = vmatpush1.msra.mxu0 %v3889
    %3923 = vmatprep.subr.mxu0 %v3892
    %3924 = vmatpush1.msra.mxu0 %v3891
    %3925 = vmatprep.subr.mxu0 %v3894
    %3926 = vmatpush1.msra.mxu0 %v3893
    %3927 = vmatprep.subr.mxu0 0.0
    %3928 = vmatpush1.msra.mxu0 0.0
    %3929 = vmatprep.subr.mxu0 0.0
    %3930 = vmatpush1.msra.mxu0 0.0
    %3931 = vmatprep.subr.mxu0 0.0
    %3932 = vmatpush1.msra.mxu0 0.0
    %3933 = vmatprep.subr.mxu0 0.0
    %3934 = vmatpush1.msra.mxu0 0.0
    %3935 = vmatprep.subr.mxu0 0.0
    %3936 = vmatpush1.msra.mxu0 0.0
    %3937 = vmatprep.subr.mxu0 0.0
    %3938 = vmatpush1.msra.mxu0 0.0
    %3939 = vmatprep.subr.mxu0 0.0
    %3940 = vmatpush1.msra.mxu0 0.0
    %3941 = vmatprep.subr.mxu0 0.0
    %3942 = vmatpush1.msra.mxu0 0.0
    %3943 = vmatprep.subr.mxu0 0.0
    %3944 = vmatpush1.msra.mxu0 0.0
    %3945 = vmatprep.subr.mxu0 0.0
    %3946 = vmatpush1.msra.mxu0 0.0
    %3947 = vmatprep.subr.mxu0 0.0
    %3948 = vmatpush1.msra.mxu0 0.0
    %3949 = vmatprep.subr.mxu0 0.0
    %3950 = vmatpush1.msra.mxu0 0.0
    %3951 = vmatprep.subr.mxu0 0.0
    %3952 = vmatpush1.msra.mxu0 0.0
    %3953 = vmatprep.subr.mxu0 0.0
    %3954 = vmatpush1.msra.mxu0 0.0
    %3955 = vmatprep.subr.mxu0 0.0
    %3956 = vmatpush1.msra.mxu0 0.0
    %3957 = vmatprep.subr.mxu0 0.0
    %3958 = vmatpush1.msra.mxu0 0.0
    %3959 = vmatprep.mubr.f32.mxu0 0.0
    %3960 = vmatmul.mubr.f32.gmra.mrb[0].mxu0 %v3862
    %v3961 = vpop.f32.mrb[0].mxu0
    %v3962 = vadd.f32 0.0, %v3961
    %v3963 = vpop.f32.mrb[0].mxu0
    %v3964 = vadd.f32 0.0, %v3963
    %3965 = vdwg.mxu0
    %v3966 = vadd.f32 %v3964, %v688
    %s3967 = scalar_lea.vmem [#allocation10], 112
    %3968 = vst [vmem:[%s3967] sm:$0xff] %v3966
    %3969 = vmax.xlane.f32.xlu0 %v3966
    %v3970 = vpop.xlane.xlu0 %3969
    %vm3971 = vcmp.eq.f32.partialorder %v3966, %v3970
    %v3972 = vsel %vm3971, %v691, 128
    %v3973 = vand.u32 %v3972, 65535
    %v3974 = vshra.s32 %v3972, 16
    %v3975 = vcvt.s32.f32 %v3973
    %v3976 = vcvt.s32.f32 %v3974
    %3977 = vmin.xlane.f32.xlu0 %v3976
    %v3978 = vpop.xlane.xlu0 %3977
    %vm3979 = vcmp.eq.f32.partialorder %v3976, %v3978
    %v3980 = vsel %vm3979, %v3975, inf
    %3981 = vmin.xlane.f32.xlu0 %v3980
    %v3982 = vpop.xlane.xlu0 %3981
    %v3983 = vcvt.f32.s32 %v3982
    %v3984 = vcvt.f32.s32 %v3978
    %v3985 = vshll.u32 %v3984, 16
    %v3986 = vadd.s32 %v3985, %v3983
    %vm3987 = vcmp.eq.s32.totalorder %v691, %v3986
    %v3988 = vsel %vm3987, 1, 0
    %v3989 = vcvt.s32.f32 %v3988
    %v3990 = vld [vmem:[#allocation7] sm:$0xff]
    %v3991 = vld [vmem:[#allocation7 + $0x8] sm:$0xff]
    %v3992 = vld [vmem:[#allocation7 + $0x10] sm:$0xff]
    %v3993 = vld [vmem:[#allocation7 + $0x18] sm:$0xff]
    %v3994 = vld [vmem:[#allocation7 + $0x20] sm:$0xff]
    %v3995 = vld [vmem:[#allocation7 + $0x28] sm:$0xff]
    %v3996 = vld [vmem:[#allocation7 + $0x30] sm:$0xff]
    %v3997 = vld [vmem:[#allocation7 + $0x38] sm:$0xff]
    %v3998 = vld [vmem:[#allocation7 + $0x40] sm:$0xff]
    %v3999 = vld [vmem:[#allocation7 + $0x48] sm:$0xff]
    %v4000 = vld [vmem:[#allocation7 + $0x50] sm:$0xff]
    %v4001 = vld [vmem:[#allocation7 + $0x58] sm:$0xff]
    %v4002 = vld [vmem:[#allocation7 + $0x60] sm:$0xff]
    %v4003 = vld [vmem:[#allocation7 + $0x68] sm:$0xff]
    %v4004 = vld [vmem:[#allocation7 + $0x70] sm:$0xff]
    %v4005 = vld [vmem:[#allocation7 + $0x78] sm:$0xff]
    %4006 = vmatprep.subr.mxu0 0.0
    %4007 = vmatpush1.msra.mxu0 %v3990
    %4008 = vmatprep.subr.mxu0 0.0
    %4009 = vmatpush1.msra.mxu0 %v3991
    %4010 = vmatprep.subr.mxu0 0.0
    %4011 = vmatpush1.msra.mxu0 %v3992
    %4012 = vmatprep.subr.mxu0 0.0
    %4013 = vmatpush1.msra.mxu0 %v3993
    %4014 = vmatprep.subr.mxu0 0.0
    %4015 = vmatpush1.msra.mxu0 %v3994
    %4016 = vmatprep.subr.mxu0 0.0
    %4017 = vmatpush1.msra.mxu0 %v3995
    %4018 = vmatprep.subr.mxu0 0.0
    %4019 = vmatpush1.msra.mxu0 %v3996
    %4020 = vmatprep.subr.mxu0 0.0
    %4021 = vmatpush1.msra.mxu0 %v3997
    %4022 = vmatprep.subr.mxu0 0.0
    %4023 = vmatpush1.msra.mxu0 %v3998
    %4024 = vmatprep.subr.mxu0 0.0
    %4025 = vmatpush1.msra.mxu0 %v3999
    %4026 = vmatprep.subr.mxu0 0.0
    %4027 = vmatpush1.msra.mxu0 %v4000
    %4028 = vmatprep.subr.mxu0 0.0
    %4029 = vmatpush1.msra.mxu0 %v4001
    %4030 = vmatprep.subr.mxu0 0.0
    %4031 = vmatpush1.msra.mxu0 %v4002
    %4032 = vmatprep.subr.mxu0 0.0
    %4033 = vmatpush1.msra.mxu0 %v4003
    %4034 = vmatprep.subr.mxu0 0.0
    %4035 = vmatpush1.msra.mxu0 %v4004
    %4036 = vmatprep.subr.mxu0 0.0
    %4037 = vmatpush1.msra.mxu0 %v4005
    %4038 = vmatprep.subr.mxu0 0.0
    %4039 = vmatpush1.msra.mxu0 0.0
    %4040 = vmatprep.subr.mxu0 0.0
    %4041 = vmatpush1.msra.mxu0 0.0
    %4042 = vmatprep.subr.mxu0 0.0
    %4043 = vmatpush1.msra.mxu0 0.0
    %4044 = vmatprep.subr.mxu0 0.0
    %4045 = vmatpush1.msra.mxu0 0.0
    %4046 = vmatprep.subr.mxu0 0.0
    %4047 = vmatpush1.msra.mxu0 0.0
    %4048 = vmatprep.subr.mxu0 0.0
    %4049 = vmatpush1.msra.mxu0 0.0
    %4050 = vmatprep.subr.mxu0 0.0
    %4051 = vmatpush1.msra.mxu0 0.0
    %4052 = vmatprep.subr.mxu0 0.0
    %4053 = vmatpush1.msra.mxu0 0.0
    %4054 = vmatprep.subr.mxu0 0.0
    %4055 = vmatpush1.msra.mxu0 0.0
    %4056 = vmatprep.subr.mxu0 0.0
    %4057 = vmatpush1.msra.mxu0 0.0
    %4058 = vmatprep.subr.mxu0 0.0
    %4059 = vmatpush1.msra.mxu0 0.0
    %4060 = vmatprep.subr.mxu0 0.0
    %4061 = vmatpush1.msra.mxu0 0.0
    %4062 = vmatprep.subr.mxu0 0.0
    %4063 = vmatpush1.msra.mxu0 0.0
    %4064 = vmatprep.subr.mxu0 0.0
    %4065 = vmatpush1.msra.mxu0 0.0
    %4066 = vmatprep.subr.mxu0 0.0
    %4067 = vmatpush1.msra.mxu0 0.0
    %4068 = vmatprep.subr.mxu0 0.0
    %4069 = vmatpush1.msra.mxu0 0.0
    %4070 = vmatprep.mubr.f32.mxu0 0.0
    %4071 = vmatmul.mubr.f32.gmra.mrb[0].mxu0 %v3989
    %v4072 = vpop.f32.mrb[0].mxu0
    %v4073 = vadd.f32 %v3962, %v4072
    %v4074 = vpop.f32.mrb[0].mxu0
    %4075 = vdwg.mxu0
    %v4076 = vtanh.pop %v4073
    %v4077 = vld [vmem:[#allocation8] sm:$0xff]
    %v4078 = vld [vmem:[#allocation8 + $0x8] sm:$0xff]
    %v4079 = vld [vmem:[#allocation8 + $0x10] sm:$0xff]
    %v4080 = vld [vmem:[#allocation8 + $0x18] sm:$0xff]
    %v4081 = vld [vmem:[#allocation8 + $0x20] sm:$0xff]
    %v4082 = vld [vmem:[#allocation8 + $0x28] sm:$0xff]
    %v4083 = vld [vmem:[#allocation8 + $0x30] sm:$0xff]
    %v4084 = vld [vmem:[#allocation8 + $0x38] sm:$0xff]
    %v4085 = vld [vmem:[#allocation8 + $0x40] sm:$0xff]
    %v4086 = vld [vmem:[#allocation8 + $0x48] sm:$0xff]
    %v4087 = vld [vmem:[#allocation8 + $0x50] sm:$0xff]
    %v4088 = vld [vmem:[#allocation8 + $0x58] sm:$0xff]
    %v4089 = vld [vmem:[#allocation8 + $0x60] sm:$0xff]
    %v4090 = vld [vmem:[#allocation8 + $0x68] sm:$0xff]
    %v4091 = vld [vmem:[#allocation8 + $0x70] sm:$0xff]
    %v4092 = vld [vmem:[#allocation8 + $0x78] sm:$0xff]
    %v4093 = vld [vmem:[#allocation8 + $0x80] sm:$0xff]
    %v4094 = vld [vmem:[#allocation8 + $0x88] sm:$0xff]
    %v4095 = vld [vmem:[#allocation8 + $0x90] sm:$0xff]
    %v4096 = vld [vmem:[#allocation8 + $0x98] sm:$0xff]
    %v4097 = vld [vmem:[#allocation8 + $0xa0] sm:$0xff]
    %v4098 = vld [vmem:[#allocation8 + $0xa8] sm:$0xff]
    %v4099 = vld [vmem:[#allocation8 + $0xb0] sm:$0xff]
    %v4100 = vld [vmem:[#allocation8 + $0xb8] sm:$0xff]
    %v4101 = vld [vmem:[#allocation8 + $0xc0] sm:$0xff]
    %v4102 = vld [vmem:[#allocation8 + $0xc8] sm:$0xff]
    %v4103 = vld [vmem:[#allocation8 + $0xd0] sm:$0xff]
    %v4104 = vld [vmem:[#allocation8 + $0xd8] sm:$0xff]
    %v4105 = vld [vmem:[#allocation8 + $0xe0] sm:$0xff]
    %v4106 = vld [vmem:[#allocation8 + $0xe8] sm:$0xff]
    %v4107 = vld [vmem:[#allocation8 + $0xf0] sm:$0xff]
    %v4108 = vld [vmem:[#allocation8 + $0xf8] sm:$0xff]
    %4109 = vmatprep.subr.mxu0 %v4078
    %4110 = vmatpush1.msra.mxu0 %v4077
    %4111 = vmatprep.subr.mxu0 %v4080
    %4112 = vmatpush1.msra.mxu0 %v4079
    %4113 = vmatprep.subr.mxu0 %v4082
    %4114 = vmatpush1.msra.mxu0 %v4081
    %4115 = vmatprep.subr.mxu0 %v4084
    %4116 = vmatpush1.msra.mxu0 %v4083
    %4117 = vmatprep.subr.mxu0 %v4086
    %4118 = vmatpush1.msra.mxu0 %v4085
    %4119 = vmatprep.subr.mxu0 %v4088
    %4120 = vmatpush1.msra.mxu0 %v4087
    %4121 = vmatprep.subr.mxu0 %v4090
    %4122 = vmatpush1.msra.mxu0 %v4089
    %4123 = vmatprep.subr.mxu0 %v4092
    %4124 = vmatpush1.msra.mxu0 %v4091
    %4125 = vmatprep.subr.mxu0 %v4094
    %4126 = vmatpush1.msra.mxu0 %v4093
    %4127 = vmatprep.subr.mxu0 %v4096
    %4128 = vmatpush1.msra.mxu0 %v4095
    %4129 = vmatprep.subr.mxu0 %v4098
    %4130 = vmatpush1.msra.mxu0 %v4097
    %4131 = vmatprep.subr.mxu0 %v4100
    %4132 = vmatpush1.msra.mxu0 %v4099
    %4133 = vmatprep.subr.mxu0 %v4102
    %4134 = vmatpush1.msra.mxu0 %v4101
    %4135 = vmatprep.subr.mxu0 %v4104
    %4136 = vmatpush1.msra.mxu0 %v4103
    %4137 = vmatprep.subr.mxu0 %v4106
    %4138 = vmatpush1.msra.mxu0 %v4105
    %4139 = vmatprep.subr.mxu0 %v4108
    %4140 = vmatpush1.msra.mxu0 %v4107
    %4141 = vmatprep.subr.mxu0 0.0
    %4142 = vmatpush1.msra.mxu0 0.0
    %4143 = vmatprep.subr.mxu0 0.0
    %4144 = vmatpush1.msra.mxu0 0.0
    %4145 = vmatprep.subr.mxu0 0.0
    %4146 = vmatpush1.msra.mxu0 0.0
    %4147 = vmatprep.subr.mxu0 0.0
    %4148 = vmatpush1.msra.mxu0 0.0
    %4149 = vmatprep.subr.mxu0 0.0
    %4150 = vmatpush1.msra.mxu0 0.0
    %4151 = vmatprep.subr.mxu0 0.0
    %4152 = vmatpush1.msra.mxu0 0.0
    %4153 = vmatprep.subr.mxu0 0.0
    %4154 = vmatpush1.msra.mxu0 0.0
    %4155 = vmatprep.subr.mxu0 0.0
    %4156 = vmatpush1.msra.mxu0 0.0
    %4157 = vmatprep.subr.mxu0 0.0
    %4158 = vmatpush1.msra.mxu0 0.0
    %4159 = vmatprep.subr.mxu0 0.0
    %4160 = vmatpush1.msra.mxu0 0.0
    %4161 = vmatprep.subr.mxu0 0.0
    %4162 = vmatpush1.msra.mxu0 0.0
    %4163 = vmatprep.subr.mxu0 0.0
    %4164 = vmatpush1.msra.mxu0 0.0
    %4165 = vmatprep.subr.mxu0 0.0
    %4166 = vmatpush1.msra.mxu0 0.0
    %4167 = vmatprep.subr.mxu0 0.0
    %4168 = vmatpush1.msra.mxu0 0.0
    %4169 = vmatprep.subr.mxu0 0.0
    %4170 = vmatpush1.msra.mxu0 0.0
    %4171 = vmatprep.subr.mxu0 0.0
    %4172 = vmatpush1.msra.mxu0 0.0
    %4173 = vmatprep.mubr.f32.mxu0 0.0
    %4174 = vmatmul.mubr.f32.gmra.mrb[0].mxu0 %v4076
    %v4175 = vpop.f32.mrb[0].mxu0
    %v4176 = vadd.f32 0.0, %v4175
    %v4177 = vpop.f32.mrb[0].mxu0
    %v4178 = vadd.f32 0.0, %v4177
    %4179 = vdwg.mxu0
    %v4180 = vadd.f32 %v4178, %v688
    %s4181 = scalar_lea.vmem [#allocation10], 120
    %4182 = vst [vmem:[%s4181] sm:$0xff] %v4180
    %4183 = vmax.xlane.f32.xlu0 %v4180
    %v4184 = vpop.xlane.xlu0 %4183
    %vm4185 = vcmp.eq.f32.partialorder %v4180, %v4184
    %v4186 = vsel %vm4185, %v691, 128
    %v4187 = vand.u32 %v4186, 65535
    %v4188 = vshra.s32 %v4186, 16
    %v4189 = vcvt.s32.f32 %v4187
    %v4190 = vcvt.s32.f32 %v4188
    %4191 = vmin.xlane.f32.xlu0 %v4190
    %v4192 = vpop.xlane.xlu0 %4191
    %vm4193 = vcmp.eq.f32.partialorder %v4190, %v4192
    %v4194 = vsel %vm4193, %v4189, inf
    %4195 = vmin.xlane.f32.xlu0 %v4194
    %v4196 = vpop.xlane.xlu0 %4195
    %v4197 = vcvt.f32.s32 %v4196
    %v4198 = vcvt.f32.s32 %v4192
    %v4199 = vshll.u32 %v4198, 16
    %v4200 = vadd.s32 %v4199, %v4197
    %vm4201 = vcmp.eq.s32.totalorder %v691, %v4200
    %v4202 = vsel %vm4201, 1, 0
    %v4203 = vcvt.s32.f32 %v4202
    %v4204 = vld [vmem:[#allocation7] sm:$0xff]
    %v4205 = vld [vmem:[#allocation7 + $0x8] sm:$0xff]
    %v4206 = vld [vmem:[#allocation7 + $0x10] sm:$0xff]
    %v4207 = vld [vmem:[#allocation7 + $0x18] sm:$0xff]
    %v4208 = vld [vmem:[#allocation7 + $0x20] sm:$0xff]
    %v4209 = vld [vmem:[#allocation7 + $0x28] sm:$0xff]
    %v4210 = vld [vmem:[#allocation7 + $0x30] sm:$0xff]
    %v4211 = vld [vmem:[#allocation7 + $0x38] sm:$0xff]
    %v4212 = vld [vmem:[#allocation7 + $0x40] sm:$0xff]
    %v4213 = vld [vmem:[#allocation7 + $0x48] sm:$0xff]
    %v4214 = vld [vmem:[#allocation7 + $0x50] sm:$0xff]
    %v4215 = vld [vmem:[#allocation7 + $0x58] sm:$0xff]
    %v4216 = vld [vmem:[#allocation7 + $0x60] sm:$0xff]
    %v4217 = vld [vmem:[#allocation7 + $0x68] sm:$0xff]
    %v4218 = vld [vmem:[#allocation7 + $0x70] sm:$0xff]
    %v4219 = vld [vmem:[#allocation7 + $0x78] sm:$0xff]
    %4220 = vmatprep.subr.mxu0 0.0
    %4221 = vmatpush1.msra.mxu0 %v4204
    %4222 = vmatprep.subr.mxu0 0.0
    %4223 = vmatpush1.msra.mxu0 %v4205
    %4224 = vmatprep.subr.mxu0 0.0
    %4225 = vmatpush1.msra.mxu0 %v4206
    %4226 = vmatprep.subr.mxu0 0.0
    %4227 = vmatpush1.msra.mxu0 %v4207
    %4228 = vmatprep.subr.mxu0 0.0
    %4229 = vmatpush1.msra.mxu0 %v4208
    %4230 = vmatprep.subr.mxu0 0.0
    %4231 = vmatpush1.msra.mxu0 %v4209
    %4232 = vmatprep.subr.mxu0 0.0
    %4233 = vmatpush1.msra.mxu0 %v4210
    %4234 = vmatprep.subr.mxu0 0.0
    %4235 = vmatpush1.msra.mxu0 %v4211
    %4236 = vmatprep.subr.mxu0 0.0
    %4237 = vmatpush1.msra.mxu0 %v4212
    %4238 = vmatprep.subr.mxu0 0.0
    %4239 = vmatpush1.msra.mxu0 %v4213
    %4240 = vmatprep.subr.mxu0 0.0
    %4241 = vmatpush1.msra.mxu0 %v4214
    %4242 = vmatprep.subr.mxu0 0.0
    %4243 = vmatpush1.msra.mxu0 %v4215
    %4244 = vmatprep.subr.mxu0 0.0
    %4245 = vmatpush1.msra.mxu0 %v4216
    %4246 = vmatprep.subr.mxu0 0.0
    %4247 = vmatpush1.msra.mxu0 %v4217
    %4248 = vmatprep.subr.mxu0 0.0
    %4249 = vmatpush1.msra.mxu0 %v4218
    %4250 = vmatprep.subr.mxu0 0.0
    %4251 = vmatpush1.msra.mxu0 %v4219
    %4252 = vmatprep.subr.mxu0 0.0
    %4253 = vmatpush1.msra.mxu0 0.0
    %4254 = vmatprep.subr.mxu0 0.0
    %4255 = vmatpush1.msra.mxu0 0.0
    %4256 = vmatprep.subr.mxu0 0.0
    %4257 = vmatpush1.msra.mxu0 0.0
    %4258 = vmatprep.subr.mxu0 0.0
    %4259 = vmatpush1.msra.mxu0 0.0
    %4260 = vmatprep.subr.mxu0 0.0
    %4261 = vmatpush1.msra.mxu0 0.0
    %4262 = vmatprep.subr.mxu0 0.0
    %4263 = vmatpush1.msra.mxu0 0.0
    %4264 = vmatprep.subr.mxu0 0.0
    %4265 = vmatpush1.msra.mxu0 0.0
    %4266 = vmatprep.subr.mxu0 0.0
    %4267 = vmatpush1.msra.mxu0 0.0
    %4268 = vmatprep.subr.mxu0 0.0
    %4269 = vmatpush1.msra.mxu0 0.0
    %4270 = vmatprep.subr.mxu0 0.0
    %4271 = vmatpush1.msra.mxu0 0.0
    %4272 = vmatprep.subr.mxu0 0.0
    %4273 = vmatpush1.msra.mxu0 0.0
    %4274 = vmatprep.subr.mxu0 0.0
    %4275 = vmatpush1.msra.mxu0 0.0
    %4276 = vmatprep.subr.mxu0 0.0
    %4277 = vmatpush1.msra.mxu0 0.0
    %4278 = vmatprep.subr.mxu0 0.0
    %4279 = vmatpush1.msra.mxu0 0.0
    %4280 = vmatprep.subr.mxu0 0.0
    %4281 = vmatpush1.msra.mxu0 0.0
    %4282 = vmatprep.subr.mxu0 0.0
    %4283 = vmatpush1.msra.mxu0 0.0
    %4284 = vmatprep.mubr.f32.mxu0 0.0
    %4285 = vmatmul.mubr.f32.gmra.mrb[0].mxu0 %v4203
    %v4286 = vpop.f32.mrb[0].mxu0
    %v4287 = vadd.f32 %v4176, %v4286
    %v4288 = vpop.f32.mrb[0].mxu0
    %4289 = vdwg.mxu0
    %v4290 = vtanh.pop %v4287
    %v4291 = vld [vmem:[#allocation8] sm:$0xff]
    %v4292 = vld [vmem:[#allocation8 + $0x8] sm:$0xff]
    %v4293 = vld [vmem:[#allocation8 + $0x10] sm:$0xff]
    %v4294 = vld [vmem:[#allocation8 + $0x18] sm:$0xff]
    %v4295 = vld [vmem:[#allocation8 + $0x20] sm:$0xff]
    %v4296 = vld [vmem:[#allocation8 + $0x28] sm:$0xff]
    %v4297 = vld [vmem:[#allocation8 + $0x30] sm:$0xff]
    %v4298 = vld [vmem:[#allocation8 + $0x38] sm:$0xff]
    %v4299 = vld [vmem:[#allocation8 + $0x40] sm:$0xff]
    %v4300 = vld [vmem:[#allocation8 + $0x48] sm:$0xff]
    %v4301 = vld [vmem:[#allocation8 + $0x50] sm:$0xff]
    %v4302 = vld [vmem:[#allocation8 + $0x58] sm:$0xff]
    %v4303 = vld [vmem:[#allocation8 + $0x60] sm:$0xff]
    %v4304 = vld [vmem:[#allocation8 + $0x68] sm:$0xff]
    %v4305 = vld [vmem:[#allocation8 + $0x70] sm:$0xff]
    %v4306 = vld [vmem:[#allocation8 + $0x78] sm:$0xff]
    %v4307 = vld [vmem:[#allocation8 + $0x80] sm:$0xff]
    %v4308 = vld [vmem:[#allocation8 + $0x88] sm:$0xff]
    %v4309 = vld [vmem:[#allocation8 + $0x90] sm:$0xff]
    %v4310 = vld [vmem:[#allocation8 + $0x98] sm:$0xff]
    %v4311 = vld [vmem:[#allocation8 + $0xa0] sm:$0xff]
    %v4312 = vld [vmem:[#allocation8 + $0xa8] sm:$0xff]
    %v4313 = vld [vmem:[#allocation8 + $0xb0] sm:$0xff]
    %v4314 = vld [vmem:[#allocation8 + $0xb8] sm:$0xff]
    %v4315 = vld [vmem:[#allocation8 + $0xc0] sm:$0xff]
    %v4316 = vld [vmem:[#allocation8 + $0xc8] sm:$0xff]
    %v4317 = vld [vmem:[#allocation8 + $0xd0] sm:$0xff]
    %v4318 = vld [vmem:[#allocation8 + $0xd8] sm:$0xff]
    %v4319 = vld [vmem:[#allocation8 + $0xe0] sm:$0xff]
    %v4320 = vld [vmem:[#allocation8 + $0xe8] sm:$0xff]
    %v4321 = vld [vmem:[#allocation8 + $0xf0] sm:$0xff]
    %v4322 = vld [vmem:[#allocation8 + $0xf8] sm:$0xff]
    %4323 = vmatprep.subr.mxu0 %v4292
    %4324 = vmatpush1.msra.mxu0 %v4291
    %4325 = vmatprep.subr.mxu0 %v4294
    %4326 = vmatpush1.msra.mxu0 %v4293
    %4327 = vmatprep.subr.mxu0 %v4296
    %4328 = vmatpush1.msra.mxu0 %v4295
    %4329 = vmatprep.subr.mxu0 %v4298
    %4330 = vmatpush1.msra.mxu0 %v4297
    %4331 = vmatprep.subr.mxu0 %v4300
    %4332 = vmatpush1.msra.mxu0 %v4299
    %4333 = vmatprep.subr.mxu0 %v4302
    %4334 = vmatpush1.msra.mxu0 %v4301
    %4335 = vmatprep.subr.mxu0 %v4304
    %4336 = vmatpush1.msra.mxu0 %v4303
    %4337 = vmatprep.subr.mxu0 %v4306
    %4338 = vmatpush1.msra.mxu0 %v4305
    %4339 = vmatprep.subr.mxu0 %v4308
    %4340 = vmatpush1.msra.mxu0 %v4307
    %4341 = vmatprep.subr.mxu0 %v4310
    %4342 = vmatpush1.msra.mxu0 %v4309
    %4343 = vmatprep.subr.mxu0 %v4312
    %4344 = vmatpush1.msra.mxu0 %v4311
    %4345 = vmatprep.subr.mxu0 %v4314
    %4346 = vmatpush1.msra.mxu0 %v4313
    %4347 = vmatprep.subr.mxu0 %v4316
    %4348 = vmatpush1.msra.mxu0 %v4315
    %4349 = vmatprep.subr.mxu0 %v4318
    %4350 = vmatpush1.msra.mxu0 %v4317
    %4351 = vmatprep.subr.mxu0 %v4320
    %4352 = vmatpush1.msra.mxu0 %v4319
    %4353 = vmatprep.subr.mxu0 %v4322
    %4354 = vmatpush1.msra.mxu0 %v4321
    %4355 = vmatprep.subr.mxu0 0.0
    %4356 = vmatpush1.msra.mxu0 0.0
    %4357 = vmatprep.subr.mxu0 0.0
    %4358 = vmatpush1.msra.mxu0 0.0
    %4359 = vmatprep.subr.mxu0 0.0
    %4360 = vmatpush1.msra.mxu0 0.0
    %4361 = vmatprep.subr.mxu0 0.0
    %4362 = vmatpush1.msra.mxu0 0.0
    %4363 = vmatprep.subr.mxu0 0.0
    %4364 = vmatpush1.msra.mxu0 0.0
    %4365 = vmatprep.subr.mxu0 0.0
    %4366 = vmatpush1.msra.mxu0 0.0
    %4367 = vmatprep.subr.mxu0 0.0
    %4368 = vmatpush1.msra.mxu0 0.0
    %4369 = vmatprep.subr.mxu0 0.0
    %4370 = vmatpush1.msra.mxu0 0.0
    %4371 = vmatprep.subr.mxu0 0.0
    %4372 = vmatpush1.msra.mxu0 0.0
    %4373 = vmatprep.subr.mxu0 0.0
    %4374 = vmatpush1.msra.mxu0 0.0
    %4375 = vmatprep.subr.mxu0 0.0
    %4376 = vmatpush1.msra.mxu0 0.0
    %4377 = vmatprep.subr.mxu0 0.0
    %4378 = vmatpush1.msra.mxu0 0.0
    %4379 = vmatprep.subr.mxu0 0.0
    %4380 = vmatpush1.msra.mxu0 0.0
    %4381 = vmatprep.subr.mxu0 0.0
    %4382 = vmatpush1.msra.mxu0 0.0
    %4383 = vmatprep.subr.mxu0 0.0
    %4384 = vmatpush1.msra.mxu0 0.0
    %4385 = vmatprep.subr.mxu0 0.0
    %4386 = vmatpush1.msra.mxu0 0.0
    %4387 = vmatprep.mubr.f32.mxu0 0.0
    %4388 = vmatmul.mubr.f32.gmra.mrb[0].mxu0 %v4290
    %v4389 = vpop.f32.mrb[0].mxu0
    %v4390 = vadd.f32 0.0, %v4389
    %v4391 = vpop.f32.mrb[0].mxu0
    %v4392 = vadd.f32 0.0, %v4391
    %4393 = vdwg.mxu0
    %v4394 = vadd.f32 %v4392, %v688
    %s4395 = scalar_lea.vmem [#allocation10], 128
    %4396 = vst [vmem:[%s4395] sm:$0xff] %v4394
    %4397 = vmax.xlane.f32.xlu0 %v4394
    %v4398 = vpop.xlane.xlu0 %4397
    %vm4399 = vcmp.eq.f32.partialorder %v4394, %v4398
    %v4400 = vsel %vm4399, %v691, 128
    %v4401 = vand.u32 %v4400, 65535
    %v4402 = vshra.s32 %v4400, 16
    %v4403 = vcvt.s32.f32 %v4401
    %v4404 = vcvt.s32.f32 %v4402
    %4405 = vmin.xlane.f32.xlu0 %v4404
    %v4406 = vpop.xlane.xlu0 %4405
    %vm4407 = vcmp.eq.f32.partialorder %v4404, %v4406
    %v4408 = vsel %vm4407, %v4403, inf
    %4409 = vmin.xlane.f32.xlu0 %v4408
    %v4410 = vpop.xlane.xlu0 %4409
    %v4411 = vcvt.f32.s32 %v4410
    %v4412 = vcvt.f32.s32 %v4406
    %v4413 = vshll.u32 %v4412, 16
    %v4414 = vadd.s32 %v4413, %v4411
    %vm4415 = vcmp.eq.s32.totalorder %v691, %v4414
    %v4416 = vsel %vm4415, 1, 0
    %v4417 = vcvt.s32.f32 %v4416
    %v4418 = vld [vmem:[#allocation7] sm:$0xff]
    %v4419 = vld [vmem:[#allocation7 + $0x8] sm:$0xff]
    %v4420 = vld [vmem:[#allocation7 + $0x10] sm:$0xff]
    %v4421 = vld [vmem:[#allocation7 + $0x18] sm:$0xff]
    %v4422 = vld [vmem:[#allocation7 + $0x20] sm:$0xff]
    %v4423 = vld [vmem:[#allocation7 + $0x28] sm:$0xff]
    %v4424 = vld [vmem:[#allocation7 + $0x30] sm:$0xff]
    %v4425 = vld [vmem:[#allocation7 + $0x38] sm:$0xff]
    %v4426 = vld [vmem:[#allocation7 + $0x40] sm:$0xff]
    %v4427 = vld [vmem:[#allocation7 + $0x48] sm:$0xff]
    %v4428 = vld [vmem:[#allocation7 + $0x50] sm:$0xff]
    %v4429 = vld [vmem:[#allocation7 + $0x58] sm:$0xff]
    %v4430 = vld [vmem:[#allocation7 + $0x60] sm:$0xff]
    %v4431 = vld [vmem:[#allocation7 + $0x68] sm:$0xff]
    %v4432 = vld [vmem:[#allocation7 + $0x70] sm:$0xff]
    %v4433 = vld [vmem:[#allocation7 + $0x78] sm:$0xff]
    %4434 = vmatprep.subr.mxu0 0.0
    %4435 = vmatpush1.msra.mxu0 %v4418
    %4436 = vmatprep.subr.mxu0 0.0
    %4437 = vmatpush1.msra.mxu0 %v4419
    %4438 = vmatprep.subr.mxu0 0.0
    %4439 = vmatpush1.msra.mxu0 %v4420
    %4440 = vmatprep.subr.mxu0 0.0
    %4441 = vmatpush1.msra.mxu0 %v4421
    %4442 = vmatprep.subr.mxu0 0.0
    %4443 = vmatpush1.msra.mxu0 %v4422
    %4444 = vmatprep.subr.mxu0 0.0
    %4445 = vmatpush1.msra.mxu0 %v4423
    %4446 = vmatprep.subr.mxu0 0.0
    %4447 = vmatpush1.msra.mxu0 %v4424
    %4448 = vmatprep.subr.mxu0 0.0
    %4449 = vmatpush1.msra.mxu0 %v4425
    %4450 = vmatprep.subr.mxu0 0.0
    %4451 = vmatpush1.msra.mxu0 %v4426
    %4452 = vmatprep.subr.mxu0 0.0
    %4453 = vmatpush1.msra.mxu0 %v4427
    %4454 = vmatprep.subr.mxu0 0.0
    %4455 = vmatpush1.msra.mxu0 %v4428
    %4456 = vmatprep.subr.mxu0 0.0
    %4457 = vmatpush1.msra.mxu0 %v4429
    %4458 = vmatprep.subr.mxu0 0.0
    %4459 = vmatpush1.msra.mxu0 %v4430
    %4460 = vmatprep.subr.mxu0 0.0
    %4461 = vmatpush1.msra.mxu0 %v4431
    %4462 = vmatprep.subr.mxu0 0.0
    %4463 = vmatpush1.msra.mxu0 %v4432
    %4464 = vmatprep.subr.mxu0 0.0
    %4465 = vmatpush1.msra.mxu0 %v4433
    %4466 = vmatprep.subr.mxu0 0.0
    %4467 = vmatpush1.msra.mxu0 0.0
    %4468 = vmatprep.subr.mxu0 0.0
    %4469 = vmatpush1.msra.mxu0 0.0
    %4470 = vmatprep.subr.mxu0 0.0
    %4471 = vmatpush1.msra.mxu0 0.0
    %4472 = vmatprep.subr.mxu0 0.0
    %4473 = vmatpush1.msra.mxu0 0.0
    %4474 = vmatprep.subr.mxu0 0.0
    %4475 = vmatpush1.msra.mxu0 0.0
    %4476 = vmatprep.subr.mxu0 0.0
    %4477 = vmatpush1.msra.mxu0 0.0
    %4478 = vmatprep.subr.mxu0 0.0
    %4479 = vmatpush1.msra.mxu0 0.0
    %4480 = vmatprep.subr.mxu0 0.0
    %4481 = vmatpush1.msra.mxu0 0.0
    %4482 = vmatprep.subr.mxu0 0.0
    %4483 = vmatpush1.msra.mxu0 0.0
    %4484 = vmatprep.subr.mxu0 0.0
    %4485 = vmatpush1.msra.mxu0 0.0
    %4486 = vmatprep.subr.mxu0 0.0
    %4487 = vmatpush1.msra.mxu0 0.0
    %4488 = vmatprep.subr.mxu0 0.0
    %4489 = vmatpush1.msra.mxu0 0.0
    %4490 = vmatprep.subr.mxu0 0.0
    %4491 = vmatpush1.msra.mxu0 0.0
    %4492 = vmatprep.subr.mxu0 0.0
    %4493 = vmatpush1.msra.mxu0 0.0
    %4494 = vmatprep.subr.mxu0 0.0
    %4495 = vmatpush1.msra.mxu0 0.0
    %4496 = vmatprep.subr.mxu0 0.0
    %4497 = vmatpush1.msra.mxu0 0.0
    %4498 = vmatprep.mubr.f32.mxu0 0.0
    %4499 = vmatmul.mubr.f32.gmra.mrb[0].mxu0 %v4417
    %v4500 = vpop.f32.mrb[0].mxu0
    %v4501 = vadd.f32 %v4390, %v4500
    %v4502 = vpop.f32.mrb[0].mxu0
    %4503 = vdwg.mxu0
    %v4504 = vtanh.pop %v4501
    %v4505 = vld [vmem:[#allocation8] sm:$0xff]
    %v4506 = vld [vmem:[#allocation8 + $0x8] sm:$0xff]
    %v4507 = vld [vmem:[#allocation8 + $0x10] sm:$0xff]
    %v4508 = vld [vmem:[#allocation8 + $0x18] sm:$0xff]
    %v4509 = vld [vmem:[#allocation8 + $0x20] sm:$0xff]
    %v4510 = vld [vmem:[#allocation8 + $0x28] sm:$0xff]
    %v4511 = vld [vmem:[#allocation8 + $0x30] sm:$0xff]
    %v4512 = vld [vmem:[#allocation8 + $0x38] sm:$0xff]
    %v4513 = vld [vmem:[#allocation8 + $0x40] sm:$0xff]
    %v4514 = vld [vmem:[#allocation8 + $0x48] sm:$0xff]
    %v4515 = vld [vmem:[#allocation8 + $0x50] sm:$0xff]
    %v4516 = vld [vmem:[#allocation8 + $0x58] sm:$0xff]
    %v4517 = vld [vmem:[#allocation8 + $0x60] sm:$0xff]
    %v4518 = vld [vmem:[#allocation8 + $0x68] sm:$0xff]
    %v4519 = vld [vmem:[#allocation8 + $0x70] sm:$0xff]
    %v4520 = vld [vmem:[#allocation8 + $0x78] sm:$0xff]
    %v4521 = vld [vmem:[#allocation8 + $0x80] sm:$0xff]
    %v4522 = vld [vmem:[#allocation8 + $0x88] sm:$0xff]
    %v4523 = vld [vmem:[#allocation8 + $0x90] sm:$0xff]
    %v4524 = vld [vmem:[#allocation8 + $0x98] sm:$0xff]
    %v4525 = vld [vmem:[#allocation8 + $0xa0] sm:$0xff]
    %v4526 = vld [vmem:[#allocation8 + $0xa8] sm:$0xff]
    %v4527 = vld [vmem:[#allocation8 + $0xb0] sm:$0xff]
    %v4528 = vld [vmem:[#allocation8 + $0xb8] sm:$0xff]
    %v4529 = vld [vmem:[#allocation8 + $0xc0] sm:$0xff]
    %v4530 = vld [vmem:[#allocation8 + $0xc8] sm:$0xff]
    %v4531 = vld [vmem:[#allocation8 + $0xd0] sm:$0xff]
    %v4532 = vld [vmem:[#allocation8 + $0xd8] sm:$0xff]
    %v4533 = vld [vmem:[#allocation8 + $0xe0] sm:$0xff]
    %v4534 = vld [vmem:[#allocation8 + $0xe8] sm:$0xff]
    %v4535 = vld [vmem:[#allocation8 + $0xf0] sm:$0xff]
    %v4536 = vld [vmem:[#allocation8 + $0xf8] sm:$0xff]
    %4537 = vmatprep.subr.mxu0 %v4506
    %4538 = vmatpush1.msra.mxu0 %v4505
    %4539 = vmatprep.subr.mxu0 %v4508
    %4540 = vmatpush1.msra.mxu0 %v4507
    %4541 = vmatprep.subr.mxu0 %v4510
    %4542 = vmatpush1.msra.mxu0 %v4509
    %4543 = vmatprep.subr.mxu0 %v4512
    %4544 = vmatpush1.msra.mxu0 %v4511
    %4545 = vmatprep.subr.mxu0 %v4514
    %4546 = vmatpush1.msra.mxu0 %v4513
    %4547 = vmatprep.subr.mxu0 %v4516
    %4548 = vmatpush1.msra.mxu0 %v4515
    %4549 = vmatprep.subr.mxu0 %v4518
    %4550 = vmatpush1.msra.mxu0 %v4517
    %4551 = vmatprep.subr.mxu0 %v4520
    %4552 = vmatpush1.msra.mxu0 %v4519
    %4553 = vmatprep.subr.mxu0 %v4522
    %4554 = vmatpush1.msra.mxu0 %v4521
    %4555 = vmatprep.subr.mxu0 %v4524
    %4556 = vmatpush1.msra.mxu0 %v4523
    %4557 = vmatprep.subr.mxu0 %v4526
    %4558 = vmatpush1.msra.mxu0 %v4525
    %4559 = vmatprep.subr.mxu0 %v4528
    %4560 = vmatpush1.msra.mxu0 %v4527
    %4561 = vmatprep.subr.mxu0 %v4530
    %4562 = vmatpush1.msra.mxu0 %v4529
    %4563 = vmatprep.subr.mxu0 %v4532
    %4564 = vmatpush1.msra.mxu0 %v4531
    %4565 = vmatprep.subr.mxu0 %v4534
    %4566 = vmatpush1.msra.mxu0 %v4533
    %4567 = vmatprep.subr.mxu0 %v4536
    %4568 = vmatpush1.msra.mxu0 %v4535
    %4569 = vmatprep.subr.mxu0 0.0
    %4570 = vmatpush1.msra.mxu0 0.0
    %4571 = vmatprep.subr.mxu0 0.0
    %4572 = vmatpush1.msra.mxu0 0.0
    %4573 = vmatprep.subr.mxu0 0.0
    %4574 = vmatpush1.msra.mxu0 0.0
    %4575 = vmatprep.subr.mxu0 0.0
    %4576 = vmatpush1.msra.mxu0 0.0
    %4577 = vmatprep.subr.mxu0 0.0
    %4578 = vmatpush1.msra.mxu0 0.0
    %4579 = vmatprep.subr.mxu0 0.0
    %4580 = vmatpush1.msra.mxu0 0.0
    %4581 = vmatprep.subr.mxu0 0.0
    %4582 = vmatpush1.msra.mxu0 0.0
    %4583 = vmatprep.subr.mxu0 0.0
    %4584 = vmatpush1.msra.mxu0 0.0
    %4585 = vmatprep.subr.mxu0 0.0
    %4586 = vmatpush1.msra.mxu0 0.0
    %4587 = vmatprep.subr.mxu0 0.0
    %4588 = vmatpush1.msra.mxu0 0.0
    %4589 = vmatprep.subr.mxu0 0.0
    %4590 = vmatpush1.msra.mxu0 0.0
    %4591 = vmatprep.subr.mxu0 0.0
    %4592 = vmatpush1.msra.mxu0 0.0
    %4593 = vmatprep.subr.mxu0 0.0
    %4594 = vmatpush1.msra.mxu0 0.0
    %4595 = vmatprep.subr.mxu0 0.0
    %4596 = vmatpush1.msra.mxu0 0.0
    %4597 = vmatprep.subr.mxu0 0.0
    %4598 = vmatpush1.msra.mxu0 0.0
    %4599 = vmatprep.subr.mxu0 0.0
    %4600 = vmatpush1.msra.mxu0 0.0
    %4601 = vmatprep.mubr.f32.mxu0 0.0
    %4602 = vmatmul.mubr.f32.gmra.mrb[0].mxu0 %v4504
    %v4603 = vpop.f32.mrb[0].mxu0
    %v4604 = vadd.f32 0.0, %v4603
    %v4605 = vpop.f32.mrb[0].mxu0
    %v4606 = vadd.f32 0.0, %v4605
    %4607 = vdwg.mxu0
    %v4608 = vadd.f32 %v4606, %v688
    %s4609 = scalar_lea.vmem [#allocation10], 136
    %4610 = vst [vmem:[%s4609] sm:$0xff] %v4608
    %4611 = vmax.xlane.f32.xlu0 %v4608
    %v4612 = vpop.xlane.xlu0 %4611
    %vm4613 = vcmp.eq.f32.partialorder %v4608, %v4612
    %v4614 = vsel %vm4613, %v691, 128
    %v4615 = vand.u32 %v4614, 65535
    %v4616 = vshra.s32 %v4614, 16
    %v4617 = vcvt.s32.f32 %v4615
    %v4618 = vcvt.s32.f32 %v4616
    %4619 = vmin.xlane.f32.xlu0 %v4618
    %v4620 = vpop.xlane.xlu0 %4619
    %vm4621 = vcmp.eq.f32.partialorder %v4618, %v4620
    %v4622 = vsel %vm4621, %v4617, inf
    %4623 = vmin.xlane.f32.xlu0 %v4622
    %v4624 = vpop.xlane.xlu0 %4623
    %v4625 = vcvt.f32.s32 %v4624
    %v4626 = vcvt.f32.s32 %v4620
    %v4627 = vshll.u32 %v4626, 16
    %v4628 = vadd.s32 %v4627, %v4625
    %vm4629 = vcmp.eq.s32.totalorder %v691, %v4628
    %v4630 = vsel %vm4629, 1, 0
    %v4631 = vcvt.s32.f32 %v4630
    %v4632 = vld [vmem:[#allocation7] sm:$0xff]
    %v4633 = vld [vmem:[#allocation7 + $0x8] sm:$0xff]
    %v4634 = vld [vmem:[#allocation7 + $0x10] sm:$0xff]
    %v4635 = vld [vmem:[#allocation7 + $0x18] sm:$0xff]
    %v4636 = vld [vmem:[#allocation7 + $0x20] sm:$0xff]
    %v4637 = vld [vmem:[#allocation7 + $0x28] sm:$0xff]
    %v4638 = vld [vmem:[#allocation7 + $0x30] sm:$0xff]
    %v4639 = vld [vmem:[#allocation7 + $0x38] sm:$0xff]
    %v4640 = vld [vmem:[#allocation7 + $0x40] sm:$0xff]
    %v4641 = vld [vmem:[#allocation7 + $0x48] sm:$0xff]
    %v4642 = vld [vmem:[#allocation7 + $0x50] sm:$0xff]
    %v4643 = vld [vmem:[#allocation7 + $0x58] sm:$0xff]
    %v4644 = vld [vmem:[#allocation7 + $0x60] sm:$0xff]
    %v4645 = vld [vmem:[#allocation7 + $0x68] sm:$0xff]
    %v4646 = vld [vmem:[#allocation7 + $0x70] sm:$0xff]
    %v4647 = vld [vmem:[#allocation7 + $0x78] sm:$0xff]
    %4648 = vmatprep.subr.mxu0 0.0
    %4649 = vmatpush1.msra.mxu0 %v4632
    %4650 = vmatprep.subr.mxu0 0.0
    %4651 = vmatpush1.msra.mxu0 %v4633
    %4652 = vmatprep.subr.mxu0 0.0
    %4653 = vmatpush1.msra.mxu0 %v4634
    %4654 = vmatprep.subr.mxu0 0.0
    %4655 = vmatpush1.msra.mxu0 %v4635
    %4656 = vmatprep.subr.mxu0 0.0
    %4657 = vmatpush1.msra.mxu0 %v4636
    %4658 = vmatprep.subr.mxu0 0.0
    %4659 = vmatpush1.msra.mxu0 %v4637
    %4660 = vmatprep.subr.mxu0 0.0
    %4661 = vmatpush1.msra.mxu0 %v4638
    %4662 = vmatprep.subr.mxu0 0.0
    %4663 = vmatpush1.msra.mxu0 %v4639
    %4664 = vmatprep.subr.mxu0 0.0
    %4665 = vmatpush1.msra.mxu0 %v4640
    %4666 = vmatprep.subr.mxu0 0.0
    %4667 = vmatpush1.msra.mxu0 %v4641
    %4668 = vmatprep.subr.mxu0 0.0
    %4669 = vmatpush1.msra.mxu0 %v4642
    %4670 = vmatprep.subr.mxu0 0.0
    %4671 = vmatpush1.msra.mxu0 %v4643
    %4672 = vmatprep.subr.mxu0 0.0
    %4673 = vmatpush1.msra.mxu0 %v4644
    %4674 = vmatprep.subr.mxu0 0.0
    %4675 = vmatpush1.msra.mxu0 %v4645
    %4676 = vmatprep.subr.mxu0 0.0
    %4677 = vmatpush1.msra.mxu0 %v4646
    %4678 = vmatprep.subr.mxu0 0.0
    %4679 = vmatpush1.msra.mxu0 %v4647
    %4680 = vmatprep.subr.mxu0 0.0
    %4681 = vmatpush1.msra.mxu0 0.0
    %4682 = vmatprep.subr.mxu0 0.0
    %4683 = vmatpush1.msra.mxu0 0.0
    %4684 = vmatprep.subr.mxu0 0.0
    %4685 = vmatpush1.msra.mxu0 0.0
    %4686 = vmatprep.subr.mxu0 0.0
    %4687 = vmatpush1.msra.mxu0 0.0
    %4688 = vmatprep.subr.mxu0 0.0
    %4689 = vmatpush1.msra.mxu0 0.0
    %4690 = vmatprep.subr.mxu0 0.0
    %4691 = vmatpush1.msra.mxu0 0.0
    %4692 = vmatprep.subr.mxu0 0.0
    %4693 = vmatpush1.msra.mxu0 0.0
    %4694 = vmatprep.subr.mxu0 0.0
    %4695 = vmatpush1.msra.mxu0 0.0
    %4696 = vmatprep.subr.mxu0 0.0
    %4697 = vmatpush1.msra.mxu0 0.0
    %4698 = vmatprep.subr.mxu0 0.0
    %4699 = vmatpush1.msra.mxu0 0.0
    %4700 = vmatprep.subr.mxu0 0.0
    %4701 = vmatpush1.msra.mxu0 0.0
    %4702 = vmatprep.subr.mxu0 0.0
    %4703 = vmatpush1.msra.mxu0 0.0
    %4704 = vmatprep.subr.mxu0 0.0
    %4705 = vmatpush1.msra.mxu0 0.0
    %4706 = vmatprep.subr.mxu0 0.0
    %4707 = vmatpush1.msra.mxu0 0.0
    %4708 = vmatprep.subr.mxu0 0.0
    %4709 = vmatpush1.msra.mxu0 0.0
    %4710 = vmatprep.subr.mxu0 0.0
    %4711 = vmatpush1.msra.mxu0 0.0
    %4712 = vmatprep.mubr.f32.mxu0 0.0
    %4713 = vmatmul.mubr.f32.gmra.mrb[0].mxu0 %v4631
    %v4714 = vpop.f32.mrb[0].mxu0
    %v4715 = vadd.f32 %v4604, %v4714
    %v4716 = vpop.f32.mrb[0].mxu0
    %4717 = vdwg.mxu0
    %v4718 = vtanh.pop %v4715
    %v4719 = vld [vmem:[#allocation8] sm:$0xff]
    %v4720 = vld [vmem:[#allocation8 + $0x8] sm:$0xff]
    %v4721 = vld [vmem:[#allocation8 + $0x10] sm:$0xff]
    %v4722 = vld [vmem:[#allocation8 + $0x18] sm:$0xff]
    %v4723 = vld [vmem:[#allocation8 + $0x20] sm:$0xff]
    %v4724 = vld [vmem:[#allocation8 + $0x28] sm:$0xff]
    %v4725 = vld [vmem:[#allocation8 + $0x30] sm:$0xff]
    %v4726 = vld [vmem:[#allocation8 + $0x38] sm:$0xff]
    %v4727 = vld [vmem:[#allocation8 + $0x40] sm:$0xff]
    %v4728 = vld [vmem:[#allocation8 + $0x48] sm:$0xff]
    %v4729 = vld [vmem:[#allocation8 + $0x50] sm:$0xff]
    %v4730 = vld [vmem:[#allocation8 + $0x58] sm:$0xff]
    %v4731 = vld [vmem:[#allocation8 + $0x60] sm:$0xff]
    %v4732 = vld [vmem:[#allocation8 + $0x68] sm:$0xff]
    %v4733 = vld [vmem:[#allocation8 + $0x70] sm:$0xff]
    %v4734 = vld [vmem:[#allocation8 + $0x78] sm:$0xff]
    %v4735 = vld [vmem:[#allocation8 + $0x80] sm:$0xff]
    %v4736 = vld [vmem:[#allocation8 + $0x88] sm:$0xff]
    %v4737 = vld [vmem:[#allocation8 + $0x90] sm:$0xff]
    %v4738 = vld [vmem:[#allocation8 + $0x98] sm:$0xff]
    %v4739 = vld [vmem:[#allocation8 + $0xa0] sm:$0xff]
    %v4740 = vld [vmem:[#allocation8 + $0xa8] sm:$0xff]
    %v4741 = vld [vmem:[#allocation8 + $0xb0] sm:$0xff]
    %v4742 = vld [vmem:[#allocation8 + $0xb8] sm:$0xff]
    %v4743 = vld [vmem:[#allocation8 + $0xc0] sm:$0xff]
    %v4744 = vld [vmem:[#allocation8 + $0xc8] sm:$0xff]
    %v4745 = vld [vmem:[#allocation8 + $0xd0] sm:$0xff]
    %v4746 = vld [vmem:[#allocation8 + $0xd8] sm:$0xff]
    %v4747 = vld [vmem:[#allocation8 + $0xe0] sm:$0xff]
    %v4748 = vld [vmem:[#allocation8 + $0xe8] sm:$0xff]
    %v4749 = vld [vmem:[#allocation8 + $0xf0] sm:$0xff]
    %v4750 = vld [vmem:[#allocation8 + $0xf8] sm:$0xff]
    %4751 = vmatprep.subr.mxu0 %v4720
    %4752 = vmatpush1.msra.mxu0 %v4719
    %4753 = vmatprep.subr.mxu0 %v4722
    %4754 = vmatpush1.msra.mxu0 %v4721
    %4755 = vmatprep.subr.mxu0 %v4724
    %4756 = vmatpush1.msra.mxu0 %v4723
    %4757 = vmatprep.subr.mxu0 %v4726
    %4758 = vmatpush1.msra.mxu0 %v4725
    %4759 = vmatprep.subr.mxu0 %v4728
    %4760 = vmatpush1.msra.mxu0 %v4727
    %4761 = vmatprep.subr.mxu0 %v4730
    %4762 = vmatpush1.msra.mxu0 %v4729
    %4763 = vmatprep.subr.mxu0 %v4732
    %4764 = vmatpush1.msra.mxu0 %v4731
    %4765 = vmatprep.subr.mxu0 %v4734
    %4766 = vmatpush1.msra.mxu0 %v4733
    %4767 = vmatprep.subr.mxu0 %v4736
    %4768 = vmatpush1.msra.mxu0 %v4735
    %4769 = vmatprep.subr.mxu0 %v4738
    %4770 = vmatpush1.msra.mxu0 %v4737
    %4771 = vmatprep.subr.mxu0 %v4740
    %4772 = vmatpush1.msra.mxu0 %v4739
    %4773 = vmatprep.subr.mxu0 %v4742
    %4774 = vmatpush1.msra.mxu0 %v4741
    %4775 = vmatprep.subr.mxu0 %v4744
    %4776 = vmatpush1.msra.mxu0 %v4743
    %4777 = vmatprep.subr.mxu0 %v4746
    %4778 = vmatpush1.msra.mxu0 %v4745
    %4779 = vmatprep.subr.mxu0 %v4748
    %4780 = vmatpush1.msra.mxu0 %v4747
    %4781 = vmatprep.subr.mxu0 %v4750
    %4782 = vmatpush1.msra.mxu0 %v4749
    %4783 = vmatprep.subr.mxu0 0.0
    %4784 = vmatpush1.msra.mxu0 0.0
    %4785 = vmatprep.subr.mxu0 0.0
    %4786 = vmatpush1.msra.mxu0 0.0
    %4787 = vmatprep.subr.mxu0 0.0
    %4788 = vmatpush1.msra.mxu0 0.0
    %4789 = vmatprep.subr.mxu0 0.0
    %4790 = vmatpush1.msra.mxu0 0.0
    %4791 = vmatprep.subr.mxu0 0.0
    %4792 = vmatpush1.msra.mxu0 0.0
    %4793 = vmatprep.subr.mxu0 0.0
    %4794 = vmatpush1.msra.mxu0 0.0
    %4795 = vmatprep.subr.mxu0 0.0
    %4796 = vmatpush1.msra.mxu0 0.0
    %4797 = vmatprep.subr.mxu0 0.0
    %4798 = vmatpush1.msra.mxu0 0.0
    %4799 = vmatprep.subr.mxu0 0.0
    %4800 = vmatpush1.msra.mxu0 0.0
    %4801 = vmatprep.subr.mxu0 0.0
    %4802 = vmatpush1.msra.mxu0 0.0
    %4803 = vmatprep.subr.mxu0 0.0
    %4804 = vmatpush1.msra.mxu0 0.0
    %4805 = vmatprep.subr.mxu0 0.0
    %4806 = vmatpush1.msra.mxu0 0.0
    %4807 = vmatprep.subr.mxu0 0.0
    %4808 = vmatpush1.msra.mxu0 0.0
    %4809 = vmatprep.subr.mxu0 0.0
    %4810 = vmatpush1.msra.mxu0 0.0
    %4811 = vmatprep.subr.mxu0 0.0
    %4812 = vmatpush1.msra.mxu0 0.0
    %4813 = vmatprep.subr.mxu0 0.0
    %4814 = vmatpush1.msra.mxu0 0.0
    %4815 = vmatprep.mubr.f32.mxu0 0.0
    %4816 = vmatmul.mubr.f32.gmra.mrb[0].mxu0 %v4718
    %v4817 = vpop.f32.mrb[0].mxu0
    %v4818 = vadd.f32 0.0, %v4817
    %v4819 = vpop.f32.mrb[0].mxu0
    %v4820 = vadd.f32 0.0, %v4819
    %4821 = vdwg.mxu0
    %v4822 = vadd.f32 %v4820, %v688
    %s4823 = scalar_lea.vmem [#allocation10], 144
    %4824 = vst [vmem:[%s4823] sm:$0xff] %v4822
    %4825 = vmax.xlane.f32.xlu0 %v4822
    %v4826 = vpop.xlane.xlu0 %4825
    %vm4827 = vcmp.eq.f32.partialorder %v4822, %v4826
    %v4828 = vsel %vm4827, %v691, 128
    %v4829 = vand.u32 %v4828, 65535
    %v4830 = vshra.s32 %v4828, 16
    %v4831 = vcvt.s32.f32 %v4829
    %v4832 = vcvt.s32.f32 %v4830
    %4833 = vmin.xlane.f32.xlu0 %v4832
    %v4834 = vpop.xlane.xlu0 %4833
    %vm4835 = vcmp.eq.f32.partialorder %v4832, %v4834
    %v4836 = vsel %vm4835, %v4831, inf
    %4837 = vmin.xlane.f32.xlu0 %v4836
    %v4838 = vpop.xlane.xlu0 %4837
    %v4839 = vcvt.f32.s32 %v4838
    %v4840 = vcvt.f32.s32 %v4834
    %v4841 = vshll.u32 %v4840, 16
    %v4842 = vadd.s32 %v4841, %v4839
    %vm4843 = vcmp.eq.s32.totalorder %v691, %v4842
    %v4844 = vsel %vm4843, 1, 0
    %v4845 = vcvt.s32.f32 %v4844
    %v4846 = vld [vmem:[#allocation7] sm:$0xff]
    %v4847 = vld [vmem:[#allocation7 + $0x8] sm:$0xff]
    %v4848 = vld [vmem:[#allocation7 + $0x10] sm:$0xff]
    %v4849 = vld [vmem:[#allocation7 + $0x18] sm:$0xff]
    %v4850 = vld [vmem:[#allocation7 + $0x20] sm:$0xff]
    %v4851 = vld [vmem:[#allocation7 + $0x28] sm:$0xff]
    %v4852 = vld [vmem:[#allocation7 + $0x30] sm:$0xff]
    %v4853 = vld [vmem:[#allocation7 + $0x38] sm:$0xff]
    %v4854 = vld [vmem:[#allocation7 + $0x40] sm:$0xff]
    %v4855 = vld [vmem:[#allocation7 + $0x48] sm:$0xff]
    %v4856 = vld [vmem:[#allocation7 + $0x50] sm:$0xff]
    %v4857 = vld [vmem:[#allocation7 + $0x58] sm:$0xff]
    %v4858 = vld [vmem:[#allocation7 + $0x60] sm:$0xff]
    %v4859 = vld [vmem:[#allocation7 + $0x68] sm:$0xff]
    %v4860 = vld [vmem:[#allocation7 + $0x70] sm:$0xff]
    %v4861 = vld [vmem:[#allocation7 + $0x78] sm:$0xff]
    %4862 = vmatprep.subr.mxu0 0.0
    %4863 = vmatpush1.msra.mxu0 %v4846
    %4864 = vmatprep.subr.mxu0 0.0
    %4865 = vmatpush1.msra.mxu0 %v4847
    %4866 = vmatprep.subr.mxu0 0.0
    %4867 = vmatpush1.msra.mxu0 %v4848
    %4868 = vmatprep.subr.mxu0 0.0
    %4869 = vmatpush1.msra.mxu0 %v4849
    %4870 = vmatprep.subr.mxu0 0.0
    %4871 = vmatpush1.msra.mxu0 %v4850
    %4872 = vmatprep.subr.mxu0 0.0
    %4873 = vmatpush1.msra.mxu0 %v4851
    %4874 = vmatprep.subr.mxu0 0.0
    %4875 = vmatpush1.msra.mxu0 %v4852
    %4876 = vmatprep.subr.mxu0 0.0
    %4877 = vmatpush1.msra.mxu0 %v4853
    %4878 = vmatprep.subr.mxu0 0.0
    %4879 = vmatpush1.msra.mxu0 %v4854
    %4880 = vmatprep.subr.mxu0 0.0
    %4881 = vmatpush1.msra.mxu0 %v4855
    %4882 = vmatprep.subr.mxu0 0.0
    %4883 = vmatpush1.msra.mxu0 %v4856
    %4884 = vmatprep.subr.mxu0 0.0
    %4885 = vmatpush1.msra.mxu0 %v4857
    %4886 = vmatprep.subr.mxu0 0.0
    %4887 = vmatpush1.msra.mxu0 %v4858
    %4888 = vmatprep.subr.mxu0 0.0
    %4889 = vmatpush1.msra.mxu0 %v4859
    %4890 = vmatprep.subr.mxu0 0.0
    %4891 = vmatpush1.msra.mxu0 %v4860
    %4892 = vmatprep.subr.mxu0 0.0
    %4893 = vmatpush1.msra.mxu0 %v4861
    %4894 = vmatprep.subr.mxu0 0.0
    %4895 = vmatpush1.msra.mxu0 0.0
    %4896 = vmatprep.subr.mxu0 0.0
    %4897 = vmatpush1.msra.mxu0 0.0
    %4898 = vmatprep.subr.mxu0 0.0
    %4899 = vmatpush1.msra.mxu0 0.0
    %4900 = vmatprep.subr.mxu0 0.0
    %4901 = vmatpush1.msra.mxu0 0.0
    %4902 = vmatprep.subr.mxu0 0.0
    %4903 = vmatpush1.msra.mxu0 0.0
    %4904 = vmatprep.subr.mxu0 0.0
    %4905 = vmatpush1.msra.mxu0 0.0
    %4906 = vmatprep.subr.mxu0 0.0
    %4907 = vmatpush1.msra.mxu0 0.0
    %4908 = vmatprep.subr.mxu0 0.0
    %4909 = vmatpush1.msra.mxu0 0.0
    %4910 = vmatprep.subr.mxu0 0.0
    %4911 = vmatpush1.msra.mxu0 0.0
    %4912 = vmatprep.subr.mxu0 0.0
    %4913 = vmatpush1.msra.mxu0 0.0
    %4914 = vmatprep.subr.mxu0 0.0
    %4915 = vmatpush1.msra.mxu0 0.0
    %4916 = vmatprep.subr.mxu0 0.0
    %4917 = vmatpush1.msra.mxu0 0.0
    %4918 = vmatprep.subr.mxu0 0.0
    %4919 = vmatpush1.msra.mxu0 0.0
    %4920 = vmatprep.subr.mxu0 0.0
    %4921 = vmatpush1.msra.mxu0 0.0
    %4922 = vmatprep.subr.mxu0 0.0
    %4923 = vmatpush1.msra.mxu0 0.0
    %4924 = vmatprep.subr.mxu0 0.0
    %4925 = vmatpush1.msra.mxu0 0.0
    %4926 = vmatprep.mubr.f32.mxu0 0.0
    %4927 = vmatmul.mubr.f32.gmra.mrb[0].mxu0 %v4845
    %v4928 = vpop.f32.mrb[0].mxu0
    %v4929 = vadd.f32 %v4818, %v4928
    %v4930 = vpop.f32.mrb[0].mxu0
    %4931 = vdwg.mxu0
    %v4932 = vtanh.pop %v4929
    %v4933 = vld [vmem:[#allocation8] sm:$0xff]
    %v4934 = vld [vmem:[#allocation8 + $0x8] sm:$0xff]
    %v4935 = vld [vmem:[#allocation8 + $0x10] sm:$0xff]
    %v4936 = vld [vmem:[#allocation8 + $0x18] sm:$0xff]
    %v4937 = vld [vmem:[#allocation8 + $0x20] sm:$0xff]
    %v4938 = vld [vmem:[#allocation8 + $0x28] sm:$0xff]
    %v4939 = vld [vmem:[#allocation8 + $0x30] sm:$0xff]
    %v4940 = vld [vmem:[#allocation8 + $0x38] sm:$0xff]
    %v4941 = vld [vmem:[#allocation8 + $0x40] sm:$0xff]
    %v4942 = vld [vmem:[#allocation8 + $0x48] sm:$0xff]
    %v4943 = vld [vmem:[#allocation8 + $0x50] sm:$0xff]
    %v4944 = vld [vmem:[#allocation8 + $0x58] sm:$0xff]
    %v4945 = vld [vmem:[#allocation8 + $0x60] sm:$0xff]
    %v4946 = vld [vmem:[#allocation8 + $0x68] sm:$0xff]
    %v4947 = vld [vmem:[#allocation8 + $0x70] sm:$0xff]
    %v4948 = vld [vmem:[#allocation8 + $0x78] sm:$0xff]
    %v4949 = vld [vmem:[#allocation8 + $0x80] sm:$0xff]
    %v4950 = vld [vmem:[#allocation8 + $0x88] sm:$0xff]
    %v4951 = vld [vmem:[#allocation8 + $0x90] sm:$0xff]
    %v4952 = vld [vmem:[#allocation8 + $0x98] sm:$0xff]
    %v4953 = vld [vmem:[#allocation8 + $0xa0] sm:$0xff]
    %v4954 = vld [vmem:[#allocation8 + $0xa8] sm:$0xff]
    %v4955 = vld [vmem:[#allocation8 + $0xb0] sm:$0xff]
    %v4956 = vld [vmem:[#allocation8 + $0xb8] sm:$0xff]
    %v4957 = vld [vmem:[#allocation8 + $0xc0] sm:$0xff]
    %v4958 = vld [vmem:[#allocation8 + $0xc8] sm:$0xff]
    %v4959 = vld [vmem:[#allocation8 + $0xd0] sm:$0xff]
    %v4960 = vld [vmem:[#allocation8 + $0xd8] sm:$0xff]
    %v4961 = vld [vmem:[#allocation8 + $0xe0] sm:$0xff]
    %v4962 = vld [vmem:[#allocation8 + $0xe8] sm:$0xff]
    %v4963 = vld [vmem:[#allocation8 + $0xf0] sm:$0xff]
    %v4964 = vld [vmem:[#allocation8 + $0xf8] sm:$0xff]
    %4965 = vmatprep.subr.mxu0 %v4934
    %4966 = vmatpush1.msra.mxu0 %v4933
    %4967 = vmatprep.subr.mxu0 %v4936
    %4968 = vmatpush1.msra.mxu0 %v4935
    %4969 = vmatprep.subr.mxu0 %v4938
    %4970 = vmatpush1.msra.mxu0 %v4937
    %4971 = vmatprep.subr.mxu0 %v4940
    %4972 = vmatpush1.msra.mxu0 %v4939
    %4973 = vmatprep.subr.mxu0 %v4942
    %4974 = vmatpush1.msra.mxu0 %v4941
    %4975 = vmatprep.subr.mxu0 %v4944
    %4976 = vmatpush1.msra.mxu0 %v4943
    %4977 = vmatprep.subr.mxu0 %v4946
    %4978 = vmatpush1.msra.mxu0 %v4945
    %4979 = vmatprep.subr.mxu0 %v4948
    %4980 = vmatpush1.msra.mxu0 %v4947
    %4981 = vmatprep.subr.mxu0 %v4950
    %4982 = vmatpush1.msra.mxu0 %v4949
    %4983 = vmatprep.subr.mxu0 %v4952
    %4984 = vmatpush1.msra.mxu0 %v4951
    %4985 = vmatprep.subr.mxu0 %v4954
    %4986 = vmatpush1.msra.mxu0 %v4953
    %4987 = vmatprep.subr.mxu0 %v4956
    %4988 = vmatpush1.msra.mxu0 %v4955
    %4989 = vmatprep.subr.mxu0 %v4958
    %4990 = vmatpush1.msra.mxu0 %v4957
    %4991 = vmatprep.subr.mxu0 %v4960
    %4992 = vmatpush1.msra.mxu0 %v4959
    %4993 = vmatprep.subr.mxu0 %v4962
    %4994 = vmatpush1.msra.mxu0 %v4961
    %4995 = vmatprep.subr.mxu0 %v4964
    %4996 = vmatpush1.msra.mxu0 %v4963
    %4997 = vmatprep.subr.mxu0 0.0
    %4998 = vmatpush1.msra.mxu0 0.0
    %4999 = vmatprep.subr.mxu0 0.0
    %5000 = vmatpush1.msra.mxu0 0.0
    %5001 = vmatprep.subr.mxu0 0.0
    %5002 = vmatpush1.msra.mxu0 0.0
    %5003 = vmatprep.subr.mxu0 0.0
    %5004 = vmatpush1.msra.mxu0 0.0
    %5005 = vmatprep.subr.mxu0 0.0
    %5006 = vmatpush1.msra.mxu0 0.0
    %5007 = vmatprep.subr.mxu0 0.0
    %5008 = vmatpush1.msra.mxu0 0.0
    %5009 = vmatprep.subr.mxu0 0.0
    %5010 = vmatpush1.msra.mxu0 0.0
    %5011 = vmatprep.subr.mxu0 0.0
    %5012 = vmatpush1.msra.mxu0 0.0
    %5013 = vmatprep.subr.mxu0 0.0
    %5014 = vmatpush1.msra.mxu0 0.0
    %5015 = vmatprep.subr.mxu0 0.0
    %5016 = vmatpush1.msra.mxu0 0.0
    %5017 = vmatprep.subr.mxu0 0.0
    %5018 = vmatpush1.msra.mxu0 0.0
    %5019 = vmatprep.subr.mxu0 0.0
    %5020 = vmatpush1.msra.mxu0 0.0
    %5021 = vmatprep.subr.mxu0 0.0
    %5022 = vmatpush1.msra.mxu0 0.0
    %5023 = vmatprep.subr.mxu0 0.0
    %5024 = vmatpush1.msra.mxu0 0.0
    %5025 = vmatprep.subr.mxu0 0.0
    %5026 = vmatpush1.msra.mxu0 0.0
    %5027 = vmatprep.subr.mxu0 0.0
    %5028 = vmatpush1.msra.mxu0 0.0
    %5029 = vmatprep.mubr.f32.mxu0 0.0
    %5030 = vmatmul.mubr.f32.gmra.mrb[0].mxu0 %v4932
    %v5031 = vpop.f32.mrb[0].mxu0
    %v5032 = vpop.f32.mrb[0].mxu0
    %v5033 = vadd.f32 0.0, %v5032
    %5034 = vdwg.mxu0
    %v5035 = vadd.f32 %v5033, %v688
    %s5036 = scalar_lea.vmem [#allocation10], 152
    %5037 = vst [vmem:[%s5036] sm:$0xff] %v5035
    // Predicated region
    $region38: #{tpu_custom_call.1} parent=1 // pred_check
      _
    $region39: #{tpu_custom_call.1} parent=1 // pred_check_branch
      %5039 = sbr.rel (0) target = $region41
    $region40: #{tpu_custom_call.1} parent=1 // pred_region
      %s5041 = ssub.s32 2560, 2560
      %5042 = vsyncadd [#allocation4], %s5041
      %s5043 = sshll.u32 [#allocation10], 4
      %s5044 = int_to_ptr.vmem [resolvable:$true] %s5043
      %5049 = dma.vmem_to_hbm [thread:$0]  %s5044, 2560, %s5, [#allocation4], 128, 128, 8
    $region41: #{tpu_custom_call.1} parent=1 // pred_fallthru
      _
    // Predicated region
    $region42: #{tpu_custom_call.1} parent=1 // pred_check
      _
    $region43: #{tpu_custom_call.1} parent=1 // pred_check_branch
      %5051 = sbr.rel (0) target = $region45
    $region44: #{tpu_custom_call.1} parent=1 // pred_region
      %5052 = dma.done [#allocation4], 2560
    $region45: #{tpu_custom_call.1} parent=1 // pred_fallthru
      _
    %5053 = vsyncpa [#allocation3], 1
    %5054 = vsyncpa [#allocation6], 1
    %5055 = vsyncpa [#allocation9], 1
    %5056 = vsyncpa [#allocation4], 1

</llo_original>
